<compile_context>
chip_gen: v7x
topology: tpu7x:2x2x1
jax: 0.10.0
libtpu: 0.0.40
codegen_flags: <defaults>
</compile_context>

<pallas_src>
import functools

import jax
import jax.numpy as jnp
from jax.experimental import pallas as pl
from jax.experimental.pallas import tpu as pltpu


def _round8(v):
    return ((v + 7) // 8) * 8


def _cpad(c):
    """Round a channel count up to a multiple of 128 (lane-dense stores / MXU N dim)."""
    return ((c + 127) // 128) * 128


def _images_per_step(n):
    """Images folded into the GEMM M dimension per grid step.

    Keep >= 2 parallel grid steps whenever the batch allows (v7x megacore), cap the fold
    so per-step VMEM stays small, and require the fold to divide the batch exactly.
    """
    g = min(max(n // 2, 1), 8)
    while g > 1 and n % g:
        g -= 1
    return g


# ----------------------------------------------------------------------------
# Pallas kernels
# ----------------------------------------------------------------------------
def _l1_kernel(x_ref, w_ref, y_ref):
    """Layer 1: one im2col GEMM (K = 16*Cin) fused with LeakyReLU(0.2).

    x_ref: (1, G*OH*OW, 16*Cin) bf16 im2col rows for a group of G images.
    w_ref: (16*Cin, Cp)         bf16.
    y_ref: (1, G*OH*OW, Cp)     bf16 post-LeakyReLU activations (lane-dense store).
    """
    y = jnp.dot(x_ref[0], w_ref[...], preferred_element_type=jnp.float32)
    y_ref[0] = jnp.where(y > 0, y, 0.2 * y).astype(y_ref.dtype)


def _conv_s2_kernel(xs_ref, w_ref, y_ref, st_ref, *, ow, owp, mo, b_rows):
    """4x4 / stride-2 / pad-1 conv over G images folded into the GEMM M dimension,
    with the BatchNorm batch statistics fused into the epilogue.

    xs_ref: (1, G*B + E, 4*Cin) space-to-depth rows (bf16); each image owns a B-row
                                block, E trailing zero rows absorb the shifted reads
                                issued by the (dropped) alignment rows of the last image.
    w_ref : (4, 4*Cin, Cp)      one (4*Cin, Cp) GEMM matrix per 2x2 shift (bf16).
    y_ref : (1, G*B, Cp)        raw conv output on the per-image (OH, OWp) raster (bf16).
    st_ref: (1, 8, Cp)          rows 0/1 = [sum, sum-of-squares] over valid outputs (f32).
    """
    gb = y_ref.shape[1]
    # Four shifted GEMMs accumulated in values -> a single VMEM store (no RMW scratch).
    acc = jnp.dot(xs_ref[0, pl.ds(0, gb), :], w_ref[0],
                  preferred_element_type=jnp.float32)
    acc = acc + jnp.dot(xs_ref[0, pl.ds(1, gb), :], w_ref[1],
                        preferred_element_type=jnp.float32)
    acc = acc + jnp.dot(xs_ref[0, pl.ds(owp, gb), :], w_ref[2],
                        preferred_element_type=jnp.float32)
    acc = acc + jnp.dot(xs_ref[0, pl.ds(owp + 1, gb), :], w_ref[3],
                        preferred_element_type=jnp.float32)
    y_ref[0] = acc.astype(y_ref.dtype)                        # lane-dense store

    # BatchNorm batch statistics over valid output positions only (mask the junk column
    # of the OWp-wide raster and the per-image alignment rows).
    rows = jax.lax.broadcasted_iota(jnp.int32, acc.shape, 0)
    m = rows % b_rows
    valid = (m < mo) & ((m % owp) < ow)
    ym = jnp.where(valid, acc, 0.0)
    srow = jnp.sum(ym, axis=0, keepdims=True)                 # (1, Cp)
    qrow = jnp.sum(ym * ym, axis=0, keepdims=True)            # (1, Cp)
    rows8 = jax.lax.broadcasted_iota(jnp.int32, (8, acc.shape[1]), 0)
    st_ref[0] = jnp.where(rows8 == 0, srow, jnp.where(rows8 == 1, qrow, 0.0))


def _final_kernel(x_ref, w_ref, o_ref):
    """Final 4x4 valid conv flattened to one lane-padded GEMM + numerically stable
    sigmoid (EUP approximate reciprocal)."""
    y = jnp.dot(x_ref[...], w_ref[...], preferred_element_type=jnp.float32)
    e = jnp.exp(-jnp.abs(y))                                  # exp of a non-positive value
    num = jnp.where(y >= 0.0, 1.0, e)
    o_ref[...] = num * pl.reciprocal(1.0 + e, approx=True)


# ----------------------------------------------------------------------------
# Pallas wrappers
# ----------------------------------------------------------------------------
_VMEM_LIMIT = 48 * 1024 * 1024    # explicit scoped-VMEM limit with headroom (<= 64 MiB)


def conv_l1(xc_g, w1m):
    """xc_g: (ngrp, G*OH*OW, 16*Cin) bf16, w1m: (16*Cin, Cp) bf16 -> lrelu(conv) bf16."""
    ngrp, gm, k = xc_g.shape
    cp = w1m.shape[1]
    return pl.pallas_call(
        _l1_kernel,
        out_shape=jax.ShapeDtypeStruct((ngrp, gm, cp), jnp.bfloat16),
        grid=(ngrp,),
        in_specs=[pl.BlockSpec((1, gm, k), lambda i: (i, 0, 0)),
                  pl.BlockSpec((k, cp), lambda i: (0, 0))],
        out_specs=pl.BlockSpec((1, gm, cp), lambda i: (i, 0, 0)),
        compiler_params=pltpu.CompilerParams(
            dimension_semantics=("parallel",), vmem_limit_bytes=_VMEM_LIMIT),
    )(xc_g, w1m)


def conv_s2(xs_g, wm, *, ow, owp, mo, b_rows, gb, cout_p):
    """xs_g: (ngrp, G*B+E, 4*Cin) bf16, wm: (4, 4*Cin, Cp) bf16 -> (y, stats)."""
    ngrp, rows_in, k4 = xs_g.shape
    kern = functools.partial(_conv_s2_kernel, ow=ow, owp=owp, mo=mo, b_rows=b_rows)
    return pl.pallas_call(
        kern,
        out_shape=(jax.ShapeDtypeStruct((ngrp, gb, cout_p), jnp.bfloat16),
                   jax.ShapeDtypeStruct((ngrp, 8, cout_p), jnp.float32)),
        grid=(ngrp,),
        in_specs=[pl.BlockSpec((1, rows_in, k4), lambda i: (i, 0, 0)),
                  # TODO(synk): single-buffer this constant-index weight operand
                  # (pipeline_mode=pl.Buffered(1)) once the pinned jax allows it.
                  pl.BlockSpec((4, k4, cout_p), lambda i: (0, 0, 0))],
        out_specs=(pl.BlockSpec((1, gb, cout_p), lambda i: (i, 0, 0)),
                   pl.BlockSpec((1, 8, cout_p), lambda i: (i, 0, 0))),
        compiler_params=pltpu.CompilerParams(
            dimension_semantics=("parallel",), vmem_limit_bytes=_VMEM_LIMIT),
    )(xs_g, wm)


def final_dense(xf, w5m):
    """xf: (N, 16*C) bf16, w5m: (16*C, 128) bf16 -> sigmoid(xf @ w5m) f32."""
    n, k = xf.shape
    cp = w5m.shape[1]
    return pl.pallas_call(
        _final_kernel,
        out_shape=jax.ShapeDtypeStruct((n, cp), jnp.float32),
        grid=(1,),
        in_specs=[pl.BlockSpec((n, k), lambda i: (0, 0)),
                  pl.BlockSpec((k, cp), lambda i: (0, 0))],
        out_specs=pl.BlockSpec((n, cp), lambda i: (0, 0)),
        compiler_params=pltpu.CompilerParams(dimension_semantics=("arbitrary",)),
    )(xf, w5m)


# ----------------------------------------------------------------------------
# Cheap layout / load-path helpers (plain JAX; fused by XLA into one pass per layer)
# ----------------------------------------------------------------------------
def im2col_l1(x_nhwc):
    """(N, H, W, Cin) input -> exact 4x4/s2/p1 im2col rows (N, OH*OW, 16*Cin) bf16."""
    n, h, w, c = x_nhwc.shape
    oh, ow = h // 2, w // 2
    xp = jnp.pad(x_nhwc, ((0, 0), (1, 1), (1, 1), (0, 0)))
    taps = [xp[:, ki:ki + 2 * oh:2, kj:kj + 2 * ow:2, :]
            for ki in range(4) for kj in range(4)]
    xc = jnp.stack(taps, axis=3)                              # (n, oh, ow, 16, c)
    return xc.reshape(n, oh * ow, 16 * c).astype(jnp.bfloat16), oh, ow


def s2d_group(a, g):
    """(N, H, W, C) activation -> grouped space-to-depth LHS for a 4x4/s2/p1 conv.

    Returns xs of shape (N//g, g*B + E, 4*C) bf16: each image owns a B-row block
    (B = round8(OHp*OWp + 1) so the shifted reads of valid outputs stay inside the
    image), and E trailing zero rows absorb the reads of the dropped alignment rows.
    """
    n, h, w, c = a.shape
    oh, ow = h // 2, w // 2
    ohp, owp = oh + 1, ow + 1
    s = ohp * owp
    b = _round8(s + 1)
    e = _round8(owp + 2)
    ap = jnp.pad(a, ((0, 0), (1, 1), (1, 1), (0, 0)))
    xs = ap.reshape(n, ohp, 2, owp, 2, c).transpose(0, 1, 3, 2, 4, 5)
    xs = xs.reshape(n, s, 4 * c)
    xs = jnp.pad(xs, ((0, 0), (0, b - s), (0, 0)))            # per-image B-row block
    xs = xs.reshape(n // g, g * b, 4 * c)
    xs = jnp.pad(xs, ((0, 0), (0, e), (0, 0)))                # shifted-read overrun tail
    return xs.astype(jnp.bfloat16), oh, ow, owp, b, g * b


def unpack_conv(y, n, b_rows, oh, ow, owp, cout):
    """(N//g, g*B, Cp) raw conv raster -> (N, OH, OW, cout) real-channel activation."""
    cp = y.shape[-1]
    y = y.reshape(n, b_rows, cp)[:, :oh * owp]
    return y.reshape(n, oh, owp, cp)[:, :, :ow, :cout]


def affine_lrelu(a, scale, shift):
    """Previous layer's BatchNorm affine + LeakyReLU(0.2), applied on the next layer's
    load path (fused by XLA with the following space-to-depth pack)."""
    a = a.astype(jnp.float32) * scale + shift
    return jnp.where(a > 0, a, 0.2 * a).astype(jnp.bfloat16)


def bn_affine(st, cout, count, gamma, beta, eps=1e-5):
    """Training-mode BatchNorm scale/shift from the fused per-step conv statistics."""
    s = jnp.sum(st[:, 0, :cout], axis=0)
    ss = jnp.sum(st[:, 1, :cout], axis=0)
    mean = s / count
    var = jnp.maximum(ss / count - mean * mean, 0.0)          # biased variance (PyTorch train)
    scale = gamma * jax.lax.rsqrt(var + eps)
    shift = beta - mean * scale
    return scale, shift


def prep_weight_s2(w, cout_pad):
    """(Cout, Cin, 4, 4) conv weight -> (4, 4*Cin, cout_pad) bf16; one matrix per (di,dj)
    2x2 shift, K ordered (dr, dc, cin) to match the s2d packing. Real Cin (no K pad)."""
    cout, cin, _, _ = w.shape
    wt = jnp.transpose(w, (2, 3, 1, 0))                       # (ki, kj, ci, co)
    wt = wt.reshape(2, 2, 2, 2, cin, cout)                    # (di, dr, dj, dc, ci, co)
    wt = jnp.transpose(wt, (0, 2, 1, 3, 4, 5))                # (di, dj, dr, dc, ci, co)
    wt = jnp.pad(wt, ((0, 0),) * 5 + ((0, cout_pad - cout),))
    return wt.reshape(4, 4 * cin, cout_pad).astype(jnp.bfloat16)


def prep_weight_full(w, cout_pad):
    """(Cout, Cin, kh, kw) conv weight -> (kh*kw*Cin, cout_pad) bf16, K order (ki,kj,ci)."""
    cout, cin, kh, kw = w.shape
    wt = jnp.transpose(w, (2, 3, 1, 0))                       # (ki, kj, ci, co)
    wt = jnp.pad(wt, ((0, 0), (0, 0), (0, 0), (0, cout_pad - cout)))
    return wt.reshape(kh * kw * cin, cout_pad).astype(jnp.bfloat16)


# ----------------------------------------------------------------------------
# Discriminator (parameters + forward)
# ----------------------------------------------------------------------------
def init_params(key, input_dim, df):
    ks = jax.random.split(key, 11)

    def conv_w(k, cout, cin):
        return 0.02 * jax.random.normal(k, (cout, cin, 4, 4), dtype=jnp.float32)

    def bn_p(kg, kb, c):
        return (1.0 + 0.1 * jax.random.normal(kg, (c,), dtype=jnp.float32),
                0.1 * jax.random.normal(kb, (c,), dtype=jnp.float32))

    g2, b2 = bn_p(ks[5], ks[6], df * 2)
    g3, b3 = bn_p(ks[7], ks[8], df * 4)
    g4, b4 = bn_p(ks[9], ks[10], df * 8)
    return {
        "w1": conv_w(ks[0], df, input_dim),
        "w2": conv_w(ks[1], df * 2, df), "g2": g2, "b2": b2,
        "w3": conv_w(ks[2], df * 4, df * 2), "g3": g3, "b3": b3,
        "w4": conv_w(ks[3], df * 8, df * 4), "g4": g4, "b4": b4,
        "w5": conv_w(ks[4], 1, df * 8),
    }


@jax.jit
def discriminator_forward(x, params):
    n, cin, h, w = x.shape
    assert h == w == 64, "DCGAN discriminator expects 64x64 input"
    g = _images_per_step(n)
    ngrp = n // g
    x_nhwc = jnp.transpose(x, (0, 2, 3, 1))                   # single layout change

    # ---- Block 1: Conv(4, s2, p1) as one K=16*Cin GEMM, LeakyReLU fused in-kernel ----
    c1 = params["w1"].shape[0]
    c1p = _cpad(c1)
    xc, oh, ow = im2col_l1(x_nhwc)                            # (n, 1024, 16*cin)
    xc = xc.reshape(ngrp, g * oh * ow, xc.shape[-1])
    w1m = prep_weight_full(params["w1"], c1p)
    y1 = conv_l1(xc, w1m)                                     # (ngrp, g*1024, c1p)
    a = y1.reshape(n, oh, ow, c1p)[..., :c1]                  # real channels into next K

    # ---- Blocks 2-4: Conv(4, s2, p1) -> BatchNorm(batch stats) -> LeakyReLU ---------
    for wk, gk, bk in (("w2", "g2", "b2"), ("w3", "g3", "b3"), ("w4", "g4", "b4")):
        wconv = params[wk]
        cout = wconv.shape[0]
        cout_p = _cpad(cout)
        wm = prep_weight_s2(wconv, cout_p)
        xs, oh, ow, owp, b_rows, gb = s2d_group(a, g)
        y, st = conv_s2(xs, wm, ow=ow, owp=owp, mo=oh * owp, b_rows=b_rows,
                        gb=gb, cout_p=cout_p)
        scale, shift = bn_affine(st, cout, n * oh * ow, params[gk], params[bk])
        # BN affine + LeakyReLU applied on the next layer's load path (fused by XLA
        # with the next space-to-depth pack); conv output stays bf16 for HBM traffic.
        a = affine_lrelu(unpack_conv(y, n, b_rows, oh, ow, owp, cout), scale, shift)

    # ---- Block 5: Conv(4, s1, p0) -> Sigmoid (one lane-padded GEMM) ------------------
    c4 = a.shape[-1]
    xf = a.reshape(n, oh * ow * c4)                           # (n, 16*c4) bf16
    w5m = prep_weight_full(params["w5"], 128)
    o = final_dense(xf, w5m)                                  # (n, 128), column 0 = logit
    return o[:, :1].reshape(n, 1, 1, 1)                       # matches PyTorch output


# ----------------------------------------------------------------------------
# Pure-JAX f32 reference (in-script correctness check)
# ----------------------------------------------------------------------------
@jax.jit
def reference_forward(x, params):
    def conv(v, wgt, stride, pad):
        return jax.lax.conv_general_dilated(
            v, wgt, window_strides=(stride, stride),
            padding=((pad, pad), (pad, pad)),
            dimension_numbers=("NCHW", "OIHW", "NCHW"))

    def lrelu(v):
        return jnp.where(v > 0, v, 0.2 * v)

    y = lrelu(conv(x, params["w1"], 2, 1))
    for wk, gk, bk in (("w2", "g2", "b2"), ("w3", "g3", "b3"), ("w4", "g4", "b4")):
        y = conv(y, params[wk], 2, 1)
        mean = jnp.mean(y, axis=(0, 2, 3), keepdims=True)
        var = jnp.mean(jnp.square(y - mean), axis=(0, 2, 3), keepdims=True)
        y = (y - mean) * jax.lax.rsqrt(var + 1e-5)
        y = y * params[gk].reshape(1, -1, 1, 1) + params[bk].reshape(1, -1, 1, 1)
        y = lrelu(y)
    y = conv(y, params["w5"], 1, 0)
    return jax.nn.sigmoid(y)


if __name__ == "__main__":
    # Small but architecture-consistent shapes: the DCGAN discriminator needs 64x64
    # spatial input so the final 4x4/s1/p0 conv lands on a 1x1 map.
    batch, input_dim, dis_filter, hw = 2, 3, 8, 64

    key = jax.random.PRNGKey(0)
    k_x, k_p = jax.random.split(key)
    x = jax.random.normal(k_x, (batch, input_dim, hw, hw), dtype=jnp.float32)
    params = init_params(k_p, input_dim, dis_filter)

    out = jax.block_until_ready(discriminator_forward(x, params))
    assert out.shape == (batch, 1, 1, 1), out.shape
    assert bool(jnp.all(jnp.isfinite(out)))
    assert bool(jnp.all((out >= 0.0) & (out <= 1.0)))

    ref = jax.block_until_ready(reference_forward(x, params))
    max_err = float(jnp.max(jnp.abs(out - ref)))
    assert max_err < 5e-2, f"max abs err vs f32 reference: {max_err}"

    print("KERNEL_OK")
</pallas_src>

<mosaic_0001>
module attributes {stable_mosaic.version = 11 : i64} {
  func.func @_l1_kernel(%arg0: i32, %arg1: memref<1x1024x48xbf16, #tpu.memory_space<vmem>>, %arg2: memref<48x128xbf16, #tpu.memory_space<vmem>>, %arg3: memref<1x1024x128xbf16, #tpu.memory_space<vmem>>) attributes {dimension_semantics = [#tpu.dimension_semantics<parallel>], iteration_bounds = array<i64: 2>, scalar_prefetch = 0 : i64, scratch_operands = 0 : i64, tpu.core_type = #tpu.core_type<tc>, window_params = [{transform_indices = @transform_0, window_bounds = array<i64: 1, 1024, 48>}, {pipeline_mode = #tpu.pipeline_mode<synchronous>, transform_indices = @transform_1, window_bounds = array<i64: 48, 128>}, {transform_indices = @transform_2, window_bounds = array<i64: 1, 1024, 128>}]} {
    %c0 = arith.constant 0 : index
    %c0_0 = arith.constant 0 : index
    %c0_1 = arith.constant 0 : index
    %0 = vector.load %arg1[%c0, %c0_0, %c0_1] : memref<1x1024x48xbf16, #tpu.memory_space<vmem>>, vector<1x1024x48xbf16>
    %1 = vector.shape_cast %0 : vector<1x1024x48xbf16> to vector<1024x48xbf16>
    %c0_2 = arith.constant 0 : index
    %c0_3 = arith.constant 0 : index
    %2 = vector.load %arg2[%c0_2, %c0_3] : memref<48x128xbf16, #tpu.memory_space<vmem>>, vector<48x128xbf16>
    %cst = arith.constant dense<0.000000e+00> : vector<1024x128xf32>
    %3 = tpu.matmul %1, %2, %cst {dimension_numbers = #tpu.dot_dimension_numbers<[1], [0], [0], [1], [0, 0, 1, 1], [], []>} : vector<1024x48xbf16>, vector<48x128xbf16>, vector<1024x128xf32> -> vector<1024x128xf32>
    %cst_4 = arith.constant 0.000000e+00 : f32
    %4 = vector.broadcast %cst_4 : f32 to vector<1024x128xf32>
    %5 = arith.cmpf ogt, %3, %4 : vector<1024x128xf32>
    %cst_5 = arith.constant 2.000000e-01 : f32
    %6 = vector.broadcast %cst_5 : f32 to vector<1024x128xf32>
    %7 = arith.mulf %6, %3 : vector<1024x128xf32>
    %8 = arith.select %5, %3, %7 : vector<1024x128xi1>, vector<1024x128xf32>
    %9 = arith.truncf %8 : vector<1024x128xf32> to vector<1024x128xbf16>
    %c0_6 = arith.constant 0 : index
    %c0_7 = arith.constant 0 : index
    %c0_8 = arith.constant 0 : index
    %10 = vector.load %arg3[%c0_6, %c0_7, %c0_8] : memref<1x1024x128xbf16, #tpu.memory_space<vmem>>, vector<1x1024x128xbf16>
    %11 = vector.shape_cast %10 : vector<1x1024x128xbf16> to vector<1024x128xbf16>
    %12 = vector.shape_cast %9 : vector<1024x128xbf16> to vector<1x1024x128xbf16>
    tpu.vector_store %arg3[%c0_6, %c0_7, %c0_8], %12 {strides = array<i32>} : memref<1x1024x128xbf16, #tpu.memory_space<vmem>>, vector<1x1024x128xbf16>,
    return
  }
  func.func @transform_0(%arg0: i32) -> (i32, i32, i32) {
    %c0_i32 = arith.constant 0 : i32
    %c0_i32_0 = arith.constant 0 : i32
    %c0_i32_1 = arith.constant 0 : i32
    return %arg0, %c0_i32, %c0_i32_0 : i32, i32, i32
  }
  func.func @transform_1(%arg0: i32) -> (i32, i32) {
    %c0_i32 = arith.constant 0 : i32
    %c0_i32_0 = arith.constant 0 : i32
    %c0_i32_1 = arith.constant 0 : i32
    return %c0_i32, %c0_i32_0 : i32, i32
  }
  func.func @transform_2(%arg0: i32) -> (i32, i32, i32) {
    %c0_i32 = arith.constant 0 : i32
    %c0_i32_0 = arith.constant 0 : i32
    %c0_i32_1 = arith.constant 0 : i32
    return %arg0, %c0_i32, %c0_i32_0 : i32, i32, i32
  }
}

module attributes {stable_mosaic.version = 11 : i64} {
  func.func @_conv_s2_kernel(%arg0: i32, %arg1: memref<1x320x32xbf16, #tpu.memory_space<vmem>>, %arg2: memref<4x32x128xbf16, #tpu.memory_space<vmem>>, %arg3: memref<1x296x128xbf16, #tpu.memory_space<vmem>>, %arg4: memref<1x8x128xf32, #tpu.memory_space<vmem>>) attributes {dimension_semantics = [#tpu.dimension_semantics<parallel>], iteration_bounds = array<i64: 2>, scalar_prefetch = 0 : i64, scratch_operands = 0 : i64, tpu.core_type = #tpu.core_type<tc>, window_params = [{transform_indices = @transform_0, window_bounds = array<i64: 1, 320, 32>}, {pipeline_mode = #tpu.pipeline_mode<synchronous>, transform_indices = @transform_1, window_bounds = array<i64: 4, 32, 128>}, {transform_indices = @transform_2, window_bounds = array<i64: 1, 296, 128>}, {transform_indices = @transform_3, window_bounds = array<i64: 1, 8, 128>}]} {
    %c0 = arith.constant 0 : index
    %c0_0 = arith.constant 0 : index
    %c0_1 = arith.constant 0 : index
    %0 = vector.load %arg1[%c0, %c0_0, %c0_1] : memref<1x320x32xbf16, #tpu.memory_space<vmem>>, vector<1x296x32xbf16>
    %1 = vector.shape_cast %0 : vector<1x296x32xbf16> to vector<296x32xbf16>
    %c0_2 = arith.constant 0 : index
    %c0_3 = arith.constant 0 : index
    %c0_4 = arith.constant 0 : index
    %2 = vector.load %arg2[%c0_2, %c0_3, %c0_4] : memref<4x32x128xbf16, #tpu.memory_space<vmem>>, vector<1x32x128xbf16>
    %3 = vector.shape_cast %2 : vector<1x32x128xbf16> to vector<32x128xbf16>
    %cst = arith.constant dense<0.000000e+00> : vector<296x128xf32>
    %4 = tpu.matmul %1, %3, %cst {dimension_numbers = #tpu.dot_dimension_numbers<[1], [0], [0], [1], [0, 0, 1, 1], [], []>} : vector<296x32xbf16>, vector<32x128xbf16>, vector<296x128xf32> -> vector<296x128xf32>
    %c0_5 = arith.constant 0 : index
    %c1 = arith.constant 1 : index
    %c0_6 = arith.constant 0 : index
    %5 = vector.load %arg1[%c0_5, %c1, %c0_6] : memref<1x320x32xbf16, #tpu.memory_space<vmem>>, vector<1x296x32xbf16>
    %6 = vector.shape_cast %5 : vector<1x296x32xbf16> to vector<296x32xbf16>
    %c1_7 = arith.constant 1 : index
    %c0_8 = arith.constant 0 : index
    %c0_9 = arith.constant 0 : index
    %7 = vector.load %arg2[%c1_7, %c0_8, %c0_9] : memref<4x32x128xbf16, #tpu.memory_space<vmem>>, vector<1x32x128xbf16>
    %8 = vector.shape_cast %7 : vector<1x32x128xbf16> to vector<32x128xbf16>
    %cst_10 = arith.constant dense<0.000000e+00> : vector<296x128xf32>
    %9 = tpu.matmul %6, %8, %cst_10 {dimension_numbers = #tpu.dot_dimension_numbers<[1], [0], [0], [1], [0, 0, 1, 1], [], []>} : vector<296x32xbf16>, vector<32x128xbf16>, vector<296x128xf32> -> vector<296x128xf32>
    %10 = arith.addf %4, %9 : vector<296x128xf32>
    %c0_11 = arith.constant 0 : index
    %c17 = arith.constant 17 : index
    %c0_12 = arith.constant 0 : index
    %11 = vector.load %arg1[%c0_11, %c17, %c0_12] : memref<1x320x32xbf16, #tpu.memory_space<vmem>>, vector<1x296x32xbf16>
    %12 = vector.shape_cast %11 : vector<1x296x32xbf16> to vector<296x32xbf16>
    %c2 = arith.constant 2 : index
    %c0_13 = arith.constant 0 : index
    %c0_14 = arith.constant 0 : index
    %13 = vector.load %arg2[%c2, %c0_13, %c0_14] : memref<4x32x128xbf16, #tpu.memory_space<vmem>>, vector<1x32x128xbf16>
    %14 = vector.shape_cast %13 : vector<1x32x128xbf16> to vector<32x128xbf16>
    %cst_15 = arith.constant dense<0.000000e+00> : vector<296x128xf32>
    %15 = tpu.matmul %12, %14, %cst_15 {dimension_numbers = #tpu.dot_dimension_numbers<[1], [0], [0], [1], [0, 0, 1, 1], [], []>} : vector<296x32xbf16>, vector<32x128xbf16>, vector<296x128xf32> -> vector<296x128xf32>
    %16 = arith.addf %10, %15 : vector<296x128xf32>
    %c0_16 = arith.constant 0 : index
    %c18 = arith.constant 18 : index
    %c0_17 = arith.constant 0 : index
    %17 = vector.load %arg1[%c0_16, %c18, %c0_17] : memref<1x320x32xbf16, #tpu.memory_space<vmem>>, vector<1x296x32xbf16>
    %18 = vector.shape_cast %17 : vector<1x296x32xbf16> to vector<296x32xbf16>
    %c3 = arith.constant 3 : index
    %c0_18 = arith.constant 0 : index
    %c0_19 = arith.constant 0 : index
    %19 = vector.load %arg2[%c3, %c0_18, %c0_19] : memref<4x32x128xbf16, #tpu.memory_space<vmem>>, vector<1x32x128xbf16>
    %20 = vector.shape_cast %19 : vector<1x32x128xbf16> to vector<32x128xbf16>
    %cst_20 = arith.constant dense<0.000000e+00> : vector<296x128xf32>
    %21 = tpu.matmul %18, %20, %cst_20 {dimension_numbers = #tpu.dot_dimension_numbers<[1], [0], [0], [1], [0, 0, 1, 1], [], []>} : vector<296x32xbf16>, vector<32x128xbf16>, vector<296x128xf32> -> vector<296x128xf32>
    %22 = arith.addf %16, %21 : vector<296x128xf32>
    %23 = arith.truncf %22 : vector<296x128xf32> to vector<296x128xbf16>
    %c0_21 = arith.constant 0 : index
    %c0_22 = arith.constant 0 : index
    %c0_23 = arith.constant 0 : index
    %24 = vector.load %arg3[%c0_21, %c0_22, %c0_23] : memref<1x296x128xbf16, #tpu.memory_space<vmem>>, vector<1x296x128xbf16>
    %25 = vector.shape_cast %24 : vector<1x296x128xbf16> to vector<296x128xbf16>
    %26 = vector.shape_cast %23 : vector<296x128xbf16> to vector<1x296x128xbf16>
    tpu.vector_store %arg3[%c0_21, %c0_22, %c0_23], %26 {strides = array<i32>} : memref<1x296x128xbf16, #tpu.memory_space<vmem>>, vector<1x296x128xbf16>,
    %27 = tpu.iota {dimensions = array<i32: 0>} : vector<296x128xi32>
    %c296_i32 = arith.constant 296 : i32
    %c0_i32 = arith.constant 0 : i32
    %28 = arith.cmpi eq, %c296_i32, %c0_i32 : i32
    %c1_i32 = arith.constant 1 : i32
    %29 = arith.select %28, %c1_i32, %c296_i32 : i32
    %30 = vector.broadcast %29 : i32 to vector<296x128xi32>
    %31 = arith.remsi %27, %30 : vector<296x128xi32>
    %c0_i32_24 = arith.constant 0 : i32
    %32 = vector.broadcast %c0_i32_24 : i32 to vector<296x128xi32>
    %33 = arith.cmpi ne, %31, %32 : vector<296x128xi32>
    %c0_i32_25 = arith.constant 0 : i32
    %34 = vector.broadcast %c0_i32_25 : i32 to vector<296x128xi32>
    %35 = arith.cmpi slt, %31, %34 : vector<296x128xi32>
    %c0_i32_26 = arith.constant 0 : i32
    %36 = arith.cmpi slt, %29, %c0_i32_26 : i32
    %37 = vector.broadcast %36 : i1 to vector<296x128xi1>
    %38 = vector.broadcast %37 : vector<296x128xi1> to vector<296x128xi1>
    %39 = arith.xori %35, %38 : vector<296x128xi1>
    %40 = arith.andi %39, %33 : vector<296x128xi1>
    %41 = vector.broadcast %29 : i32 to vector<296x128xi32>
    %42 = arith.addi %31, %41 : vector<296x128xi32>
    %43 = arith.select %40, %42, %31 : vector<296x128xi1>, vector<296x128xi32>
    %c272_i32 = arith.constant 272 : i32
    %44 = vector.broadcast %c272_i32 : i32 to vector<296x128xi32>
    %45 = arith.cmpi slt, %43, %44 : vector<296x128xi32>
    %c17_i32 = arith.constant 17 : i32
    %c0_i32_27 = arith.constant 0 : i32
    %46 = arith.cmpi eq, %c17_i32, %c0_i32_27 : i32
    %c1_i32_28 = arith.constant 1 : i32
    %47 = arith.select %46, %c1_i32_28, %c17_i32 : i32
    %48 = vector.broadcast %47 : i32 to vector<296x128xi32>
    %49 = arith.remsi %43, %48 : vector<296x128xi32>
    %c0_i32_29 = arith.constant 0 : i32
    %50 = vector.broadcast %c0_i32_29 : i32 to vector<296x128xi32>
    %51 = arith.cmpi ne, %49, %50 : vector<296x128xi32>
    %c0_i32_30 = arith.constant 0 : i32
    %52 = vector.broadcast %c0_i32_30 : i32 to vector<296x128xi32>
    %53 = arith.cmpi slt, %49, %52 : vector<296x128xi32>
    %c0_i32_31 = arith.constant 0 : i32
    %54 = arith.cmpi slt, %47, %c0_i32_31 : i32
    %55 = vector.broadcast %54 : i1 to vector<296x128xi1>
    %56 = vector.broadcast %55 : vector<296x128xi1> to vector<296x128xi1>
    %57 = arith.xori %53, %56 : vector<296x128xi1>
    %58 = arith.andi %57, %51 : vector<296x128xi1>
    %59 = vector.broadcast %47 : i32 to vector<296x128xi32>
    %60 = arith.addi %49, %59 : vector<296x128xi32>
    %61 = arith.select %58, %60, %49 : vector<296x128xi1>, vector<296x128xi32>
    %c16_i32 = arith.constant 16 : i32
    %62 = vector.broadcast %c16_i32 : i32 to vector<296x128xi32>
    %63 = arith.cmpi slt, %61, %62 : vector<296x128xi32>
    %64 = arith.andi %45, %63 : vector<296x128xi1>
    %cst_32 = arith.constant 0.000000e+00 : f32
    %65 = vector.broadcast %cst_32 : f32 to vector<296x128xf32>
    %66 = arith.select %64, %22, %65 : vector<296x128xi1>, vector<296x128xf32>
    %cst_33 = arith.constant dense<0.000000e+00> : vector<128xf32>
    %67 = vector.multi_reduction <add>, %66, %cst_33 [0] : vector<296x128xf32> to vector<128xf32>
    %68 = vector.shape_cast %67 : vector<128xf32> to vector<1x128xf32>
    %69 = arith.mulf %66, %66 : vector<296x128xf32>
    %cst_34 = arith.constant dense<0.000000e+00> : vector<128xf32>
    %70 = vector.multi_reduction <add>, %69, %cst_34 [0] : vector<296x128xf32> to vector<128xf32>
    %71 = vector.shape_cast %70 : vector<128xf32> to vector<1x128xf32>
    %72 = tpu.iota {dimensions = array<i32: 0>} : vector<8x128xi32>
    %c0_i32_35 = arith.constant 0 : i32
    %73 = vector.broadcast %c0_i32_35 : i32 to vector<8x128xi32>
    %74 = arith.cmpi eq, %72, %73 : vector<8x128xi32>
    %c1_i32_36 = arith.constant 1 : i32
    %75 = vector.broadcast %c1_i32_36 : i32 to vector<8x128xi32>
    %76 = arith.cmpi eq, %72, %75 : vector<8x128xi32>
    %cst_37 = arith.constant 0.000000e+00 : f32
    %77 = vector.shape_cast %71 : vector<1x128xf32> to vector<1x128xf32>
    %78 = vector.broadcast %77 : vector<1x128xf32> to vector<8x128xf32>
    %79 = vector.broadcast %cst_37 : f32 to vector<8x128xf32>
    %80 = arith.select %76, %78, %79 : vector<8x128xi1>, vector<8x128xf32>
    %81 = vector.shape_cast %68 : vector<1x128xf32> to vector<1x128xf32>
    %82 = vector.broadcast %81 : vector<1x128xf32> to vector<8x128xf32>
    %83 = arith.select %74, %82, %80 : vector<8x128xi1>, vector<8x128xf32>
    %c0_38 = arith.constant 0 : index
    %c0_39 = arith.constant 0 : index
    %c0_40 = arith.constant 0 : index
    %84 = vector.load %arg4[%c0_38, %c0_39, %c0_40] : memref<1x8x128xf32, #tpu.memory_space<vmem>>, vector<1x8x128xf32>
    %85 = vector.shape_cast %84 : vector<1x8x128xf32> to vector<8x128xf32>
    %86 = vector.shape_cast %83 : vector<8x128xf32> to vector<1x8x128xf32>
    tpu.vector_store %arg4[%c0_38, %c0_39, %c0_40], %86 {strides = array<i32>} : memref<1x8x128xf32, #tpu.memory_space<vmem>>, vector<1x8x128xf32>,
    return
  }
  func.func @transform_0(%arg0: i32) -> (i32, i32, i32) {
    %c0_i32 = arith.constant 0 : i32
    %c0_i32_0 = arith.constant 0 : i32
    %c0_i32_1 = arith.constant 0 : i32
    return %arg0, %c0_i32, %c0_i32_0 : i32, i32, i32
  }
  func.func @transform_1(%arg0: i32) -> (i32, i32, i32) {
    %c0_i32 = arith.constant 0 : i32
    %c0_i32_0 = arith.constant 0 : i32
    %c0_i32_1 = arith.constant 0 : i32
    %c0_i32_2 = arith.constant 0 : i32
    return %c0_i32, %c0_i32_0, %c0_i32_1 : i32, i32, i32
  }
  func.func @transform_2(%arg0: i32) -> (i32, i32, i32) {
    %c0_i32 = arith.constant 0 : i32
    %c0_i32_0 = arith.constant 0 : i32
    %c0_i32_1 = arith.constant 0 : i32
    return %arg0, %c0_i32, %c0_i32_0 : i32, i32, i32
  }
  func.func @transform_3(%arg0: i32) -> (i32, i32, i32) {
    %c0_i32 = arith.constant 0 : i32
    %c0_i32_0 = arith.constant 0 : i32
    %c0_i32_1 = arith.constant 0 : i32
    return %arg0, %c0_i32, %c0_i32_0 : i32, i32, i32
  }
}

module attributes {stable_mosaic.version = 11 : i64} {
  func.func @_conv_s2_kernel(%arg0: i32, %arg1: memref<1x104x64xbf16, #tpu.memory_space<vmem>>, %arg2: memref<4x64x128xbf16, #tpu.memory_space<vmem>>, %arg3: memref<1x88x128xbf16, #tpu.memory_space<vmem>>, %arg4: memref<1x8x128xf32, #tpu.memory_space<vmem>>) attributes {dimension_semantics = [#tpu.dimension_semantics<parallel>], iteration_bounds = array<i64: 2>, scalar_prefetch = 0 : i64, scratch_operands = 0 : i64, tpu.core_type = #tpu.core_type<tc>, window_params = [{transform_indices = @transform_0, window_bounds = array<i64: 1, 104, 64>}, {pipeline_mode = #tpu.pipeline_mode<synchronous>, transform_indices = @transform_1, window_bounds = array<i64: 4, 64, 128>}, {transform_indices = @transform_2, window_bounds = array<i64: 1, 88, 128>}, {transform_indices = @transform_3, window_bounds = array<i64: 1, 8, 128>}]} {
    %c0 = arith.constant 0 : index
    %c0_0 = arith.constant 0 : index
    %c0_1 = arith.constant 0 : index
    %0 = vector.load %arg1[%c0, %c0_0, %c0_1] : memref<1x104x64xbf16, #tpu.memory_space<vmem>>, vector<1x88x64xbf16>
    %1 = vector.shape_cast %0 : vector<1x88x64xbf16> to vector<88x64xbf16>
    %c0_2 = arith.constant 0 : index
    %c0_3 = arith.constant 0 : index
    %c0_4 = arith.constant 0 : index
    %2 = vector.load %arg2[%c0_2, %c0_3, %c0_4] : memref<4x64x128xbf16, #tpu.memory_space<vmem>>, vector<1x64x128xbf16>
    %3 = vector.shape_cast %2 : vector<1x64x128xbf16> to vector<64x128xbf16>
    %cst = arith.constant dense<0.000000e+00> : vector<88x128xf32>
    %4 = tpu.matmul %1, %3, %cst {dimension_numbers = #tpu.dot_dimension_numbers<[1], [0], [0], [1], [0, 0, 1, 1], [], []>} : vector<88x64xbf16>, vector<64x128xbf16>, vector<88x128xf32> -> vector<88x128xf32>
    %c0_5 = arith.constant 0 : index
    %c1 = arith.constant 1 : index
    %c0_6 = arith.constant 0 : index
    %5 = vector.load %arg1[%c0_5, %c1, %c0_6] : memref<1x104x64xbf16, #tpu.memory_space<vmem>>, vector<1x88x64xbf16>
    %6 = vector.shape_cast %5 : vector<1x88x64xbf16> to vector<88x64xbf16>
    %c1_7 = arith.constant 1 : index
    %c0_8 = arith.constant 0 : index
    %c0_9 = arith.constant 0 : index
    %7 = vector.load %arg2[%c1_7, %c0_8, %c0_9] : memref<4x64x128xbf16, #tpu.memory_space<vmem>>, vector<1x64x128xbf16>
    %8 = vector.shape_cast %7 : vector<1x64x128xbf16> to vector<64x128xbf16>
    %cst_10 = arith.constant dense<0.000000e+00> : vector<88x128xf32>
    %9 = tpu.matmul %6, %8, %cst_10 {dimension_numbers = #tpu.dot_dimension_numbers<[1], [0], [0], [1], [0, 0, 1, 1], [], []>} : vector<88x64xbf16>, vector<64x128xbf16>, vector<88x128xf32> -> vector<88x128xf32>
    %10 = arith.addf %4, %9 : vector<88x128xf32>
    %c0_11 = arith.constant 0 : index
    %c9 = arith.constant 9 : index
    %c0_12 = arith.constant 0 : index
    %11 = vector.load %arg1[%c0_11, %c9, %c0_12] : memref<1x104x64xbf16, #tpu.memory_space<vmem>>, vector<1x88x64xbf16>
    %12 = vector.shape_cast %11 : vector<1x88x64xbf16> to vector<88x64xbf16>
    %c2 = arith.constant 2 : index
    %c0_13 = arith.constant 0 : index
    %c0_14 = arith.constant 0 : index
    %13 = vector.load %arg2[%c2, %c0_13, %c0_14] : memref<4x64x128xbf16, #tpu.memory_space<vmem>>, vector<1x64x128xbf16>
    %14 = vector.shape_cast %13 : vector<1x64x128xbf16> to vector<64x128xbf16>
    %cst_15 = arith.constant dense<0.000000e+00> : vector<88x128xf32>
    %15 = tpu.matmul %12, %14, %cst_15 {dimension_numbers = #tpu.dot_dimension_numbers<[1], [0], [0], [1], [0, 0, 1, 1], [], []>} : vector<88x64xbf16>, vector<64x128xbf16>, vector<88x128xf32> -> vector<88x128xf32>
    %16 = arith.addf %10, %15 : vector<88x128xf32>
    %c0_16 = arith.constant 0 : index
    %c10 = arith.constant 10 : index
    %c0_17 = arith.constant 0 : index
    %17 = vector.load %arg1[%c0_16, %c10, %c0_17] : memref<1x104x64xbf16, #tpu.memory_space<vmem>>, vector<1x88x64xbf16>
    %18 = vector.shape_cast %17 : vector<1x88x64xbf16> to vector<88x64xbf16>
    %c3 = arith.constant 3 : index
    %c0_18 = arith.constant 0 : index
    %c0_19 = arith.constant 0 : index
    %19 = vector.load %arg2[%c3, %c0_18, %c0_19] : memref<4x64x128xbf16, #tpu.memory_space<vmem>>, vector<1x64x128xbf16>
    %20 = vector.shape_cast %19 : vector<1x64x128xbf16> to vector<64x128xbf16>
    %cst_20 = arith.constant dense<0.000000e+00> : vector<88x128xf32>
    %21 = tpu.matmul %18, %20, %cst_20 {dimension_numbers = #tpu.dot_dimension_numbers<[1], [0], [0], [1], [0, 0, 1, 1], [], []>} : vector<88x64xbf16>, vector<64x128xbf16>, vector<88x128xf32> -> vector<88x128xf32>
    %22 = arith.addf %16, %21 : vector<88x128xf32>
    %23 = arith.truncf %22 : vector<88x128xf32> to vector<88x128xbf16>
    %c0_21 = arith.constant 0 : index
    %c0_22 = arith.constant 0 : index
    %c0_23 = arith.constant 0 : index
    %24 = vector.load %arg3[%c0_21, %c0_22, %c0_23] : memref<1x88x128xbf16, #tpu.memory_space<vmem>>, vector<1x88x128xbf16>
    %25 = vector.shape_cast %24 : vector<1x88x128xbf16> to vector<88x128xbf16>
    %26 = vector.shape_cast %23 : vector<88x128xbf16> to vector<1x88x128xbf16>
    tpu.vector_store %arg3[%c0_21, %c0_22, %c0_23], %26 {strides = array<i32>} : memref<1x88x128xbf16, #tpu.memory_space<vmem>>, vector<1x88x128xbf16>,
    %27 = tpu.iota {dimensions = array<i32: 0>} : vector<88x128xi32>
    %c88_i32 = arith.constant 88 : i32
    %c0_i32 = arith.constant 0 : i32
    %28 = arith.cmpi eq, %c88_i32, %c0_i32 : i32
    %c1_i32 = arith.constant 1 : i32
    %29 = arith.select %28, %c1_i32, %c88_i32 : i32
    %30 = vector.broadcast %29 : i32 to vector<88x128xi32>
    %31 = arith.remsi %27, %30 : vector<88x128xi32>
    %c0_i32_24 = arith.constant 0 : i32
    %32 = vector.broadcast %c0_i32_24 : i32 to vector<88x128xi32>
    %33 = arith.cmpi ne, %31, %32 : vector<88x128xi32>
    %c0_i32_25 = arith.constant 0 : i32
    %34 = vector.broadcast %c0_i32_25 : i32 to vector<88x128xi32>
    %35 = arith.cmpi slt, %31, %34 : vector<88x128xi32>
    %c0_i32_26 = arith.constant 0 : i32
    %36 = arith.cmpi slt, %29, %c0_i32_26 : i32
    %37 = vector.broadcast %36 : i1 to vector<88x128xi1>
    %38 = vector.broadcast %37 : vector<88x128xi1> to vector<88x128xi1>
    %39 = arith.xori %35, %38 : vector<88x128xi1>
    %40 = arith.andi %39, %33 : vector<88x128xi1>
    %41 = vector.broadcast %29 : i32 to vector<88x128xi32>
    %42 = arith.addi %31, %41 : vector<88x128xi32>
    %43 = arith.select %40, %42, %31 : vector<88x128xi1>, vector<88x128xi32>
    %c72_i32 = arith.constant 72 : i32
    %44 = vector.broadcast %c72_i32 : i32 to vector<88x128xi32>
    %45 = arith.cmpi slt, %43, %44 : vector<88x128xi32>
    %c9_i32 = arith.constant 9 : i32
    %c0_i32_27 = arith.constant 0 : i32
    %46 = arith.cmpi eq, %c9_i32, %c0_i32_27 : i32
    %c1_i32_28 = arith.constant 1 : i32
    %47 = arith.select %46, %c1_i32_28, %c9_i32 : i32
    %48 = vector.broadcast %47 : i32 to vector<88x128xi32>
    %49 = arith.remsi %43, %48 : vector<88x128xi32>
    %c0_i32_29 = arith.constant 0 : i32
    %50 = vector.broadcast %c0_i32_29 : i32 to vector<88x128xi32>
    %51 = arith.cmpi ne, %49, %50 : vector<88x128xi32>
    %c0_i32_30 = arith.constant 0 : i32
    %52 = vector.broadcast %c0_i32_30 : i32 to vector<88x128xi32>
    %53 = arith.cmpi slt, %49, %52 : vector<88x128xi32>
    %c0_i32_31 = arith.constant 0 : i32
    %54 = arith.cmpi slt, %47, %c0_i32_31 : i32
    %55 = vector.broadcast %54 : i1 to vector<88x128xi1>
    %56 = vector.broadcast %55 : vector<88x128xi1> to vector<88x128xi1>
    %57 = arith.xori %53, %56 : vector<88x128xi1>
    %58 = arith.andi %57, %51 : vector<88x128xi1>
    %59 = vector.broadcast %47 : i32 to vector<88x128xi32>
    %60 = arith.addi %49, %59 : vector<88x128xi32>
    %61 = arith.select %58, %60, %49 : vector<88x128xi1>, vector<88x128xi32>
    %c8_i32 = arith.constant 8 : i32
    %62 = vector.broadcast %c8_i32 : i32 to vector<88x128xi32>
    %63 = arith.cmpi slt, %61, %62 : vector<88x128xi32>
    %64 = arith.andi %45, %63 : vector<88x128xi1>
    %cst_32 = arith.constant 0.000000e+00 : f32
    %65 = vector.broadcast %cst_32 : f32 to vector<88x128xf32>
    %66 = arith.select %64, %22, %65 : vector<88x128xi1>, vector<88x128xf32>
    %cst_33 = arith.constant dense<0.000000e+00> : vector<128xf32>
    %67 = vector.multi_reduction <add>, %66, %cst_33 [0] : vector<88x128xf32> to vector<128xf32>
    %68 = vector.shape_cast %67 : vector<128xf32> to vector<1x128xf32>
    %69 = arith.mulf %66, %66 : vector<88x128xf32>
    %cst_34 = arith.constant dense<0.000000e+00> : vector<128xf32>
    %70 = vector.multi_reduction <add>, %69, %cst_34 [0] : vector<88x128xf32> to vector<128xf32>
    %71 = vector.shape_cast %70 : vector<128xf32> to vector<1x128xf32>
    %72 = tpu.iota {dimensions = array<i32: 0>} : vector<8x128xi32>
    %c0_i32_35 = arith.constant 0 : i32
    %73 = vector.broadcast %c0_i32_35 : i32 to vector<8x128xi32>
    %74 = arith.cmpi eq, %72, %73 : vector<8x128xi32>
    %c1_i32_36 = arith.constant 1 : i32
    %75 = vector.broadcast %c1_i32_36 : i32 to vector<8x128xi32>
    %76 = arith.cmpi eq, %72, %75 : vector<8x128xi32>
    %cst_37 = arith.constant 0.000000e+00 : f32
    %77 = vector.shape_cast %71 : vector<1x128xf32> to vector<1x128xf32>
    %78 = vector.broadcast %77 : vector<1x128xf32> to vector<8x128xf32>
    %79 = vector.broadcast %cst_37 : f32 to vector<8x128xf32>
    %80 = arith.select %76, %78, %79 : vector<8x128xi1>, vector<8x128xf32>
    %81 = vector.shape_cast %68 : vector<1x128xf32> to vector<1x128xf32>
    %82 = vector.broadcast %81 : vector<1x128xf32> to vector<8x128xf32>
    %83 = arith.select %74, %82, %80 : vector<8x128xi1>, vector<8x128xf32>
    %c0_38 = arith.constant 0 : index
    %c0_39 = arith.constant 0 : index
    %c0_40 = arith.constant 0 : index
    %84 = vector.load %arg4[%c0_38, %c0_39, %c0_40] : memref<1x8x128xf32, #tpu.memory_space<vmem>>, vector<1x8x128xf32>
    %85 = vector.shape_cast %84 : vector<1x8x128xf32> to vector<8x128xf32>
    %86 = vector.shape_cast %83 : vector<8x128xf32> to vector<1x8x128xf32>
    tpu.vector_store %arg4[%c0_38, %c0_39, %c0_40], %86 {strides = array<i32>} : memref<1x8x128xf32, #tpu.memory_space<vmem>>, vector<1x8x128xf32>,
    return
  }
  func.func @transform_0(%arg0: i32) -> (i32, i32, i32) {
    %c0_i32 = arith.constant 0 : i32
    %c0_i32_0 = arith.constant 0 : i32
    %c0_i32_1 = arith.constant 0 : i32
    return %arg0, %c0_i32, %c0_i32_0 : i32, i32, i32
  }
  func.func @transform_1(%arg0: i32) -> (i32, i32, i32) {
    %c0_i32 = arith.constant 0 : i32
    %c0_i32_0 = arith.constant 0 : i32
    %c0_i32_1 = arith.constant 0 : i32
    %c0_i32_2 = arith.constant 0 : i32
    return %c0_i32, %c0_i32_0, %c0_i32_1 : i32, i32, i32
  }
  func.func @transform_2(%arg0: i32) -> (i32, i32, i32) {
    %c0_i32 = arith.constant 0 : i32
    %c0_i32_0 = arith.constant 0 : i32
    %c0_i32_1 = arith.constant 0 : i32
    return %arg0, %c0_i32, %c0_i32_0 : i32, i32, i32
  }
  func.func @transform_3(%arg0: i32) -> (i32, i32, i32) {
    %c0_i32 = arith.constant 0 : i32
    %c0_i32_0 = arith.constant 0 : i32
    %c0_i32_1 = arith.constant 0 : i32
    return %arg0, %c0_i32, %c0_i32_0 : i32, i32, i32
  }
}

module attributes {stable_mosaic.version = 11 : i64} {
  func.func @_final_kernel(%arg0: i32, %arg1: memref<2x1024xbf16, #tpu.memory_space<vmem>>, %arg2: memref<1024x128xbf16, #tpu.memory_space<vmem>>, %arg3: memref<2x128xf32, #tpu.memory_space<vmem>>) attributes {dimension_semantics = [#tpu.dimension_semantics<arbitrary>], iteration_bounds = array<i64: 1>, scalar_prefetch = 0 : i64, scratch_operands = 0 : i64, tpu.core_type = #tpu.core_type<tc>, window_params = [{pipeline_mode = #tpu.pipeline_mode<synchronous>, transform_indices = @transform_0, window_bounds = array<i64: 2, 1024>}, {pipeline_mode = #tpu.pipeline_mode<synchronous>, transform_indices = @transform_1, window_bounds = array<i64: 1024, 128>}, {pipeline_mode = #tpu.pipeline_mode<synchronous>, transform_indices = @transform_2, window_bounds = array<i64: 2, 128>}]} {
    %c0 = arith.constant 0 : index
    %c0_0 = arith.constant 0 : index
    %0 = vector.load %arg1[%c0, %c0_0] : memref<2x1024xbf16, #tpu.memory_space<vmem>>, vector<2x1024xbf16>
    %c0_1 = arith.constant 0 : index
    %c0_2 = arith.constant 0 : index
    %1 = vector.load %arg2[%c0_1, %c0_2] : memref<1024x128xbf16, #tpu.memory_space<vmem>>, vector<1024x128xbf16>
    %cst = arith.constant dense<0.000000e+00> : vector<2x128xf32>
    %2 = tpu.matmul %0, %1, %cst {dimension_numbers = #tpu.dot_dimension_numbers<[1], [0], [0], [1], [0, 0, 1, 1], [], []>} : vector<2x1024xbf16>, vector<1024x128xbf16>, vector<2x128xf32> -> vector<2x128xf32>
    %3 = math.absf %2 : vector<2x128xf32>
    %cst_3 = arith.constant 0.000000e+00 : f32
    %4 = vector.broadcast %cst_3 : f32 to vector<2x128xf32>
    %5 = arith.subf %4, %3 : vector<2x128xf32>
    %6 = math.exp %5 : vector<2x128xf32>
    %cst_4 = arith.constant 0.000000e+00 : f32
    %7 = vector.broadcast %cst_4 : f32 to vector<2x128xf32>
    %8 = arith.cmpf oge, %2, %7 : vector<2x128xf32>
    %cst_5 = arith.constant 1.000000e+00 : f32
    %9 = vector.broadcast %cst_5 : f32 to vector<2x128xf32>
    %10 = arith.select %8, %9, %6 : vector<2x128xi1>, vector<2x128xf32>
    %cst_6 = arith.constant 1.000000e+00 : f32
    %11 = vector.broadcast %cst_6 : f32 to vector<2x128xf32>
    %12 = arith.addf %11, %6 : vector<2x128xf32>
    %13 = tpu.reciprocal %12 {approx = true} : vector<2x128xf32> -> vector<2x128xf32>
    %14 = arith.mulf %10, %13 : vector<2x128xf32>
    %c0_7 = arith.constant 0 : index
    %c0_8 = arith.constant 0 : index
    %15 = vector.load %arg3[%c0_7, %c0_8] : memref<2x128xf32, #tpu.memory_space<vmem>>, vector<2x128xf32>
    tpu.vector_store %arg3[%c0_7, %c0_8], %14 {strides = array<i32>} : memref<2x128xf32, #tpu.memory_space<vmem>>, vector<2x128xf32>,
    return
  }
  func.func @transform_0(%arg0: i32) -> (i32, i32) {
    %c0_i32 = arith.constant 0 : i32
    %c0_i32_0 = arith.constant 0 : i32
    %c0_i32_1 = arith.constant 0 : i32
    return %c0_i32, %c0_i32_0 : i32, i32
  }
  func.func @transform_1(%arg0: i32) -> (i32, i32) {
    %c0_i32 = arith.constant 0 : i32
    %c0_i32_0 = arith.constant 0 : i32
    %c0_i32_1 = arith.constant 0 : i32
    return %c0_i32, %c0_i32_0 : i32, i32
  }
  func.func @transform_2(%arg0: i32) -> (i32, i32) {
    %c0_i32 = arith.constant 0 : i32
    %c0_i32_0 = arith.constant 0 : i32
    %c0_i32_1 = arith.constant 0 : i32
    return %c0_i32, %c0_i32_0 : i32, i32
  }
}

module attributes {stable_mosaic.version = 11 : i64} {
  func.func @_conv_s2_kernel(%arg0: i32, %arg1: memref<1x40x128xbf16, #tpu.memory_space<vmem>>, %arg2: memref<4x128x128xbf16, #tpu.memory_space<vmem>>, %arg3: memref<1x32x128xbf16, #tpu.memory_space<vmem>>, %arg4: memref<1x8x128xf32, #tpu.memory_space<vmem>>) attributes {dimension_semantics = [#tpu.dimension_semantics<parallel>], iteration_bounds = array<i64: 2>, scalar_prefetch = 0 : i64, scratch_operands = 0 : i64, tpu.core_type = #tpu.core_type<tc>, window_params = [{transform_indices = @transform_0, window_bounds = array<i64: 1, 40, 128>}, {pipeline_mode = #tpu.pipeline_mode<synchronous>, transform_indices = @transform_1, window_bounds = array<i64: 4, 128, 128>}, {transform_indices = @transform_2, window_bounds = array<i64: 1, 32, 128>}, {transform_indices = @transform_3, window_bounds = array<i64: 1, 8, 128>}]} {
    %c0 = arith.constant 0 : index
    %c0_0 = arith.constant 0 : index
    %c0_1 = arith.constant 0 : index
    %0 = vector.load %arg1[%c0, %c0_0, %c0_1] : memref<1x40x128xbf16, #tpu.memory_space<vmem>>, vector<1x32x128xbf16>
    %1 = vector.shape_cast %0 : vector<1x32x128xbf16> to vector<32x128xbf16>
    %c0_2 = arith.constant 0 : index
    %c0_3 = arith.constant 0 : index
    %c0_4 = arith.constant 0 : index
    %2 = vector.load %arg2[%c0_2, %c0_3, %c0_4] : memref<4x128x128xbf16, #tpu.memory_space<vmem>>, vector<1x128x128xbf16>
    %3 = vector.shape_cast %2 : vector<1x128x128xbf16> to vector<128x128xbf16>
    %cst = arith.constant dense<0.000000e+00> : vector<32x128xf32>
    %4 = tpu.matmul %1, %3, %cst {dimension_numbers = #tpu.dot_dimension_numbers<[1], [0], [0], [1], [0, 0, 1, 1], [], []>} : vector<32x128xbf16>, vector<128x128xbf16>, vector<32x128xf32> -> vector<32x128xf32>
    %c0_5 = arith.constant 0 : index
    %c1 = arith.constant 1 : index
    %c0_6 = arith.constant 0 : index
    %5 = vector.load %arg1[%c0_5, %c1, %c0_6] : memref<1x40x128xbf16, #tpu.memory_space<vmem>>, vector<1x32x128xbf16>
    %6 = vector.shape_cast %5 : vector<1x32x128xbf16> to vector<32x128xbf16>
    %c1_7 = arith.constant 1 : index
    %c0_8 = arith.constant 0 : index
    %c0_9 = arith.constant 0 : index
    %7 = vector.load %arg2[%c1_7, %c0_8, %c0_9] : memref<4x128x128xbf16, #tpu.memory_space<vmem>>, vector<1x128x128xbf16>
    %8 = vector.shape_cast %7 : vector<1x128x128xbf16> to vector<128x128xbf16>
    %cst_10 = arith.constant dense<0.000000e+00> : vector<32x128xf32>
    %9 = tpu.matmul %6, %8, %cst_10 {dimension_numbers = #tpu.dot_dimension_numbers<[1], [0], [0], [1], [0, 0, 1, 1], [], []>} : vector<32x128xbf16>, vector<128x128xbf16>, vector<32x128xf32> -> vector<32x128xf32>
    %10 = arith.addf %4, %9 : vector<32x128xf32>
    %c0_11 = arith.constant 0 : index
    %c5 = arith.constant 5 : index
    %c0_12 = arith.constant 0 : index
    %11 = vector.load %arg1[%c0_11, %c5, %c0_12] : memref<1x40x128xbf16, #tpu.memory_space<vmem>>, vector<1x32x128xbf16>
    %12 = vector.shape_cast %11 : vector<1x32x128xbf16> to vector<32x128xbf16>
    %c2 = arith.constant 2 : index
    %c0_13 = arith.constant 0 : index
    %c0_14 = arith.constant 0 : index
    %13 = vector.load %arg2[%c2, %c0_13, %c0_14] : memref<4x128x128xbf16, #tpu.memory_space<vmem>>, vector<1x128x128xbf16>
    %14 = vector.shape_cast %13 : vector<1x128x128xbf16> to vector<128x128xbf16>
    %cst_15 = arith.constant dense<0.000000e+00> : vector<32x128xf32>
    %15 = tpu.matmul %12, %14, %cst_15 {dimension_numbers = #tpu.dot_dimension_numbers<[1], [0], [0], [1], [0, 0, 1, 1], [], []>} : vector<32x128xbf16>, vector<128x128xbf16>, vector<32x128xf32> -> vector<32x128xf32>
    %16 = arith.addf %10, %15 : vector<32x128xf32>
    %c0_16 = arith.constant 0 : index
    %c6 = arith.constant 6 : index
    %c0_17 = arith.constant 0 : index
    %17 = vector.load %arg1[%c0_16, %c6, %c0_17] : memref<1x40x128xbf16, #tpu.memory_space<vmem>>, vector<1x32x128xbf16>
    %18 = vector.shape_cast %17 : vector<1x32x128xbf16> to vector<32x128xbf16>
    %c3 = arith.constant 3 : index
    %c0_18 = arith.constant 0 : index
    %c0_19 = arith.constant 0 : index
    %19 = vector.load %arg2[%c3, %c0_18, %c0_19] : memref<4x128x128xbf16, #tpu.memory_space<vmem>>, vector<1x128x128xbf16>
    %20 = vector.shape_cast %19 : vector<1x128x128xbf16> to vector<128x128xbf16>
    %cst_20 = arith.constant dense<0.000000e+00> : vector<32x128xf32>
    %21 = tpu.matmul %18, %20, %cst_20 {dimension_numbers = #tpu.dot_dimension_numbers<[1], [0], [0], [1], [0, 0, 1, 1], [], []>} : vector<32x128xbf16>, vector<128x128xbf16>, vector<32x128xf32> -> vector<32x128xf32>
    %22 = arith.addf %16, %21 : vector<32x128xf32>
    %23 = arith.truncf %22 : vector<32x128xf32> to vector<32x128xbf16>
    %c0_21 = arith.constant 0 : index
    %c0_22 = arith.constant 0 : index
    %c0_23 = arith.constant 0 : index
    %24 = vector.load %arg3[%c0_21, %c0_22, %c0_23] : memref<1x32x128xbf16, #tpu.memory_space<vmem>>, vector<1x32x128xbf16>
    %25 = vector.shape_cast %24 : vector<1x32x128xbf16> to vector<32x128xbf16>
    %26 = vector.shape_cast %23 : vector<32x128xbf16> to vector<1x32x128xbf16>
    tpu.vector_store %arg3[%c0_21, %c0_22, %c0_23], %26 {strides = array<i32>} : memref<1x32x128xbf16, #tpu.memory_space<vmem>>, vector<1x32x128xbf16>,
    %27 = tpu.iota {dimensions = array<i32: 0>} : vector<32x128xi32>
    %c32_i32 = arith.constant 32 : i32
    %c0_i32 = arith.constant 0 : i32
    %28 = arith.cmpi eq, %c32_i32, %c0_i32 : i32
    %c1_i32 = arith.constant 1 : i32
    %29 = arith.select %28, %c1_i32, %c32_i32 : i32
    %30 = vector.broadcast %29 : i32 to vector<32x128xi32>
    %31 = arith.remsi %27, %30 : vector<32x128xi32>
    %c0_i32_24 = arith.constant 0 : i32
    %32 = vector.broadcast %c0_i32_24 : i32 to vector<32x128xi32>
    %33 = arith.cmpi ne, %31, %32 : vector<32x128xi32>
    %c0_i32_25 = arith.constant 0 : i32
    %34 = vector.broadcast %c0_i32_25 : i32 to vector<32x128xi32>
    %35 = arith.cmpi slt, %31, %34 : vector<32x128xi32>
    %c0_i32_26 = arith.constant 0 : i32
    %36 = arith.cmpi slt, %29, %c0_i32_26 : i32
    %37 = vector.broadcast %36 : i1 to vector<32x128xi1>
    %38 = vector.broadcast %37 : vector<32x128xi1> to vector<32x128xi1>
    %39 = arith.xori %35, %38 : vector<32x128xi1>
    %40 = arith.andi %39, %33 : vector<32x128xi1>
    %41 = vector.broadcast %29 : i32 to vector<32x128xi32>
    %42 = arith.addi %31, %41 : vector<32x128xi32>
    %43 = arith.select %40, %42, %31 : vector<32x128xi1>, vector<32x128xi32>
    %c20_i32 = arith.constant 20 : i32
    %44 = vector.broadcast %c20_i32 : i32 to vector<32x128xi32>
    %45 = arith.cmpi slt, %43, %44 : vector<32x128xi32>
    %c5_i32 = arith.constant 5 : i32
    %c0_i32_27 = arith.constant 0 : i32
    %46 = arith.cmpi eq, %c5_i32, %c0_i32_27 : i32
    %c1_i32_28 = arith.constant 1 : i32
    %47 = arith.select %46, %c1_i32_28, %c5_i32 : i32
    %48 = vector.broadcast %47 : i32 to vector<32x128xi32>
    %49 = arith.remsi %43, %48 : vector<32x128xi32>
    %c0_i32_29 = arith.constant 0 : i32
    %50 = vector.broadcast %c0_i32_29 : i32 to vector<32x128xi32>
    %51 = arith.cmpi ne, %49, %50 : vector<32x128xi32>
    %c0_i32_30 = arith.constant 0 : i32
    %52 = vector.broadcast %c0_i32_30 : i32 to vector<32x128xi32>
    %53 = arith.cmpi slt, %49, %52 : vector<32x128xi32>
    %c0_i32_31 = arith.constant 0 : i32
    %54 = arith.cmpi slt, %47, %c0_i32_31 : i32
    %55 = vector.broadcast %54 : i1 to vector<32x128xi1>
    %56 = vector.broadcast %55 : vector<32x128xi1> to vector<32x128xi1>
    %57 = arith.xori %53, %56 : vector<32x128xi1>
    %58 = arith.andi %57, %51 : vector<32x128xi1>
    %59 = vector.broadcast %47 : i32 to vector<32x128xi32>
    %60 = arith.addi %49, %59 : vector<32x128xi32>
    %61 = arith.select %58, %60, %49 : vector<32x128xi1>, vector<32x128xi32>
    %c4_i32 = arith.constant 4 : i32
    %62 = vector.broadcast %c4_i32 : i32 to vector<32x128xi32>
    %63 = arith.cmpi slt, %61, %62 : vector<32x128xi32>
    %64 = arith.andi %45, %63 : vector<32x128xi1>
    %cst_32 = arith.constant 0.000000e+00 : f32
    %65 = vector.broadcast %cst_32 : f32 to vector<32x128xf32>
    %66 = arith.select %64, %22, %65 : vector<32x128xi1>, vector<32x128xf32>
    %cst_33 = arith.constant dense<0.000000e+00> : vector<128xf32>
    %67 = vector.multi_reduction <add>, %66, %cst_33 [0] : vector<32x128xf32> to vector<128xf32>
    %68 = vector.shape_cast %67 : vector<128xf32> to vector<1x128xf32>
    %69 = arith.mulf %66, %66 : vector<32x128xf32>
    %cst_34 = arith.constant dense<0.000000e+00> : vector<128xf32>
    %70 = vector.multi_reduction <add>, %69, %cst_34 [0] : vector<32x128xf32> to vector<128xf32>
    %71 = vector.shape_cast %70 : vector<128xf32> to vector<1x128xf32>
    %72 = tpu.iota {dimensions = array<i32: 0>} : vector<8x128xi32>
    %c0_i32_35 = arith.constant 0 : i32
    %73 = vector.broadcast %c0_i32_35 : i32 to vector<8x128xi32>
    %74 = arith.cmpi eq, %72, %73 : vector<8x128xi32>
    %c1_i32_36 = arith.constant 1 : i32
    %75 = vector.broadcast %c1_i32_36 : i32 to vector<8x128xi32>
    %76 = arith.cmpi eq, %72, %75 : vector<8x128xi32>
    %cst_37 = arith.constant 0.000000e+00 : f32
    %77 = vector.shape_cast %71 : vector<1x128xf32> to vector<1x128xf32>
    %78 = vector.broadcast %77 : vector<1x128xf32> to vector<8x128xf32>
    %79 = vector.broadcast %cst_37 : f32 to vector<8x128xf32>
    %80 = arith.select %76, %78, %79 : vector<8x128xi1>, vector<8x128xf32>
    %81 = vector.shape_cast %68 : vector<1x128xf32> to vector<1x128xf32>
    %82 = vector.broadcast %81 : vector<1x128xf32> to vector<8x128xf32>
    %83 = arith.select %74, %82, %80 : vector<8x128xi1>, vector<8x128xf32>
    %c0_38 = arith.constant 0 : index
    %c0_39 = arith.constant 0 : index
    %c0_40 = arith.constant 0 : index
    %84 = vector.load %arg4[%c0_38, %c0_39, %c0_40] : memref<1x8x128xf32, #tpu.memory_space<vmem>>, vector<1x8x128xf32>
    %85 = vector.shape_cast %84 : vector<1x8x128xf32> to vector<8x128xf32>
    %86 = vector.shape_cast %83 : vector<8x128xf32> to vector<1x8x128xf32>
    tpu.vector_store %arg4[%c0_38, %c0_39, %c0_40], %86 {strides = array<i32>} : memref<1x8x128xf32, #tpu.memory_space<vmem>>, vector<1x8x128xf32>,
    return
  }
  func.func @transform_0(%arg0: i32) -> (i32, i32, i32) {
    %c0_i32 = arith.constant 0 : i32
    %c0_i32_0 = arith.constant 0 : i32
    %c0_i32_1 = arith.constant 0 : i32
    return %arg0, %c0_i32, %c0_i32_0 : i32, i32, i32
  }
  func.func @transform_1(%arg0: i32) -> (i32, i32, i32) {
    %c0_i32 = arith.constant 0 : i32
    %c0_i32_0 = arith.constant 0 : i32
    %c0_i32_1 = arith.constant 0 : i32
    %c0_i32_2 = arith.constant 0 : i32
    return %c0_i32, %c0_i32_0, %c0_i32_1 : i32, i32, i32
  }
  func.func @transform_2(%arg0: i32) -> (i32, i32, i32) {
    %c0_i32 = arith.constant 0 : i32
    %c0_i32_0 = arith.constant 0 : i32
    %c0_i32_1 = arith.constant 0 : i32
    return %arg0, %c0_i32, %c0_i32_0 : i32, i32, i32
  }
  func.func @transform_3(%arg0: i32) -> (i32, i32, i32) {
    %c0_i32 = arith.constant 0 : i32
    %c0_i32_0 = arith.constant 0 : i32
    %c0_i32_1 = arith.constant 0 : i32
    return %arg0, %c0_i32, %c0_i32_0 : i32, i32, i32
  }
}

</mosaic_0001>

<llo_original>
// kernel: discriminator_forward.5
$region0: #{discriminator_forward.5}
  #allocation0 [shape = 'u32[]', space=smem, size = 0x4, offset = 0x4, fixed_abs, tag = 'smem constant byte address 0x4 - core index']
  #allocation1 [shape = 'u32[144,128]{1,0:T(1,128)}', space=vmem, size = 0x12000, scoped, tag = 'internal scratch']
  %s0 = inlined_call_operand.vmem [shape: bf16[2,1024,48], index: 0, kind: input, shape index: {}]
  %s1 = inlined_call_operand.vmem [shape: bf16[48,128], index: 1, kind: input, shape index: {}]
  %s2 = inlined_call_operand.vmem [shape: bf16[2,1024,128], index: 2, kind: output, shape index: {}]
  %s3 = sld [smem:[#allocation0]]
  $region41: #{discriminator_forward.5} parent=0
    _
  %s5 = ssub.s32 1, %s3
  %s6 = scalar_select 0, %s5, %s3
  loop: start=0, step=1, limit=4
  $region2: #{discriminator_forward.5} parent=0 // loop_pre_header
    _
  $region3: #{discriminator_forward.5} parent=0 // loop_header
    %s8 = sphi 0, %s12
    %p9 = scmp.ge.s32.totalorder %s8, 4
    %s18 = sphi 0, %s20
    %s21 = sphi 0, %s18
    %s22 = sphi 0, %s21
    %s38 = sphi 0, %s22
    %s42 = sphi 0, %s42
    %s44 = sphi 0, %s42
    %s45 = sphi 0, %s44
    %s59 = sphi 0, %s45
    %s65 = sphi 0, %s67
    %s68 = sphi 0, %s65
    %s69 = sphi 0, %s68
    %s85 = sphi 0, %s69
  $region4: #{discriminator_forward.5} parent=0 // loop_header_branch
    %11 = sbr.rel (%p9) target = $region8
  $region5: #{discriminator_forward.5} parent=0 // loop_body
    %s13 = ssub.s32 %s8, 1
    %s14 = ssub.s32 %s8, 2
    %s15 = sadd.s32 %s8, 1
    %s16 = ssub.s32 %s8, %s15
    %p17 = scmp.eq.s32.totalorder %s16, 0
    %s19 = sadd.s32 %s18, 1
    %s20 = scalar_select %p17, %s18, %s19
    %p23 = pneg %p17
    %p24 = scmp.eq.s32.totalorder %s8, 1
    %p25 = por %p23, %p24
    %p26 = scmp.ne.s32.totalorder %s18, %s21
    %p27 = scmp.eq.s32.totalorder %s8, 0
    %p28 = por %p26, %p27
    %p29 = scmp.ne.s32.totalorder %s18, %s21
    %p30 = scmp.eq.s32.totalorder %s13, 1
    %p31 = por %p29, %p30
    %p32 = scmp.ne.s32.totalorder %s21, %s22
    %p33 = scmp.eq.s32.totalorder %s13, 0
    %p34 = por %p32, %p33
    %p35 = scmp.ne.s32.totalorder %s21, %s22
    %p36 = scmp.eq.s32.totalorder %s14, 1
    %p37 = por %p35, %p36
    %p39 = scmp.ne.s32.totalorder %s22, %s38
    %p40 = scmp.eq.s32.totalorder %s14, 0
    %p41 = por %p39, %p40
    %s43 = sadd.s32 %s42, 1
    %p46 = scmp.eq.s32.totalorder %s8, 1
    %p47 = scmp.ne.s32.totalorder %s42, %s44
    %p48 = scmp.eq.s32.totalorder %s8, 0
    %p49 = por %p47, %p48
    %p50 = scmp.ne.s32.totalorder %s42, %s44
    %p51 = scmp.eq.s32.totalorder %s13, 1
    %p52 = por %p50, %p51
    %p53 = scmp.ne.s32.totalorder %s44, %s45
    %p54 = scmp.eq.s32.totalorder %s13, 0
    %p55 = por %p53, %p54
    %p56 = scmp.ne.s32.totalorder %s44, %s45
    %p57 = scmp.eq.s32.totalorder %s14, 1
    %p58 = por %p56, %p57
    %p60 = scmp.ne.s32.totalorder %s45, %s59
    %p61 = scmp.eq.s32.totalorder %s14, 0
    %p62 = por %p60, %p61
    %s63 = ssub.s32 %s8, %s15
    %p64 = scmp.eq.s32.totalorder %s63, 0
    %s66 = sadd.s32 %s65, 1
    %s67 = scalar_select %p64, %s65, %s66
    %p70 = pneg %p64
    %p71 = scmp.eq.s32.totalorder %s8, 1
    %p72 = por %p70, %p71
    %p73 = scmp.ne.s32.totalorder %s65, %s68
    %p74 = scmp.eq.s32.totalorder %s8, 0
    %p75 = por %p73, %p74
    %p76 = scmp.ne.s32.totalorder %s65, %s68
    %p77 = scmp.eq.s32.totalorder %s13, 1
    %p78 = por %p76, %p77
    %p79 = scmp.ne.s32.totalorder %s68, %s69
    %p80 = scmp.eq.s32.totalorder %s13, 0
    %p81 = por %p79, %p80
    %p82 = scmp.ne.s32.totalorder %s68, %s69
    %p83 = scmp.eq.s32.totalorder %s14, 1
    %p84 = por %p82, %p83
    %p86 = scmp.ne.s32.totalorder %s69, %s85
    %p87 = scmp.eq.s32.totalorder %s14, 0
    %p88 = por %p86, %p87
    %p89 = scmp.le.s32.totalorder 1, %s8
    %p90 = scmp.lt.s32.totalorder %s8, 3
    %p91 = pnand %p89, %p90
    %p92 = pneg %p91
    // Predicated region
    $region9: #{discriminator_forward.5} parent=5 // pred_check
      _
    $region10: #{discriminator_forward.5} parent=5 // pred_check_branch
      %94 = sbr.rel (%p91) target = $region12
    $region11: #{discriminator_forward.5} parent=5 // pred_region
      %s95 = ssub.s32 %s8, 1
      // Predicated region
      $region13: #{discriminator_forward.5} parent=11 // pred_check
        %p96 = pneg %p55
      $region14: #{discriminator_forward.5} parent=11 // pred_check_branch
        %98 = sbr.rel (%p96) target = $region16
      $region15: #{discriminator_forward.5} parent=11 // pred_region
        _
      $region16: #{discriminator_forward.5} parent=11 // pred_fallthru
        _
    $region12: #{discriminator_forward.5} parent=5 // pred_fallthru
      _
    %p99 = scmp.lt.s32.totalorder %s8, 2
    // Predicated region
    $region17: #{discriminator_forward.5} parent=5 // pred_check
      %p100 = pneg %p99
    $region18: #{discriminator_forward.5} parent=5 // pred_check_branch
      %102 = sbr.rel (%p100) target = $region20
    $region19: #{discriminator_forward.5} parent=5 // pred_region
      // Predicated region
      $region21: #{discriminator_forward.5} parent=19 // pred_check
        %p103 = pneg %p28
      $region22: #{discriminator_forward.5} parent=19 // pred_check_branch
        %105 = sbr.rel (%p103) target = $region24
      $region23: #{discriminator_forward.5} parent=19 // pred_region
        %p106 = scmp.lt.s32.totalorder %s8, 1
        %s107 = scalar_select %p106, %s8, 1
        %s108 = smul.addr %s107, 128
        %s109 = smul.addr %s108, 4
        %s110 = scalar_lea.vmem %s0, %s109
      $region24: #{discriminator_forward.5} parent=19 // pred_fallthru
        _
    $region20: #{discriminator_forward.5} parent=5 // pred_fallthru
      _
    %p111 = scmp.le.s32.totalorder 1, %s8
    %p112 = scmp.lt.s32.totalorder %s8, 3
    %p113 = pnand %p111, %p112
    %p114 = pneg %p113
    // Predicated region
    $region25: #{discriminator_forward.5} parent=5 // pred_check
      _
    $region26: #{discriminator_forward.5} parent=5 // pred_check_branch
      %116 = sbr.rel (%p113) target = $region28
    $region27: #{discriminator_forward.5} parent=5 // pred_region
      %s117 = ssub.s32 %s8, 1
      %p118 = scmp.lt.s32.totalorder %s13, 1
      %s119 = scalar_select %p118, %s13, 1
      %s120 = smul.addr %s119, 128
      %s121 = smul.addr %s120, 4
      %s122 = scalar_lea.vmem %s0, %s121
      %p123 = pneg %p34
      %p124 = pneg %p31
      %p125 = pneg %p55
      %p126 = pneg %p52
      %p127 = pneg %p81
      %p128 = pneg %p78
      %p129 = scmp.lt.s32.totalorder %s13, 1
      %s130 = scalar_select %p129, %s13, 1
      %s131 = smul.addr %s130, 128
      %s132 = smul.addr %s131, 4
      %s133 = scalar_lea.vmem %s2, %s132
      %p134 = scmp.lt.s32.totalorder %s13, 1
      %s135 = scalar_select %p134, %s13, 1
      %s136 = smul.addr %s135, 128
      %s137 = smul.addr %s136, 4
      %s138 = scalar_lea.vmem %s0, %s137
      %p139 = scmp.lt.s32.totalorder %s13, 1
      %s140 = scalar_select %p139, %s13, 1
      %s141 = smul.addr %s140, 128
      %s142 = smul.addr %s141, 4
      %s143 = scalar_lea.vmem %s2, %s142
      %v145 = vld [vmem:[%s138] sm:$0xf]
      %v146 = vld [vmem:[%s138 + $0x4] sm:$0xf]
      %v147 = vld [vmem:[%s138 + $0x8] sm:$0xf]
      %v148 = vld [vmem:[%s138 + $0xc] sm:$0xf]
      %v149 = vld [vmem:[%s138 + $0x10] sm:$0xf]
      %v150 = vld [vmem:[%s138 + $0x14] sm:$0xf]
      %v151 = vld [vmem:[%s138 + $0x18] sm:$0xf]
      %v152 = vld [vmem:[%s138 + $0x1c] sm:$0xf]
      %v153 = vld [vmem:[%s138 + $0x20] sm:$0xf]
      %v154 = vld [vmem:[%s138 + $0x24] sm:$0xf]
      %v155 = vld [vmem:[%s138 + $0x28] sm:$0xf]
      %v156 = vld [vmem:[%s138 + $0x2c] sm:$0xf]
      %v157 = vld [vmem:[%s138 + $0x30] sm:$0xf]
      %v158 = vld [vmem:[%s138 + $0x34] sm:$0xf]
      %v159 = vld [vmem:[%s138 + $0x38] sm:$0xf]
      %v160 = vld [vmem:[%s138 + $0x3c] sm:$0xf]
      %v161 = vld [vmem:[%s138 + $0x40] sm:$0xf]
      %v162 = vld [vmem:[%s138 + $0x44] sm:$0xf]
      %v163 = vld [vmem:[%s138 + $0x48] sm:$0xf]
      %v164 = vld [vmem:[%s138 + $0x4c] sm:$0xf]
      %v165 = vld [vmem:[%s138 + $0x50] sm:$0xf]
      %v166 = vld [vmem:[%s138 + $0x54] sm:$0xf]
      %v167 = vld [vmem:[%s138 + $0x58] sm:$0xf]
      %v168 = vld [vmem:[%s138 + $0x5c] sm:$0xf]
      %v169 = vld [vmem:[%s138 + $0x60] sm:$0xf]
      %v170 = vld [vmem:[%s138 + $0x64] sm:$0xf]
      %v171 = vld [vmem:[%s138 + $0x68] sm:$0xf]
      %v172 = vld [vmem:[%s138 + $0x6c] sm:$0xf]
      %v173 = vld [vmem:[%s138 + $0x70] sm:$0xf]
      %v174 = vld [vmem:[%s138 + $0x74] sm:$0xf]
      %v175 = vld [vmem:[%s138 + $0x78] sm:$0xf]
      %v176 = vld [vmem:[%s138 + $0x7c] sm:$0xf]
      %v177 = vld [vmem:[%s138 + $0x80] sm:$0xf]
      %v178 = vld [vmem:[%s138 + $0x84] sm:$0xf]
      %v179 = vld [vmem:[%s138 + $0x88] sm:$0xf]
      %v180 = vld [vmem:[%s138 + $0x8c] sm:$0xf]
      %v181 = vld [vmem:[%s138 + $0x90] sm:$0xf]
      %v182 = vld [vmem:[%s138 + $0x94] sm:$0xf]
      %v183 = vld [vmem:[%s138 + $0x98] sm:$0xf]
      %v184 = vld [vmem:[%s138 + $0x9c] sm:$0xf]
      %v185 = vld [vmem:[%s138 + $0xa0] sm:$0xf]
      %v186 = vld [vmem:[%s138 + $0xa4] sm:$0xf]
      %v187 = vld [vmem:[%s138 + $0xa8] sm:$0xf]
      %v188 = vld [vmem:[%s138 + $0xac] sm:$0xf]
      %v189 = vld [vmem:[%s138 + $0xb0] sm:$0xf]
      %v190 = vld [vmem:[%s138 + $0xb4] sm:$0xf]
      %v191 = vld [vmem:[%s138 + $0xb8] sm:$0xf]
      %v192 = vld [vmem:[%s138 + $0xbc] sm:$0xf]
      %v193 = vld [vmem:[%s138 + $0xc0] sm:$0xf]
      %v194 = vld [vmem:[%s138 + $0xc4] sm:$0xf]
      %v195 = vld [vmem:[%s138 + $0xc8] sm:$0xf]
      %v196 = vld [vmem:[%s138 + $0xcc] sm:$0xf]
      %v197 = vld [vmem:[%s138 + $0xd0] sm:$0xf]
      %v198 = vld [vmem:[%s138 + $0xd4] sm:$0xf]
      %v199 = vld [vmem:[%s138 + $0xd8] sm:$0xf]
      %v200 = vld [vmem:[%s138 + $0xdc] sm:$0xf]
      %v201 = vld [vmem:[%s138 + $0xe0] sm:$0xf]
      %v202 = vld [vmem:[%s138 + $0xe4] sm:$0xf]
      %v203 = vld [vmem:[%s138 + $0xe8] sm:$0xf]
      %v204 = vld [vmem:[%s138 + $0xec] sm:$0xf]
      %v205 = vld [vmem:[%s138 + $0xf0] sm:$0xf]
      %v206 = vld [vmem:[%s138 + $0xf4] sm:$0xf]
      %v207 = vld [vmem:[%s138 + $0xf8] sm:$0xf]
      %v208 = vld [vmem:[%s138 + $0xfc] sm:$0xf]
      %v209 = vld [vmem:[%s138 + $0x100] sm:$0xf]
      %v210 = vld [vmem:[%s138 + $0x104] sm:$0xf]
      %v211 = vld [vmem:[%s138 + $0x108] sm:$0xf]
      %v212 = vld [vmem:[%s138 + $0x10c] sm:$0xf]
      %v213 = vld [vmem:[%s138 + $0x110] sm:$0xf]
      %v214 = vld [vmem:[%s138 + $0x114] sm:$0xf]
      %v215 = vld [vmem:[%s138 + $0x118] sm:$0xf]
      %v216 = vld [vmem:[%s138 + $0x11c] sm:$0xf]
      %v217 = vld [vmem:[%s138 + $0x120] sm:$0xf]
      %v218 = vld [vmem:[%s138 + $0x124] sm:$0xf]
      %v219 = vld [vmem:[%s138 + $0x128] sm:$0xf]
      %v220 = vld [vmem:[%s138 + $0x12c] sm:$0xf]
      %v221 = vld [vmem:[%s138 + $0x130] sm:$0xf]
      %v222 = vld [vmem:[%s138 + $0x134] sm:$0xf]
      %v223 = vld [vmem:[%s138 + $0x138] sm:$0xf]
      %v224 = vld [vmem:[%s138 + $0x13c] sm:$0xf]
      %v225 = vld [vmem:[%s138 + $0x140] sm:$0xf]
      %v226 = vld [vmem:[%s138 + $0x144] sm:$0xf]
      %v227 = vld [vmem:[%s138 + $0x148] sm:$0xf]
      %v228 = vld [vmem:[%s138 + $0x14c] sm:$0xf]
      %v229 = vld [vmem:[%s138 + $0x150] sm:$0xf]
      %v230 = vld [vmem:[%s138 + $0x154] sm:$0xf]
      %v231 = vld [vmem:[%s138 + $0x158] sm:$0xf]
      %v232 = vld [vmem:[%s138 + $0x15c] sm:$0xf]
      %v233 = vld [vmem:[%s138 + $0x160] sm:$0xf]
      %v234 = vld [vmem:[%s138 + $0x164] sm:$0xf]
      %v235 = vld [vmem:[%s138 + $0x168] sm:$0xf]
      %v236 = vld [vmem:[%s138 + $0x16c] sm:$0xf]
      %v237 = vld [vmem:[%s138 + $0x170] sm:$0xf]
      %v238 = vld [vmem:[%s138 + $0x174] sm:$0xf]
      %v239 = vld [vmem:[%s138 + $0x178] sm:$0xf]
      %v240 = vld [vmem:[%s138 + $0x17c] sm:$0xf]
      %v241 = vld [vmem:[%s138 + $0x180] sm:$0xf]
      %v242 = vld [vmem:[%s138 + $0x184] sm:$0xf]
      %v243 = vld [vmem:[%s138 + $0x188] sm:$0xf]
      %v244 = vld [vmem:[%s138 + $0x18c] sm:$0xf]
      %v245 = vld [vmem:[%s138 + $0x190] sm:$0xf]
      %v246 = vld [vmem:[%s138 + $0x194] sm:$0xf]
      %v247 = vld [vmem:[%s138 + $0x198] sm:$0xf]
      %v248 = vld [vmem:[%s138 + $0x19c] sm:$0xf]
      %v249 = vld [vmem:[%s138 + $0x1a0] sm:$0xf]
      %v250 = vld [vmem:[%s138 + $0x1a4] sm:$0xf]
      %v251 = vld [vmem:[%s138 + $0x1a8] sm:$0xf]
      %v252 = vld [vmem:[%s138 + $0x1ac] sm:$0xf]
      %v253 = vld [vmem:[%s138 + $0x1b0] sm:$0xf]
      %v254 = vld [vmem:[%s138 + $0x1b4] sm:$0xf]
      %v255 = vld [vmem:[%s138 + $0x1b8] sm:$0xf]
      %v256 = vld [vmem:[%s138 + $0x1bc] sm:$0xf]
      %v257 = vld [vmem:[%s138 + $0x1c0] sm:$0xf]
      %v258 = vld [vmem:[%s138 + $0x1c4] sm:$0xf]
      %v259 = vld [vmem:[%s138 + $0x1c8] sm:$0xf]
      %v260 = vld [vmem:[%s138 + $0x1cc] sm:$0xf]
      %v261 = vld [vmem:[%s138 + $0x1d0] sm:$0xf]
      %v262 = vld [vmem:[%s138 + $0x1d4] sm:$0xf]
      %v263 = vld [vmem:[%s138 + $0x1d8] sm:$0xf]
      %v264 = vld [vmem:[%s138 + $0x1dc] sm:$0xf]
      %v265 = vld [vmem:[%s138 + $0x1e0] sm:$0xf]
      %v266 = vld [vmem:[%s138 + $0x1e4] sm:$0xf]
      %v267 = vld [vmem:[%s138 + $0x1e8] sm:$0xf]
      %v268 = vld [vmem:[%s138 + $0x1ec] sm:$0xf]
      %v269 = vld [vmem:[%s138 + $0x1f0] sm:$0xf]
      %v270 = vld [vmem:[%s138 + $0x1f4] sm:$0xf]
      %v271 = vld [vmem:[%s138 + $0x1f8] sm:$0xf]
      %v272 = vld [vmem:[%s138 + $0x1fc] sm:$0xf]
      %v273 = vld [vmem:[%s1] sm:$0xf]
      %v274 = vld [vmem:[%s1 + $0x4] sm:$0xf]
      %v275 = vld [vmem:[%s1 + $0x8] sm:$0xf]
      %v276 = vld [vmem:[%s1 + $0xc] sm:$0xf]
      %v277 = vld [vmem:[%s1 + $0x10] sm:$0xf]
      %v278 = vld [vmem:[%s1 + $0x14] sm:$0xf]
      %v407 = vunpack.c.l.b16 %v145
      %v408 = vunpack.c.l.b16 %v146
      %v409 = vunpack.c.l.b16 %v147
      %v410 = vunpack.c.l.b16 %v148
      %v411 = vunpack.c.l.b16 %v149
      %v412 = vunpack.c.l.b16 %v150
      %v413 = vunpack.c.l.b16 %v151
      %v414 = vunpack.c.l.b16 %v152
      %v415 = vunpack.c.l.b16 %v153
      %v416 = vunpack.c.l.b16 %v154
      %v417 = vunpack.c.l.b16 %v155
      %v418 = vunpack.c.l.b16 %v156
      %v419 = vunpack.c.l.b16 %v157
      %v420 = vunpack.c.l.b16 %v158
      %v421 = vunpack.c.l.b16 %v159
      %v422 = vunpack.c.l.b16 %v160
      %v423 = vunpack.c.l.b16 %v161
      %v424 = vunpack.c.l.b16 %v162
      %v425 = vunpack.c.l.b16 %v163
      %v426 = vunpack.c.l.b16 %v164
      %v427 = vunpack.c.l.b16 %v165
      %v428 = vunpack.c.l.b16 %v166
      %v429 = vunpack.c.l.b16 %v167
      %v430 = vunpack.c.l.b16 %v168
      %v431 = vunpack.c.l.b16 %v169
      %v432 = vunpack.c.l.b16 %v170
      %v433 = vunpack.c.l.b16 %v171
      %v434 = vunpack.c.l.b16 %v172
      %v435 = vunpack.c.l.b16 %v173
      %v436 = vunpack.c.l.b16 %v174
      %v437 = vunpack.c.l.b16 %v175
      %v438 = vunpack.c.l.b16 %v176
      %v439 = vunpack.c.l.b16 %v177
      %v440 = vunpack.c.l.b16 %v178
      %v441 = vunpack.c.l.b16 %v179
      %v442 = vunpack.c.l.b16 %v180
      %v443 = vunpack.c.l.b16 %v181
      %v444 = vunpack.c.l.b16 %v182
      %v445 = vunpack.c.l.b16 %v183
      %v446 = vunpack.c.l.b16 %v184
      %v447 = vunpack.c.l.b16 %v185
      %v448 = vunpack.c.l.b16 %v186
      %v449 = vunpack.c.l.b16 %v187
      %v450 = vunpack.c.l.b16 %v188
      %v451 = vunpack.c.l.b16 %v189
      %v452 = vunpack.c.l.b16 %v190
      %v453 = vunpack.c.l.b16 %v191
      %v454 = vunpack.c.l.b16 %v192
      %v455 = vunpack.c.l.b16 %v193
      %v456 = vunpack.c.l.b16 %v194
      %v457 = vunpack.c.l.b16 %v195
      %v458 = vunpack.c.l.b16 %v196
      %v459 = vunpack.c.l.b16 %v197
      %v460 = vunpack.c.l.b16 %v198
      %v461 = vunpack.c.l.b16 %v199
      %v462 = vunpack.c.l.b16 %v200
      %v463 = vunpack.c.l.b16 %v201
      %v464 = vunpack.c.l.b16 %v202
      %v465 = vunpack.c.l.b16 %v203
      %v466 = vunpack.c.l.b16 %v204
      %v467 = vunpack.c.l.b16 %v205
      %v468 = vunpack.c.l.b16 %v206
      %v469 = vunpack.c.l.b16 %v207
      %v470 = vunpack.c.l.b16 %v208
      %v471 = vunpack.c.l.b16 %v209
      %v472 = vunpack.c.l.b16 %v210
      %v473 = vunpack.c.l.b16 %v211
      %v474 = vunpack.c.l.b16 %v212
      %v475 = vunpack.c.l.b16 %v213
      %v476 = vunpack.c.l.b16 %v214
      %v477 = vunpack.c.l.b16 %v215
      %v478 = vunpack.c.l.b16 %v216
      %v479 = vunpack.c.l.b16 %v217
      %v480 = vunpack.c.l.b16 %v218
      %v481 = vunpack.c.l.b16 %v219
      %v482 = vunpack.c.l.b16 %v220
      %v483 = vunpack.c.l.b16 %v221
      %v484 = vunpack.c.l.b16 %v222
      %v485 = vunpack.c.l.b16 %v223
      %v486 = vunpack.c.l.b16 %v224
      %v487 = vunpack.c.l.b16 %v225
      %v488 = vunpack.c.l.b16 %v226
      %v489 = vunpack.c.l.b16 %v227
      %v490 = vunpack.c.l.b16 %v228
      %v491 = vunpack.c.l.b16 %v229
      %v492 = vunpack.c.l.b16 %v230
      %v493 = vunpack.c.l.b16 %v231
      %v494 = vunpack.c.l.b16 %v232
      %v495 = vunpack.c.l.b16 %v233
      %v496 = vunpack.c.l.b16 %v234
      %v497 = vunpack.c.l.b16 %v235
      %v498 = vunpack.c.l.b16 %v236
      %v499 = vunpack.c.l.b16 %v237
      %v500 = vunpack.c.l.b16 %v238
      %v501 = vunpack.c.l.b16 %v239
      %v502 = vunpack.c.l.b16 %v240
      %v503 = vunpack.c.l.b16 %v241
      %v504 = vunpack.c.l.b16 %v242
      %v505 = vunpack.c.l.b16 %v243
      %v506 = vunpack.c.l.b16 %v244
      %v507 = vunpack.c.l.b16 %v245
      %v508 = vunpack.c.l.b16 %v246
      %v509 = vunpack.c.l.b16 %v247
      %v510 = vunpack.c.l.b16 %v248
      %v511 = vunpack.c.l.b16 %v249
      %v512 = vunpack.c.l.b16 %v250
      %v513 = vunpack.c.l.b16 %v251
      %v514 = vunpack.c.l.b16 %v252
      %v515 = vunpack.c.l.b16 %v253
      %v516 = vunpack.c.l.b16 %v254
      %v517 = vunpack.c.l.b16 %v255
      %v518 = vunpack.c.l.b16 %v256
      %v519 = vunpack.c.l.b16 %v257
      %v520 = vunpack.c.l.b16 %v258
      %v521 = vunpack.c.l.b16 %v259
      %v522 = vunpack.c.l.b16 %v260
      %v523 = vunpack.c.l.b16 %v261
      %v524 = vunpack.c.l.b16 %v262
      %v525 = vunpack.c.l.b16 %v263
      %v526 = vunpack.c.l.b16 %v264
      %v527 = vunpack.c.l.b16 %v265
      %v528 = vunpack.c.l.b16 %v266
      %v529 = vunpack.c.l.b16 %v267
      %v530 = vunpack.c.l.b16 %v268
      %v531 = vunpack.c.l.b16 %v269
      %v532 = vunpack.c.l.b16 %v270
      %v533 = vunpack.c.l.b16 %v271
      %v534 = vunpack.c.l.b16 %v272
      %v535 = vpack.c.b16 %v408, %v407
      %v536 = vpack.c.b16 %v410, %v409
      %v537 = vpack.c.b16 %v412, %v411
      %v538 = vpack.c.b16 %v414, %v413
      %v539 = vpack.c.b16 %v416, %v415
      %v540 = vpack.c.b16 %v418, %v417
      %v541 = vpack.c.b16 %v420, %v419
      %v542 = vpack.c.b16 %v422, %v421
      %v543 = vpack.c.b16 %v424, %v423
      %v544 = vpack.c.b16 %v426, %v425
      %v545 = vpack.c.b16 %v428, %v427
      %v546 = vpack.c.b16 %v430, %v429
      %v547 = vpack.c.b16 %v432, %v431
      %v548 = vpack.c.b16 %v434, %v433
      %v549 = vpack.c.b16 %v436, %v435
      %v550 = vpack.c.b16 %v438, %v437
      %v551 = vpack.c.b16 %v440, %v439
      %v552 = vpack.c.b16 %v442, %v441
      %v553 = vpack.c.b16 %v444, %v443
      %v554 = vpack.c.b16 %v446, %v445
      %v555 = vpack.c.b16 %v448, %v447
      %v556 = vpack.c.b16 %v450, %v449
      %v557 = vpack.c.b16 %v452, %v451
      %v558 = vpack.c.b16 %v454, %v453
      %v559 = vpack.c.b16 %v456, %v455
      %v560 = vpack.c.b16 %v458, %v457
      %v561 = vpack.c.b16 %v460, %v459
      %v562 = vpack.c.b16 %v462, %v461
      %v563 = vpack.c.b16 %v464, %v463
      %v564 = vpack.c.b16 %v466, %v465
      %v565 = vpack.c.b16 %v468, %v467
      %v566 = vpack.c.b16 %v470, %v469
      %v567 = vpack.c.b16 %v472, %v471
      %v568 = vpack.c.b16 %v474, %v473
      %v569 = vpack.c.b16 %v476, %v475
      %v570 = vpack.c.b16 %v478, %v477
      %v571 = vpack.c.b16 %v480, %v479
      %v572 = vpack.c.b16 %v482, %v481
      %v573 = vpack.c.b16 %v484, %v483
      %v574 = vpack.c.b16 %v486, %v485
      %v575 = vpack.c.b16 %v488, %v487
      %v576 = vpack.c.b16 %v490, %v489
      %v577 = vpack.c.b16 %v492, %v491
      %v578 = vpack.c.b16 %v494, %v493
      %v579 = vpack.c.b16 %v496, %v495
      %v580 = vpack.c.b16 %v498, %v497
      %v581 = vpack.c.b16 %v500, %v499
      %v582 = vpack.c.b16 %v502, %v501
      %v583 = vpack.c.b16 %v504, %v503
      %v584 = vpack.c.b16 %v506, %v505
      %v585 = vpack.c.b16 %v508, %v507
      %v586 = vpack.c.b16 %v510, %v509
      %v587 = vpack.c.b16 %v512, %v511
      %v588 = vpack.c.b16 %v514, %v513
      %v589 = vpack.c.b16 %v516, %v515
      %v590 = vpack.c.b16 %v518, %v517
      %v591 = vpack.c.b16 %v520, %v519
      %v592 = vpack.c.b16 %v522, %v521
      %v593 = vpack.c.b16 %v524, %v523
      %v594 = vpack.c.b16 %v526, %v525
      %v595 = vpack.c.b16 %v528, %v527
      %v596 = vpack.c.b16 %v530, %v529
      %v597 = vpack.c.b16 %v532, %v531
      %v598 = vpack.c.b16 %v534, %v533
      %v605 = vunpack.c.l.b16 %v273
      %v606 = vunpack.c.l.b16 %v274
      %v607 = vunpack.c.l.b16 %v275
      %v608 = vunpack.c.l.b16 %v276
      %v609 = vunpack.c.l.b16 %v277
      %v610 = vunpack.c.l.b16 %v278
      %v611 = vpack.c.b16 %v606, %v605
      %v612 = vpack.c.b16 %v608, %v607
      %v613 = vpack.c.b16 %v610, %v609
      %vm617 = vcmask 392192
      %v619 = vsel %vm617, %v535, 0
      %v622 = vsel %vm617, %v536, 0
      %v625 = vsel %vm617, %v537, 0
      %v628 = vsel %vm617, %v538, 0
      %v631 = vsel %vm617, %v539, 0
      %v634 = vsel %vm617, %v540, 0
      %v637 = vsel %vm617, %v541, 0
      %v640 = vsel %vm617, %v542, 0
      %v643 = vsel %vm617, %v543, 0
      %v646 = vsel %vm617, %v544, 0
      %v649 = vsel %vm617, %v545, 0
      %v652 = vsel %vm617, %v546, 0
      %v655 = vsel %vm617, %v547, 0
      %v658 = vsel %vm617, %v548, 0
      %v661 = vsel %vm617, %v549, 0
      %v664 = vsel %vm617, %v550, 0
      %v667 = vsel %vm617, %v551, 0
      %v670 = vsel %vm617, %v552, 0
      %v673 = vsel %vm617, %v553, 0
      %v676 = vsel %vm617, %v554, 0
      %v679 = vsel %vm617, %v555, 0
      %v682 = vsel %vm617, %v556, 0
      %v685 = vsel %vm617, %v557, 0
      %v688 = vsel %vm617, %v558, 0
      %v691 = vsel %vm617, %v559, 0
      %v694 = vsel %vm617, %v560, 0
      %v697 = vsel %vm617, %v561, 0
      %v700 = vsel %vm617, %v562, 0
      %v703 = vsel %vm617, %v563, 0
      %v706 = vsel %vm617, %v564, 0
      %v709 = vsel %vm617, %v565, 0
      %v712 = vsel %vm617, %v566, 0
      %v715 = vsel %vm617, %v567, 0
      %v718 = vsel %vm617, %v568, 0
      %v721 = vsel %vm617, %v569, 0
      %v724 = vsel %vm617, %v570, 0
      %v727 = vsel %vm617, %v571, 0
      %v730 = vsel %vm617, %v572, 0
      %v733 = vsel %vm617, %v573, 0
      %v736 = vsel %vm617, %v574, 0
      %v739 = vsel %vm617, %v575, 0
      %v742 = vsel %vm617, %v576, 0
      %v745 = vsel %vm617, %v577, 0
      %v748 = vsel %vm617, %v578, 0
      %v751 = vsel %vm617, %v579, 0
      %v754 = vsel %vm617, %v580, 0
      %v757 = vsel %vm617, %v581, 0
      %v760 = vsel %vm617, %v582, 0
      %v763 = vsel %vm617, %v583, 0
      %v766 = vsel %vm617, %v584, 0
      %v769 = vsel %vm617, %v585, 0
      %v772 = vsel %vm617, %v586, 0
      %v775 = vsel %vm617, %v587, 0
      %v778 = vsel %vm617, %v588, 0
      %v781 = vsel %vm617, %v589, 0
      %v784 = vsel %vm617, %v590, 0
      %v787 = vsel %vm617, %v591, 0
      %v790 = vsel %vm617, %v592, 0
      %v793 = vsel %vm617, %v593, 0
      %v796 = vsel %vm617, %v594, 0
      %v799 = vsel %vm617, %v595, 0
      %v802 = vsel %vm617, %v596, 0
      %v805 = vsel %vm617, %v597, 0
      %v808 = vsel %vm617, %v598, 0
      %810 = vmatprep.subr.bf16.mxu0 0
      %811 = vmatpush1.bf16.msra.mxu0 %v611
      %812 = vmatprep.subr.bf16.mxu0 0
      %813 = vmatpush1.bf16.msra.mxu0 %v612
      %814 = vmatprep.subr.bf16.mxu0 0
      %815 = vmatpush1.bf16.msra.mxu0 %v613
      %816 = vmatprep.subr.bf16.mxu0 0
      %817 = vmatpush1.bf16.msra.mxu0 0
      %818 = vmatprep.subr.bf16.mxu0 0
      %819 = vmatpush1.bf16.msra.mxu0 0
      %820 = vmatprep.subr.bf16.mxu0 0
      %821 = vmatpush1.bf16.msra.mxu0 0
      %822 = vmatprep.subr.bf16.mxu0 0
      %823 = vmatpush1.bf16.msra.mxu0 0
      %824 = vmatprep.subr.bf16.mxu0 0
      %825 = vmatpush1.bf16.msra.mxu0 0
      %826 = vmatprep.subr.bf16.mxu0 0
      %827 = vmatpush1.bf16.msra.mxu0 0
      %828 = vmatprep.subr.bf16.mxu0 0
      %829 = vmatpush1.bf16.msra.mxu0 0
      %830 = vmatprep.subr.bf16.mxu0 0
      %831 = vmatpush1.bf16.msra.mxu0 0
      %832 = vmatprep.subr.bf16.mxu0 0
      %833 = vmatpush1.bf16.msra.mxu0 0
      %834 = vmatprep.subr.bf16.mxu0 0
      %835 = vmatpush1.bf16.msra.mxu0 0
      %836 = vmatprep.subr.bf16.mxu0 0
      %837 = vmatpush1.bf16.msra.mxu0 0
      %838 = vmatprep.subr.bf16.mxu0 0
      %839 = vmatpush1.bf16.msra.mxu0 0
      %840 = vmatprep.subr.bf16.mxu0 0
      %841 = vmatpush1.bf16.msra.mxu0 0
      %842 = vmatprep.mubr.bf16.mxu0 0
      %843 = vmatmul.mubr.bf16.gmra.mrb[0].mxu0 %v619
      %v844 = vpop.f32.mrb[0].mxu0
      %v845 = vadd.f32 0.0, %v844
      %v846 = vpop.f32.mrb[0].mxu0
      %v847 = vpop.f32.mrb[0].mxu0
      %v848 = vadd.f32 0.0, %v847
      %v849 = vpop.f32.mrb[0].mxu0
      %850 = vmatprep.mubr.bf16.mxu0 0
      %851 = vmatmul.mubr.bf16.gmra.mrb[0].mxu0 %v622
      %v852 = vpop.f32.mrb[0].mxu0
      %v853 = vadd.f32 0.0, %v852
      %v854 = vpop.f32.mrb[0].mxu0
      %v855 = vpop.f32.mrb[0].mxu0
      %v856 = vadd.f32 0.0, %v855
      %v857 = vpop.f32.mrb[0].mxu0
      %858 = vmatprep.mubr.bf16.mxu0 0
      %859 = vmatmul.mubr.bf16.gmra.mrb[0].mxu0 %v625
      %v860 = vpop.f32.mrb[0].mxu0
      %v861 = vadd.f32 0.0, %v860
      %v862 = vpop.f32.mrb[0].mxu0
      %v863 = vpop.f32.mrb[0].mxu0
      %v864 = vadd.f32 0.0, %v863
      %v865 = vpop.f32.mrb[0].mxu0
      %866 = vmatprep.mubr.bf16.mxu0 0
      %867 = vmatmul.mubr.bf16.gmra.mrb[0].mxu0 %v628
      %v868 = vpop.f32.mrb[0].mxu0
      %v869 = vadd.f32 0.0, %v868
      %v870 = vpop.f32.mrb[0].mxu0
      %v871 = vpop.f32.mrb[0].mxu0
      %v872 = vadd.f32 0.0, %v871
      %v873 = vpop.f32.mrb[0].mxu0
      %874 = vmatprep.mubr.bf16.mxu0 0
      %875 = vmatmul.mubr.bf16.gmra.mrb[0].mxu0 %v631
      %v876 = vpop.f32.mrb[0].mxu0
      %v877 = vadd.f32 0.0, %v876
      %v878 = vpop.f32.mrb[0].mxu0
      %v879 = vpop.f32.mrb[0].mxu0
      %v880 = vadd.f32 0.0, %v879
      %v881 = vpop.f32.mrb[0].mxu0
      %882 = vmatprep.mubr.bf16.mxu0 0
      %883 = vmatmul.mubr.bf16.gmra.mrb[0].mxu0 %v634
      %v884 = vpop.f32.mrb[0].mxu0
      %v885 = vadd.f32 0.0, %v884
      %v886 = vpop.f32.mrb[0].mxu0
      %v887 = vpop.f32.mrb[0].mxu0
      %v888 = vadd.f32 0.0, %v887
      %v889 = vpop.f32.mrb[0].mxu0
      %890 = vmatprep.mubr.bf16.mxu0 0
      %891 = vmatmul.mubr.bf16.gmra.mrb[0].mxu0 %v637
      %v892 = vpop.f32.mrb[0].mxu0
      %v893 = vadd.f32 0.0, %v892
      %v894 = vpop.f32.mrb[0].mxu0
      %v895 = vpop.f32.mrb[0].mxu0
      %v896 = vadd.f32 0.0, %v895
      %v897 = vpop.f32.mrb[0].mxu0
      %898 = vmatprep.mubr.bf16.mxu0 0
      %899 = vmatmul.mubr.bf16.gmra.mrb[0].mxu0 %v640
      %v900 = vpop.f32.mrb[0].mxu0
      %v901 = vadd.f32 0.0, %v900
      %v902 = vpop.f32.mrb[0].mxu0
      %v903 = vpop.f32.mrb[0].mxu0
      %v904 = vadd.f32 0.0, %v903
      %v905 = vpop.f32.mrb[0].mxu0
      %906 = vmatprep.mubr.bf16.mxu0 0
      %907 = vmatmul.mubr.bf16.gmra.mrb[0].mxu0 %v643
      %v908 = vpop.f32.mrb[0].mxu0
      %v909 = vadd.f32 0.0, %v908
      %v910 = vpop.f32.mrb[0].mxu0
      %v911 = vpop.f32.mrb[0].mxu0
      %v912 = vadd.f32 0.0, %v911
      %v913 = vpop.f32.mrb[0].mxu0
      %914 = vmatprep.mubr.bf16.mxu0 0
      %915 = vmatmul.mubr.bf16.gmra.mrb[0].mxu0 %v646
      %v916 = vpop.f32.mrb[0].mxu0
      %v917 = vadd.f32 0.0, %v916
      %v918 = vpop.f32.mrb[0].mxu0
      %v919 = vpop.f32.mrb[0].mxu0
      %v920 = vadd.f32 0.0, %v919
      %v921 = vpop.f32.mrb[0].mxu0
      %922 = vmatprep.mubr.bf16.mxu0 0
      %923 = vmatmul.mubr.bf16.gmra.mrb[0].mxu0 %v649
      %v924 = vpop.f32.mrb[0].mxu0
      %v925 = vadd.f32 0.0, %v924
      %v926 = vpop.f32.mrb[0].mxu0
      %v927 = vpop.f32.mrb[0].mxu0
      %v928 = vadd.f32 0.0, %v927
      %v929 = vpop.f32.mrb[0].mxu0
      %930 = vmatprep.mubr.bf16.mxu0 0
      %931 = vmatmul.mubr.bf16.gmra.mrb[0].mxu0 %v652
      %v932 = vpop.f32.mrb[0].mxu0
      %v933 = vadd.f32 0.0, %v932
      %v934 = vpop.f32.mrb[0].mxu0
      %v935 = vpop.f32.mrb[0].mxu0
      %v936 = vadd.f32 0.0, %v935
      %v937 = vpop.f32.mrb[0].mxu0
      %938 = vmatprep.mubr.bf16.mxu0 0
      %939 = vmatmul.mubr.bf16.gmra.mrb[0].mxu0 %v655
      %v940 = vpop.f32.mrb[0].mxu0
      %v941 = vadd.f32 0.0, %v940
      %v942 = vpop.f32.mrb[0].mxu0
      %v943 = vpop.f32.mrb[0].mxu0
      %v944 = vadd.f32 0.0, %v943
      %v945 = vpop.f32.mrb[0].mxu0
      %946 = vmatprep.mubr.bf16.mxu0 0
      %947 = vmatmul.mubr.bf16.gmra.mrb[0].mxu0 %v658
      %v948 = vpop.f32.mrb[0].mxu0
      %v949 = vadd.f32 0.0, %v948
      %v950 = vpop.f32.mrb[0].mxu0
      %v951 = vpop.f32.mrb[0].mxu0
      %v952 = vadd.f32 0.0, %v951
      %v953 = vpop.f32.mrb[0].mxu0
      %954 = vmatprep.mubr.bf16.mxu0 0
      %955 = vmatmul.mubr.bf16.gmra.mrb[0].mxu0 %v661
      %v956 = vpop.f32.mrb[0].mxu0
      %v957 = vadd.f32 0.0, %v956
      %v958 = vpop.f32.mrb[0].mxu0
      %v959 = vpop.f32.mrb[0].mxu0
      %v960 = vadd.f32 0.0, %v959
      %v961 = vpop.f32.mrb[0].mxu0
      %962 = vmatprep.mubr.bf16.mxu0 0
      %963 = vmatmul.mubr.bf16.gmra.mrb[0].mxu0 %v664
      %v964 = vpop.f32.mrb[0].mxu0
      %v965 = vadd.f32 0.0, %v964
      %v966 = vpop.f32.mrb[0].mxu0
      %v967 = vpop.f32.mrb[0].mxu0
      %v968 = vadd.f32 0.0, %v967
      %v969 = vpop.f32.mrb[0].mxu0
      %970 = vmatprep.mubr.bf16.mxu0 0
      %971 = vmatmul.mubr.bf16.gmra.mrb[0].mxu0 %v667
      %v972 = vpop.f32.mrb[0].mxu0
      %v973 = vadd.f32 0.0, %v972
      %v974 = vpop.f32.mrb[0].mxu0
      %v975 = vpop.f32.mrb[0].mxu0
      %v976 = vadd.f32 0.0, %v975
      %v977 = vpop.f32.mrb[0].mxu0
      %978 = vmatprep.mubr.bf16.mxu0 0
      %979 = vmatmul.mubr.bf16.gmra.mrb[0].mxu0 %v670
      %v980 = vpop.f32.mrb[0].mxu0
      %v981 = vadd.f32 0.0, %v980
      %v982 = vpop.f32.mrb[0].mxu0
      %v983 = vpop.f32.mrb[0].mxu0
      %v984 = vadd.f32 0.0, %v983
      %v985 = vpop.f32.mrb[0].mxu0
      %986 = vmatprep.mubr.bf16.mxu0 0
      %987 = vmatmul.mubr.bf16.gmra.mrb[0].mxu0 %v673
      %v988 = vpop.f32.mrb[0].mxu0
      %v989 = vadd.f32 0.0, %v988
      %v990 = vpop.f32.mrb[0].mxu0
      %v991 = vpop.f32.mrb[0].mxu0
      %v992 = vadd.f32 0.0, %v991
      %v993 = vpop.f32.mrb[0].mxu0
      %994 = vmatprep.mubr.bf16.mxu0 0
      %995 = vmatmul.mubr.bf16.gmra.mrb[0].mxu0 %v676
      %v996 = vpop.f32.mrb[0].mxu0
      %v997 = vadd.f32 0.0, %v996
      %v998 = vpop.f32.mrb[0].mxu0
      %v999 = vpop.f32.mrb[0].mxu0
      %v1000 = vadd.f32 0.0, %v999
      %v1001 = vpop.f32.mrb[0].mxu0
      %1002 = vmatprep.mubr.bf16.mxu0 0
      %1003 = vmatmul.mubr.bf16.gmra.mrb[0].mxu0 %v679
      %v1004 = vpop.f32.mrb[0].mxu0
      %v1005 = vadd.f32 0.0, %v1004
      %v1006 = vpop.f32.mrb[0].mxu0
      %v1007 = vpop.f32.mrb[0].mxu0
      %v1008 = vadd.f32 0.0, %v1007
      %v1009 = vpop.f32.mrb[0].mxu0
      %1010 = vmatprep.mubr.bf16.mxu0 0
      %1011 = vmatmul.mubr.bf16.gmra.mrb[0].mxu0 %v682
      %v1012 = vpop.f32.mrb[0].mxu0
      %v1013 = vadd.f32 0.0, %v1012
      %v1014 = vpop.f32.mrb[0].mxu0
      %v1015 = vpop.f32.mrb[0].mxu0
      %v1016 = vadd.f32 0.0, %v1015
      %v1017 = vpop.f32.mrb[0].mxu0
      %1018 = vmatprep.mubr.bf16.mxu0 0
      %1019 = vmatmul.mubr.bf16.gmra.mrb[0].mxu0 %v685
      %v1020 = vpop.f32.mrb[0].mxu0
      %v1021 = vadd.f32 0.0, %v1020
      %v1022 = vpop.f32.mrb[0].mxu0
      %v1023 = vpop.f32.mrb[0].mxu0
      %v1024 = vadd.f32 0.0, %v1023
      %v1025 = vpop.f32.mrb[0].mxu0
      %1026 = vmatprep.mubr.bf16.mxu0 0
      %1027 = vmatmul.mubr.bf16.gmra.mrb[0].mxu0 %v688
      %v1028 = vpop.f32.mrb[0].mxu0
      %v1029 = vadd.f32 0.0, %v1028
      %v1030 = vpop.f32.mrb[0].mxu0
      %v1031 = vpop.f32.mrb[0].mxu0
      %v1032 = vadd.f32 0.0, %v1031
      %v1033 = vpop.f32.mrb[0].mxu0
      %1034 = vmatprep.mubr.bf16.mxu0 0
      %1035 = vmatmul.mubr.bf16.gmra.mrb[0].mxu0 %v691
      %v1036 = vpop.f32.mrb[0].mxu0
      %v1037 = vadd.f32 0.0, %v1036
      %v1038 = vpop.f32.mrb[0].mxu0
      %v1039 = vpop.f32.mrb[0].mxu0
      %v1040 = vadd.f32 0.0, %v1039
      %v1041 = vpop.f32.mrb[0].mxu0
      %1042 = vmatprep.mubr.bf16.mxu0 0
      %1043 = vmatmul.mubr.bf16.gmra.mrb[0].mxu0 %v694
      %v1044 = vpop.f32.mrb[0].mxu0
      %v1045 = vadd.f32 0.0, %v1044
      %v1046 = vpop.f32.mrb[0].mxu0
      %v1047 = vpop.f32.mrb[0].mxu0
      %v1048 = vadd.f32 0.0, %v1047
      %v1049 = vpop.f32.mrb[0].mxu0
      %1050 = vmatprep.mubr.bf16.mxu0 0
      %1051 = vmatmul.mubr.bf16.gmra.mrb[0].mxu0 %v697
      %v1052 = vpop.f32.mrb[0].mxu0
      %v1053 = vadd.f32 0.0, %v1052
      %v1054 = vpop.f32.mrb[0].mxu0
      %v1055 = vpop.f32.mrb[0].mxu0
      %v1056 = vadd.f32 0.0, %v1055
      %v1057 = vpop.f32.mrb[0].mxu0
      %1058 = vmatprep.mubr.bf16.mxu0 0
      %1059 = vmatmul.mubr.bf16.gmra.mrb[0].mxu0 %v700
      %v1060 = vpop.f32.mrb[0].mxu0
      %v1061 = vadd.f32 0.0, %v1060
      %v1062 = vpop.f32.mrb[0].mxu0
      %v1063 = vpop.f32.mrb[0].mxu0
      %v1064 = vadd.f32 0.0, %v1063
      %v1065 = vpop.f32.mrb[0].mxu0
      %1066 = vmatprep.mubr.bf16.mxu0 0
      %1067 = vmatmul.mubr.bf16.gmra.mrb[0].mxu0 %v703
      %v1068 = vpop.f32.mrb[0].mxu0
      %v1069 = vadd.f32 0.0, %v1068
      %v1070 = vpop.f32.mrb[0].mxu0
      %v1071 = vpop.f32.mrb[0].mxu0
      %v1072 = vadd.f32 0.0, %v1071
      %v1073 = vpop.f32.mrb[0].mxu0
      %1074 = vmatprep.mubr.bf16.mxu0 0
      %1075 = vmatmul.mubr.bf16.gmra.mrb[0].mxu0 %v706
      %v1076 = vpop.f32.mrb[0].mxu0
      %v1077 = vadd.f32 0.0, %v1076
      %v1078 = vpop.f32.mrb[0].mxu0
      %v1079 = vpop.f32.mrb[0].mxu0
      %v1080 = vadd.f32 0.0, %v1079
      %v1081 = vpop.f32.mrb[0].mxu0
      %1082 = vmatprep.mubr.bf16.mxu0 0
      %1083 = vmatmul.mubr.bf16.gmra.mrb[0].mxu0 %v709
      %v1084 = vpop.f32.mrb[0].mxu0
      %v1085 = vadd.f32 0.0, %v1084
      %v1086 = vpop.f32.mrb[0].mxu0
      %v1087 = vpop.f32.mrb[0].mxu0
      %v1088 = vadd.f32 0.0, %v1087
      %v1089 = vpop.f32.mrb[0].mxu0
      %1090 = vmatprep.mubr.bf16.mxu0 0
      %1091 = vmatmul.mubr.bf16.gmra.mrb[0].mxu0 %v712
      %v1092 = vpop.f32.mrb[0].mxu0
      %v1093 = vadd.f32 0.0, %v1092
      %v1094 = vpop.f32.mrb[0].mxu0
      %v1095 = vpop.f32.mrb[0].mxu0
      %v1096 = vadd.f32 0.0, %v1095
      %v1097 = vpop.f32.mrb[0].mxu0
      %1098 = vmatprep.mubr.bf16.mxu0 0
      %1099 = vmatmul.mubr.bf16.gmra.mrb[0].mxu0 %v715
      %v1100 = vpop.f32.mrb[0].mxu0
      %v1101 = vadd.f32 0.0, %v1100
      %v1102 = vpop.f32.mrb[0].mxu0
      %v1103 = vpop.f32.mrb[0].mxu0
      %v1104 = vadd.f32 0.0, %v1103
      %v1105 = vpop.f32.mrb[0].mxu0
      %1106 = vmatprep.mubr.bf16.mxu0 0
      %1107 = vmatmul.mubr.bf16.gmra.mrb[0].mxu0 %v718
      %v1108 = vpop.f32.mrb[0].mxu0
      %v1109 = vadd.f32 0.0, %v1108
      %v1110 = vpop.f32.mrb[0].mxu0
      %v1111 = vpop.f32.mrb[0].mxu0
      %v1112 = vadd.f32 0.0, %v1111
      %v1113 = vpop.f32.mrb[0].mxu0
      %1114 = vmatprep.mubr.bf16.mxu0 0
      %1115 = vmatmul.mubr.bf16.gmra.mrb[0].mxu0 %v721
      %v1116 = vpop.f32.mrb[0].mxu0
      %v1117 = vadd.f32 0.0, %v1116
      %v1118 = vpop.f32.mrb[0].mxu0
      %v1119 = vpop.f32.mrb[0].mxu0
      %v1120 = vadd.f32 0.0, %v1119
      %v1121 = vpop.f32.mrb[0].mxu0
      %1122 = vmatprep.mubr.bf16.mxu0 0
      %1123 = vmatmul.mubr.bf16.gmra.mrb[0].mxu0 %v724
      %v1124 = vpop.f32.mrb[0].mxu0
      %v1125 = vadd.f32 0.0, %v1124
      %v1126 = vpop.f32.mrb[0].mxu0
      %v1127 = vpop.f32.mrb[0].mxu0
      %v1128 = vadd.f32 0.0, %v1127
      %v1129 = vpop.f32.mrb[0].mxu0
      %1130 = vmatprep.mubr.bf16.mxu0 0
      %1131 = vmatmul.mubr.bf16.gmra.mrb[0].mxu0 %v727
      %v1132 = vpop.f32.mrb[0].mxu0
      %v1133 = vadd.f32 0.0, %v1132
      %v1134 = vpop.f32.mrb[0].mxu0
      %v1135 = vpop.f32.mrb[0].mxu0
      %v1136 = vadd.f32 0.0, %v1135
      %v1137 = vpop.f32.mrb[0].mxu0
      %1138 = vmatprep.mubr.bf16.mxu0 0
      %1139 = vmatmul.mubr.bf16.gmra.mrb[0].mxu0 %v730
      %v1140 = vpop.f32.mrb[0].mxu0
      %v1141 = vadd.f32 0.0, %v1140
      %v1142 = vpop.f32.mrb[0].mxu0
      %v1143 = vpop.f32.mrb[0].mxu0
      %v1144 = vadd.f32 0.0, %v1143
      %v1145 = vpop.f32.mrb[0].mxu0
      %1146 = vmatprep.mubr.bf16.mxu0 0
      %1147 = vmatmul.mubr.bf16.gmra.mrb[0].mxu0 %v733
      %v1148 = vpop.f32.mrb[0].mxu0
      %v1149 = vadd.f32 0.0, %v1148
      %v1150 = vpop.f32.mrb[0].mxu0
      %v1151 = vpop.f32.mrb[0].mxu0
      %v1152 = vadd.f32 0.0, %v1151
      %v1153 = vpop.f32.mrb[0].mxu0
      %1154 = vmatprep.mubr.bf16.mxu0 0
      %1155 = vmatmul.mubr.bf16.gmra.mrb[0].mxu0 %v736
      %v1156 = vpop.f32.mrb[0].mxu0
      %v1157 = vadd.f32 0.0, %v1156
      %v1158 = vpop.f32.mrb[0].mxu0
      %v1159 = vpop.f32.mrb[0].mxu0
      %v1160 = vadd.f32 0.0, %v1159
      %v1161 = vpop.f32.mrb[0].mxu0
      %1162 = vmatprep.mubr.bf16.mxu0 0
      %1163 = vmatmul.mubr.bf16.gmra.mrb[0].mxu0 %v739
      %v1164 = vpop.f32.mrb[0].mxu0
      %v1165 = vadd.f32 0.0, %v1164
      %v1166 = vpop.f32.mrb[0].mxu0
      %v1167 = vpop.f32.mrb[0].mxu0
      %v1168 = vadd.f32 0.0, %v1167
      %v1169 = vpop.f32.mrb[0].mxu0
      %1170 = vmatprep.mubr.bf16.mxu0 0
      %1171 = vmatmul.mubr.bf16.gmra.mrb[0].mxu0 %v742
      %v1172 = vpop.f32.mrb[0].mxu0
      %v1173 = vadd.f32 0.0, %v1172
      %v1174 = vpop.f32.mrb[0].mxu0
      %v1175 = vpop.f32.mrb[0].mxu0
      %v1176 = vadd.f32 0.0, %v1175
      %v1177 = vpop.f32.mrb[0].mxu0
      %1178 = vmatprep.mubr.bf16.mxu0 0
      %1179 = vmatmul.mubr.bf16.gmra.mrb[0].mxu0 %v745
      %v1180 = vpop.f32.mrb[0].mxu0
      %v1181 = vadd.f32 0.0, %v1180
      %v1182 = vpop.f32.mrb[0].mxu0
      %v1183 = vpop.f32.mrb[0].mxu0
      %v1184 = vadd.f32 0.0, %v1183
      %v1185 = vpop.f32.mrb[0].mxu0
      %1186 = vmatprep.mubr.bf16.mxu0 0
      %1187 = vmatmul.mubr.bf16.gmra.mrb[0].mxu0 %v748
      %v1188 = vpop.f32.mrb[0].mxu0
      %v1189 = vadd.f32 0.0, %v1188
      %v1190 = vpop.f32.mrb[0].mxu0
      %v1191 = vpop.f32.mrb[0].mxu0
      %v1192 = vadd.f32 0.0, %v1191
      %v1193 = vpop.f32.mrb[0].mxu0
      %1194 = vmatprep.mubr.bf16.mxu0 0
      %1195 = vmatmul.mubr.bf16.gmra.mrb[0].mxu0 %v751
      %v1196 = vpop.f32.mrb[0].mxu0
      %v1197 = vadd.f32 0.0, %v1196
      %v1198 = vpop.f32.mrb[0].mxu0
      %v1199 = vpop.f32.mrb[0].mxu0
      %v1200 = vadd.f32 0.0, %v1199
      %v1201 = vpop.f32.mrb[0].mxu0
      %1202 = vmatprep.mubr.bf16.mxu0 0
      %1203 = vmatmul.mubr.bf16.gmra.mrb[0].mxu0 %v754
      %v1204 = vpop.f32.mrb[0].mxu0
      %v1205 = vadd.f32 0.0, %v1204
      %v1206 = vpop.f32.mrb[0].mxu0
      %v1207 = vpop.f32.mrb[0].mxu0
      %v1208 = vadd.f32 0.0, %v1207
      %v1209 = vpop.f32.mrb[0].mxu0
      %1210 = vmatprep.mubr.bf16.mxu0 0
      %1211 = vmatmul.mubr.bf16.gmra.mrb[0].mxu0 %v757
      %v1212 = vpop.f32.mrb[0].mxu0
      %v1213 = vadd.f32 0.0, %v1212
      %v1214 = vpop.f32.mrb[0].mxu0
      %v1215 = vpop.f32.mrb[0].mxu0
      %v1216 = vadd.f32 0.0, %v1215
      %v1217 = vpop.f32.mrb[0].mxu0
      %1218 = vmatprep.mubr.bf16.mxu0 0
      %1219 = vmatmul.mubr.bf16.gmra.mrb[0].mxu0 %v760
      %v1220 = vpop.f32.mrb[0].mxu0
      %v1221 = vadd.f32 0.0, %v1220
      %v1222 = vpop.f32.mrb[0].mxu0
      %v1223 = vpop.f32.mrb[0].mxu0
      %v1224 = vadd.f32 0.0, %v1223
      %v1225 = vpop.f32.mrb[0].mxu0
      %1226 = vmatprep.mubr.bf16.mxu0 0
      %1227 = vmatmul.mubr.bf16.gmra.mrb[0].mxu0 %v763
      %v1228 = vpop.f32.mrb[0].mxu0
      %v1229 = vadd.f32 0.0, %v1228
      %v1230 = vpop.f32.mrb[0].mxu0
      %v1231 = vpop.f32.mrb[0].mxu0
      %v1232 = vadd.f32 0.0, %v1231
      %v1233 = vpop.f32.mrb[0].mxu0
      %1234 = vmatprep.mubr.bf16.mxu0 0
      %1235 = vmatmul.mubr.bf16.gmra.mrb[0].mxu0 %v766
      %v1236 = vpop.f32.mrb[0].mxu0
      %v1237 = vadd.f32 0.0, %v1236
      %v1238 = vpop.f32.mrb[0].mxu0
      %v1239 = vpop.f32.mrb[0].mxu0
      %v1240 = vadd.f32 0.0, %v1239
      %v1241 = vpop.f32.mrb[0].mxu0
      %1242 = vmatprep.mubr.bf16.mxu0 0
      %1243 = vmatmul.mubr.bf16.gmra.mrb[0].mxu0 %v769
      %v1244 = vpop.f32.mrb[0].mxu0
      %v1245 = vadd.f32 0.0, %v1244
      %v1246 = vpop.f32.mrb[0].mxu0
      %v1247 = vpop.f32.mrb[0].mxu0
      %v1248 = vadd.f32 0.0, %v1247
      %v1249 = vpop.f32.mrb[0].mxu0
      %1250 = vmatprep.mubr.bf16.mxu0 0
      %1251 = vmatmul.mubr.bf16.gmra.mrb[0].mxu0 %v772
      %v1252 = vpop.f32.mrb[0].mxu0
      %v1253 = vadd.f32 0.0, %v1252
      %v1254 = vpop.f32.mrb[0].mxu0
      %v1255 = vpop.f32.mrb[0].mxu0
      %v1256 = vadd.f32 0.0, %v1255
      %v1257 = vpop.f32.mrb[0].mxu0
      %1258 = vmatprep.mubr.bf16.mxu0 0
      %1259 = vmatmul.mubr.bf16.gmra.mrb[0].mxu0 %v775
      %v1260 = vpop.f32.mrb[0].mxu0
      %v1261 = vadd.f32 0.0, %v1260
      %v1262 = vpop.f32.mrb[0].mxu0
      %v1263 = vpop.f32.mrb[0].mxu0
      %v1264 = vadd.f32 0.0, %v1263
      %v1265 = vpop.f32.mrb[0].mxu0
      %1266 = vmatprep.mubr.bf16.mxu0 0
      %1267 = vmatmul.mubr.bf16.gmra.mrb[0].mxu0 %v778
      %v1268 = vpop.f32.mrb[0].mxu0
      %v1269 = vadd.f32 0.0, %v1268
      %v1270 = vpop.f32.mrb[0].mxu0
      %v1271 = vpop.f32.mrb[0].mxu0
      %v1272 = vadd.f32 0.0, %v1271
      %v1273 = vpop.f32.mrb[0].mxu0
      %1274 = vmatprep.mubr.bf16.mxu0 0
      %1275 = vmatmul.mubr.bf16.gmra.mrb[0].mxu0 %v781
      %v1276 = vpop.f32.mrb[0].mxu0
      %v1277 = vadd.f32 0.0, %v1276
      %v1278 = vpop.f32.mrb[0].mxu0
      %v1279 = vpop.f32.mrb[0].mxu0
      %v1280 = vadd.f32 0.0, %v1279
      %v1281 = vpop.f32.mrb[0].mxu0
      %1282 = vmatprep.mubr.bf16.mxu0 0
      %1283 = vmatmul.mubr.bf16.gmra.mrb[0].mxu0 %v784
      %v1284 = vpop.f32.mrb[0].mxu0
      %v1285 = vadd.f32 0.0, %v1284
      %v1286 = vpop.f32.mrb[0].mxu0
      %v1287 = vpop.f32.mrb[0].mxu0
      %v1288 = vadd.f32 0.0, %v1287
      %v1289 = vpop.f32.mrb[0].mxu0
      %1290 = vmatprep.mubr.bf16.mxu0 0
      %1291 = vmatmul.mubr.bf16.gmra.mrb[0].mxu0 %v787
      %v1292 = vpop.f32.mrb[0].mxu0
      %v1293 = vadd.f32 0.0, %v1292
      %v1294 = vpop.f32.mrb[0].mxu0
      %v1295 = vpop.f32.mrb[0].mxu0
      %v1296 = vadd.f32 0.0, %v1295
      %v1297 = vpop.f32.mrb[0].mxu0
      %1298 = vmatprep.mubr.bf16.mxu0 0
      %1299 = vmatmul.mubr.bf16.gmra.mrb[0].mxu0 %v790
      %v1300 = vpop.f32.mrb[0].mxu0
      %v1301 = vadd.f32 0.0, %v1300
      %v1302 = vpop.f32.mrb[0].mxu0
      %v1303 = vpop.f32.mrb[0].mxu0
      %v1304 = vadd.f32 0.0, %v1303
      %v1305 = vpop.f32.mrb[0].mxu0
      %1306 = vmatprep.mubr.bf16.mxu0 0
      %1307 = vmatmul.mubr.bf16.gmra.mrb[0].mxu0 %v793
      %v1308 = vpop.f32.mrb[0].mxu0
      %v1309 = vadd.f32 0.0, %v1308
      %v1310 = vpop.f32.mrb[0].mxu0
      %v1311 = vpop.f32.mrb[0].mxu0
      %v1312 = vadd.f32 0.0, %v1311
      %v1313 = vpop.f32.mrb[0].mxu0
      %1314 = vmatprep.mubr.bf16.mxu0 0
      %1315 = vmatmul.mubr.bf16.gmra.mrb[0].mxu0 %v796
      %v1316 = vpop.f32.mrb[0].mxu0
      %v1317 = vadd.f32 0.0, %v1316
      %v1318 = vpop.f32.mrb[0].mxu0
      %v1319 = vpop.f32.mrb[0].mxu0
      %v1320 = vadd.f32 0.0, %v1319
      %v1321 = vpop.f32.mrb[0].mxu0
      %1322 = vmatprep.mubr.bf16.mxu0 0
      %1323 = vmatmul.mubr.bf16.gmra.mrb[0].mxu0 %v799
      %v1324 = vpop.f32.mrb[0].mxu0
      %v1325 = vadd.f32 0.0, %v1324
      %v1326 = vpop.f32.mrb[0].mxu0
      %v1327 = vpop.f32.mrb[0].mxu0
      %v1328 = vadd.f32 0.0, %v1327
      %v1329 = vpop.f32.mrb[0].mxu0
      %1330 = vmatprep.mubr.bf16.mxu0 0
      %1331 = vmatmul.mubr.bf16.gmra.mrb[0].mxu0 %v802
      %v1332 = vpop.f32.mrb[0].mxu0
      %v1333 = vadd.f32 0.0, %v1332
      %v1334 = vpop.f32.mrb[0].mxu0
      %v1335 = vpop.f32.mrb[0].mxu0
      %v1336 = vadd.f32 0.0, %v1335
      %v1337 = vpop.f32.mrb[0].mxu0
      %1338 = vmatprep.mubr.bf16.mxu0 0
      %1339 = vmatmul.mubr.bf16.gmra.mrb[0].mxu0 %v805
      %v1340 = vpop.f32.mrb[0].mxu0
      %v1341 = vadd.f32 0.0, %v1340
      %v1342 = vpop.f32.mrb[0].mxu0
      %v1343 = vpop.f32.mrb[0].mxu0
      %v1344 = vadd.f32 0.0, %v1343
      %v1345 = vpop.f32.mrb[0].mxu0
      %1346 = vmatprep.mubr.bf16.mxu0 0
      %1347 = vmatmul.mubr.bf16.gmra.mrb[0].mxu0 %v808
      %v1348 = vpop.f32.mrb[0].mxu0
      %v1349 = vadd.f32 0.0, %v1348
      %v1350 = vpop.f32.mrb[0].mxu0
      %v1351 = vpop.f32.mrb[0].mxu0
      %v1352 = vadd.f32 0.0, %v1351
      %v1353 = vpop.f32.mrb[0].mxu0
      %1354 = vdwg.mxu0
      %vm1355 = vcmp.gt.f32.partialorder %v845, 0.0
      %vm1356 = vcmp.gt.f32.partialorder %v848, 0.0
      %vm1357 = vcmp.gt.f32.partialorder %v853, 0.0
      %vm1358 = vcmp.gt.f32.partialorder %v856, 0.0
      %vm1359 = vcmp.gt.f32.partialorder %v861, 0.0
      %vm1360 = vcmp.gt.f32.partialorder %v864, 0.0
      %vm1361 = vcmp.gt.f32.partialorder %v869, 0.0
      %vm1362 = vcmp.gt.f32.partialorder %v872, 0.0
      %vm1363 = vcmp.gt.f32.partialorder %v877, 0.0
      %vm1364 = vcmp.gt.f32.partialorder %v880, 0.0
      %vm1365 = vcmp.gt.f32.partialorder %v885, 0.0
      %vm1366 = vcmp.gt.f32.partialorder %v888, 0.0
      %vm1367 = vcmp.gt.f32.partialorder %v893, 0.0
      %vm1368 = vcmp.gt.f32.partialorder %v896, 0.0
      %vm1369 = vcmp.gt.f32.partialorder %v901, 0.0
      %vm1370 = vcmp.gt.f32.partialorder %v904, 0.0
      %vm1371 = vcmp.gt.f32.partialorder %v909, 0.0
      %vm1372 = vcmp.gt.f32.partialorder %v912, 0.0
      %vm1373 = vcmp.gt.f32.partialorder %v917, 0.0
      %vm1374 = vcmp.gt.f32.partialorder %v920, 0.0
      %vm1375 = vcmp.gt.f32.partialorder %v925, 0.0
      %vm1376 = vcmp.gt.f32.partialorder %v928, 0.0
      %vm1377 = vcmp.gt.f32.partialorder %v933, 0.0
      %vm1378 = vcmp.gt.f32.partialorder %v936, 0.0
      %vm1379 = vcmp.gt.f32.partialorder %v941, 0.0
      %vm1380 = vcmp.gt.f32.partialorder %v944, 0.0
      %vm1381 = vcmp.gt.f32.partialorder %v949, 0.0
      %vm1382 = vcmp.gt.f32.partialorder %v952, 0.0
      %vm1383 = vcmp.gt.f32.partialorder %v957, 0.0
      %vm1384 = vcmp.gt.f32.partialorder %v960, 0.0
      %vm1385 = vcmp.gt.f32.partialorder %v965, 0.0
      %vm1386 = vcmp.gt.f32.partialorder %v968, 0.0
      %vm1387 = vcmp.gt.f32.partialorder %v973, 0.0
      %vm1388 = vcmp.gt.f32.partialorder %v976, 0.0
      %vm1389 = vcmp.gt.f32.partialorder %v981, 0.0
      %vm1390 = vcmp.gt.f32.partialorder %v984, 0.0
      %vm1391 = vcmp.gt.f32.partialorder %v989, 0.0
      %vm1392 = vcmp.gt.f32.partialorder %v992, 0.0
      %vm1393 = vcmp.gt.f32.partialorder %v997, 0.0
      %vm1394 = vcmp.gt.f32.partialorder %v1000, 0.0
      %vm1395 = vcmp.gt.f32.partialorder %v1005, 0.0
      %vm1396 = vcmp.gt.f32.partialorder %v1008, 0.0
      %vm1397 = vcmp.gt.f32.partialorder %v1013, 0.0
      %vm1398 = vcmp.gt.f32.partialorder %v1016, 0.0
      %vm1399 = vcmp.gt.f32.partialorder %v1021, 0.0
      %vm1400 = vcmp.gt.f32.partialorder %v1024, 0.0
      %vm1401 = vcmp.gt.f32.partialorder %v1029, 0.0
      %vm1402 = vcmp.gt.f32.partialorder %v1032, 0.0
      %vm1403 = vcmp.gt.f32.partialorder %v1037, 0.0
      %vm1404 = vcmp.gt.f32.partialorder %v1040, 0.0
      %vm1405 = vcmp.gt.f32.partialorder %v1045, 0.0
      %vm1406 = vcmp.gt.f32.partialorder %v1048, 0.0
      %vm1407 = vcmp.gt.f32.partialorder %v1053, 0.0
      %vm1408 = vcmp.gt.f32.partialorder %v1056, 0.0
      %vm1409 = vcmp.gt.f32.partialorder %v1061, 0.0
      %vm1410 = vcmp.gt.f32.partialorder %v1064, 0.0
      %vm1411 = vcmp.gt.f32.partialorder %v1069, 0.0
      %vm1412 = vcmp.gt.f32.partialorder %v1072, 0.0
      %vm1413 = vcmp.gt.f32.partialorder %v1077, 0.0
      %vm1414 = vcmp.gt.f32.partialorder %v1080, 0.0
      %vm1415 = vcmp.gt.f32.partialorder %v1085, 0.0
      %vm1416 = vcmp.gt.f32.partialorder %v1088, 0.0
      %vm1417 = vcmp.gt.f32.partialorder %v1093, 0.0
      %vm1418 = vcmp.gt.f32.partialorder %v1096, 0.0
      %vm1419 = vcmp.gt.f32.partialorder %v1101, 0.0
      %vm1420 = vcmp.gt.f32.partialorder %v1104, 0.0
      %vm1421 = vcmp.gt.f32.partialorder %v1109, 0.0
      %vm1422 = vcmp.gt.f32.partialorder %v1112, 0.0
      %vm1423 = vcmp.gt.f32.partialorder %v1117, 0.0
      %vm1424 = vcmp.gt.f32.partialorder %v1120, 0.0
      %vm1425 = vcmp.gt.f32.partialorder %v1125, 0.0
      %vm1426 = vcmp.gt.f32.partialorder %v1128, 0.0
      %vm1427 = vcmp.gt.f32.partialorder %v1133, 0.0
      %vm1428 = vcmp.gt.f32.partialorder %v1136, 0.0
      %vm1429 = vcmp.gt.f32.partialorder %v1141, 0.0
      %vm1430 = vcmp.gt.f32.partialorder %v1144, 0.0
      %vm1431 = vcmp.gt.f32.partialorder %v1149, 0.0
      %vm1432 = vcmp.gt.f32.partialorder %v1152, 0.0
      %vm1433 = vcmp.gt.f32.partialorder %v1157, 0.0
      %vm1434 = vcmp.gt.f32.partialorder %v1160, 0.0
      %vm1435 = vcmp.gt.f32.partialorder %v1165, 0.0
      %vm1436 = vcmp.gt.f32.partialorder %v1168, 0.0
      %vm1437 = vcmp.gt.f32.partialorder %v1173, 0.0
      %vm1438 = vcmp.gt.f32.partialorder %v1176, 0.0
      %vm1439 = vcmp.gt.f32.partialorder %v1181, 0.0
      %vm1440 = vcmp.gt.f32.partialorder %v1184, 0.0
      %vm1441 = vcmp.gt.f32.partialorder %v1189, 0.0
      %vm1442 = vcmp.gt.f32.partialorder %v1192, 0.0
      %vm1443 = vcmp.gt.f32.partialorder %v1197, 0.0
      %vm1444 = vcmp.gt.f32.partialorder %v1200, 0.0
      %vm1445 = vcmp.gt.f32.partialorder %v1205, 0.0
      %vm1446 = vcmp.gt.f32.partialorder %v1208, 0.0
      %vm1447 = vcmp.gt.f32.partialorder %v1213, 0.0
      %vm1448 = vcmp.gt.f32.partialorder %v1216, 0.0
      %vm1449 = vcmp.gt.f32.partialorder %v1221, 0.0
      %vm1450 = vcmp.gt.f32.partialorder %v1224, 0.0
      %vm1451 = vcmp.gt.f32.partialorder %v1229, 0.0
      %vm1452 = vcmp.gt.f32.partialorder %v1232, 0.0
      %vm1453 = vcmp.gt.f32.partialorder %v1237, 0.0
      %vm1454 = vcmp.gt.f32.partialorder %v1240, 0.0
      %vm1455 = vcmp.gt.f32.partialorder %v1245, 0.0
      %vm1456 = vcmp.gt.f32.partialorder %v1248, 0.0
      %vm1457 = vcmp.gt.f32.partialorder %v1253, 0.0
      %vm1458 = vcmp.gt.f32.partialorder %v1256, 0.0
      %vm1459 = vcmp.gt.f32.partialorder %v1261, 0.0
      %vm1460 = vcmp.gt.f32.partialorder %v1264, 0.0
      %vm1461 = vcmp.gt.f32.partialorder %v1269, 0.0
      %vm1462 = vcmp.gt.f32.partialorder %v1272, 0.0
      %vm1463 = vcmp.gt.f32.partialorder %v1277, 0.0
      %vm1464 = vcmp.gt.f32.partialorder %v1280, 0.0
      %vm1465 = vcmp.gt.f32.partialorder %v1285, 0.0
      %vm1466 = vcmp.gt.f32.partialorder %v1288, 0.0
      %vm1467 = vcmp.gt.f32.partialorder %v1293, 0.0
      %vm1468 = vcmp.gt.f32.partialorder %v1296, 0.0
      %vm1469 = vcmp.gt.f32.partialorder %v1301, 0.0
      %vm1470 = vcmp.gt.f32.partialorder %v1304, 0.0
      %vm1471 = vcmp.gt.f32.partialorder %v1309, 0.0
      %vm1472 = vcmp.gt.f32.partialorder %v1312, 0.0
      %vm1473 = vcmp.gt.f32.partialorder %v1317, 0.0
      %vm1474 = vcmp.gt.f32.partialorder %v1320, 0.0
      %vm1475 = vcmp.gt.f32.partialorder %v1325, 0.0
      %vm1476 = vcmp.gt.f32.partialorder %v1328, 0.0
      %vm1477 = vcmp.gt.f32.partialorder %v1333, 0.0
      %vm1478 = vcmp.gt.f32.partialorder %v1336, 0.0
      %vm1479 = vcmp.gt.f32.partialorder %v1341, 0.0
      %vm1480 = vcmp.gt.f32.partialorder %v1344, 0.0
      %vm1481 = vcmp.gt.f32.partialorder %v1349, 0.0
      %vm1482 = vcmp.gt.f32.partialorder %v1352, 0.0
      %v1483 = vmul.f32 %v845, 0.2
      %v1484 = vmul.f32 %v848, 0.2
      %v1485 = vmul.f32 %v853, 0.2
      %v1486 = vmul.f32 %v856, 0.2
      %v1487 = vmul.f32 %v861, 0.2
      %v1488 = vmul.f32 %v864, 0.2
      %v1489 = vmul.f32 %v869, 0.2
      %v1490 = vmul.f32 %v872, 0.2
      %v1491 = vmul.f32 %v877, 0.2
      %v1492 = vmul.f32 %v880, 0.2
      %v1493 = vmul.f32 %v885, 0.2
      %v1494 = vmul.f32 %v888, 0.2
      %v1495 = vmul.f32 %v893, 0.2
      %v1496 = vmul.f32 %v896, 0.2
      %v1497 = vmul.f32 %v901, 0.2
      %v1498 = vmul.f32 %v904, 0.2
      %v1499 = vmul.f32 %v909, 0.2
      %v1500 = vmul.f32 %v912, 0.2
      %v1501 = vmul.f32 %v917, 0.2
      %v1502 = vmul.f32 %v920, 0.2
      %v1503 = vmul.f32 %v925, 0.2
      %v1504 = vmul.f32 %v928, 0.2
      %v1505 = vmul.f32 %v933, 0.2
      %v1506 = vmul.f32 %v936, 0.2
      %v1507 = vmul.f32 %v941, 0.2
      %v1508 = vmul.f32 %v944, 0.2
      %v1509 = vmul.f32 %v949, 0.2
      %v1510 = vmul.f32 %v952, 0.2
      %v1511 = vmul.f32 %v957, 0.2
      %v1512 = vmul.f32 %v960, 0.2
      %v1513 = vmul.f32 %v965, 0.2
      %v1514 = vmul.f32 %v968, 0.2
      %v1515 = vmul.f32 %v973, 0.2
      %v1516 = vmul.f32 %v976, 0.2
      %v1517 = vmul.f32 %v981, 0.2
      %v1518 = vmul.f32 %v984, 0.2
      %v1519 = vmul.f32 %v989, 0.2
      %v1520 = vmul.f32 %v992, 0.2
      %v1521 = vmul.f32 %v997, 0.2
      %v1522 = vmul.f32 %v1000, 0.2
      %v1523 = vmul.f32 %v1005, 0.2
      %v1524 = vmul.f32 %v1008, 0.2
      %v1525 = vmul.f32 %v1013, 0.2
      %v1526 = vmul.f32 %v1016, 0.2
      %v1527 = vmul.f32 %v1021, 0.2
      %v1528 = vmul.f32 %v1024, 0.2
      %v1529 = vmul.f32 %v1029, 0.2
      %v1530 = vmul.f32 %v1032, 0.2
      %v1531 = vmul.f32 %v1037, 0.2
      %v1532 = vmul.f32 %v1040, 0.2
      %v1533 = vmul.f32 %v1045, 0.2
      %v1534 = vmul.f32 %v1048, 0.2
      %v1535 = vmul.f32 %v1053, 0.2
      %v1536 = vmul.f32 %v1056, 0.2
      %v1537 = vmul.f32 %v1061, 0.2
      %v1538 = vmul.f32 %v1064, 0.2
      %v1539 = vmul.f32 %v1069, 0.2
      %v1540 = vmul.f32 %v1072, 0.2
      %v1541 = vmul.f32 %v1077, 0.2
      %v1542 = vmul.f32 %v1080, 0.2
      %v1543 = vmul.f32 %v1085, 0.2
      %v1544 = vmul.f32 %v1088, 0.2
      %v1545 = vmul.f32 %v1093, 0.2
      %v1546 = vmul.f32 %v1096, 0.2
      %v1547 = vmul.f32 %v1101, 0.2
      %v1548 = vmul.f32 %v1104, 0.2
      %v1549 = vmul.f32 %v1109, 0.2
      %v1550 = vmul.f32 %v1112, 0.2
      %v1551 = vmul.f32 %v1117, 0.2
      %v1552 = vmul.f32 %v1120, 0.2
      %v1553 = vmul.f32 %v1125, 0.2
      %v1554 = vmul.f32 %v1128, 0.2
      %v1555 = vmul.f32 %v1133, 0.2
      %v1556 = vmul.f32 %v1136, 0.2
      %v1557 = vmul.f32 %v1141, 0.2
      %v1558 = vmul.f32 %v1144, 0.2
      %v1559 = vmul.f32 %v1149, 0.2
      %v1560 = vmul.f32 %v1152, 0.2
      %v1561 = vmul.f32 %v1157, 0.2
      %v1562 = vmul.f32 %v1160, 0.2
      %v1563 = vmul.f32 %v1165, 0.2
      %v1564 = vmul.f32 %v1168, 0.2
      %v1565 = vmul.f32 %v1173, 0.2
      %v1566 = vmul.f32 %v1176, 0.2
      %v1567 = vmul.f32 %v1181, 0.2
      %v1568 = vmul.f32 %v1184, 0.2
      %v1569 = vmul.f32 %v1189, 0.2
      %v1570 = vmul.f32 %v1192, 0.2
      %v1571 = vmul.f32 %v1197, 0.2
      %v1572 = vmul.f32 %v1200, 0.2
      %v1573 = vmul.f32 %v1205, 0.2
      %v1574 = vmul.f32 %v1208, 0.2
      %v1575 = vmul.f32 %v1213, 0.2
      %v1576 = vmul.f32 %v1216, 0.2
      %v1577 = vmul.f32 %v1221, 0.2
      %v1578 = vmul.f32 %v1224, 0.2
      %v1579 = vmul.f32 %v1229, 0.2
      %v1580 = vmul.f32 %v1232, 0.2
      %v1581 = vmul.f32 %v1237, 0.2
      %v1582 = vmul.f32 %v1240, 0.2
      %v1583 = vmul.f32 %v1245, 0.2
      %v1584 = vmul.f32 %v1248, 0.2
      %v1585 = vmul.f32 %v1253, 0.2
      %v1586 = vmul.f32 %v1256, 0.2
      %v1587 = vmul.f32 %v1261, 0.2
      %v1588 = vmul.f32 %v1264, 0.2
      %v1589 = vmul.f32 %v1269, 0.2
      %v1590 = vmul.f32 %v1272, 0.2
      %v1591 = vmul.f32 %v1277, 0.2
      %v1592 = vmul.f32 %v1280, 0.2
      %v1593 = vmul.f32 %v1285, 0.2
      %v1594 = vmul.f32 %v1288, 0.2
      %v1595 = vmul.f32 %v1293, 0.2
      %v1596 = vmul.f32 %v1296, 0.2
      %v1597 = vmul.f32 %v1301, 0.2
      %v1598 = vmul.f32 %v1304, 0.2
      %v1599 = vmul.f32 %v1309, 0.2
      %v1600 = vmul.f32 %v1312, 0.2
      %v1601 = vmul.f32 %v1317, 0.2
      %v1602 = vmul.f32 %v1320, 0.2
      %v1603 = vmul.f32 %v1325, 0.2
      %v1604 = vmul.f32 %v1328, 0.2
      %v1605 = vmul.f32 %v1333, 0.2
      %v1606 = vmul.f32 %v1336, 0.2
      %v1607 = vmul.f32 %v1341, 0.2
      %v1608 = vmul.f32 %v1344, 0.2
      %v1609 = vmul.f32 %v1349, 0.2
      %v1610 = vmul.f32 %v1352, 0.2
      %v1611 = vsel %vm1355, %v845, %v1483
      %v1612 = vsel %vm1356, %v848, %v1484
      %v1613 = vsel %vm1357, %v853, %v1485
      %v1614 = vsel %vm1358, %v856, %v1486
      %v1615 = vsel %vm1359, %v861, %v1487
      %v1616 = vsel %vm1360, %v864, %v1488
      %v1617 = vsel %vm1361, %v869, %v1489
      %v1618 = vsel %vm1362, %v872, %v1490
      %v1619 = vsel %vm1363, %v877, %v1491
      %v1620 = vsel %vm1364, %v880, %v1492
      %v1621 = vsel %vm1365, %v885, %v1493
      %v1622 = vsel %vm1366, %v888, %v1494
      %v1623 = vsel %vm1367, %v893, %v1495
      %v1624 = vsel %vm1368, %v896, %v1496
      %v1625 = vsel %vm1369, %v901, %v1497
      %v1626 = vsel %vm1370, %v904, %v1498
      %v1627 = vsel %vm1371, %v909, %v1499
      %v1628 = vsel %vm1372, %v912, %v1500
      %v1629 = vsel %vm1373, %v917, %v1501
      %v1630 = vsel %vm1374, %v920, %v1502
      %v1631 = vsel %vm1375, %v925, %v1503
      %v1632 = vsel %vm1376, %v928, %v1504
      %v1633 = vsel %vm1377, %v933, %v1505
      %v1634 = vsel %vm1378, %v936, %v1506
      %v1635 = vsel %vm1379, %v941, %v1507
      %v1636 = vsel %vm1380, %v944, %v1508
      %v1637 = vsel %vm1381, %v949, %v1509
      %v1638 = vsel %vm1382, %v952, %v1510
      %v1639 = vsel %vm1383, %v957, %v1511
      %v1640 = vsel %vm1384, %v960, %v1512
      %v1641 = vsel %vm1385, %v965, %v1513
      %v1642 = vsel %vm1386, %v968, %v1514
      %v1643 = vsel %vm1387, %v973, %v1515
      %v1644 = vsel %vm1388, %v976, %v1516
      %v1645 = vsel %vm1389, %v981, %v1517
      %v1646 = vsel %vm1390, %v984, %v1518
      %v1647 = vsel %vm1391, %v989, %v1519
      %v1648 = vsel %vm1392, %v992, %v1520
      %v1649 = vsel %vm1393, %v997, %v1521
      %v1650 = vsel %vm1394, %v1000, %v1522
      %v1651 = vsel %vm1395, %v1005, %v1523
      %v1652 = vsel %vm1396, %v1008, %v1524
      %v1653 = vsel %vm1397, %v1013, %v1525
      %v1654 = vsel %vm1398, %v1016, %v1526
      %v1655 = vsel %vm1399, %v1021, %v1527
      %v1656 = vsel %vm1400, %v1024, %v1528
      %v1657 = vsel %vm1401, %v1029, %v1529
      %v1658 = vsel %vm1402, %v1032, %v1530
      %v1659 = vsel %vm1403, %v1037, %v1531
      %v1660 = vsel %vm1404, %v1040, %v1532
      %v1661 = vsel %vm1405, %v1045, %v1533
      %v1662 = vsel %vm1406, %v1048, %v1534
      %v1663 = vsel %vm1407, %v1053, %v1535
      %v1664 = vsel %vm1408, %v1056, %v1536
      %v1665 = vsel %vm1409, %v1061, %v1537
      %v1666 = vsel %vm1410, %v1064, %v1538
      %v1667 = vsel %vm1411, %v1069, %v1539
      %v1668 = vsel %vm1412, %v1072, %v1540
      %v1669 = vsel %vm1413, %v1077, %v1541
      %v1670 = vsel %vm1414, %v1080, %v1542
      %v1671 = vsel %vm1415, %v1085, %v1543
      %v1672 = vsel %vm1416, %v1088, %v1544
      %v1673 = vsel %vm1417, %v1093, %v1545
      %v1674 = vsel %vm1418, %v1096, %v1546
      %v1675 = vsel %vm1419, %v1101, %v1547
      %v1676 = vsel %vm1420, %v1104, %v1548
      %v1677 = vsel %vm1421, %v1109, %v1549
      %v1678 = vsel %vm1422, %v1112, %v1550
      %v1679 = vsel %vm1423, %v1117, %v1551
      %v1680 = vsel %vm1424, %v1120, %v1552
      %v1681 = vsel %vm1425, %v1125, %v1553
      %v1682 = vsel %vm1426, %v1128, %v1554
      %v1683 = vsel %vm1427, %v1133, %v1555
      %v1684 = vsel %vm1428, %v1136, %v1556
      %v1685 = vsel %vm1429, %v1141, %v1557
      %v1686 = vsel %vm1430, %v1144, %v1558
      %v1687 = vsel %vm1431, %v1149, %v1559
      %v1688 = vsel %vm1432, %v1152, %v1560
      %v1689 = vsel %vm1433, %v1157, %v1561
      %v1690 = vsel %vm1434, %v1160, %v1562
      %v1691 = vsel %vm1435, %v1165, %v1563
      %v1692 = vsel %vm1436, %v1168, %v1564
      %v1693 = vsel %vm1437, %v1173, %v1565
      %v1694 = vsel %vm1438, %v1176, %v1566
      %v1695 = vsel %vm1439, %v1181, %v1567
      %v1696 = vsel %vm1440, %v1184, %v1568
      %v1697 = vsel %vm1441, %v1189, %v1569
      %v1698 = vsel %vm1442, %v1192, %v1570
      %v1699 = vsel %vm1443, %v1197, %v1571
      %v1700 = vsel %vm1444, %v1200, %v1572
      %v1701 = vsel %vm1445, %v1205, %v1573
      %v1702 = vsel %vm1446, %v1208, %v1574
      %v1703 = vsel %vm1447, %v1213, %v1575
      %v1704 = vsel %vm1448, %v1216, %v1576
      %v1705 = vsel %vm1449, %v1221, %v1577
      %v1706 = vsel %vm1450, %v1224, %v1578
      %v1707 = vsel %vm1451, %v1229, %v1579
      %v1708 = vsel %vm1452, %v1232, %v1580
      %v1709 = vsel %vm1453, %v1237, %v1581
      %v1710 = vsel %vm1454, %v1240, %v1582
      %v1711 = vsel %vm1455, %v1245, %v1583
      %v1712 = vsel %vm1456, %v1248, %v1584
      %v1713 = vsel %vm1457, %v1253, %v1585
      %v1714 = vsel %vm1458, %v1256, %v1586
      %v1715 = vsel %vm1459, %v1261, %v1587
      %v1716 = vsel %vm1460, %v1264, %v1588
      %v1717 = vsel %vm1461, %v1269, %v1589
      %v1718 = vsel %vm1462, %v1272, %v1590
      %v1719 = vsel %vm1463, %v1277, %v1591
      %v1720 = vsel %vm1464, %v1280, %v1592
      %v1721 = vsel %vm1465, %v1285, %v1593
      %v1722 = vsel %vm1466, %v1288, %v1594
      %v1723 = vsel %vm1467, %v1293, %v1595
      %v1724 = vsel %vm1468, %v1296, %v1596
      %v1725 = vsel %vm1469, %v1301, %v1597
      %v1726 = vsel %vm1470, %v1304, %v1598
      %v1727 = vsel %vm1471, %v1309, %v1599
      %v1728 = vsel %vm1472, %v1312, %v1600
      %v1729 = vsel %vm1473, %v1317, %v1601
      %v1730 = vsel %vm1474, %v1320, %v1602
      %v1731 = vsel %vm1475, %v1325, %v1603
      %v1732 = vsel %vm1476, %v1328, %v1604
      %v1733 = vsel %vm1477, %v1333, %v1605
      %v1734 = vsel %vm1478, %v1336, %v1606
      %v1735 = vsel %vm1479, %v1341, %v1607
      %v1736 = vsel %vm1480, %v1344, %v1608
      %v1737 = vsel %vm1481, %v1349, %v1609
      %v1738 = vsel %vm1482, %v1352, %v1610
      %v1739 = vpack.c.bf16 %v1612, %v1611
      %v1740 = vpack.c.bf16 %v1614, %v1613
      %v1741 = vpack.c.bf16 %v1616, %v1615
      %v1742 = vpack.c.bf16 %v1618, %v1617
      %v1743 = vpack.c.bf16 %v1620, %v1619
      %v1744 = vpack.c.bf16 %v1622, %v1621
      %v1745 = vpack.c.bf16 %v1624, %v1623
      %v1746 = vpack.c.bf16 %v1626, %v1625
      %v1747 = vpack.c.bf16 %v1628, %v1627
      %v1748 = vpack.c.bf16 %v1630, %v1629
      %v1749 = vpack.c.bf16 %v1632, %v1631
      %v1750 = vpack.c.bf16 %v1634, %v1633
      %v1751 = vpack.c.bf16 %v1636, %v1635
      %v1752 = vpack.c.bf16 %v1638, %v1637
      %v1753 = vpack.c.bf16 %v1640, %v1639
      %v1754 = vpack.c.bf16 %v1642, %v1641
      %v1755 = vpack.c.bf16 %v1644, %v1643
      %v1756 = vpack.c.bf16 %v1646, %v1645
      %v1757 = vpack.c.bf16 %v1648, %v1647
      %v1758 = vpack.c.bf16 %v1650, %v1649
      %v1759 = vpack.c.bf16 %v1652, %v1651
      %v1760 = vpack.c.bf16 %v1654, %v1653
      %v1761 = vpack.c.bf16 %v1656, %v1655
      %v1762 = vpack.c.bf16 %v1658, %v1657
      %v1763 = vpack.c.bf16 %v1660, %v1659
      %v1764 = vpack.c.bf16 %v1662, %v1661
      %v1765 = vpack.c.bf16 %v1664, %v1663
      %v1766 = vpack.c.bf16 %v1666, %v1665
      %v1767 = vpack.c.bf16 %v1668, %v1667
      %v1768 = vpack.c.bf16 %v1670, %v1669
      %v1769 = vpack.c.bf16 %v1672, %v1671
      %v1770 = vpack.c.bf16 %v1674, %v1673
      %v1771 = vpack.c.bf16 %v1676, %v1675
      %v1772 = vpack.c.bf16 %v1678, %v1677
      %v1773 = vpack.c.bf16 %v1680, %v1679
      %v1774 = vpack.c.bf16 %v1682, %v1681
      %v1775 = vpack.c.bf16 %v1684, %v1683
      %v1776 = vpack.c.bf16 %v1686, %v1685
      %v1777 = vpack.c.bf16 %v1688, %v1687
      %v1778 = vpack.c.bf16 %v1690, %v1689
      %v1779 = vpack.c.bf16 %v1692, %v1691
      %v1780 = vpack.c.bf16 %v1694, %v1693
      %v1781 = vpack.c.bf16 %v1696, %v1695
      %v1782 = vpack.c.bf16 %v1698, %v1697
      %v1783 = vpack.c.bf16 %v1700, %v1699
      %v1784 = vpack.c.bf16 %v1702, %v1701
      %v1785 = vpack.c.bf16 %v1704, %v1703
      %v1786 = vpack.c.bf16 %v1706, %v1705
      %v1787 = vpack.c.bf16 %v1708, %v1707
      %v1788 = vpack.c.bf16 %v1710, %v1709
      %v1789 = vpack.c.bf16 %v1712, %v1711
      %v1790 = vpack.c.bf16 %v1714, %v1713
      %v1791 = vpack.c.bf16 %v1716, %v1715
      %v1792 = vpack.c.bf16 %v1718, %v1717
      %v1793 = vpack.c.bf16 %v1720, %v1719
      %v1794 = vpack.c.bf16 %v1722, %v1721
      %v1795 = vpack.c.bf16 %v1724, %v1723
      %v1796 = vpack.c.bf16 %v1726, %v1725
      %v1797 = vpack.c.bf16 %v1728, %v1727
      %v1798 = vpack.c.bf16 %v1730, %v1729
      %v1799 = vpack.c.bf16 %v1732, %v1731
      %v1800 = vpack.c.bf16 %v1734, %v1733
      %v1801 = vpack.c.bf16 %v1736, %v1735
      %v1802 = vpack.c.bf16 %v1738, %v1737
      %v1867 = vunpack.c.l.b16 %v1739
      %v1868 = vunpack.c.h.b16 %v1739
      %v1869 = vunpack.c.l.b16 %v1740
      %v1870 = vunpack.c.h.b16 %v1740
      %v1871 = vunpack.c.l.b16 %v1741
      %v1872 = vunpack.c.h.b16 %v1741
      %v1873 = vunpack.c.l.b16 %v1742
      %v1874 = vunpack.c.h.b16 %v1742
      %v1875 = vunpack.c.l.b16 %v1743
      %v1876 = vunpack.c.h.b16 %v1743
      %v1877 = vunpack.c.l.b16 %v1744
      %v1878 = vunpack.c.h.b16 %v1744
      %v1879 = vunpack.c.l.b16 %v1745
      %v1880 = vunpack.c.h.b16 %v1745
      %v1881 = vunpack.c.l.b16 %v1746
      %v1882 = vunpack.c.h.b16 %v1746
      %v1883 = vunpack.c.l.b16 %v1747
      %v1884 = vunpack.c.h.b16 %v1747
      %v1885 = vunpack.c.l.b16 %v1748
      %v1886 = vunpack.c.h.b16 %v1748
      %v1887 = vunpack.c.l.b16 %v1749
      %v1888 = vunpack.c.h.b16 %v1749
      %v1889 = vunpack.c.l.b16 %v1750
      %v1890 = vunpack.c.h.b16 %v1750
      %v1891 = vunpack.c.l.b16 %v1751
      %v1892 = vunpack.c.h.b16 %v1751
      %v1893 = vunpack.c.l.b16 %v1752
      %v1894 = vunpack.c.h.b16 %v1752
      %v1895 = vunpack.c.l.b16 %v1753
      %v1896 = vunpack.c.h.b16 %v1753
      %v1897 = vunpack.c.l.b16 %v1754
      %v1898 = vunpack.c.h.b16 %v1754
      %v1899 = vunpack.c.l.b16 %v1755
      %v1900 = vunpack.c.h.b16 %v1755
      %v1901 = vunpack.c.l.b16 %v1756
      %v1902 = vunpack.c.h.b16 %v1756
      %v1903 = vunpack.c.l.b16 %v1757
      %v1904 = vunpack.c.h.b16 %v1757
      %v1905 = vunpack.c.l.b16 %v1758
      %v1906 = vunpack.c.h.b16 %v1758
      %v1907 = vunpack.c.l.b16 %v1759
      %v1908 = vunpack.c.h.b16 %v1759
      %v1909 = vunpack.c.l.b16 %v1760
      %v1910 = vunpack.c.h.b16 %v1760
      %v1911 = vunpack.c.l.b16 %v1761
      %v1912 = vunpack.c.h.b16 %v1761
      %v1913 = vunpack.c.l.b16 %v1762
      %v1914 = vunpack.c.h.b16 %v1762
      %v1915 = vunpack.c.l.b16 %v1763
      %v1916 = vunpack.c.h.b16 %v1763
      %v1917 = vunpack.c.l.b16 %v1764
      %v1918 = vunpack.c.h.b16 %v1764
      %v1919 = vunpack.c.l.b16 %v1765
      %v1920 = vunpack.c.h.b16 %v1765
      %v1921 = vunpack.c.l.b16 %v1766
      %v1922 = vunpack.c.h.b16 %v1766
      %v1923 = vunpack.c.l.b16 %v1767
      %v1924 = vunpack.c.h.b16 %v1767
      %v1925 = vunpack.c.l.b16 %v1768
      %v1926 = vunpack.c.h.b16 %v1768
      %v1927 = vunpack.c.l.b16 %v1769
      %v1928 = vunpack.c.h.b16 %v1769
      %v1929 = vunpack.c.l.b16 %v1770
      %v1930 = vunpack.c.h.b16 %v1770
      %v1931 = vunpack.c.l.b16 %v1771
      %v1932 = vunpack.c.h.b16 %v1771
      %v1933 = vunpack.c.l.b16 %v1772
      %v1934 = vunpack.c.h.b16 %v1772
      %v1935 = vunpack.c.l.b16 %v1773
      %v1936 = vunpack.c.h.b16 %v1773
      %v1937 = vunpack.c.l.b16 %v1774
      %v1938 = vunpack.c.h.b16 %v1774
      %v1939 = vunpack.c.l.b16 %v1775
      %v1940 = vunpack.c.h.b16 %v1775
      %v1941 = vunpack.c.l.b16 %v1776
      %v1942 = vunpack.c.h.b16 %v1776
      %v1943 = vunpack.c.l.b16 %v1777
      %v1944 = vunpack.c.h.b16 %v1777
      %v1945 = vunpack.c.l.b16 %v1778
      %v1946 = vunpack.c.h.b16 %v1778
      %v1947 = vunpack.c.l.b16 %v1779
      %v1948 = vunpack.c.h.b16 %v1779
      %v1949 = vunpack.c.l.b16 %v1780
      %v1950 = vunpack.c.h.b16 %v1780
      %v1951 = vunpack.c.l.b16 %v1781
      %v1952 = vunpack.c.h.b16 %v1781
      %v1953 = vunpack.c.l.b16 %v1782
      %v1954 = vunpack.c.h.b16 %v1782
      %v1955 = vunpack.c.l.b16 %v1783
      %v1956 = vunpack.c.h.b16 %v1783
      %v1957 = vunpack.c.l.b16 %v1784
      %v1958 = vunpack.c.h.b16 %v1784
      %v1959 = vunpack.c.l.b16 %v1785
      %v1960 = vunpack.c.h.b16 %v1785
      %v1961 = vunpack.c.l.b16 %v1786
      %v1962 = vunpack.c.h.b16 %v1786
      %v1963 = vunpack.c.l.b16 %v1787
      %v1964 = vunpack.c.h.b16 %v1787
      %v1965 = vunpack.c.l.b16 %v1788
      %v1966 = vunpack.c.h.b16 %v1788
      %v1967 = vunpack.c.l.b16 %v1789
      %v1968 = vunpack.c.h.b16 %v1789
      %v1969 = vunpack.c.l.b16 %v1790
      %v1970 = vunpack.c.h.b16 %v1790
      %v1971 = vunpack.c.l.b16 %v1791
      %v1972 = vunpack.c.h.b16 %v1791
      %v1973 = vunpack.c.l.b16 %v1792
      %v1974 = vunpack.c.h.b16 %v1792
      %v1975 = vunpack.c.l.b16 %v1793
      %v1976 = vunpack.c.h.b16 %v1793
      %v1977 = vunpack.c.l.b16 %v1794
      %v1978 = vunpack.c.h.b16 %v1794
      %v1979 = vunpack.c.l.b16 %v1795
      %v1980 = vunpack.c.h.b16 %v1795
      %v1981 = vunpack.c.l.b16 %v1796
      %v1982 = vunpack.c.h.b16 %v1796
      %v1983 = vunpack.c.l.b16 %v1797
      %v1984 = vunpack.c.h.b16 %v1797
      %v1985 = vunpack.c.l.b16 %v1798
      %v1986 = vunpack.c.h.b16 %v1798
      %v1987 = vunpack.c.l.b16 %v1799
      %v1988 = vunpack.c.h.b16 %v1799
      %v1989 = vunpack.c.l.b16 %v1800
      %v1990 = vunpack.c.h.b16 %v1800
      %v1991 = vunpack.c.l.b16 %v1801
      %v1992 = vunpack.c.h.b16 %v1801
      %v1993 = vunpack.c.l.b16 %v1802
      %v1994 = vunpack.c.h.b16 %v1802
      %v1995 = vpack.c.b16 %v1867, %v1867
      %v1996 = vpack.c.b16 %v1868, %v1868
      %v1997 = vpack.c.b16 %v1869, %v1869
      %v1998 = vpack.c.b16 %v1870, %v1870
      %v1999 = vpack.c.b16 %v1871, %v1871
      %v2000 = vpack.c.b16 %v1872, %v1872
      %v2001 = vpack.c.b16 %v1873, %v1873
      %v2002 = vpack.c.b16 %v1874, %v1874
      %v2003 = vpack.c.b16 %v1875, %v1875
      %v2004 = vpack.c.b16 %v1876, %v1876
      %v2005 = vpack.c.b16 %v1877, %v1877
      %v2006 = vpack.c.b16 %v1878, %v1878
      %v2007 = vpack.c.b16 %v1879, %v1879
      %v2008 = vpack.c.b16 %v1880, %v1880
      %v2009 = vpack.c.b16 %v1881, %v1881
      %v2010 = vpack.c.b16 %v1882, %v1882
      %v2011 = vpack.c.b16 %v1883, %v1883
      %v2012 = vpack.c.b16 %v1884, %v1884
      %v2013 = vpack.c.b16 %v1885, %v1885
      %v2014 = vpack.c.b16 %v1886, %v1886
      %v2015 = vpack.c.b16 %v1887, %v1887
      %v2016 = vpack.c.b16 %v1888, %v1888
      %v2017 = vpack.c.b16 %v1889, %v1889
      %v2018 = vpack.c.b16 %v1890, %v1890
      %v2019 = vpack.c.b16 %v1891, %v1891
      %v2020 = vpack.c.b16 %v1892, %v1892
      %v2021 = vpack.c.b16 %v1893, %v1893
      %v2022 = vpack.c.b16 %v1894, %v1894
      %v2023 = vpack.c.b16 %v1895, %v1895
      %v2024 = vpack.c.b16 %v1896, %v1896
      %v2025 = vpack.c.b16 %v1897, %v1897
      %v2026 = vpack.c.b16 %v1898, %v1898
      %v2027 = vpack.c.b16 %v1899, %v1899
      %v2028 = vpack.c.b16 %v1900, %v1900
      %v2029 = vpack.c.b16 %v1901, %v1901
      %v2030 = vpack.c.b16 %v1902, %v1902
      %v2031 = vpack.c.b16 %v1903, %v1903
      %v2032 = vpack.c.b16 %v1904, %v1904
      %v2033 = vpack.c.b16 %v1905, %v1905
      %v2034 = vpack.c.b16 %v1906, %v1906
      %v2035 = vpack.c.b16 %v1907, %v1907
      %v2036 = vpack.c.b16 %v1908, %v1908
      %v2037 = vpack.c.b16 %v1909, %v1909
      %v2038 = vpack.c.b16 %v1910, %v1910
      %v2039 = vpack.c.b16 %v1911, %v1911
      %v2040 = vpack.c.b16 %v1912, %v1912
      %v2041 = vpack.c.b16 %v1913, %v1913
      %v2042 = vpack.c.b16 %v1914, %v1914
      %v2043 = vpack.c.b16 %v1915, %v1915
      %v2044 = vpack.c.b16 %v1916, %v1916
      %v2045 = vpack.c.b16 %v1917, %v1917
      %v2046 = vpack.c.b16 %v1918, %v1918
      %v2047 = vpack.c.b16 %v1919, %v1919
      %v2048 = vpack.c.b16 %v1920, %v1920
      %v2049 = vpack.c.b16 %v1921, %v1921
      %v2050 = vpack.c.b16 %v1922, %v1922
      %v2051 = vpack.c.b16 %v1923, %v1923
      %v2052 = vpack.c.b16 %v1924, %v1924
      %v2053 = vpack.c.b16 %v1925, %v1925
      %v2054 = vpack.c.b16 %v1926, %v1926
      %v2055 = vpack.c.b16 %v1927, %v1927
      %v2056 = vpack.c.b16 %v1928, %v1928
      %v2057 = vpack.c.b16 %v1929, %v1929
      %v2058 = vpack.c.b16 %v1930, %v1930
      %v2059 = vpack.c.b16 %v1931, %v1931
      %v2060 = vpack.c.b16 %v1932, %v1932
      %v2061 = vpack.c.b16 %v1933, %v1933
      %v2062 = vpack.c.b16 %v1934, %v1934
      %v2063 = vpack.c.b16 %v1935, %v1935
      %v2064 = vpack.c.b16 %v1936, %v1936
      %v2065 = vpack.c.b16 %v1937, %v1937
      %v2066 = vpack.c.b16 %v1938, %v1938
      %v2067 = vpack.c.b16 %v1939, %v1939
      %v2068 = vpack.c.b16 %v1940, %v1940
      %v2069 = vpack.c.b16 %v1941, %v1941
      %v2070 = vpack.c.b16 %v1942, %v1942
      %v2071 = vpack.c.b16 %v1943, %v1943
      %v2072 = vpack.c.b16 %v1944, %v1944
      %v2073 = vpack.c.b16 %v1945, %v1945
      %v2074 = vpack.c.b16 %v1946, %v1946
      %v2075 = vpack.c.b16 %v1947, %v1947
      %v2076 = vpack.c.b16 %v1948, %v1948
      %v2077 = vpack.c.b16 %v1949, %v1949
      %v2078 = vpack.c.b16 %v1950, %v1950
      %v2079 = vpack.c.b16 %v1951, %v1951
      %v2080 = vpack.c.b16 %v1952, %v1952
      %v2081 = vpack.c.b16 %v1953, %v1953
      %v2082 = vpack.c.b16 %v1954, %v1954
      %v2083 = vpack.c.b16 %v1955, %v1955
      %v2084 = vpack.c.b16 %v1956, %v1956
      %v2085 = vpack.c.b16 %v1957, %v1957
      %v2086 = vpack.c.b16 %v1958, %v1958
      %v2087 = vpack.c.b16 %v1959, %v1959
      %v2088 = vpack.c.b16 %v1960, %v1960
      %v2089 = vpack.c.b16 %v1961, %v1961
      %v2090 = vpack.c.b16 %v1962, %v1962
      %v2091 = vpack.c.b16 %v1963, %v1963
      %v2092 = vpack.c.b16 %v1964, %v1964
      %v2093 = vpack.c.b16 %v1965, %v1965
      %v2094 = vpack.c.b16 %v1966, %v1966
      %v2095 = vpack.c.b16 %v1967, %v1967
      %v2096 = vpack.c.b16 %v1968, %v1968
      %v2097 = vpack.c.b16 %v1969, %v1969
      %v2098 = vpack.c.b16 %v1970, %v1970
      %v2099 = vpack.c.b16 %v1971, %v1971
      %v2100 = vpack.c.b16 %v1972, %v1972
      %v2101 = vpack.c.b16 %v1973, %v1973
      %v2102 = vpack.c.b16 %v1974, %v1974
      %v2103 = vpack.c.b16 %v1975, %v1975
      %v2104 = vpack.c.b16 %v1976, %v1976
      %v2105 = vpack.c.b16 %v1977, %v1977
      %v2106 = vpack.c.b16 %v1978, %v1978
      %v2107 = vpack.c.b16 %v1979, %v1979
      %v2108 = vpack.c.b16 %v1980, %v1980
      %v2109 = vpack.c.b16 %v1981, %v1981
      %v2110 = vpack.c.b16 %v1982, %v1982
      %v2111 = vpack.c.b16 %v1983, %v1983
      %v2112 = vpack.c.b16 %v1984, %v1984
      %v2113 = vpack.c.b16 %v1985, %v1985
      %v2114 = vpack.c.b16 %v1986, %v1986
      %v2115 = vpack.c.b16 %v1987, %v1987
      %v2116 = vpack.c.b16 %v1988, %v1988
      %v2117 = vpack.c.b16 %v1989, %v1989
      %v2118 = vpack.c.b16 %v1990, %v1990
      %v2119 = vpack.c.b16 %v1991, %v1991
      %v2120 = vpack.c.b16 %v1992, %v1992
      %v2121 = vpack.c.b16 %v1993, %v1993
      %v2122 = vpack.c.b16 %v1994, %v1994
      %2251 = vst [vmem:[%s143] sm:$0xf] %v1995
      %2252 = vst [vmem:[%s143 + $0x4] sm:$0xf] %v1996
      %2253 = vst [vmem:[%s143 + $0x8] sm:$0xf] %v1997
      %2254 = vst [vmem:[%s143 + $0xc] sm:$0xf] %v1998
      %2255 = vst [vmem:[%s143 + $0x10] sm:$0xf] %v1999
      %2256 = vst [vmem:[%s143 + $0x14] sm:$0xf] %v2000
      %2257 = vst [vmem:[%s143 + $0x18] sm:$0xf] %v2001
      %2258 = vst [vmem:[%s143 + $0x1c] sm:$0xf] %v2002
      %2259 = vst [vmem:[%s143 + $0x20] sm:$0xf] %v2003
      %2260 = vst [vmem:[%s143 + $0x24] sm:$0xf] %v2004
      %2261 = vst [vmem:[%s143 + $0x28] sm:$0xf] %v2005
      %2262 = vst [vmem:[%s143 + $0x2c] sm:$0xf] %v2006
      %2263 = vst [vmem:[%s143 + $0x30] sm:$0xf] %v2007
      %2264 = vst [vmem:[%s143 + $0x34] sm:$0xf] %v2008
      %2265 = vst [vmem:[%s143 + $0x38] sm:$0xf] %v2009
      %2266 = vst [vmem:[%s143 + $0x3c] sm:$0xf] %v2010
      %2267 = vst [vmem:[%s143 + $0x40] sm:$0xf] %v2011
      %2268 = vst [vmem:[%s143 + $0x44] sm:$0xf] %v2012
      %2269 = vst [vmem:[%s143 + $0x48] sm:$0xf] %v2013
      %2270 = vst [vmem:[%s143 + $0x4c] sm:$0xf] %v2014
      %2271 = vst [vmem:[%s143 + $0x50] sm:$0xf] %v2015
      %2272 = vst [vmem:[%s143 + $0x54] sm:$0xf] %v2016
      %2273 = vst [vmem:[%s143 + $0x58] sm:$0xf] %v2017
      %2274 = vst [vmem:[%s143 + $0x5c] sm:$0xf] %v2018
      %2275 = vst [vmem:[%s143 + $0x60] sm:$0xf] %v2019
      %2276 = vst [vmem:[%s143 + $0x64] sm:$0xf] %v2020
      %2277 = vst [vmem:[%s143 + $0x68] sm:$0xf] %v2021
      %2278 = vst [vmem:[%s143 + $0x6c] sm:$0xf] %v2022
      %2279 = vst [vmem:[%s143 + $0x70] sm:$0xf] %v2023
      %2280 = vst [vmem:[%s143 + $0x74] sm:$0xf] %v2024
      %2281 = vst [vmem:[%s143 + $0x78] sm:$0xf] %v2025
      %2282 = vst [vmem:[%s143 + $0x7c] sm:$0xf] %v2026
      %2283 = vst [vmem:[%s143 + $0x80] sm:$0xf] %v2027
      %2284 = vst [vmem:[%s143 + $0x84] sm:$0xf] %v2028
      %2285 = vst [vmem:[%s143 + $0x88] sm:$0xf] %v2029
      %2286 = vst [vmem:[%s143 + $0x8c] sm:$0xf] %v2030
      %2287 = vst [vmem:[%s143 + $0x90] sm:$0xf] %v2031
      %2288 = vst [vmem:[%s143 + $0x94] sm:$0xf] %v2032
      %2289 = vst [vmem:[%s143 + $0x98] sm:$0xf] %v2033
      %2290 = vst [vmem:[%s143 + $0x9c] sm:$0xf] %v2034
      %2291 = vst [vmem:[%s143 + $0xa0] sm:$0xf] %v2035
      %2292 = vst [vmem:[%s143 + $0xa4] sm:$0xf] %v2036
      %2293 = vst [vmem:[%s143 + $0xa8] sm:$0xf] %v2037
      %2294 = vst [vmem:[%s143 + $0xac] sm:$0xf] %v2038
      %2295 = vst [vmem:[%s143 + $0xb0] sm:$0xf] %v2039
      %2296 = vst [vmem:[%s143 + $0xb4] sm:$0xf] %v2040
      %2297 = vst [vmem:[%s143 + $0xb8] sm:$0xf] %v2041
      %2298 = vst [vmem:[%s143 + $0xbc] sm:$0xf] %v2042
      %2299 = vst [vmem:[%s143 + $0xc0] sm:$0xf] %v2043
      %2300 = vst [vmem:[%s143 + $0xc4] sm:$0xf] %v2044
      %2301 = vst [vmem:[%s143 + $0xc8] sm:$0xf] %v2045
      %2302 = vst [vmem:[%s143 + $0xcc] sm:$0xf] %v2046
      %2303 = vst [vmem:[%s143 + $0xd0] sm:$0xf] %v2047
      %2304 = vst [vmem:[%s143 + $0xd4] sm:$0xf] %v2048
      %2305 = vst [vmem:[%s143 + $0xd8] sm:$0xf] %v2049
      %2306 = vst [vmem:[%s143 + $0xdc] sm:$0xf] %v2050
      %2307 = vst [vmem:[%s143 + $0xe0] sm:$0xf] %v2051
      %2308 = vst [vmem:[%s143 + $0xe4] sm:$0xf] %v2052
      %2309 = vst [vmem:[%s143 + $0xe8] sm:$0xf] %v2053
      %2310 = vst [vmem:[%s143 + $0xec] sm:$0xf] %v2054
      %2311 = vst [vmem:[%s143 + $0xf0] sm:$0xf] %v2055
      %2312 = vst [vmem:[%s143 + $0xf4] sm:$0xf] %v2056
      %2313 = vst [vmem:[%s143 + $0xf8] sm:$0xf] %v2057
      %2314 = vst [vmem:[%s143 + $0xfc] sm:$0xf] %v2058
      %2315 = vst [vmem:[%s143 + $0x100] sm:$0xf] %v2059
      %2316 = vst [vmem:[%s143 + $0x104] sm:$0xf] %v2060
      %2317 = vst [vmem:[%s143 + $0x108] sm:$0xf] %v2061
      %2318 = vst [vmem:[%s143 + $0x10c] sm:$0xf] %v2062
      %2319 = vst [vmem:[%s143 + $0x110] sm:$0xf] %v2063
      %2320 = vst [vmem:[%s143 + $0x114] sm:$0xf] %v2064
      %2321 = vst [vmem:[%s143 + $0x118] sm:$0xf] %v2065
      %2322 = vst [vmem:[%s143 + $0x11c] sm:$0xf] %v2066
      %2323 = vst [vmem:[%s143 + $0x120] sm:$0xf] %v2067
      %2324 = vst [vmem:[%s143 + $0x124] sm:$0xf] %v2068
      %2325 = vst [vmem:[%s143 + $0x128] sm:$0xf] %v2069
      %2326 = vst [vmem:[%s143 + $0x12c] sm:$0xf] %v2070
      %2327 = vst [vmem:[%s143 + $0x130] sm:$0xf] %v2071
      %2328 = vst [vmem:[%s143 + $0x134] sm:$0xf] %v2072
      %2329 = vst [vmem:[%s143 + $0x138] sm:$0xf] %v2073
      %2330 = vst [vmem:[%s143 + $0x13c] sm:$0xf] %v2074
      %2331 = vst [vmem:[%s143 + $0x140] sm:$0xf] %v2075
      %2332 = vst [vmem:[%s143 + $0x144] sm:$0xf] %v2076
      %2333 = vst [vmem:[%s143 + $0x148] sm:$0xf] %v2077
      %2334 = vst [vmem:[%s143 + $0x14c] sm:$0xf] %v2078
      %2335 = vst [vmem:[%s143 + $0x150] sm:$0xf] %v2079
      %2336 = vst [vmem:[%s143 + $0x154] sm:$0xf] %v2080
      %2337 = vst [vmem:[%s143 + $0x158] sm:$0xf] %v2081
      %2338 = vst [vmem:[%s143 + $0x15c] sm:$0xf] %v2082
      %2339 = vst [vmem:[%s143 + $0x160] sm:$0xf] %v2083
      %2340 = vst [vmem:[%s143 + $0x164] sm:$0xf] %v2084
      %2341 = vst [vmem:[%s143 + $0x168] sm:$0xf] %v2085
      %2342 = vst [vmem:[%s143 + $0x16c] sm:$0xf] %v2086
      %2343 = vst [vmem:[%s143 + $0x170] sm:$0xf] %v2087
      %2344 = vst [vmem:[%s143 + $0x174] sm:$0xf] %v2088
      %2345 = vst [vmem:[%s143 + $0x178] sm:$0xf] %v2089
      %2346 = vst [vmem:[%s143 + $0x17c] sm:$0xf] %v2090
      %2347 = vst [vmem:[%s143 + $0x180] sm:$0xf] %v2091
      %2348 = vst [vmem:[%s143 + $0x184] sm:$0xf] %v2092
      %2349 = vst [vmem:[%s143 + $0x188] sm:$0xf] %v2093
      %2350 = vst [vmem:[%s143 + $0x18c] sm:$0xf] %v2094
      %2351 = vst [vmem:[%s143 + $0x190] sm:$0xf] %v2095
      %2352 = vst [vmem:[%s143 + $0x194] sm:$0xf] %v2096
      %2353 = vst [vmem:[%s143 + $0x198] sm:$0xf] %v2097
      %2354 = vst [vmem:[%s143 + $0x19c] sm:$0xf] %v2098
      %2355 = vst [vmem:[%s143 + $0x1a0] sm:$0xf] %v2099
      %2356 = vst [vmem:[%s143 + $0x1a4] sm:$0xf] %v2100
      %2357 = vst [vmem:[%s143 + $0x1a8] sm:$0xf] %v2101
      %2358 = vst [vmem:[%s143 + $0x1ac] sm:$0xf] %v2102
      %2359 = vst [vmem:[%s143 + $0x1b0] sm:$0xf] %v2103
      %2360 = vst [vmem:[%s143 + $0x1b4] sm:$0xf] %v2104
      %2361 = vst [vmem:[%s143 + $0x1b8] sm:$0xf] %v2105
      %2362 = vst [vmem:[%s143 + $0x1bc] sm:$0xf] %v2106
      %2363 = vst [vmem:[%s143 + $0x1c0] sm:$0xf] %v2107
      %2364 = vst [vmem:[%s143 + $0x1c4] sm:$0xf] %v2108
      %2365 = vst [vmem:[%s143 + $0x1c8] sm:$0xf] %v2109
      %2366 = vst [vmem:[%s143 + $0x1cc] sm:$0xf] %v2110
      %2367 = vst [vmem:[%s143 + $0x1d0] sm:$0xf] %v2111
      %2368 = vst [vmem:[%s143 + $0x1d4] sm:$0xf] %v2112
      %2369 = vst [vmem:[%s143 + $0x1d8] sm:$0xf] %v2113
      %2370 = vst [vmem:[%s143 + $0x1dc] sm:$0xf] %v2114
      %2371 = vst [vmem:[%s143 + $0x1e0] sm:$0xf] %v2115
      %2372 = vst [vmem:[%s143 + $0x1e4] sm:$0xf] %v2116
      %2373 = vst [vmem:[%s143 + $0x1e8] sm:$0xf] %v2117
      %2374 = vst [vmem:[%s143 + $0x1ec] sm:$0xf] %v2118
      %2375 = vst [vmem:[%s143 + $0x1f0] sm:$0xf] %v2119
      %2376 = vst [vmem:[%s143 + $0x1f4] sm:$0xf] %v2120
      %2377 = vst [vmem:[%s143 + $0x1f8] sm:$0xf] %v2121
      %2378 = vst [vmem:[%s143 + $0x1fc] sm:$0xf] %v2122
      %p2379 = scmp.lt.s32.totalorder %s13, 1
      %s2380 = scalar_select %p2379, %s13, 1
      %s2381 = smul.addr %s2380, 128
      %s2382 = smul.addr %s2381, 4
      %s2383 = scalar_lea.vmem %s2, %s2382
      // Predicated region
      $region29: #{discriminator_forward.5} parent=27 // pred_check
        %p2384 = pneg %p78
      $region30: #{discriminator_forward.5} parent=27 // pred_check_branch
        %2386 = sbr.rel (%p2384) target = $region32
      $region31: #{discriminator_forward.5} parent=27 // pred_region
        _
      $region32: #{discriminator_forward.5} parent=27 // pred_fallthru
        _
    $region28: #{discriminator_forward.5} parent=5 // pred_fallthru
      _
    %p2387 = scmp.le.s32.totalorder 2, %s8
    // Predicated region
    $region33: #{discriminator_forward.5} parent=5 // pred_check
      %p2388 = pneg %p2387
    $region34: #{discriminator_forward.5} parent=5 // pred_check_branch
      %2390 = sbr.rel (%p2388) target = $region36
    $region35: #{discriminator_forward.5} parent=5 // pred_region
      %s2391 = ssub.s32 %s8, 2
      // Predicated region
      $region37: #{discriminator_forward.5} parent=35 // pred_check
        %p2392 = pneg %p84
      $region38: #{discriminator_forward.5} parent=35 // pred_check_branch
        %2394 = sbr.rel (%p2392) target = $region40
      $region39: #{discriminator_forward.5} parent=35 // pred_region
        %p2395 = scmp.lt.s32.totalorder %s14, 1
        %s2396 = scalar_select %p2395, %s14, 1
        %s2397 = smul.addr %s2396, 128
        %s2398 = smul.addr %s2397, 4
        %s2399 = scalar_lea.vmem %s2, %s2398
      $region40: #{discriminator_forward.5} parent=35 // pred_fallthru
        _
    $region36: #{discriminator_forward.5} parent=5 // pred_fallthru
      _
  $region6: #{discriminator_forward.5} parent=0 // loop_footer
    %s12 = sadd.s32 1, %s8
  $region7: #{discriminator_forward.5} parent=0 // loop_footer_branch
    %7 = sbr.rel target = $region3
  $region8: #{discriminator_forward.5} parent=0 // loop_exit
    _

// kernel: discriminator_forward.6
$region0: #{discriminator_forward.6}
  #allocation0 [shape = 'u32[]', space=smem, size = 0x4, offset = 0x4, fixed_abs, tag = 'smem constant byte address 0x4 - core index']
  #allocation1 [shape = 'u32[144,128]{1,0:T(1,128)}', space=vmem, size = 0x12000, scoped, tag = 'internal scratch']
  %s0 = inlined_call_operand.vmem [shape: bf16[2,320,32], index: 0, kind: input, shape index: {}]
  %s1 = inlined_call_operand.vmem [shape: bf16[4,32,128], index: 1, kind: input, shape index: {}]
  %s2 = inlined_call_operand.vmem [shape: bf16[2,296,128], index: 2, kind: output, shape index: {0}]
  %s3 = inlined_call_operand.vmem [shape: f32[2,8,128], index: 3, kind: output, shape index: {1}]
  %4 = xla_tuple %s2, %s3
  %s5 = sld [smem:[#allocation0]]
  $region49: #{discriminator_forward.6} parent=0
    _
  %s7 = ssub.s32 1, %s5
  %s8 = scalar_select 0, %s7, %s5
  loop: start=0, step=1, limit=4
  $region2: #{discriminator_forward.6} parent=0 // loop_pre_header
    _
  $region3: #{discriminator_forward.6} parent=0 // loop_header
    %s10 = sphi 0, %s14
    %p11 = scmp.ge.s32.totalorder %s10, 4
    %s20 = sphi 0, %s22
    %s23 = sphi 0, %s20
    %s24 = sphi 0, %s23
    %s40 = sphi 0, %s24
    %s44 = sphi 0, %s44
    %s46 = sphi 0, %s44
    %s47 = sphi 0, %s46
    %s61 = sphi 0, %s47
    %s67 = sphi 0, %s69
    %s70 = sphi 0, %s67
    %s71 = sphi 0, %s70
    %s87 = sphi 0, %s71
    %s93 = sphi 0, %s95
    %s96 = sphi 0, %s93
    %s97 = sphi 0, %s96
    %s113 = sphi 0, %s97
  $region4: #{discriminator_forward.6} parent=0 // loop_header_branch
    %13 = sbr.rel (%p11) target = $region8
  $region5: #{discriminator_forward.6} parent=0 // loop_body
    %s15 = ssub.s32 %s10, 1
    %s16 = ssub.s32 %s10, 2
    %s17 = sadd.s32 %s10, 1
    %s18 = ssub.s32 %s10, %s17
    %p19 = scmp.eq.s32.totalorder %s18, 0
    %s21 = sadd.s32 %s20, 1
    %s22 = scalar_select %p19, %s20, %s21
    %p25 = pneg %p19
    %p26 = scmp.eq.s32.totalorder %s10, 1
    %p27 = por %p25, %p26
    %p28 = scmp.ne.s32.totalorder %s20, %s23
    %p29 = scmp.eq.s32.totalorder %s10, 0
    %p30 = por %p28, %p29
    %p31 = scmp.ne.s32.totalorder %s20, %s23
    %p32 = scmp.eq.s32.totalorder %s15, 1
    %p33 = por %p31, %p32
    %p34 = scmp.ne.s32.totalorder %s23, %s24
    %p35 = scmp.eq.s32.totalorder %s15, 0
    %p36 = por %p34, %p35
    %p37 = scmp.ne.s32.totalorder %s23, %s24
    %p38 = scmp.eq.s32.totalorder %s16, 1
    %p39 = por %p37, %p38
    %p41 = scmp.ne.s32.totalorder %s24, %s40
    %p42 = scmp.eq.s32.totalorder %s16, 0
    %p43 = por %p41, %p42
    %s45 = sadd.s32 %s44, 1
    %p48 = scmp.eq.s32.totalorder %s10, 1
    %p49 = scmp.ne.s32.totalorder %s44, %s46
    %p50 = scmp.eq.s32.totalorder %s10, 0
    %p51 = por %p49, %p50
    %p52 = scmp.ne.s32.totalorder %s44, %s46
    %p53 = scmp.eq.s32.totalorder %s15, 1
    %p54 = por %p52, %p53
    %p55 = scmp.ne.s32.totalorder %s46, %s47
    %p56 = scmp.eq.s32.totalorder %s15, 0
    %p57 = por %p55, %p56
    %p58 = scmp.ne.s32.totalorder %s46, %s47
    %p59 = scmp.eq.s32.totalorder %s16, 1
    %p60 = por %p58, %p59
    %p62 = scmp.ne.s32.totalorder %s47, %s61
    %p63 = scmp.eq.s32.totalorder %s16, 0
    %p64 = por %p62, %p63
    %s65 = ssub.s32 %s10, %s17
    %p66 = scmp.eq.s32.totalorder %s65, 0
    %s68 = sadd.s32 %s67, 1
    %s69 = scalar_select %p66, %s67, %s68
    %p72 = pneg %p66
    %p73 = scmp.eq.s32.totalorder %s10, 1
    %p74 = por %p72, %p73
    %p75 = scmp.ne.s32.totalorder %s67, %s70
    %p76 = scmp.eq.s32.totalorder %s10, 0
    %p77 = por %p75, %p76
    %p78 = scmp.ne.s32.totalorder %s67, %s70
    %p79 = scmp.eq.s32.totalorder %s15, 1
    %p80 = por %p78, %p79
    %p81 = scmp.ne.s32.totalorder %s70, %s71
    %p82 = scmp.eq.s32.totalorder %s15, 0
    %p83 = por %p81, %p82
    %p84 = scmp.ne.s32.totalorder %s70, %s71
    %p85 = scmp.eq.s32.totalorder %s16, 1
    %p86 = por %p84, %p85
    %p88 = scmp.ne.s32.totalorder %s71, %s87
    %p89 = scmp.eq.s32.totalorder %s16, 0
    %p90 = por %p88, %p89
    %s91 = ssub.s32 %s10, %s17
    %p92 = scmp.eq.s32.totalorder %s91, 0
    %s94 = sadd.s32 %s93, 1
    %s95 = scalar_select %p92, %s93, %s94
    %p98 = pneg %p92
    %p99 = scmp.eq.s32.totalorder %s10, 1
    %p100 = por %p98, %p99
    %p101 = scmp.ne.s32.totalorder %s93, %s96
    %p102 = scmp.eq.s32.totalorder %s10, 0
    %p103 = por %p101, %p102
    %p104 = scmp.ne.s32.totalorder %s93, %s96
    %p105 = scmp.eq.s32.totalorder %s15, 1
    %p106 = por %p104, %p105
    %p107 = scmp.ne.s32.totalorder %s96, %s97
    %p108 = scmp.eq.s32.totalorder %s15, 0
    %p109 = por %p107, %p108
    %p110 = scmp.ne.s32.totalorder %s96, %s97
    %p111 = scmp.eq.s32.totalorder %s16, 1
    %p112 = por %p110, %p111
    %p114 = scmp.ne.s32.totalorder %s97, %s113
    %p115 = scmp.eq.s32.totalorder %s16, 0
    %p116 = por %p114, %p115
    %p117 = scmp.le.s32.totalorder 1, %s10
    %p118 = scmp.lt.s32.totalorder %s10, 3
    %p119 = pnand %p117, %p118
    %p120 = pneg %p119
    // Predicated region
    $region9: #{discriminator_forward.6} parent=5 // pred_check
      _
    $region10: #{discriminator_forward.6} parent=5 // pred_check_branch
      %122 = sbr.rel (%p119) target = $region12
    $region11: #{discriminator_forward.6} parent=5 // pred_region
      %s123 = ssub.s32 %s10, 1
      // Predicated region
      $region13: #{discriminator_forward.6} parent=11 // pred_check
        %p124 = pneg %p57
      $region14: #{discriminator_forward.6} parent=11 // pred_check_branch
        %126 = sbr.rel (%p124) target = $region16
      $region15: #{discriminator_forward.6} parent=11 // pred_region
        _
      $region16: #{discriminator_forward.6} parent=11 // pred_fallthru
        _
    $region12: #{discriminator_forward.6} parent=5 // pred_fallthru
      _
    %p127 = scmp.lt.s32.totalorder %s10, 2
    // Predicated region
    $region17: #{discriminator_forward.6} parent=5 // pred_check
      %p128 = pneg %p127
    $region18: #{discriminator_forward.6} parent=5 // pred_check_branch
      %130 = sbr.rel (%p128) target = $region20
    $region19: #{discriminator_forward.6} parent=5 // pred_region
      // Predicated region
      $region21: #{discriminator_forward.6} parent=19 // pred_check
        %p131 = pneg %p30
      $region22: #{discriminator_forward.6} parent=19 // pred_check_branch
        %133 = sbr.rel (%p131) target = $region24
      $region23: #{discriminator_forward.6} parent=19 // pred_region
        %p134 = scmp.lt.s32.totalorder %s10, 1
        %s135 = scalar_select %p134, %s10, 1
        %s136 = smul.addr %s135, 40
        %s137 = smul.addr %s136, 4
        %s138 = scalar_lea.vmem %s0, %s137
      $region24: #{discriminator_forward.6} parent=19 // pred_fallthru
        _
    $region20: #{discriminator_forward.6} parent=5 // pred_fallthru
      _
    %p139 = scmp.le.s32.totalorder 1, %s10
    %p140 = scmp.lt.s32.totalorder %s10, 3
    %p141 = pnand %p139, %p140
    %p142 = pneg %p141
    // Predicated region
    $region25: #{discriminator_forward.6} parent=5 // pred_check
      _
    $region26: #{discriminator_forward.6} parent=5 // pred_check_branch
      %144 = sbr.rel (%p141) target = $region28
    $region27: #{discriminator_forward.6} parent=5 // pred_region
      %s145 = ssub.s32 %s10, 1
      %p146 = scmp.lt.s32.totalorder %s15, 1
      %s147 = scalar_select %p146, %s15, 1
      %s148 = smul.addr %s147, 40
      %s149 = smul.addr %s148, 4
      %s150 = scalar_lea.vmem %s0, %s149
      %p151 = pneg %p36
      %p152 = pneg %p33
      %p153 = pneg %p57
      %p154 = pneg %p54
      %p155 = pneg %p83
      %p156 = pneg %p80
      %p157 = scmp.lt.s32.totalorder %s15, 1
      %s158 = scalar_select %p157, %s15, 1
      %s159 = smul.addr %s158, 37
      %s160 = smul.addr %s159, 4
      %s161 = scalar_lea.vmem %s2, %s160
      %p162 = pneg %p109
      %p163 = pneg %p106
      %p164 = scmp.lt.s32.totalorder %s15, 1
      %s165 = scalar_select %p164, %s15, 1
      %s166 = smul.addr %s165, 8
      %s167 = scalar_lea.vmem %s3, %s166
      %p168 = scmp.lt.s32.totalorder %s15, 1
      %s169 = scalar_select %p168, %s15, 1
      %s170 = smul.addr %s169, 40
      %s171 = smul.addr %s170, 4
      %s172 = scalar_lea.vmem %s0, %s171
      %p173 = scmp.lt.s32.totalorder %s15, 1
      %s174 = scalar_select %p173, %s15, 1
      %s175 = smul.addr %s174, 37
      %s176 = smul.addr %s175, 4
      %s177 = scalar_lea.vmem %s2, %s176
      %p178 = scmp.lt.s32.totalorder %s15, 1
      %s179 = scalar_select %p178, %s15, 1
      %s180 = smul.addr %s179, 8
      %s181 = scalar_lea.vmem %s3, %s180
      %v183 = vld [vmem:[%s172] sm:$0xf]
      %v184 = vld [vmem:[%s172 + $0x4] sm:$0xf]
      %v185 = vld [vmem:[%s172 + $0x8] sm:$0xf]
      %v186 = vld [vmem:[%s172 + $0xc] sm:$0xf]
      %v187 = vld [vmem:[%s172 + $0x10] sm:$0xf]
      %v188 = vld [vmem:[%s172 + $0x14] sm:$0xf]
      %v189 = vld [vmem:[%s172 + $0x18] sm:$0xf]
      %v190 = vld [vmem:[%s172 + $0x1c] sm:$0xf]
      %v191 = vld [vmem:[%s172 + $0x20] sm:$0xf]
      %v192 = vld [vmem:[%s172 + $0x24] sm:$0xf]
      %v193 = vld [vmem:[%s172 + $0x28] sm:$0xf]
      %v194 = vld [vmem:[%s172 + $0x2c] sm:$0xf]
      %v195 = vld [vmem:[%s172 + $0x30] sm:$0xf]
      %v196 = vld [vmem:[%s172 + $0x34] sm:$0xf]
      %v197 = vld [vmem:[%s172 + $0x38] sm:$0xf]
      %v198 = vld [vmem:[%s172 + $0x3c] sm:$0xf]
      %v199 = vld [vmem:[%s172 + $0x40] sm:$0xf]
      %v200 = vld [vmem:[%s172 + $0x44] sm:$0xf]
      %v201 = vld [vmem:[%s172 + $0x48] sm:$0xf]
      %v202 = vld [vmem:[%s172 + $0x4c] sm:$0xf]
      %v203 = vld [vmem:[%s172 + $0x50] sm:$0xf]
      %v204 = vld [vmem:[%s172 + $0x54] sm:$0xf]
      %v205 = vld [vmem:[%s172 + $0x58] sm:$0xf]
      %v206 = vld [vmem:[%s172 + $0x5c] sm:$0xf]
      %v207 = vld [vmem:[%s172 + $0x60] sm:$0xf]
      %v208 = vld [vmem:[%s172 + $0x64] sm:$0xf]
      %v209 = vld [vmem:[%s172 + $0x68] sm:$0xf]
      %v210 = vld [vmem:[%s172 + $0x6c] sm:$0xf]
      %v211 = vld [vmem:[%s172 + $0x70] sm:$0xf]
      %v212 = vld [vmem:[%s172 + $0x74] sm:$0xf]
      %v213 = vld [vmem:[%s172 + $0x78] sm:$0xf]
      %v214 = vld [vmem:[%s172 + $0x7c] sm:$0xf]
      %v215 = vld [vmem:[%s172 + $0x80] sm:$0xf]
      %v216 = vld [vmem:[%s172 + $0x84] sm:$0xf]
      %v217 = vld [vmem:[%s172 + $0x88] sm:$0xf]
      %v218 = vld [vmem:[%s172 + $0x8c] sm:$0xf]
      %v219 = vld [vmem:[%s172 + $0x90] sm:$0xf]
      %v220 = vld [vmem:[%s1] sm:$0xf]
      %v221 = vld [vmem:[%s1 + $0x4] sm:$0xf]
      %v222 = vld [vmem:[%s1 + $0x8] sm:$0xf]
      %v223 = vld [vmem:[%s1 + $0xc] sm:$0xf]
      %v224 = vld [vmem:[%s172 + $0x94] sm:$0x1]
      %s225 = scalar_lea.vmem %s1, 16
      %v226 = vld [vmem:[%s225] sm:$0xf]
      %v227 = vld [vmem:[%s225 + $0x4] sm:$0xf]
      %v228 = vld [vmem:[%s225 + $0x8] sm:$0xf]
      %v229 = vld [vmem:[%s225 + $0xc] sm:$0xf]
      %v268 = vunpack.c.l.b16 %v183
      %v269 = vunpack.c.l.b16 %v184
      %v270 = vunpack.c.l.b16 %v185
      %v271 = vunpack.c.l.b16 %v186
      %v272 = vunpack.c.l.b16 %v187
      %v273 = vunpack.c.l.b16 %v188
      %v274 = vunpack.c.l.b16 %v189
      %v275 = vunpack.c.l.b16 %v190
      %v276 = vunpack.c.l.b16 %v191
      %v277 = vunpack.c.l.b16 %v192
      %v278 = vunpack.c.l.b16 %v193
      %v279 = vunpack.c.l.b16 %v194
      %v280 = vunpack.c.l.b16 %v195
      %v281 = vunpack.c.l.b16 %v196
      %v282 = vunpack.c.l.b16 %v197
      %v283 = vunpack.c.l.b16 %v198
      %v284 = vunpack.c.l.b16 %v199
      %v285 = vunpack.c.l.b16 %v200
      %v286 = vunpack.c.l.b16 %v201
      %v287 = vunpack.c.l.b16 %v202
      %v288 = vunpack.c.l.b16 %v203
      %v289 = vunpack.c.l.b16 %v204
      %v290 = vunpack.c.l.b16 %v205
      %v291 = vunpack.c.l.b16 %v206
      %v292 = vunpack.c.l.b16 %v207
      %v293 = vunpack.c.l.b16 %v208
      %v294 = vunpack.c.l.b16 %v209
      %v295 = vunpack.c.l.b16 %v210
      %v296 = vunpack.c.l.b16 %v211
      %v297 = vunpack.c.l.b16 %v212
      %v298 = vunpack.c.l.b16 %v213
      %v299 = vunpack.c.l.b16 %v214
      %v300 = vunpack.c.l.b16 %v215
      %v301 = vunpack.c.l.b16 %v216
      %v302 = vunpack.c.l.b16 %v217
      %v303 = vunpack.c.l.b16 %v218
      %v304 = vunpack.c.l.b16 %v219
      %v305 = vunpack.c.l.b16 %v224
      %v306 = vpack.c.b16 %v269, %v268
      %v307 = vpack.c.b16 %v271, %v270
      %v308 = vpack.c.b16 %v273, %v272
      %v309 = vpack.c.b16 %v275, %v274
      %v310 = vpack.c.b16 %v277, %v276
      %v311 = vpack.c.b16 %v279, %v278
      %v312 = vpack.c.b16 %v281, %v280
      %v313 = vpack.c.b16 %v283, %v282
      %v314 = vpack.c.b16 %v285, %v284
      %v315 = vpack.c.b16 %v287, %v286
      %v316 = vpack.c.b16 %v289, %v288
      %v317 = vpack.c.b16 %v291, %v290
      %v318 = vpack.c.b16 %v293, %v292
      %v319 = vpack.c.b16 %v295, %v294
      %v320 = vpack.c.b16 %v297, %v296
      %v321 = vpack.c.b16 %v299, %v298
      %v322 = vpack.c.b16 %v301, %v300
      %v323 = vpack.c.b16 %v303, %v302
      %v324 = vpack.c.b16 %v305, %v304
      %vm325 = vsmask.f32 7424
      %v327 = vshrl.u32 %v306, 16
      %v329 = vshll.u32 %v306, 16
      %v331 = vrot.slane %v329, 1
      %v332 = vor.u32 %v327, %v331
      %v334 = vshll.u32 %v307, 16
      %v336 = vrot.slane %v334, 1
      %v337 = vsel %vm325, %v332, %v336
      %v338 = vshrl.u32 %v307, 16
      %v340 = vor.u32 %v338, %v336
      %v342 = vshll.u32 %v308, 16
      %v344 = vrot.slane %v342, 1
      %v345 = vsel %vm325, %v340, %v344
      %v346 = vshrl.u32 %v308, 16
      %v348 = vor.u32 %v346, %v344
      %v350 = vshll.u32 %v309, 16
      %v352 = vrot.slane %v350, 1
      %v353 = vsel %vm325, %v348, %v352
      %v354 = vshrl.u32 %v309, 16
      %v356 = vor.u32 %v354, %v352
      %v358 = vshll.u32 %v310, 16
      %v360 = vrot.slane %v358, 1
      %v361 = vsel %vm325, %v356, %v360
      %v362 = vshrl.u32 %v310, 16
      %v364 = vor.u32 %v362, %v360
      %v366 = vshll.u32 %v311, 16
      %v368 = vrot.slane %v366, 1
      %v369 = vsel %vm325, %v364, %v368
      %v370 = vshrl.u32 %v311, 16
      %v372 = vor.u32 %v370, %v368
      %v374 = vshll.u32 %v312, 16
      %v376 = vrot.slane %v374, 1
      %v377 = vsel %vm325, %v372, %v376
      %v378 = vshrl.u32 %v312, 16
      %v380 = vor.u32 %v378, %v376
      %v382 = vshll.u32 %v313, 16
      %v384 = vrot.slane %v382, 1
      %v385 = vsel %vm325, %v380, %v384
      %v386 = vshrl.u32 %v313, 16
      %v388 = vor.u32 %v386, %v384
      %v390 = vshll.u32 %v314, 16
      %v392 = vrot.slane %v390, 1
      %v393 = vsel %vm325, %v388, %v392
      %v394 = vshrl.u32 %v314, 16
      %v396 = vor.u32 %v394, %v392
      %v398 = vshll.u32 %v315, 16
      %v400 = vrot.slane %v398, 1
      %v401 = vsel %vm325, %v396, %v400
      %v402 = vshrl.u32 %v315, 16
      %v404 = vor.u32 %v402, %v400
      %v406 = vshll.u32 %v316, 16
      %v408 = vrot.slane %v406, 1
      %v409 = vsel %vm325, %v404, %v408
      %v410 = vshrl.u32 %v316, 16
      %v412 = vor.u32 %v410, %v408
      %v414 = vshll.u32 %v317, 16
      %v416 = vrot.slane %v414, 1
      %v417 = vsel %vm325, %v412, %v416
      %v418 = vshrl.u32 %v317, 16
      %v420 = vor.u32 %v418, %v416
      %v422 = vshll.u32 %v318, 16
      %v424 = vrot.slane %v422, 1
      %v425 = vsel %vm325, %v420, %v424
      %v426 = vshrl.u32 %v318, 16
      %v428 = vor.u32 %v426, %v424
      %v430 = vshll.u32 %v319, 16
      %v432 = vrot.slane %v430, 1
      %v433 = vsel %vm325, %v428, %v432
      %v434 = vshrl.u32 %v319, 16
      %v436 = vor.u32 %v434, %v432
      %v438 = vshll.u32 %v320, 16
      %v440 = vrot.slane %v438, 1
      %v441 = vsel %vm325, %v436, %v440
      %v442 = vshrl.u32 %v320, 16
      %v444 = vor.u32 %v442, %v440
      %v446 = vshll.u32 %v321, 16
      %v448 = vrot.slane %v446, 1
      %v449 = vsel %vm325, %v444, %v448
      %v450 = vshrl.u32 %v321, 16
      %v452 = vor.u32 %v450, %v448
      %v454 = vshll.u32 %v322, 16
      %v456 = vrot.slane %v454, 1
      %v457 = vsel %vm325, %v452, %v456
      %v458 = vshrl.u32 %v322, 16
      %v460 = vor.u32 %v458, %v456
      %v462 = vshll.u32 %v323, 16
      %v464 = vrot.slane %v462, 1
      %v465 = vsel %vm325, %v460, %v464
      %v466 = vshrl.u32 %v323, 16
      %v468 = vor.u32 %v466, %v464
      %v470 = vshll.u32 %v324, 16
      %v472 = vrot.slane %v470, 1
      %v473 = vsel %vm325, %v468, %v472
      %v474 = vshrl.u32 %v324, 16
      %v476 = vor.u32 %v474, %v472
      %v481 = vunpack.c.l.b16 %v226
      %v482 = vunpack.c.l.b16 %v227
      %v483 = vunpack.c.l.b16 %v228
      %v484 = vunpack.c.l.b16 %v229
      %v485 = vpack.c.b16 %v482, %v481
      %v486 = vpack.c.b16 %v484, %v483
      %vm489 = vcmask 261120
      %v491 = vsel %vm489, %v337, 0
      %v494 = vsel %vm489, %v345, 0
      %v497 = vsel %vm489, %v353, 0
      %v500 = vsel %vm489, %v361, 0
      %v503 = vsel %vm489, %v369, 0
      %v506 = vsel %vm489, %v377, 0
      %v509 = vsel %vm489, %v385, 0
      %v512 = vsel %vm489, %v393, 0
      %v515 = vsel %vm489, %v401, 0
      %v518 = vsel %vm489, %v409, 0
      %v521 = vsel %vm489, %v417, 0
      %v524 = vsel %vm489, %v425, 0
      %v527 = vsel %vm489, %v433, 0
      %v530 = vsel %vm489, %v441, 0
      %v533 = vsel %vm489, %v449, 0
      %v536 = vsel %vm489, %v457, 0
      %v539 = vsel %vm489, %v465, 0
      %v542 = vsel %vm489, %v473, 0
      %v545 = vsel %vm489, %v476, 0
      %547 = vmatprep.subr.bf16.mxu0 0
      %548 = vmatpush1.bf16.msra.mxu0 %v485
      %549 = vmatprep.subr.bf16.mxu0 0
      %550 = vmatpush1.bf16.msra.mxu0 %v486
      %551 = vmatprep.subr.bf16.mxu0 0
      %552 = vmatpush1.bf16.msra.mxu0 0
      %553 = vmatprep.subr.bf16.mxu0 0
      %554 = vmatpush1.bf16.msra.mxu0 0
      %555 = vmatprep.subr.bf16.mxu0 0
      %556 = vmatpush1.bf16.msra.mxu0 0
      %557 = vmatprep.subr.bf16.mxu0 0
      %558 = vmatpush1.bf16.msra.mxu0 0
      %559 = vmatprep.subr.bf16.mxu0 0
      %560 = vmatpush1.bf16.msra.mxu0 0
      %561 = vmatprep.subr.bf16.mxu0 0
      %562 = vmatpush1.bf16.msra.mxu0 0
      %563 = vmatprep.subr.bf16.mxu0 0
      %564 = vmatpush1.bf16.msra.mxu0 0
      %565 = vmatprep.subr.bf16.mxu0 0
      %566 = vmatpush1.bf16.msra.mxu0 0
      %567 = vmatprep.subr.bf16.mxu0 0
      %568 = vmatpush1.bf16.msra.mxu0 0
      %569 = vmatprep.subr.bf16.mxu0 0
      %570 = vmatpush1.bf16.msra.mxu0 0
      %571 = vmatprep.subr.bf16.mxu0 0
      %572 = vmatpush1.bf16.msra.mxu0 0
      %573 = vmatprep.subr.bf16.mxu0 0
      %574 = vmatpush1.bf16.msra.mxu0 0
      %575 = vmatprep.subr.bf16.mxu0 0
      %576 = vmatpush1.bf16.msra.mxu0 0
      %577 = vmatprep.subr.bf16.mxu0 0
      %578 = vmatpush1.bf16.msra.mxu0 0
      %579 = vmatprep.mubr.bf16.mxu0 0
      %580 = vmatmul.mubr.bf16.gmra.mrb[0].mxu0 %v491
      %v581 = vpop.f32.mrb[0].mxu0
      %v582 = vadd.f32 0.0, %v581
      %v583 = vpop.f32.mrb[0].mxu0
      %v584 = vpop.f32.mrb[0].mxu0
      %v585 = vadd.f32 0.0, %v584
      %v586 = vpop.f32.mrb[0].mxu0
      %587 = vmatprep.mubr.bf16.mxu0 0
      %588 = vmatmul.mubr.bf16.gmra.mrb[0].mxu0 %v494
      %v589 = vpop.f32.mrb[0].mxu0
      %v590 = vadd.f32 0.0, %v589
      %v591 = vpop.f32.mrb[0].mxu0
      %v592 = vpop.f32.mrb[0].mxu0
      %v593 = vadd.f32 0.0, %v592
      %v594 = vpop.f32.mrb[0].mxu0
      %595 = vmatprep.mubr.bf16.mxu0 0
      %596 = vmatmul.mubr.bf16.gmra.mrb[0].mxu0 %v497
      %v597 = vpop.f32.mrb[0].mxu0
      %v598 = vadd.f32 0.0, %v597
      %v599 = vpop.f32.mrb[0].mxu0
      %v600 = vpop.f32.mrb[0].mxu0
      %v601 = vadd.f32 0.0, %v600
      %v602 = vpop.f32.mrb[0].mxu0
      %603 = vmatprep.mubr.bf16.mxu0 0
      %604 = vmatmul.mubr.bf16.gmra.mrb[0].mxu0 %v500
      %v605 = vpop.f32.mrb[0].mxu0
      %v606 = vadd.f32 0.0, %v605
      %v607 = vpop.f32.mrb[0].mxu0
      %v608 = vpop.f32.mrb[0].mxu0
      %v609 = vadd.f32 0.0, %v608
      %v610 = vpop.f32.mrb[0].mxu0
      %611 = vmatprep.mubr.bf16.mxu0 0
      %612 = vmatmul.mubr.bf16.gmra.mrb[0].mxu0 %v503
      %v613 = vpop.f32.mrb[0].mxu0
      %v614 = vadd.f32 0.0, %v613
      %v615 = vpop.f32.mrb[0].mxu0
      %v616 = vpop.f32.mrb[0].mxu0
      %v617 = vadd.f32 0.0, %v616
      %v618 = vpop.f32.mrb[0].mxu0
      %619 = vmatprep.mubr.bf16.mxu0 0
      %620 = vmatmul.mubr.bf16.gmra.mrb[0].mxu0 %v506
      %v621 = vpop.f32.mrb[0].mxu0
      %v622 = vadd.f32 0.0, %v621
      %v623 = vpop.f32.mrb[0].mxu0
      %v624 = vpop.f32.mrb[0].mxu0
      %v625 = vadd.f32 0.0, %v624
      %v626 = vpop.f32.mrb[0].mxu0
      %627 = vmatprep.mubr.bf16.mxu0 0
      %628 = vmatmul.mubr.bf16.gmra.mrb[0].mxu0 %v509
      %v629 = vpop.f32.mrb[0].mxu0
      %v630 = vadd.f32 0.0, %v629
      %v631 = vpop.f32.mrb[0].mxu0
      %v632 = vpop.f32.mrb[0].mxu0
      %v633 = vadd.f32 0.0, %v632
      %v634 = vpop.f32.mrb[0].mxu0
      %635 = vmatprep.mubr.bf16.mxu0 0
      %636 = vmatmul.mubr.bf16.gmra.mrb[0].mxu0 %v512
      %v637 = vpop.f32.mrb[0].mxu0
      %v638 = vadd.f32 0.0, %v637
      %v639 = vpop.f32.mrb[0].mxu0
      %v640 = vpop.f32.mrb[0].mxu0
      %v641 = vadd.f32 0.0, %v640
      %v642 = vpop.f32.mrb[0].mxu0
      %643 = vmatprep.mubr.bf16.mxu0 0
      %644 = vmatmul.mubr.bf16.gmra.mrb[0].mxu0 %v515
      %v645 = vpop.f32.mrb[0].mxu0
      %v646 = vadd.f32 0.0, %v645
      %v647 = vpop.f32.mrb[0].mxu0
      %v648 = vpop.f32.mrb[0].mxu0
      %v649 = vadd.f32 0.0, %v648
      %v650 = vpop.f32.mrb[0].mxu0
      %651 = vmatprep.mubr.bf16.mxu0 0
      %652 = vmatmul.mubr.bf16.gmra.mrb[0].mxu0 %v518
      %v653 = vpop.f32.mrb[0].mxu0
      %v654 = vadd.f32 0.0, %v653
      %v655 = vpop.f32.mrb[0].mxu0
      %v656 = vpop.f32.mrb[0].mxu0
      %v657 = vadd.f32 0.0, %v656
      %v658 = vpop.f32.mrb[0].mxu0
      %659 = vmatprep.mubr.bf16.mxu0 0
      %660 = vmatmul.mubr.bf16.gmra.mrb[0].mxu0 %v521
      %v661 = vpop.f32.mrb[0].mxu0
      %v662 = vadd.f32 0.0, %v661
      %v663 = vpop.f32.mrb[0].mxu0
      %v664 = vpop.f32.mrb[0].mxu0
      %v665 = vadd.f32 0.0, %v664
      %v666 = vpop.f32.mrb[0].mxu0
      %667 = vmatprep.mubr.bf16.mxu0 0
      %668 = vmatmul.mubr.bf16.gmra.mrb[0].mxu0 %v524
      %v669 = vpop.f32.mrb[0].mxu0
      %v670 = vadd.f32 0.0, %v669
      %v671 = vpop.f32.mrb[0].mxu0
      %v672 = vpop.f32.mrb[0].mxu0
      %v673 = vadd.f32 0.0, %v672
      %v674 = vpop.f32.mrb[0].mxu0
      %675 = vmatprep.mubr.bf16.mxu0 0
      %676 = vmatmul.mubr.bf16.gmra.mrb[0].mxu0 %v527
      %v677 = vpop.f32.mrb[0].mxu0
      %v678 = vadd.f32 0.0, %v677
      %v679 = vpop.f32.mrb[0].mxu0
      %v680 = vpop.f32.mrb[0].mxu0
      %v681 = vadd.f32 0.0, %v680
      %v682 = vpop.f32.mrb[0].mxu0
      %683 = vmatprep.mubr.bf16.mxu0 0
      %684 = vmatmul.mubr.bf16.gmra.mrb[0].mxu0 %v530
      %v685 = vpop.f32.mrb[0].mxu0
      %v686 = vadd.f32 0.0, %v685
      %v687 = vpop.f32.mrb[0].mxu0
      %v688 = vpop.f32.mrb[0].mxu0
      %v689 = vadd.f32 0.0, %v688
      %v690 = vpop.f32.mrb[0].mxu0
      %691 = vmatprep.mubr.bf16.mxu0 0
      %692 = vmatmul.mubr.bf16.gmra.mrb[0].mxu0 %v533
      %v693 = vpop.f32.mrb[0].mxu0
      %v694 = vadd.f32 0.0, %v693
      %v695 = vpop.f32.mrb[0].mxu0
      %v696 = vpop.f32.mrb[0].mxu0
      %v697 = vadd.f32 0.0, %v696
      %v698 = vpop.f32.mrb[0].mxu0
      %699 = vmatprep.mubr.bf16.mxu0 0
      %700 = vmatmul.mubr.bf16.gmra.mrb[0].mxu0 %v536
      %v701 = vpop.f32.mrb[0].mxu0
      %v702 = vadd.f32 0.0, %v701
      %v703 = vpop.f32.mrb[0].mxu0
      %v704 = vpop.f32.mrb[0].mxu0
      %v705 = vadd.f32 0.0, %v704
      %v706 = vpop.f32.mrb[0].mxu0
      %707 = vmatprep.mubr.bf16.mxu0 0
      %708 = vmatmul.mubr.bf16.gmra.mrb[0].mxu0 %v539
      %v709 = vpop.f32.mrb[0].mxu0
      %v710 = vadd.f32 0.0, %v709
      %v711 = vpop.f32.mrb[0].mxu0
      %v712 = vpop.f32.mrb[0].mxu0
      %v713 = vadd.f32 0.0, %v712
      %v714 = vpop.f32.mrb[0].mxu0
      %715 = vmatprep.mubr.bf16.mxu0 0
      %716 = vmatmul.mubr.bf16.gmra.mrb[0].mxu0 %v542
      %v717 = vpop.f32.mrb[0].mxu0
      %v718 = vadd.f32 0.0, %v717
      %v719 = vpop.f32.mrb[0].mxu0
      %v720 = vpop.f32.mrb[0].mxu0
      %v721 = vadd.f32 0.0, %v720
      %v722 = vpop.f32.mrb[0].mxu0
      %723 = vmatprep.mubr.bf16.mxu0 0
      %724 = vmatmul.mubr.bf16.gmra.mrb[0].mxu0 %v545
      %v725 = vpop.f32.mrb[0].mxu0
      %v726 = vadd.f32 0.0, %v725
      %v727 = vpop.f32.mrb[0].mxu0
      %v728 = vpop.f32.mrb[0].mxu0
      %v729 = vpop.f32.mrb[0].mxu0
      %730 = vdwg.mxu0
      %v731 = vpack.c.b16 %v304, %v304
      %v736 = vunpack.c.l.b16 %v220
      %v737 = vunpack.c.l.b16 %v221
      %v738 = vunpack.c.l.b16 %v222
      %v739 = vunpack.c.l.b16 %v223
      %v740 = vpack.c.b16 %v737, %v736
      %v741 = vpack.c.b16 %v739, %v738
      %v744 = vsel %vm489, %v306, 0
      %v746 = vsel %vm489, %v307, 0
      %v748 = vsel %vm489, %v308, 0
      %v750 = vsel %vm489, %v309, 0
      %v752 = vsel %vm489, %v310, 0
      %v754 = vsel %vm489, %v311, 0
      %v756 = vsel %vm489, %v312, 0
      %v758 = vsel %vm489, %v313, 0
      %v760 = vsel %vm489, %v314, 0
      %v762 = vsel %vm489, %v315, 0
      %v764 = vsel %vm489, %v316, 0
      %v766 = vsel %vm489, %v317, 0
      %v768 = vsel %vm489, %v318, 0
      %v770 = vsel %vm489, %v319, 0
      %v772 = vsel %vm489, %v320, 0
      %v774 = vsel %vm489, %v321, 0
      %v776 = vsel %vm489, %v322, 0
      %v778 = vsel %vm489, %v323, 0
      %v781 = vsel %vm489, %v731, 0
      %783 = vmatprep.subr.bf16.mxu0 0
      %784 = vmatpush1.bf16.msra.mxu0 %v740
      %785 = vmatprep.subr.bf16.mxu0 0
      %786 = vmatpush1.bf16.msra.mxu0 %v741
      %787 = vmatprep.subr.bf16.mxu0 0
      %788 = vmatpush1.bf16.msra.mxu0 0
      %789 = vmatprep.subr.bf16.mxu0 0
      %790 = vmatpush1.bf16.msra.mxu0 0
      %791 = vmatprep.subr.bf16.mxu0 0
      %792 = vmatpush1.bf16.msra.mxu0 0
      %793 = vmatprep.subr.bf16.mxu0 0
      %794 = vmatpush1.bf16.msra.mxu0 0
      %795 = vmatprep.subr.bf16.mxu0 0
      %796 = vmatpush1.bf16.msra.mxu0 0
      %797 = vmatprep.subr.bf16.mxu0 0
      %798 = vmatpush1.bf16.msra.mxu0 0
      %799 = vmatprep.subr.bf16.mxu0 0
      %800 = vmatpush1.bf16.msra.mxu0 0
      %801 = vmatprep.subr.bf16.mxu0 0
      %802 = vmatpush1.bf16.msra.mxu0 0
      %803 = vmatprep.subr.bf16.mxu0 0
      %804 = vmatpush1.bf16.msra.mxu0 0
      %805 = vmatprep.subr.bf16.mxu0 0
      %806 = vmatpush1.bf16.msra.mxu0 0
      %807 = vmatprep.subr.bf16.mxu0 0
      %808 = vmatpush1.bf16.msra.mxu0 0
      %809 = vmatprep.subr.bf16.mxu0 0
      %810 = vmatpush1.bf16.msra.mxu0 0
      %811 = vmatprep.subr.bf16.mxu0 0
      %812 = vmatpush1.bf16.msra.mxu0 0
      %813 = vmatprep.subr.bf16.mxu0 0
      %814 = vmatpush1.bf16.msra.mxu0 0
      %815 = vmatprep.mubr.bf16.mxu0 0
      %816 = vmatmul.mubr.bf16.gmra.mrb[0].mxu0 %v744
      %v817 = vpop.f32.mrb[0].mxu0
      %v818 = vadd.f32 %v582, %v817
      %v819 = vpop.f32.mrb[0].mxu0
      %v820 = vpop.f32.mrb[0].mxu0
      %v821 = vadd.f32 %v585, %v820
      %v822 = vpop.f32.mrb[0].mxu0
      %823 = vmatprep.mubr.bf16.mxu0 0
      %824 = vmatmul.mubr.bf16.gmra.mrb[0].mxu0 %v746
      %v825 = vpop.f32.mrb[0].mxu0
      %v826 = vadd.f32 %v590, %v825
      %v827 = vpop.f32.mrb[0].mxu0
      %v828 = vpop.f32.mrb[0].mxu0
      %v829 = vadd.f32 %v593, %v828
      %v830 = vpop.f32.mrb[0].mxu0
      %831 = vmatprep.mubr.bf16.mxu0 0
      %832 = vmatmul.mubr.bf16.gmra.mrb[0].mxu0 %v748
      %v833 = vpop.f32.mrb[0].mxu0
      %v834 = vadd.f32 %v598, %v833
      %v835 = vpop.f32.mrb[0].mxu0
      %v836 = vpop.f32.mrb[0].mxu0
      %v837 = vadd.f32 %v601, %v836
      %v838 = vpop.f32.mrb[0].mxu0
      %839 = vmatprep.mubr.bf16.mxu0 0
      %840 = vmatmul.mubr.bf16.gmra.mrb[0].mxu0 %v750
      %v841 = vpop.f32.mrb[0].mxu0
      %v842 = vadd.f32 %v606, %v841
      %v843 = vpop.f32.mrb[0].mxu0
      %v844 = vpop.f32.mrb[0].mxu0
      %v845 = vadd.f32 %v609, %v844
      %v846 = vpop.f32.mrb[0].mxu0
      %847 = vmatprep.mubr.bf16.mxu0 0
      %848 = vmatmul.mubr.bf16.gmra.mrb[0].mxu0 %v752
      %v849 = vpop.f32.mrb[0].mxu0
      %v850 = vadd.f32 %v614, %v849
      %v851 = vpop.f32.mrb[0].mxu0
      %v852 = vpop.f32.mrb[0].mxu0
      %v853 = vadd.f32 %v617, %v852
      %v854 = vpop.f32.mrb[0].mxu0
      %855 = vmatprep.mubr.bf16.mxu0 0
      %856 = vmatmul.mubr.bf16.gmra.mrb[0].mxu0 %v754
      %v857 = vpop.f32.mrb[0].mxu0
      %v858 = vadd.f32 %v622, %v857
      %v859 = vpop.f32.mrb[0].mxu0
      %v860 = vpop.f32.mrb[0].mxu0
      %v861 = vadd.f32 %v625, %v860
      %v862 = vpop.f32.mrb[0].mxu0
      %863 = vmatprep.mubr.bf16.mxu0 0
      %864 = vmatmul.mubr.bf16.gmra.mrb[0].mxu0 %v756
      %v865 = vpop.f32.mrb[0].mxu0
      %v866 = vadd.f32 %v630, %v865
      %v867 = vpop.f32.mrb[0].mxu0
      %v868 = vpop.f32.mrb[0].mxu0
      %v869 = vadd.f32 %v633, %v868
      %v870 = vpop.f32.mrb[0].mxu0
      %871 = vmatprep.mubr.bf16.mxu0 0
      %872 = vmatmul.mubr.bf16.gmra.mrb[0].mxu0 %v758
      %v873 = vpop.f32.mrb[0].mxu0
      %v874 = vadd.f32 %v638, %v873
      %v875 = vpop.f32.mrb[0].mxu0
      %v876 = vpop.f32.mrb[0].mxu0
      %v877 = vadd.f32 %v641, %v876
      %v878 = vpop.f32.mrb[0].mxu0
      %879 = vmatprep.mubr.bf16.mxu0 0
      %880 = vmatmul.mubr.bf16.gmra.mrb[0].mxu0 %v760
      %v881 = vpop.f32.mrb[0].mxu0
      %v882 = vadd.f32 %v646, %v881
      %v883 = vpop.f32.mrb[0].mxu0
      %v884 = vpop.f32.mrb[0].mxu0
      %v885 = vadd.f32 %v649, %v884
      %v886 = vpop.f32.mrb[0].mxu0
      %887 = vmatprep.mubr.bf16.mxu0 0
      %888 = vmatmul.mubr.bf16.gmra.mrb[0].mxu0 %v762
      %v889 = vpop.f32.mrb[0].mxu0
      %v890 = vadd.f32 %v654, %v889
      %v891 = vpop.f32.mrb[0].mxu0
      %v892 = vpop.f32.mrb[0].mxu0
      %v893 = vadd.f32 %v657, %v892
      %v894 = vpop.f32.mrb[0].mxu0
      %895 = vmatprep.mubr.bf16.mxu0 0
      %896 = vmatmul.mubr.bf16.gmra.mrb[0].mxu0 %v764
      %v897 = vpop.f32.mrb[0].mxu0
      %v898 = vadd.f32 %v662, %v897
      %v899 = vpop.f32.mrb[0].mxu0
      %v900 = vpop.f32.mrb[0].mxu0
      %v901 = vadd.f32 %v665, %v900
      %v902 = vpop.f32.mrb[0].mxu0
      %903 = vmatprep.mubr.bf16.mxu0 0
      %904 = vmatmul.mubr.bf16.gmra.mrb[0].mxu0 %v766
      %v905 = vpop.f32.mrb[0].mxu0
      %v906 = vadd.f32 %v670, %v905
      %v907 = vpop.f32.mrb[0].mxu0
      %v908 = vpop.f32.mrb[0].mxu0
      %v909 = vadd.f32 %v673, %v908
      %v910 = vpop.f32.mrb[0].mxu0
      %911 = vmatprep.mubr.bf16.mxu0 0
      %912 = vmatmul.mubr.bf16.gmra.mrb[0].mxu0 %v768
      %v913 = vpop.f32.mrb[0].mxu0
      %v914 = vadd.f32 %v678, %v913
      %v915 = vpop.f32.mrb[0].mxu0
      %v916 = vpop.f32.mrb[0].mxu0
      %v917 = vadd.f32 %v681, %v916
      %v918 = vpop.f32.mrb[0].mxu0
      %919 = vmatprep.mubr.bf16.mxu0 0
      %920 = vmatmul.mubr.bf16.gmra.mrb[0].mxu0 %v770
      %v921 = vpop.f32.mrb[0].mxu0
      %v922 = vadd.f32 %v686, %v921
      %v923 = vpop.f32.mrb[0].mxu0
      %v924 = vpop.f32.mrb[0].mxu0
      %v925 = vadd.f32 %v689, %v924
      %v926 = vpop.f32.mrb[0].mxu0
      %927 = vmatprep.mubr.bf16.mxu0 0
      %928 = vmatmul.mubr.bf16.gmra.mrb[0].mxu0 %v772
      %v929 = vpop.f32.mrb[0].mxu0
      %v930 = vadd.f32 %v694, %v929
      %v931 = vpop.f32.mrb[0].mxu0
      %v932 = vpop.f32.mrb[0].mxu0
      %v933 = vadd.f32 %v697, %v932
      %v934 = vpop.f32.mrb[0].mxu0
      %935 = vmatprep.mubr.bf16.mxu0 0
      %936 = vmatmul.mubr.bf16.gmra.mrb[0].mxu0 %v774
      %v937 = vpop.f32.mrb[0].mxu0
      %v938 = vadd.f32 %v702, %v937
      %v939 = vpop.f32.mrb[0].mxu0
      %v940 = vpop.f32.mrb[0].mxu0
      %v941 = vadd.f32 %v705, %v940
      %v942 = vpop.f32.mrb[0].mxu0
      %943 = vmatprep.mubr.bf16.mxu0 0
      %944 = vmatmul.mubr.bf16.gmra.mrb[0].mxu0 %v776
      %v945 = vpop.f32.mrb[0].mxu0
      %v946 = vadd.f32 %v710, %v945
      %v947 = vpop.f32.mrb[0].mxu0
      %v948 = vpop.f32.mrb[0].mxu0
      %v949 = vadd.f32 %v713, %v948
      %v950 = vpop.f32.mrb[0].mxu0
      %951 = vmatprep.mubr.bf16.mxu0 0
      %952 = vmatmul.mubr.bf16.gmra.mrb[0].mxu0 %v778
      %v953 = vpop.f32.mrb[0].mxu0
      %v954 = vadd.f32 %v718, %v953
      %v955 = vpop.f32.mrb[0].mxu0
      %v956 = vpop.f32.mrb[0].mxu0
      %v957 = vadd.f32 %v721, %v956
      %v958 = vpop.f32.mrb[0].mxu0
      %959 = vmatprep.mubr.bf16.mxu0 0
      %960 = vmatmul.mubr.bf16.gmra.mrb[0].mxu0 %v781
      %v961 = vpop.f32.mrb[0].mxu0
      %v962 = vadd.f32 %v726, %v961
      %v963 = vpop.f32.mrb[0].mxu0
      %v964 = vpop.f32.mrb[0].mxu0
      %v965 = vpop.f32.mrb[0].mxu0
      %966 = vdwg.mxu0
      %v967 = vld [vmem:[%s172 + $0x8] sm:$0xf]
      %v968 = vld [vmem:[%s172 + $0xc] sm:$0xf]
      %v969 = vld [vmem:[%s172 + $0x10] sm:$0xf]
      %v970 = vld [vmem:[%s172 + $0x14] sm:$0xf]
      %v971 = vld [vmem:[%s172 + $0x18] sm:$0xf]
      %v972 = vld [vmem:[%s172 + $0x1c] sm:$0xf]
      %v973 = vld [vmem:[%s172 + $0x20] sm:$0xf]
      %v974 = vld [vmem:[%s172 + $0x24] sm:$0xf]
      %v975 = vld [vmem:[%s172 + $0x28] sm:$0xf]
      %v976 = vld [vmem:[%s172 + $0x2c] sm:$0xf]
      %v977 = vld [vmem:[%s172 + $0x30] sm:$0xf]
      %v978 = vld [vmem:[%s172 + $0x34] sm:$0xf]
      %v979 = vld [vmem:[%s172 + $0x38] sm:$0xf]
      %v980 = vld [vmem:[%s172 + $0x3c] sm:$0xf]
      %v981 = vld [vmem:[%s172 + $0x40] sm:$0xf]
      %v982 = vld [vmem:[%s172 + $0x44] sm:$0xf]
      %v983 = vld [vmem:[%s172 + $0x48] sm:$0xf]
      %v984 = vld [vmem:[%s172 + $0x4c] sm:$0xf]
      %v985 = vld [vmem:[%s172 + $0x50] sm:$0xf]
      %v986 = vld [vmem:[%s172 + $0x54] sm:$0xf]
      %v987 = vld [vmem:[%s172 + $0x58] sm:$0xf]
      %v988 = vld [vmem:[%s172 + $0x5c] sm:$0xf]
      %v989 = vld [vmem:[%s172 + $0x60] sm:$0xf]
      %v990 = vld [vmem:[%s172 + $0x64] sm:$0xf]
      %v991 = vld [vmem:[%s172 + $0x68] sm:$0xf]
      %v992 = vld [vmem:[%s172 + $0x6c] sm:$0xf]
      %v993 = vld [vmem:[%s172 + $0x70] sm:$0xf]
      %v994 = vld [vmem:[%s172 + $0x74] sm:$0xf]
      %v995 = vld [vmem:[%s172 + $0x78] sm:$0xf]
      %v996 = vld [vmem:[%s172 + $0x7c] sm:$0xf]
      %v997 = vld [vmem:[%s172 + $0x80] sm:$0xf]
      %v998 = vld [vmem:[%s172 + $0x84] sm:$0xf]
      %v999 = vld [vmem:[%s172 + $0x88] sm:$0xf]
      %v1000 = vld [vmem:[%s172 + $0x8c] sm:$0xf]
      %v1001 = vld [vmem:[%s172 + $0x90] sm:$0xf]
      %v1002 = vld [vmem:[%s172 + $0x94] sm:$0xf]
      %v1003 = vld [vmem:[%s172 + $0x98] sm:$0xf]
      %v1004 = vld [vmem:[%s172 + $0x9c] sm:$0x1]
      %s1005 = scalar_lea.vmem %s1, 32
      %v1006 = vld [vmem:[%s1005] sm:$0xf]
      %v1007 = vld [vmem:[%s1005 + $0x4] sm:$0xf]
      %v1008 = vld [vmem:[%s1005 + $0x8] sm:$0xf]
      %v1009 = vld [vmem:[%s1005 + $0xc] sm:$0xf]
      %v1048 = vunpack.c.l.b16 %v967
      %v1049 = vunpack.c.l.b16 %v968
      %v1050 = vunpack.c.l.b16 %v969
      %v1051 = vunpack.c.l.b16 %v970
      %v1052 = vunpack.c.l.b16 %v971
      %v1053 = vunpack.c.l.b16 %v972
      %v1054 = vunpack.c.l.b16 %v973
      %v1055 = vunpack.c.l.b16 %v974
      %v1056 = vunpack.c.l.b16 %v975
      %v1057 = vunpack.c.l.b16 %v976
      %v1058 = vunpack.c.l.b16 %v977
      %v1059 = vunpack.c.l.b16 %v978
      %v1060 = vunpack.c.l.b16 %v979
      %v1061 = vunpack.c.l.b16 %v980
      %v1062 = vunpack.c.l.b16 %v981
      %v1063 = vunpack.c.l.b16 %v982
      %v1064 = vunpack.c.l.b16 %v983
      %v1065 = vunpack.c.l.b16 %v984
      %v1066 = vunpack.c.l.b16 %v985
      %v1067 = vunpack.c.l.b16 %v986
      %v1068 = vunpack.c.l.b16 %v987
      %v1069 = vunpack.c.l.b16 %v988
      %v1070 = vunpack.c.l.b16 %v989
      %v1071 = vunpack.c.l.b16 %v990
      %v1072 = vunpack.c.l.b16 %v991
      %v1073 = vunpack.c.l.b16 %v992
      %v1074 = vunpack.c.l.b16 %v993
      %v1075 = vunpack.c.l.b16 %v994
      %v1076 = vunpack.c.l.b16 %v995
      %v1077 = vunpack.c.l.b16 %v996
      %v1078 = vunpack.c.l.b16 %v997
      %v1079 = vunpack.c.l.b16 %v998
      %v1080 = vunpack.c.l.b16 %v999
      %v1081 = vunpack.c.l.b16 %v1000
      %v1082 = vunpack.c.l.b16 %v1001
      %v1083 = vunpack.c.l.b16 %v1002
      %v1084 = vunpack.c.l.b16 %v1003
      %v1085 = vunpack.c.l.b16 %v1004
      %v1086 = vpack.c.b16 %v1049, %v1048
      %v1087 = vpack.c.b16 %v1051, %v1050
      %v1088 = vpack.c.b16 %v1053, %v1052
      %v1089 = vpack.c.b16 %v1055, %v1054
      %v1090 = vpack.c.b16 %v1057, %v1056
      %v1091 = vpack.c.b16 %v1059, %v1058
      %v1092 = vpack.c.b16 %v1061, %v1060
      %v1093 = vpack.c.b16 %v1063, %v1062
      %v1094 = vpack.c.b16 %v1065, %v1064
      %v1095 = vpack.c.b16 %v1067, %v1066
      %v1096 = vpack.c.b16 %v1069, %v1068
      %v1097 = vpack.c.b16 %v1071, %v1070
      %v1098 = vpack.c.b16 %v1073, %v1072
      %v1099 = vpack.c.b16 %v1075, %v1074
      %v1100 = vpack.c.b16 %v1077, %v1076
      %v1101 = vpack.c.b16 %v1079, %v1078
      %v1102 = vpack.c.b16 %v1081, %v1080
      %v1103 = vpack.c.b16 %v1083, %v1082
      %v1104 = vpack.c.b16 %v1085, %v1084
      %v1106 = vshrl.u32 %v1086, 16
      %v1108 = vshll.u32 %v1086, 16
      %v1110 = vrot.slane %v1108, 1
      %v1111 = vor.u32 %v1106, %v1110
      %v1113 = vshll.u32 %v1087, 16
      %v1115 = vrot.slane %v1113, 1
      %v1116 = vsel %vm325, %v1111, %v1115
      %v1117 = vshrl.u32 %v1087, 16
      %v1119 = vor.u32 %v1117, %v1115
      %v1121 = vshll.u32 %v1088, 16
      %v1123 = vrot.slane %v1121, 1
      %v1124 = vsel %vm325, %v1119, %v1123
      %v1125 = vshrl.u32 %v1088, 16
      %v1127 = vor.u32 %v1125, %v1123
      %v1129 = vshll.u32 %v1089, 16
      %v1131 = vrot.slane %v1129, 1
      %v1132 = vsel %vm325, %v1127, %v1131
      %v1133 = vshrl.u32 %v1089, 16
      %v1135 = vor.u32 %v1133, %v1131
      %v1137 = vshll.u32 %v1090, 16
      %v1139 = vrot.slane %v1137, 1
      %v1140 = vsel %vm325, %v1135, %v1139
      %v1141 = vshrl.u32 %v1090, 16
      %v1143 = vor.u32 %v1141, %v1139
      %v1145 = vshll.u32 %v1091, 16
      %v1147 = vrot.slane %v1145, 1
      %v1148 = vsel %vm325, %v1143, %v1147
      %v1149 = vshrl.u32 %v1091, 16
      %v1151 = vor.u32 %v1149, %v1147
      %v1153 = vshll.u32 %v1092, 16
      %v1155 = vrot.slane %v1153, 1
      %v1156 = vsel %vm325, %v1151, %v1155
      %v1157 = vshrl.u32 %v1092, 16
      %v1159 = vor.u32 %v1157, %v1155
      %v1161 = vshll.u32 %v1093, 16
      %v1163 = vrot.slane %v1161, 1
      %v1164 = vsel %vm325, %v1159, %v1163
      %v1165 = vshrl.u32 %v1093, 16
      %v1167 = vor.u32 %v1165, %v1163
      %v1169 = vshll.u32 %v1094, 16
      %v1171 = vrot.slane %v1169, 1
      %v1172 = vsel %vm325, %v1167, %v1171
      %v1173 = vshrl.u32 %v1094, 16
      %v1175 = vor.u32 %v1173, %v1171
      %v1177 = vshll.u32 %v1095, 16
      %v1179 = vrot.slane %v1177, 1
      %v1180 = vsel %vm325, %v1175, %v1179
      %v1181 = vshrl.u32 %v1095, 16
      %v1183 = vor.u32 %v1181, %v1179
      %v1185 = vshll.u32 %v1096, 16
      %v1187 = vrot.slane %v1185, 1
      %v1188 = vsel %vm325, %v1183, %v1187
      %v1189 = vshrl.u32 %v1096, 16
      %v1191 = vor.u32 %v1189, %v1187
      %v1193 = vshll.u32 %v1097, 16
      %v1195 = vrot.slane %v1193, 1
      %v1196 = vsel %vm325, %v1191, %v1195
      %v1197 = vshrl.u32 %v1097, 16
      %v1199 = vor.u32 %v1197, %v1195
      %v1201 = vshll.u32 %v1098, 16
      %v1203 = vrot.slane %v1201, 1
      %v1204 = vsel %vm325, %v1199, %v1203
      %v1205 = vshrl.u32 %v1098, 16
      %v1207 = vor.u32 %v1205, %v1203
      %v1209 = vshll.u32 %v1099, 16
      %v1211 = vrot.slane %v1209, 1
      %v1212 = vsel %vm325, %v1207, %v1211
      %v1213 = vshrl.u32 %v1099, 16
      %v1215 = vor.u32 %v1213, %v1211
      %v1217 = vshll.u32 %v1100, 16
      %v1219 = vrot.slane %v1217, 1
      %v1220 = vsel %vm325, %v1215, %v1219
      %v1221 = vshrl.u32 %v1100, 16
      %v1223 = vor.u32 %v1221, %v1219
      %v1225 = vshll.u32 %v1101, 16
      %v1227 = vrot.slane %v1225, 1
      %v1228 = vsel %vm325, %v1223, %v1227
      %v1229 = vshrl.u32 %v1101, 16
      %v1231 = vor.u32 %v1229, %v1227
      %v1233 = vshll.u32 %v1102, 16
      %v1235 = vrot.slane %v1233, 1
      %v1236 = vsel %vm325, %v1231, %v1235
      %v1237 = vshrl.u32 %v1102, 16
      %v1239 = vor.u32 %v1237, %v1235
      %v1241 = vshll.u32 %v1103, 16
      %v1243 = vrot.slane %v1241, 1
      %v1244 = vsel %vm325, %v1239, %v1243
      %v1245 = vshrl.u32 %v1103, 16
      %v1247 = vor.u32 %v1245, %v1243
      %v1249 = vshll.u32 %v1104, 16
      %v1251 = vrot.slane %v1249, 1
      %v1252 = vsel %vm325, %v1247, %v1251
      %v1253 = vshrl.u32 %v1104, 16
      %v1255 = vor.u32 %v1253, %v1251
      %v1260 = vunpack.c.l.b16 %v1006
      %v1261 = vunpack.c.l.b16 %v1007
      %v1262 = vunpack.c.l.b16 %v1008
      %v1263 = vunpack.c.l.b16 %v1009
      %v1264 = vpack.c.b16 %v1261, %v1260
      %v1265 = vpack.c.b16 %v1263, %v1262
      %v1269 = vsel %vm489, %v1116, 0
      %v1272 = vsel %vm489, %v1124, 0
      %v1275 = vsel %vm489, %v1132, 0
      %v1278 = vsel %vm489, %v1140, 0
      %v1281 = vsel %vm489, %v1148, 0
      %v1284 = vsel %vm489, %v1156, 0
      %v1287 = vsel %vm489, %v1164, 0
      %v1290 = vsel %vm489, %v1172, 0
      %v1293 = vsel %vm489, %v1180, 0
      %v1296 = vsel %vm489, %v1188, 0
      %v1299 = vsel %vm489, %v1196, 0
      %v1302 = vsel %vm489, %v1204, 0
      %v1305 = vsel %vm489, %v1212, 0
      %v1308 = vsel %vm489, %v1220, 0
      %v1311 = vsel %vm489, %v1228, 0
      %v1314 = vsel %vm489, %v1236, 0
      %v1317 = vsel %vm489, %v1244, 0
      %v1320 = vsel %vm489, %v1252, 0
      %v1323 = vsel %vm489, %v1255, 0
      %1325 = vmatprep.subr.bf16.mxu0 0
      %1326 = vmatpush1.bf16.msra.mxu0 %v1264
      %1327 = vmatprep.subr.bf16.mxu0 0
      %1328 = vmatpush1.bf16.msra.mxu0 %v1265
      %1329 = vmatprep.subr.bf16.mxu0 0
      %1330 = vmatpush1.bf16.msra.mxu0 0
      %1331 = vmatprep.subr.bf16.mxu0 0
      %1332 = vmatpush1.bf16.msra.mxu0 0
      %1333 = vmatprep.subr.bf16.mxu0 0
      %1334 = vmatpush1.bf16.msra.mxu0 0
      %1335 = vmatprep.subr.bf16.mxu0 0
      %1336 = vmatpush1.bf16.msra.mxu0 0
      %1337 = vmatprep.subr.bf16.mxu0 0
      %1338 = vmatpush1.bf16.msra.mxu0 0
      %1339 = vmatprep.subr.bf16.mxu0 0
      %1340 = vmatpush1.bf16.msra.mxu0 0
      %1341 = vmatprep.subr.bf16.mxu0 0
      %1342 = vmatpush1.bf16.msra.mxu0 0
      %1343 = vmatprep.subr.bf16.mxu0 0
      %1344 = vmatpush1.bf16.msra.mxu0 0
      %1345 = vmatprep.subr.bf16.mxu0 0
      %1346 = vmatpush1.bf16.msra.mxu0 0
      %1347 = vmatprep.subr.bf16.mxu0 0
      %1348 = vmatpush1.bf16.msra.mxu0 0
      %1349 = vmatprep.subr.bf16.mxu0 0
      %1350 = vmatpush1.bf16.msra.mxu0 0
      %1351 = vmatprep.subr.bf16.mxu0 0
      %1352 = vmatpush1.bf16.msra.mxu0 0
      %1353 = vmatprep.subr.bf16.mxu0 0
      %1354 = vmatpush1.bf16.msra.mxu0 0
      %1355 = vmatprep.subr.bf16.mxu0 0
      %1356 = vmatpush1.bf16.msra.mxu0 0
      %1357 = vmatprep.mubr.bf16.mxu0 0
      %1358 = vmatmul.mubr.bf16.gmra.mrb[0].mxu0 %v1269
      %v1359 = vpop.f32.mrb[0].mxu0
      %v1360 = vadd.f32 0.0, %v1359
      %v1361 = vpop.f32.mrb[0].mxu0
      %v1362 = vpop.f32.mrb[0].mxu0
      %v1363 = vadd.f32 0.0, %v1362
      %v1364 = vpop.f32.mrb[0].mxu0
      %1365 = vmatprep.mubr.bf16.mxu0 0
      %1366 = vmatmul.mubr.bf16.gmra.mrb[0].mxu0 %v1272
      %v1367 = vpop.f32.mrb[0].mxu0
      %v1368 = vadd.f32 0.0, %v1367
      %v1369 = vpop.f32.mrb[0].mxu0
      %v1370 = vpop.f32.mrb[0].mxu0
      %v1371 = vadd.f32 0.0, %v1370
      %v1372 = vpop.f32.mrb[0].mxu0
      %1373 = vmatprep.mubr.bf16.mxu0 0
      %1374 = vmatmul.mubr.bf16.gmra.mrb[0].mxu0 %v1275
      %v1375 = vpop.f32.mrb[0].mxu0
      %v1376 = vadd.f32 0.0, %v1375
      %v1377 = vpop.f32.mrb[0].mxu0
      %v1378 = vpop.f32.mrb[0].mxu0
      %v1379 = vadd.f32 0.0, %v1378
      %v1380 = vpop.f32.mrb[0].mxu0
      %1381 = vmatprep.mubr.bf16.mxu0 0
      %1382 = vmatmul.mubr.bf16.gmra.mrb[0].mxu0 %v1278
      %v1383 = vpop.f32.mrb[0].mxu0
      %v1384 = vadd.f32 0.0, %v1383
      %v1385 = vpop.f32.mrb[0].mxu0
      %v1386 = vpop.f32.mrb[0].mxu0
      %v1387 = vadd.f32 0.0, %v1386
      %v1388 = vpop.f32.mrb[0].mxu0
      %1389 = vmatprep.mubr.bf16.mxu0 0
      %1390 = vmatmul.mubr.bf16.gmra.mrb[0].mxu0 %v1281
      %v1391 = vpop.f32.mrb[0].mxu0
      %v1392 = vadd.f32 0.0, %v1391
      %v1393 = vpop.f32.mrb[0].mxu0
      %v1394 = vpop.f32.mrb[0].mxu0
      %v1395 = vadd.f32 0.0, %v1394
      %v1396 = vpop.f32.mrb[0].mxu0
      %1397 = vmatprep.mubr.bf16.mxu0 0
      %1398 = vmatmul.mubr.bf16.gmra.mrb[0].mxu0 %v1284
      %v1399 = vpop.f32.mrb[0].mxu0
      %v1400 = vadd.f32 0.0, %v1399
      %v1401 = vpop.f32.mrb[0].mxu0
      %v1402 = vpop.f32.mrb[0].mxu0
      %v1403 = vadd.f32 0.0, %v1402
      %v1404 = vpop.f32.mrb[0].mxu0
      %1405 = vmatprep.mubr.bf16.mxu0 0
      %1406 = vmatmul.mubr.bf16.gmra.mrb[0].mxu0 %v1287
      %v1407 = vpop.f32.mrb[0].mxu0
      %v1408 = vadd.f32 0.0, %v1407
      %v1409 = vpop.f32.mrb[0].mxu0
      %v1410 = vpop.f32.mrb[0].mxu0
      %v1411 = vadd.f32 0.0, %v1410
      %v1412 = vpop.f32.mrb[0].mxu0
      %1413 = vmatprep.mubr.bf16.mxu0 0
      %1414 = vmatmul.mubr.bf16.gmra.mrb[0].mxu0 %v1290
      %v1415 = vpop.f32.mrb[0].mxu0
      %v1416 = vadd.f32 0.0, %v1415
      %v1417 = vpop.f32.mrb[0].mxu0
      %v1418 = vpop.f32.mrb[0].mxu0
      %v1419 = vadd.f32 0.0, %v1418
      %v1420 = vpop.f32.mrb[0].mxu0
      %1421 = vmatprep.mubr.bf16.mxu0 0
      %1422 = vmatmul.mubr.bf16.gmra.mrb[0].mxu0 %v1293
      %v1423 = vpop.f32.mrb[0].mxu0
      %v1424 = vadd.f32 0.0, %v1423
      %v1425 = vpop.f32.mrb[0].mxu0
      %v1426 = vpop.f32.mrb[0].mxu0
      %v1427 = vadd.f32 0.0, %v1426
      %v1428 = vpop.f32.mrb[0].mxu0
      %1429 = vmatprep.mubr.bf16.mxu0 0
      %1430 = vmatmul.mubr.bf16.gmra.mrb[0].mxu0 %v1296
      %v1431 = vpop.f32.mrb[0].mxu0
      %v1432 = vadd.f32 0.0, %v1431
      %v1433 = vpop.f32.mrb[0].mxu0
      %v1434 = vpop.f32.mrb[0].mxu0
      %v1435 = vadd.f32 0.0, %v1434
      %v1436 = vpop.f32.mrb[0].mxu0
      %1437 = vmatprep.mubr.bf16.mxu0 0
      %1438 = vmatmul.mubr.bf16.gmra.mrb[0].mxu0 %v1299
      %v1439 = vpop.f32.mrb[0].mxu0
      %v1440 = vadd.f32 0.0, %v1439
      %v1441 = vpop.f32.mrb[0].mxu0
      %v1442 = vpop.f32.mrb[0].mxu0
      %v1443 = vadd.f32 0.0, %v1442
      %v1444 = vpop.f32.mrb[0].mxu0
      %1445 = vmatprep.mubr.bf16.mxu0 0
      %1446 = vmatmul.mubr.bf16.gmra.mrb[0].mxu0 %v1302
      %v1447 = vpop.f32.mrb[0].mxu0
      %v1448 = vadd.f32 0.0, %v1447
      %v1449 = vpop.f32.mrb[0].mxu0
      %v1450 = vpop.f32.mrb[0].mxu0
      %v1451 = vadd.f32 0.0, %v1450
      %v1452 = vpop.f32.mrb[0].mxu0
      %1453 = vmatprep.mubr.bf16.mxu0 0
      %1454 = vmatmul.mubr.bf16.gmra.mrb[0].mxu0 %v1305
      %v1455 = vpop.f32.mrb[0].mxu0
      %v1456 = vadd.f32 0.0, %v1455
      %v1457 = vpop.f32.mrb[0].mxu0
      %v1458 = vpop.f32.mrb[0].mxu0
      %v1459 = vadd.f32 0.0, %v1458
      %v1460 = vpop.f32.mrb[0].mxu0
      %1461 = vmatprep.mubr.bf16.mxu0 0
      %1462 = vmatmul.mubr.bf16.gmra.mrb[0].mxu0 %v1308
      %v1463 = vpop.f32.mrb[0].mxu0
      %v1464 = vadd.f32 0.0, %v1463
      %v1465 = vpop.f32.mrb[0].mxu0
      %v1466 = vpop.f32.mrb[0].mxu0
      %v1467 = vadd.f32 0.0, %v1466
      %v1468 = vpop.f32.mrb[0].mxu0
      %1469 = vmatprep.mubr.bf16.mxu0 0
      %1470 = vmatmul.mubr.bf16.gmra.mrb[0].mxu0 %v1311
      %v1471 = vpop.f32.mrb[0].mxu0
      %v1472 = vadd.f32 0.0, %v1471
      %v1473 = vpop.f32.mrb[0].mxu0
      %v1474 = vpop.f32.mrb[0].mxu0
      %v1475 = vadd.f32 0.0, %v1474
      %v1476 = vpop.f32.mrb[0].mxu0
      %1477 = vmatprep.mubr.bf16.mxu0 0
      %1478 = vmatmul.mubr.bf16.gmra.mrb[0].mxu0 %v1314
      %v1479 = vpop.f32.mrb[0].mxu0
      %v1480 = vadd.f32 0.0, %v1479
      %v1481 = vpop.f32.mrb[0].mxu0
      %v1482 = vpop.f32.mrb[0].mxu0
      %v1483 = vadd.f32 0.0, %v1482
      %v1484 = vpop.f32.mrb[0].mxu0
      %1485 = vmatprep.mubr.bf16.mxu0 0
      %1486 = vmatmul.mubr.bf16.gmra.mrb[0].mxu0 %v1317
      %v1487 = vpop.f32.mrb[0].mxu0
      %v1488 = vadd.f32 0.0, %v1487
      %v1489 = vpop.f32.mrb[0].mxu0
      %v1490 = vpop.f32.mrb[0].mxu0
      %v1491 = vadd.f32 0.0, %v1490
      %v1492 = vpop.f32.mrb[0].mxu0
      %1493 = vmatprep.mubr.bf16.mxu0 0
      %1494 = vmatmul.mubr.bf16.gmra.mrb[0].mxu0 %v1320
      %v1495 = vpop.f32.mrb[0].mxu0
      %v1496 = vadd.f32 0.0, %v1495
      %v1497 = vpop.f32.mrb[0].mxu0
      %v1498 = vpop.f32.mrb[0].mxu0
      %v1499 = vadd.f32 0.0, %v1498
      %v1500 = vpop.f32.mrb[0].mxu0
      %1501 = vmatprep.mubr.bf16.mxu0 0
      %1502 = vmatmul.mubr.bf16.gmra.mrb[0].mxu0 %v1323
      %v1503 = vpop.f32.mrb[0].mxu0
      %v1504 = vadd.f32 0.0, %v1503
      %v1505 = vpop.f32.mrb[0].mxu0
      %v1506 = vpop.f32.mrb[0].mxu0
      %v1507 = vpop.f32.mrb[0].mxu0
      %1508 = vdwg.mxu0
      %v1509 = vadd.f32 %v818, %v1360
      %v1510 = vadd.f32 %v821, %v1363
      %v1511 = vadd.f32 %v826, %v1368
      %v1512 = vadd.f32 %v829, %v1371
      %v1513 = vadd.f32 %v834, %v1376
      %v1514 = vadd.f32 %v837, %v1379
      %v1515 = vadd.f32 %v842, %v1384
      %v1516 = vadd.f32 %v845, %v1387
      %v1517 = vadd.f32 %v850, %v1392
      %v1518 = vadd.f32 %v853, %v1395
      %v1519 = vadd.f32 %v858, %v1400
      %v1520 = vadd.f32 %v861, %v1403
      %v1521 = vadd.f32 %v866, %v1408
      %v1522 = vadd.f32 %v869, %v1411
      %v1523 = vadd.f32 %v874, %v1416
      %v1524 = vadd.f32 %v877, %v1419
      %v1525 = vadd.f32 %v882, %v1424
      %v1526 = vadd.f32 %v885, %v1427
      %v1527 = vadd.f32 %v890, %v1432
      %v1528 = vadd.f32 %v893, %v1435
      %v1529 = vadd.f32 %v898, %v1440
      %v1530 = vadd.f32 %v901, %v1443
      %v1531 = vadd.f32 %v906, %v1448
      %v1532 = vadd.f32 %v909, %v1451
      %v1533 = vadd.f32 %v914, %v1456
      %v1534 = vadd.f32 %v917, %v1459
      %v1535 = vadd.f32 %v922, %v1464
      %v1536 = vadd.f32 %v925, %v1467
      %v1537 = vadd.f32 %v930, %v1472
      %v1538 = vadd.f32 %v933, %v1475
      %v1539 = vadd.f32 %v938, %v1480
      %v1540 = vadd.f32 %v941, %v1483
      %v1541 = vadd.f32 %v946, %v1488
      %v1542 = vadd.f32 %v949, %v1491
      %v1543 = vadd.f32 %v954, %v1496
      %v1544 = vadd.f32 %v957, %v1499
      %v1545 = vadd.f32 %v962, %v1504
      %v1546 = vld [vmem:[%s172 + $0x8] sm:$0xe]
      %s1547 = scalar_lea.vmem %s1, 48
      %v1548 = vld [vmem:[%s1547] sm:$0xf]
      %v1549 = vld [vmem:[%s1547 + $0x4] sm:$0xf]
      %v1550 = vld [vmem:[%s1547 + $0x8] sm:$0xf]
      %v1551 = vld [vmem:[%s1547 + $0xc] sm:$0xf]
      %v1553 = vunpack.c.l.b16 %v1546
      %v1554 = vpack.c.b16 %v1049, %v1553
      %vm1555 = vcmask 1046528
      %v1556 = vrot.slane %v1554, 1
      %v1557 = vrot.slane %v1087, 1
      %v1558 = vsel %vm1555, %v1556, %v1557
      %v1559 = vrot.slane %v1088, 1
      %v1560 = vsel %vm1555, %v1557, %v1559
      %v1561 = vrot.slane %v1089, 1
      %v1562 = vsel %vm1555, %v1559, %v1561
      %v1563 = vrot.slane %v1090, 1
      %v1564 = vsel %vm1555, %v1561, %v1563
      %v1565 = vrot.slane %v1091, 1
      %v1566 = vsel %vm1555, %v1563, %v1565
      %v1567 = vrot.slane %v1092, 1
      %v1568 = vsel %vm1555, %v1565, %v1567
      %v1569 = vrot.slane %v1093, 1
      %v1570 = vsel %vm1555, %v1567, %v1569
      %v1571 = vrot.slane %v1094, 1
      %v1572 = vsel %vm1555, %v1569, %v1571
      %v1573 = vrot.slane %v1095, 1
      %v1574 = vsel %vm1555, %v1571, %v1573
      %v1575 = vrot.slane %v1096, 1
      %v1576 = vsel %vm1555, %v1573, %v1575
      %v1577 = vrot.slane %v1097, 1
      %v1578 = vsel %vm1555, %v1575, %v1577
      %v1579 = vrot.slane %v1098, 1
      %v1580 = vsel %vm1555, %v1577, %v1579
      %v1581 = vrot.slane %v1099, 1
      %v1582 = vsel %vm1555, %v1579, %v1581
      %v1583 = vrot.slane %v1100, 1
      %v1584 = vsel %vm1555, %v1581, %v1583
      %v1585 = vrot.slane %v1101, 1
      %v1586 = vsel %vm1555, %v1583, %v1585
      %v1587 = vrot.slane %v1102, 1
      %v1588 = vsel %vm1555, %v1585, %v1587
      %v1589 = vrot.slane %v1103, 1
      %v1590 = vsel %vm1555, %v1587, %v1589
      %v1591 = vrot.slane %v1104, 1
      %v1592 = vsel %vm1555, %v1589, %v1591
      %v1597 = vunpack.c.l.b16 %v1548
      %v1598 = vunpack.c.l.b16 %v1549
      %v1599 = vunpack.c.l.b16 %v1550
      %v1600 = vunpack.c.l.b16 %v1551
      %v1601 = vpack.c.b16 %v1598, %v1597
      %v1602 = vpack.c.b16 %v1600, %v1599
      %v1606 = vsel %vm489, %v1558, 0
      %v1609 = vsel %vm489, %v1560, 0
      %v1612 = vsel %vm489, %v1562, 0
      %v1615 = vsel %vm489, %v1564, 0
      %v1618 = vsel %vm489, %v1566, 0
      %v1621 = vsel %vm489, %v1568, 0
      %v1624 = vsel %vm489, %v1570, 0
      %v1627 = vsel %vm489, %v1572, 0
      %v1630 = vsel %vm489, %v1574, 0
      %v1633 = vsel %vm489, %v1576, 0
      %v1636 = vsel %vm489, %v1578, 0
      %v1639 = vsel %vm489, %v1580, 0
      %v1642 = vsel %vm489, %v1582, 0
      %v1645 = vsel %vm489, %v1584, 0
      %v1648 = vsel %vm489, %v1586, 0
      %v1651 = vsel %vm489, %v1588, 0
      %v1654 = vsel %vm489, %v1590, 0
      %v1657 = vsel %vm489, %v1592, 0
      %v1660 = vsel %vm489, %v1591, 0
      %1662 = vmatprep.subr.bf16.mxu0 0
      %1663 = vmatpush1.bf16.msra.mxu0 %v1601
      %1664 = vmatprep.subr.bf16.mxu0 0
      %1665 = vmatpush1.bf16.msra.mxu0 %v1602
      %1666 = vmatprep.subr.bf16.mxu0 0
      %1667 = vmatpush1.bf16.msra.mxu0 0
      %1668 = vmatprep.subr.bf16.mxu0 0
      %1669 = vmatpush1.bf16.msra.mxu0 0
      %1670 = vmatprep.subr.bf16.mxu0 0
      %1671 = vmatpush1.bf16.msra.mxu0 0
      %1672 = vmatprep.subr.bf16.mxu0 0
      %1673 = vmatpush1.bf16.msra.mxu0 0
      %1674 = vmatprep.subr.bf16.mxu0 0
      %1675 = vmatpush1.bf16.msra.mxu0 0
      %1676 = vmatprep.subr.bf16.mxu0 0
      %1677 = vmatpush1.bf16.msra.mxu0 0
      %1678 = vmatprep.subr.bf16.mxu0 0
      %1679 = vmatpush1.bf16.msra.mxu0 0
      %1680 = vmatprep.subr.bf16.mxu0 0
      %1681 = vmatpush1.bf16.msra.mxu0 0
      %1682 = vmatprep.subr.bf16.mxu0 0
      %1683 = vmatpush1.bf16.msra.mxu0 0
      %1684 = vmatprep.subr.bf16.mxu0 0
      %1685 = vmatpush1.bf16.msra.mxu0 0
      %1686 = vmatprep.subr.bf16.mxu0 0
      %1687 = vmatpush1.bf16.msra.mxu0 0
      %1688 = vmatprep.subr.bf16.mxu0 0
      %1689 = vmatpush1.bf16.msra.mxu0 0
      %1690 = vmatprep.subr.bf16.mxu0 0
      %1691 = vmatpush1.bf16.msra.mxu0 0
      %1692 = vmatprep.subr.bf16.mxu0 0
      %1693 = vmatpush1.bf16.msra.mxu0 0
      %1694 = vmatprep.mubr.bf16.mxu0 0
      %1695 = vmatmul.mubr.bf16.gmra.mrb[0].mxu0 %v1606
      %v1696 = vpop.f32.mrb[0].mxu0
      %v1697 = vadd.f32 0.0, %v1696
      %v1698 = vpop.f32.mrb[0].mxu0
      %v1699 = vpop.f32.mrb[0].mxu0
      %v1700 = vadd.f32 0.0, %v1699
      %v1701 = vpop.f32.mrb[0].mxu0
      %1702 = vmatprep.mubr.bf16.mxu0 0
      %1703 = vmatmul.mubr.bf16.gmra.mrb[0].mxu0 %v1609
      %v1704 = vpop.f32.mrb[0].mxu0
      %v1705 = vadd.f32 0.0, %v1704
      %v1706 = vpop.f32.mrb[0].mxu0
      %v1707 = vpop.f32.mrb[0].mxu0
      %v1708 = vadd.f32 0.0, %v1707
      %v1709 = vpop.f32.mrb[0].mxu0
      %1710 = vmatprep.mubr.bf16.mxu0 0
      %1711 = vmatmul.mubr.bf16.gmra.mrb[0].mxu0 %v1612
      %v1712 = vpop.f32.mrb[0].mxu0
      %v1713 = vadd.f32 0.0, %v1712
      %v1714 = vpop.f32.mrb[0].mxu0
      %v1715 = vpop.f32.mrb[0].mxu0
      %v1716 = vadd.f32 0.0, %v1715
      %v1717 = vpop.f32.mrb[0].mxu0
      %1718 = vmatprep.mubr.bf16.mxu0 0
      %1719 = vmatmul.mubr.bf16.gmra.mrb[0].mxu0 %v1615
      %v1720 = vpop.f32.mrb[0].mxu0
      %v1721 = vadd.f32 0.0, %v1720
      %v1722 = vpop.f32.mrb[0].mxu0
      %v1723 = vpop.f32.mrb[0].mxu0
      %v1724 = vadd.f32 0.0, %v1723
      %v1725 = vpop.f32.mrb[0].mxu0
      %1726 = vmatprep.mubr.bf16.mxu0 0
      %1727 = vmatmul.mubr.bf16.gmra.mrb[0].mxu0 %v1618
      %v1728 = vpop.f32.mrb[0].mxu0
      %v1729 = vadd.f32 0.0, %v1728
      %v1730 = vpop.f32.mrb[0].mxu0
      %v1731 = vpop.f32.mrb[0].mxu0
      %v1732 = vadd.f32 0.0, %v1731
      %v1733 = vpop.f32.mrb[0].mxu0
      %1734 = vmatprep.mubr.bf16.mxu0 0
      %1735 = vmatmul.mubr.bf16.gmra.mrb[0].mxu0 %v1621
      %v1736 = vpop.f32.mrb[0].mxu0
      %v1737 = vadd.f32 0.0, %v1736
      %v1738 = vpop.f32.mrb[0].mxu0
      %v1739 = vpop.f32.mrb[0].mxu0
      %v1740 = vadd.f32 0.0, %v1739
      %v1741 = vpop.f32.mrb[0].mxu0
      %1742 = vmatprep.mubr.bf16.mxu0 0
      %1743 = vmatmul.mubr.bf16.gmra.mrb[0].mxu0 %v1624
      %v1744 = vpop.f32.mrb[0].mxu0
      %v1745 = vadd.f32 0.0, %v1744
      %v1746 = vpop.f32.mrb[0].mxu0
      %v1747 = vpop.f32.mrb[0].mxu0
      %v1748 = vadd.f32 0.0, %v1747
      %v1749 = vpop.f32.mrb[0].mxu0
      %1750 = vmatprep.mubr.bf16.mxu0 0
      %1751 = vmatmul.mubr.bf16.gmra.mrb[0].mxu0 %v1627
      %v1752 = vpop.f32.mrb[0].mxu0
      %v1753 = vadd.f32 0.0, %v1752
      %v1754 = vpop.f32.mrb[0].mxu0
      %v1755 = vpop.f32.mrb[0].mxu0
      %v1756 = vadd.f32 0.0, %v1755
      %v1757 = vpop.f32.mrb[0].mxu0
      %1758 = vmatprep.mubr.bf16.mxu0 0
      %1759 = vmatmul.mubr.bf16.gmra.mrb[0].mxu0 %v1630
      %v1760 = vpop.f32.mrb[0].mxu0
      %v1761 = vadd.f32 0.0, %v1760
      %v1762 = vpop.f32.mrb[0].mxu0
      %v1763 = vpop.f32.mrb[0].mxu0
      %v1764 = vadd.f32 0.0, %v1763
      %v1765 = vpop.f32.mrb[0].mxu0
      %1766 = vmatprep.mubr.bf16.mxu0 0
      %1767 = vmatmul.mubr.bf16.gmra.mrb[0].mxu0 %v1633
      %v1768 = vpop.f32.mrb[0].mxu0
      %v1769 = vadd.f32 0.0, %v1768
      %v1770 = vpop.f32.mrb[0].mxu0
      %v1771 = vpop.f32.mrb[0].mxu0
      %v1772 = vadd.f32 0.0, %v1771
      %v1773 = vpop.f32.mrb[0].mxu0
      %1774 = vmatprep.mubr.bf16.mxu0 0
      %1775 = vmatmul.mubr.bf16.gmra.mrb[0].mxu0 %v1636
      %v1776 = vpop.f32.mrb[0].mxu0
      %v1777 = vadd.f32 0.0, %v1776
      %v1778 = vpop.f32.mrb[0].mxu0
      %v1779 = vpop.f32.mrb[0].mxu0
      %v1780 = vadd.f32 0.0, %v1779
      %v1781 = vpop.f32.mrb[0].mxu0
      %1782 = vmatprep.mubr.bf16.mxu0 0
      %1783 = vmatmul.mubr.bf16.gmra.mrb[0].mxu0 %v1639
      %v1784 = vpop.f32.mrb[0].mxu0
      %v1785 = vadd.f32 0.0, %v1784
      %v1786 = vpop.f32.mrb[0].mxu0
      %v1787 = vpop.f32.mrb[0].mxu0
      %v1788 = vadd.f32 0.0, %v1787
      %v1789 = vpop.f32.mrb[0].mxu0
      %1790 = vmatprep.mubr.bf16.mxu0 0
      %1791 = vmatmul.mubr.bf16.gmra.mrb[0].mxu0 %v1642
      %v1792 = vpop.f32.mrb[0].mxu0
      %v1793 = vadd.f32 0.0, %v1792
      %v1794 = vpop.f32.mrb[0].mxu0
      %v1795 = vpop.f32.mrb[0].mxu0
      %v1796 = vadd.f32 0.0, %v1795
      %v1797 = vpop.f32.mrb[0].mxu0
      %1798 = vmatprep.mubr.bf16.mxu0 0
      %1799 = vmatmul.mubr.bf16.gmra.mrb[0].mxu0 %v1645
      %v1800 = vpop.f32.mrb[0].mxu0
      %v1801 = vadd.f32 0.0, %v1800
      %v1802 = vpop.f32.mrb[0].mxu0
      %v1803 = vpop.f32.mrb[0].mxu0
      %v1804 = vadd.f32 0.0, %v1803
      %v1805 = vpop.f32.mrb[0].mxu0
      %1806 = vmatprep.mubr.bf16.mxu0 0
      %1807 = vmatmul.mubr.bf16.gmra.mrb[0].mxu0 %v1648
      %v1808 = vpop.f32.mrb[0].mxu0
      %v1809 = vadd.f32 0.0, %v1808
      %v1810 = vpop.f32.mrb[0].mxu0
      %v1811 = vpop.f32.mrb[0].mxu0
      %v1812 = vadd.f32 0.0, %v1811
      %v1813 = vpop.f32.mrb[0].mxu0
      %1814 = vmatprep.mubr.bf16.mxu0 0
      %1815 = vmatmul.mubr.bf16.gmra.mrb[0].mxu0 %v1651
      %v1816 = vpop.f32.mrb[0].mxu0
      %v1817 = vadd.f32 0.0, %v1816
      %v1818 = vpop.f32.mrb[0].mxu0
      %v1819 = vpop.f32.mrb[0].mxu0
      %v1820 = vadd.f32 0.0, %v1819
      %v1821 = vpop.f32.mrb[0].mxu0
      %1822 = vmatprep.mubr.bf16.mxu0 0
      %1823 = vmatmul.mubr.bf16.gmra.mrb[0].mxu0 %v1654
      %v1824 = vpop.f32.mrb[0].mxu0
      %v1825 = vadd.f32 0.0, %v1824
      %v1826 = vpop.f32.mrb[0].mxu0
      %v1827 = vpop.f32.mrb[0].mxu0
      %v1828 = vadd.f32 0.0, %v1827
      %v1829 = vpop.f32.mrb[0].mxu0
      %1830 = vmatprep.mubr.bf16.mxu0 0
      %1831 = vmatmul.mubr.bf16.gmra.mrb[0].mxu0 %v1657
      %v1832 = vpop.f32.mrb[0].mxu0
      %v1833 = vadd.f32 0.0, %v1832
      %v1834 = vpop.f32.mrb[0].mxu0
      %v1835 = vpop.f32.mrb[0].mxu0
      %v1836 = vadd.f32 0.0, %v1835
      %v1837 = vpop.f32.mrb[0].mxu0
      %1838 = vmatprep.mubr.bf16.mxu0 0
      %1839 = vmatmul.mubr.bf16.gmra.mrb[0].mxu0 %v1660
      %v1840 = vpop.f32.mrb[0].mxu0
      %v1841 = vadd.f32 0.0, %v1840
      %v1842 = vpop.f32.mrb[0].mxu0
      %v1843 = vpop.f32.mrb[0].mxu0
      %v1844 = vpop.f32.mrb[0].mxu0
      %1845 = vdwg.mxu0
      %v1846 = vadd.f32 %v1509, %v1697
      %v1847 = vadd.f32 %v1510, %v1700
      %v1848 = vadd.f32 %v1511, %v1705
      %v1849 = vadd.f32 %v1512, %v1708
      %v1850 = vadd.f32 %v1513, %v1713
      %v1851 = vadd.f32 %v1514, %v1716
      %v1852 = vadd.f32 %v1515, %v1721
      %v1853 = vadd.f32 %v1516, %v1724
      %v1854 = vadd.f32 %v1517, %v1729
      %v1855 = vadd.f32 %v1518, %v1732
      %v1856 = vadd.f32 %v1519, %v1737
      %v1857 = vadd.f32 %v1520, %v1740
      %v1858 = vadd.f32 %v1521, %v1745
      %v1859 = vadd.f32 %v1522, %v1748
      %v1860 = vadd.f32 %v1523, %v1753
      %v1861 = vadd.f32 %v1524, %v1756
      %v1862 = vadd.f32 %v1525, %v1761
      %v1863 = vadd.f32 %v1526, %v1764
      %v1864 = vadd.f32 %v1527, %v1769
      %v1865 = vadd.f32 %v1528, %v1772
      %v1866 = vadd.f32 %v1529, %v1777
      %v1867 = vadd.f32 %v1530, %v1780
      %v1868 = vadd.f32 %v1531, %v1785
      %v1869 = vadd.f32 %v1532, %v1788
      %v1870 = vadd.f32 %v1533, %v1793
      %v1871 = vadd.f32 %v1534, %v1796
      %v1872 = vadd.f32 %v1535, %v1801
      %v1873 = vadd.f32 %v1536, %v1804
      %v1874 = vadd.f32 %v1537, %v1809
      %v1875 = vadd.f32 %v1538, %v1812
      %v1876 = vadd.f32 %v1539, %v1817
      %v1877 = vadd.f32 %v1540, %v1820
      %v1878 = vadd.f32 %v1541, %v1825
      %v1879 = vadd.f32 %v1542, %v1828
      %v1880 = vadd.f32 %v1543, %v1833
      %v1881 = vadd.f32 %v1544, %v1836
      %v1882 = vadd.f32 %v1545, %v1841
      %v1883 = vpack.c.bf16 %v1847, %v1846
      %v1884 = vpack.c.bf16 %v1849, %v1848
      %v1885 = vpack.c.bf16 %v1851, %v1850
      %v1886 = vpack.c.bf16 %v1853, %v1852
      %v1887 = vpack.c.bf16 %v1855, %v1854
      %v1888 = vpack.c.bf16 %v1857, %v1856
      %v1889 = vpack.c.bf16 %v1859, %v1858
      %v1890 = vpack.c.bf16 %v1861, %v1860
      %v1891 = vpack.c.bf16 %v1863, %v1862
      %v1892 = vpack.c.bf16 %v1865, %v1864
      %v1893 = vpack.c.bf16 %v1867, %v1866
      %v1894 = vpack.c.bf16 %v1869, %v1868
      %v1895 = vpack.c.bf16 %v1871, %v1870
      %v1896 = vpack.c.bf16 %v1873, %v1872
      %v1897 = vpack.c.bf16 %v1875, %v1874
      %v1898 = vpack.c.bf16 %v1877, %v1876
      %v1899 = vpack.c.bf16 %v1879, %v1878
      %v1900 = vpack.c.bf16 %v1881, %v1880
      %v1901 = vpack.c.bf16 %v1882, %v1882
      %v1921 = vunpack.c.l.b16 %v1883
      %v1922 = vunpack.c.h.b16 %v1883
      %v1923 = vunpack.c.l.b16 %v1884
      %v1924 = vunpack.c.h.b16 %v1884
      %v1925 = vunpack.c.l.b16 %v1885
      %v1926 = vunpack.c.h.b16 %v1885
      %v1927 = vunpack.c.l.b16 %v1886
      %v1928 = vunpack.c.h.b16 %v1886
      %v1929 = vunpack.c.l.b16 %v1887
      %v1930 = vunpack.c.h.b16 %v1887
      %v1931 = vunpack.c.l.b16 %v1888
      %v1932 = vunpack.c.h.b16 %v1888
      %v1933 = vunpack.c.l.b16 %v1889
      %v1934 = vunpack.c.h.b16 %v1889
      %v1935 = vunpack.c.l.b16 %v1890
      %v1936 = vunpack.c.h.b16 %v1890
      %v1937 = vunpack.c.l.b16 %v1891
      %v1938 = vunpack.c.h.b16 %v1891
      %v1939 = vunpack.c.l.b16 %v1892
      %v1940 = vunpack.c.h.b16 %v1892
      %v1941 = vunpack.c.l.b16 %v1893
      %v1942 = vunpack.c.h.b16 %v1893
      %v1943 = vunpack.c.l.b16 %v1894
      %v1944 = vunpack.c.h.b16 %v1894
      %v1945 = vunpack.c.l.b16 %v1895
      %v1946 = vunpack.c.h.b16 %v1895
      %v1947 = vunpack.c.l.b16 %v1896
      %v1948 = vunpack.c.h.b16 %v1896
      %v1949 = vunpack.c.l.b16 %v1897
      %v1950 = vunpack.c.h.b16 %v1897
      %v1951 = vunpack.c.l.b16 %v1898
      %v1952 = vunpack.c.h.b16 %v1898
      %v1953 = vunpack.c.l.b16 %v1899
      %v1954 = vunpack.c.h.b16 %v1899
      %v1955 = vunpack.c.l.b16 %v1900
      %v1956 = vunpack.c.h.b16 %v1900
      %v1957 = vunpack.c.l.b16 %v1901
      %v1958 = vpack.c.b16 %v1921, %v1921
      %v1959 = vpack.c.b16 %v1922, %v1922
      %v1960 = vpack.c.b16 %v1923, %v1923
      %v1961 = vpack.c.b16 %v1924, %v1924
      %v1962 = vpack.c.b16 %v1925, %v1925
      %v1963 = vpack.c.b16 %v1926, %v1926
      %v1964 = vpack.c.b16 %v1927, %v1927
      %v1965 = vpack.c.b16 %v1928, %v1928
      %v1966 = vpack.c.b16 %v1929, %v1929
      %v1967 = vpack.c.b16 %v1930, %v1930
      %v1968 = vpack.c.b16 %v1931, %v1931
      %v1969 = vpack.c.b16 %v1932, %v1932
      %v1970 = vpack.c.b16 %v1933, %v1933
      %v1971 = vpack.c.b16 %v1934, %v1934
      %v1972 = vpack.c.b16 %v1935, %v1935
      %v1973 = vpack.c.b16 %v1936, %v1936
      %v1974 = vpack.c.b16 %v1937, %v1937
      %v1975 = vpack.c.b16 %v1938, %v1938
      %v1976 = vpack.c.b16 %v1939, %v1939
      %v1977 = vpack.c.b16 %v1940, %v1940
      %v1978 = vpack.c.b16 %v1941, %v1941
      %v1979 = vpack.c.b16 %v1942, %v1942
      %v1980 = vpack.c.b16 %v1943, %v1943
      %v1981 = vpack.c.b16 %v1944, %v1944
      %v1982 = vpack.c.b16 %v1945, %v1945
      %v1983 = vpack.c.b16 %v1946, %v1946
      %v1984 = vpack.c.b16 %v1947, %v1947
      %v1985 = vpack.c.b16 %v1948, %v1948
      %v1986 = vpack.c.b16 %v1949, %v1949
      %v1987 = vpack.c.b16 %v1950, %v1950
      %v1988 = vpack.c.b16 %v1951, %v1951
      %v1989 = vpack.c.b16 %v1952, %v1952
      %v1990 = vpack.c.b16 %v1953, %v1953
      %v1991 = vpack.c.b16 %v1954, %v1954
      %v1992 = vpack.c.b16 %v1955, %v1955
      %v1993 = vpack.c.b16 %v1956, %v1956
      %v1994 = vpack.c.b16 %v1957, %v1957
      %2032 = vst [vmem:[%s177] sm:$0xf] %v1958
      %2033 = vst [vmem:[%s177 + $0x4] sm:$0xf] %v1959
      %2034 = vst [vmem:[%s177 + $0x8] sm:$0xf] %v1960
      %2035 = vst [vmem:[%s177 + $0xc] sm:$0xf] %v1961
      %2036 = vst [vmem:[%s177 + $0x10] sm:$0xf] %v1962
      %2037 = vst [vmem:[%s177 + $0x14] sm:$0xf] %v1963
      %2038 = vst [vmem:[%s177 + $0x18] sm:$0xf] %v1964
      %2039 = vst [vmem:[%s177 + $0x1c] sm:$0xf] %v1965
      %2040 = vst [vmem:[%s177 + $0x20] sm:$0xf] %v1966
      %2041 = vst [vmem:[%s177 + $0x24] sm:$0xf] %v1967
      %2042 = vst [vmem:[%s177 + $0x28] sm:$0xf] %v1968
      %2043 = vst [vmem:[%s177 + $0x2c] sm:$0xf] %v1969
      %2044 = vst [vmem:[%s177 + $0x30] sm:$0xf] %v1970
      %2045 = vst [vmem:[%s177 + $0x34] sm:$0xf] %v1971
      %2046 = vst [vmem:[%s177 + $0x38] sm:$0xf] %v1972
      %2047 = vst [vmem:[%s177 + $0x3c] sm:$0xf] %v1973
      %2048 = vst [vmem:[%s177 + $0x40] sm:$0xf] %v1974
      %2049 = vst [vmem:[%s177 + $0x44] sm:$0xf] %v1975
      %2050 = vst [vmem:[%s177 + $0x48] sm:$0xf] %v1976
      %2051 = vst [vmem:[%s177 + $0x4c] sm:$0xf] %v1977
      %2052 = vst [vmem:[%s177 + $0x50] sm:$0xf] %v1978
      %2053 = vst [vmem:[%s177 + $0x54] sm:$0xf] %v1979
      %2054 = vst [vmem:[%s177 + $0x58] sm:$0xf] %v1980
      %2055 = vst [vmem:[%s177 + $0x5c] sm:$0xf] %v1981
      %2056 = vst [vmem:[%s177 + $0x60] sm:$0xf] %v1982
      %2057 = vst [vmem:[%s177 + $0x64] sm:$0xf] %v1983
      %2058 = vst [vmem:[%s177 + $0x68] sm:$0xf] %v1984
      %2059 = vst [vmem:[%s177 + $0x6c] sm:$0xf] %v1985
      %2060 = vst [vmem:[%s177 + $0x70] sm:$0xf] %v1986
      %2061 = vst [vmem:[%s177 + $0x74] sm:$0xf] %v1987
      %2062 = vst [vmem:[%s177 + $0x78] sm:$0xf] %v1988
      %2063 = vst [vmem:[%s177 + $0x7c] sm:$0xf] %v1989
      %2064 = vst [vmem:[%s177 + $0x80] sm:$0xf] %v1990
      %2065 = vst [vmem:[%s177 + $0x84] sm:$0xf] %v1991
      %2066 = vst [vmem:[%s177 + $0x88] sm:$0xf] %v1992
      %2067 = vst [vmem:[%s177 + $0x8c] sm:$0xf] %v1993
      %2068 = vst [vmem:[%s177 + $0x90] sm:$0xf] %v1994
      %v2069 = vlaneseq
      %v2070 = vshrl.u32 %v2069, 7
      %v2071 = vadd.s32 %v2070, 8
      %v2072 = vadd.s32 %v2070, 16
      %v2073 = vadd.s32 %v2070, 24
      %v2074 = vadd.s32 %v2070, 32
      %v2075 = vadd.s32 %v2070, 40
      %v2076 = vadd.s32 %v2070, 48
      %v2077 = vadd.s32 %v2070, 56
      %v2078 = vadd.s32 %v2070, 64
      %v2079 = vadd.s32 %v2070, 72
      %v2080 = vadd.s32 %v2070, 80
      %v2081 = vadd.s32 %v2070, 88
      %v2082 = vadd.s32 %v2070, 96
      %v2083 = vadd.s32 %v2070, 104
      %v2084 = vadd.s32 %v2070, 112
      %v2085 = vadd.s32 %v2070, 120
      %v2086 = vadd.s32 %v2070, 128
      %v2087 = vadd.s32 %v2070, 136
      %v2088 = vadd.s32 %v2070, 144
      %v2089 = vadd.s32 %v2070, 152
      %v2090 = vadd.s32 %v2070, 160
      %v2091 = vadd.s32 %v2070, 168
      %v2092 = vadd.s32 %v2070, 176
      %v2093 = vadd.s32 %v2070, 184
      %v2094 = vadd.s32 %v2070, 192
      %v2095 = vadd.s32 %v2070, 200
      %v2096 = vadd.s32 %v2070, 208
      %v2097 = vadd.s32 %v2070, 216
      %v2098 = vadd.s32 %v2070, 224
      %v2099 = vadd.s32 %v2070, 232
      %v2100 = vadd.s32 %v2070, 240
      %v2101 = vadd.s32 %v2070, 248
      %v2102 = vadd.s32 %v2070, 256
      %v2103 = vadd.s32 %v2070, 264
      %v2104 = vadd.s32 %v2070, 272
      %v2105 = vadd.s32 %v2070, 280
      %v2106 = vadd.s32 %v2070, 288
      %vm2107 = vcmp.lt.s32.totalorder %v2070, 0
      %v2108 = vsub.s32 0, %v2070
      %v2109 = vsel %vm2107, %v2108, %v2070
      %v2110 = vmul.u32.u64.compose %v2109, 3714566310
      %v2111 = vextract.low.u32 %v2110
      %v2112 = vextract.high.u32 %v2110
      %vm2113 = vc.u32 %v2111, 3714566310
      %v2114 = vsel %vm2113, 1, 0
      %v2115 = vadd.s32 %v2112, %v2114
      %v2116 = vshrl.u32 %v2115, 8
      %v2117 = vmul.u32 %v2116, 296
      %v2118 = vsub.s32 %v2109, %v2117
      %v2119 = vsub.s32 0, %v2118
      %v2120 = vsel %vm2107, %v2119, %v2118
      %vm2121 = vcmp.lt.s32.totalorder %v2071, 0
      %v2122 = vsub.s32 0, %v2071
      %v2123 = vsel %vm2121, %v2122, %v2071
      %v2124 = vmul.u32.u64.compose %v2123, 3714566310
      %v2125 = vextract.low.u32 %v2124
      %v2126 = vextract.high.u32 %v2124
      %vm2127 = vc.u32 %v2125, 3714566310
      %v2128 = vsel %vm2127, 1, 0
      %v2129 = vadd.s32 %v2126, %v2128
      %v2130 = vshrl.u32 %v2129, 8
      %v2131 = vmul.u32 %v2130, 296
      %v2132 = vsub.s32 %v2123, %v2131
      %v2133 = vsub.s32 0, %v2132
      %v2134 = vsel %vm2121, %v2133, %v2132
      %vm2135 = vcmp.lt.s32.totalorder %v2072, 0
      %v2136 = vsub.s32 0, %v2072
      %v2137 = vsel %vm2135, %v2136, %v2072
      %v2138 = vmul.u32.u64.compose %v2137, 3714566310
      %v2139 = vextract.low.u32 %v2138
      %v2140 = vextract.high.u32 %v2138
      %vm2141 = vc.u32 %v2139, 3714566310
      %v2142 = vsel %vm2141, 1, 0
      %v2143 = vadd.s32 %v2140, %v2142
      %v2144 = vshrl.u32 %v2143, 8
      %v2145 = vmul.u32 %v2144, 296
      %v2146 = vsub.s32 %v2137, %v2145
      %v2147 = vsub.s32 0, %v2146
      %v2148 = vsel %vm2135, %v2147, %v2146
      %vm2149 = vcmp.lt.s32.totalorder %v2073, 0
      %v2150 = vsub.s32 0, %v2073
      %v2151 = vsel %vm2149, %v2150, %v2073
      %v2152 = vmul.u32.u64.compose %v2151, 3714566310
      %v2153 = vextract.low.u32 %v2152
      %v2154 = vextract.high.u32 %v2152
      %vm2155 = vc.u32 %v2153, 3714566310
      %v2156 = vsel %vm2155, 1, 0
      %v2157 = vadd.s32 %v2154, %v2156
      %v2158 = vshrl.u32 %v2157, 8
      %v2159 = vmul.u32 %v2158, 296
      %v2160 = vsub.s32 %v2151, %v2159
      %v2161 = vsub.s32 0, %v2160
      %v2162 = vsel %vm2149, %v2161, %v2160
      %vm2163 = vcmp.lt.s32.totalorder %v2074, 0
      %v2164 = vsub.s32 0, %v2074
      %v2165 = vsel %vm2163, %v2164, %v2074
      %v2166 = vmul.u32.u64.compose %v2165, 3714566310
      %v2167 = vextract.low.u32 %v2166
      %v2168 = vextract.high.u32 %v2166
      %vm2169 = vc.u32 %v2167, 3714566310
      %v2170 = vsel %vm2169, 1, 0
      %v2171 = vadd.s32 %v2168, %v2170
      %v2172 = vshrl.u32 %v2171, 8
      %v2173 = vmul.u32 %v2172, 296
      %v2174 = vsub.s32 %v2165, %v2173
      %v2175 = vsub.s32 0, %v2174
      %v2176 = vsel %vm2163, %v2175, %v2174
      %vm2177 = vcmp.lt.s32.totalorder %v2075, 0
      %v2178 = vsub.s32 0, %v2075
      %v2179 = vsel %vm2177, %v2178, %v2075
      %v2180 = vmul.u32.u64.compose %v2179, 3714566310
      %v2181 = vextract.low.u32 %v2180
      %v2182 = vextract.high.u32 %v2180
      %vm2183 = vc.u32 %v2181, 3714566310
      %v2184 = vsel %vm2183, 1, 0
      %v2185 = vadd.s32 %v2182, %v2184
      %v2186 = vshrl.u32 %v2185, 8
      %v2187 = vmul.u32 %v2186, 296
      %v2188 = vsub.s32 %v2179, %v2187
      %v2189 = vsub.s32 0, %v2188
      %v2190 = vsel %vm2177, %v2189, %v2188
      %vm2191 = vcmp.lt.s32.totalorder %v2076, 0
      %v2192 = vsub.s32 0, %v2076
      %v2193 = vsel %vm2191, %v2192, %v2076
      %v2194 = vmul.u32.u64.compose %v2193, 3714566310
      %v2195 = vextract.low.u32 %v2194
      %v2196 = vextract.high.u32 %v2194
      %vm2197 = vc.u32 %v2195, 3714566310
      %v2198 = vsel %vm2197, 1, 0
      %v2199 = vadd.s32 %v2196, %v2198
      %v2200 = vshrl.u32 %v2199, 8
      %v2201 = vmul.u32 %v2200, 296
      %v2202 = vsub.s32 %v2193, %v2201
      %v2203 = vsub.s32 0, %v2202
      %v2204 = vsel %vm2191, %v2203, %v2202
      %vm2205 = vcmp.lt.s32.totalorder %v2077, 0
      %v2206 = vsub.s32 0, %v2077
      %v2207 = vsel %vm2205, %v2206, %v2077
      %v2208 = vmul.u32.u64.compose %v2207, 3714566310
      %v2209 = vextract.low.u32 %v2208
      %v2210 = vextract.high.u32 %v2208
      %vm2211 = vc.u32 %v2209, 3714566310
      %v2212 = vsel %vm2211, 1, 0
      %v2213 = vadd.s32 %v2210, %v2212
      %v2214 = vshrl.u32 %v2213, 8
      %v2215 = vmul.u32 %v2214, 296
      %v2216 = vsub.s32 %v2207, %v2215
      %v2217 = vsub.s32 0, %v2216
      %v2218 = vsel %vm2205, %v2217, %v2216
      %vm2219 = vcmp.lt.s32.totalorder %v2078, 0
      %v2220 = vsub.s32 0, %v2078
      %v2221 = vsel %vm2219, %v2220, %v2078
      %v2222 = vmul.u32.u64.compose %v2221, 3714566310
      %v2223 = vextract.low.u32 %v2222
      %v2224 = vextract.high.u32 %v2222
      %vm2225 = vc.u32 %v2223, 3714566310
      %v2226 = vsel %vm2225, 1, 0
      %v2227 = vadd.s32 %v2224, %v2226
      %v2228 = vshrl.u32 %v2227, 8
      %v2229 = vmul.u32 %v2228, 296
      %v2230 = vsub.s32 %v2221, %v2229
      %v2231 = vsub.s32 0, %v2230
      %v2232 = vsel %vm2219, %v2231, %v2230
      %vm2233 = vcmp.lt.s32.totalorder %v2079, 0
      %v2234 = vsub.s32 0, %v2079
      %v2235 = vsel %vm2233, %v2234, %v2079
      %v2236 = vmul.u32.u64.compose %v2235, 3714566310
      %v2237 = vextract.low.u32 %v2236
      %v2238 = vextract.high.u32 %v2236
      %vm2239 = vc.u32 %v2237, 3714566310
      %v2240 = vsel %vm2239, 1, 0
      %v2241 = vadd.s32 %v2238, %v2240
      %v2242 = vshrl.u32 %v2241, 8
      %v2243 = vmul.u32 %v2242, 296
      %v2244 = vsub.s32 %v2235, %v2243
      %v2245 = vsub.s32 0, %v2244
      %v2246 = vsel %vm2233, %v2245, %v2244
      %vm2247 = vcmp.lt.s32.totalorder %v2080, 0
      %v2248 = vsub.s32 0, %v2080
      %v2249 = vsel %vm2247, %v2248, %v2080
      %v2250 = vmul.u32.u64.compose %v2249, 3714566310
      %v2251 = vextract.low.u32 %v2250
      %v2252 = vextract.high.u32 %v2250
      %vm2253 = vc.u32 %v2251, 3714566310
      %v2254 = vsel %vm2253, 1, 0
      %v2255 = vadd.s32 %v2252, %v2254
      %v2256 = vshrl.u32 %v2255, 8
      %v2257 = vmul.u32 %v2256, 296
      %v2258 = vsub.s32 %v2249, %v2257
      %v2259 = vsub.s32 0, %v2258
      %v2260 = vsel %vm2247, %v2259, %v2258
      %vm2261 = vcmp.lt.s32.totalorder %v2081, 0
      %v2262 = vsub.s32 0, %v2081
      %v2263 = vsel %vm2261, %v2262, %v2081
      %v2264 = vmul.u32.u64.compose %v2263, 3714566310
      %v2265 = vextract.low.u32 %v2264
      %v2266 = vextract.high.u32 %v2264
      %vm2267 = vc.u32 %v2265, 3714566310
      %v2268 = vsel %vm2267, 1, 0
      %v2269 = vadd.s32 %v2266, %v2268
      %v2270 = vshrl.u32 %v2269, 8
      %v2271 = vmul.u32 %v2270, 296
      %v2272 = vsub.s32 %v2263, %v2271
      %v2273 = vsub.s32 0, %v2272
      %v2274 = vsel %vm2261, %v2273, %v2272
      %vm2275 = vcmp.lt.s32.totalorder %v2082, 0
      %v2276 = vsub.s32 0, %v2082
      %v2277 = vsel %vm2275, %v2276, %v2082
      %v2278 = vmul.u32.u64.compose %v2277, 3714566310
      %v2279 = vextract.low.u32 %v2278
      %v2280 = vextract.high.u32 %v2278
      %vm2281 = vc.u32 %v2279, 3714566310
      %v2282 = vsel %vm2281, 1, 0
      %v2283 = vadd.s32 %v2280, %v2282
      %v2284 = vshrl.u32 %v2283, 8
      %v2285 = vmul.u32 %v2284, 296
      %v2286 = vsub.s32 %v2277, %v2285
      %v2287 = vsub.s32 0, %v2286
      %v2288 = vsel %vm2275, %v2287, %v2286
      %vm2289 = vcmp.lt.s32.totalorder %v2083, 0
      %v2290 = vsub.s32 0, %v2083
      %v2291 = vsel %vm2289, %v2290, %v2083
      %v2292 = vmul.u32.u64.compose %v2291, 3714566310
      %v2293 = vextract.low.u32 %v2292
      %v2294 = vextract.high.u32 %v2292
      %vm2295 = vc.u32 %v2293, 3714566310
      %v2296 = vsel %vm2295, 1, 0
      %v2297 = vadd.s32 %v2294, %v2296
      %v2298 = vshrl.u32 %v2297, 8
      %v2299 = vmul.u32 %v2298, 296
      %v2300 = vsub.s32 %v2291, %v2299
      %v2301 = vsub.s32 0, %v2300
      %v2302 = vsel %vm2289, %v2301, %v2300
      %vm2303 = vcmp.lt.s32.totalorder %v2084, 0
      %v2304 = vsub.s32 0, %v2084
      %v2305 = vsel %vm2303, %v2304, %v2084
      %v2306 = vmul.u32.u64.compose %v2305, 3714566310
      %v2307 = vextract.low.u32 %v2306
      %v2308 = vextract.high.u32 %v2306
      %vm2309 = vc.u32 %v2307, 3714566310
      %v2310 = vsel %vm2309, 1, 0
      %v2311 = vadd.s32 %v2308, %v2310
      %v2312 = vshrl.u32 %v2311, 8
      %v2313 = vmul.u32 %v2312, 296
      %v2314 = vsub.s32 %v2305, %v2313
      %v2315 = vsub.s32 0, %v2314
      %v2316 = vsel %vm2303, %v2315, %v2314
      %vm2317 = vcmp.lt.s32.totalorder %v2085, 0
      %v2318 = vsub.s32 0, %v2085
      %v2319 = vsel %vm2317, %v2318, %v2085
      %v2320 = vmul.u32.u64.compose %v2319, 3714566310
      %v2321 = vextract.low.u32 %v2320
      %v2322 = vextract.high.u32 %v2320
      %vm2323 = vc.u32 %v2321, 3714566310
      %v2324 = vsel %vm2323, 1, 0
      %v2325 = vadd.s32 %v2322, %v2324
      %v2326 = vshrl.u32 %v2325, 8
      %v2327 = vmul.u32 %v2326, 296
      %v2328 = vsub.s32 %v2319, %v2327
      %v2329 = vsub.s32 0, %v2328
      %v2330 = vsel %vm2317, %v2329, %v2328
      %vm2331 = vcmp.lt.s32.totalorder %v2086, 0
      %v2332 = vsub.s32 0, %v2086
      %v2333 = vsel %vm2331, %v2332, %v2086
      %v2334 = vmul.u32.u64.compose %v2333, 3714566310
      %v2335 = vextract.low.u32 %v2334
      %v2336 = vextract.high.u32 %v2334
      %vm2337 = vc.u32 %v2335, 3714566310
      %v2338 = vsel %vm2337, 1, 0
      %v2339 = vadd.s32 %v2336, %v2338
      %v2340 = vshrl.u32 %v2339, 8
      %v2341 = vmul.u32 %v2340, 296
      %v2342 = vsub.s32 %v2333, %v2341
      %v2343 = vsub.s32 0, %v2342
      %v2344 = vsel %vm2331, %v2343, %v2342
      %vm2345 = vcmp.lt.s32.totalorder %v2087, 0
      %v2346 = vsub.s32 0, %v2087
      %v2347 = vsel %vm2345, %v2346, %v2087
      %v2348 = vmul.u32.u64.compose %v2347, 3714566310
      %v2349 = vextract.low.u32 %v2348
      %v2350 = vextract.high.u32 %v2348
      %vm2351 = vc.u32 %v2349, 3714566310
      %v2352 = vsel %vm2351, 1, 0
      %v2353 = vadd.s32 %v2350, %v2352
      %v2354 = vshrl.u32 %v2353, 8
      %v2355 = vmul.u32 %v2354, 296
      %v2356 = vsub.s32 %v2347, %v2355
      %v2357 = vsub.s32 0, %v2356
      %v2358 = vsel %vm2345, %v2357, %v2356
      %vm2359 = vcmp.lt.s32.totalorder %v2088, 0
      %v2360 = vsub.s32 0, %v2088
      %v2361 = vsel %vm2359, %v2360, %v2088
      %v2362 = vmul.u32.u64.compose %v2361, 3714566310
      %v2363 = vextract.low.u32 %v2362
      %v2364 = vextract.high.u32 %v2362
      %vm2365 = vc.u32 %v2363, 3714566310
      %v2366 = vsel %vm2365, 1, 0
      %v2367 = vadd.s32 %v2364, %v2366
      %v2368 = vshrl.u32 %v2367, 8
      %v2369 = vmul.u32 %v2368, 296
      %v2370 = vsub.s32 %v2361, %v2369
      %v2371 = vsub.s32 0, %v2370
      %v2372 = vsel %vm2359, %v2371, %v2370
      %vm2373 = vcmp.lt.s32.totalorder %v2089, 0
      %v2374 = vsub.s32 0, %v2089
      %v2375 = vsel %vm2373, %v2374, %v2089
      %v2376 = vmul.u32.u64.compose %v2375, 3714566310
      %v2377 = vextract.low.u32 %v2376
      %v2378 = vextract.high.u32 %v2376
      %vm2379 = vc.u32 %v2377, 3714566310
      %v2380 = vsel %vm2379, 1, 0
      %v2381 = vadd.s32 %v2378, %v2380
      %v2382 = vshrl.u32 %v2381, 8
      %v2383 = vmul.u32 %v2382, 296
      %v2384 = vsub.s32 %v2375, %v2383
      %v2385 = vsub.s32 0, %v2384
      %v2386 = vsel %vm2373, %v2385, %v2384
      %vm2387 = vcmp.lt.s32.totalorder %v2090, 0
      %v2388 = vsub.s32 0, %v2090
      %v2389 = vsel %vm2387, %v2388, %v2090
      %v2390 = vmul.u32.u64.compose %v2389, 3714566310
      %v2391 = vextract.low.u32 %v2390
      %v2392 = vextract.high.u32 %v2390
      %vm2393 = vc.u32 %v2391, 3714566310
      %v2394 = vsel %vm2393, 1, 0
      %v2395 = vadd.s32 %v2392, %v2394
      %v2396 = vshrl.u32 %v2395, 8
      %v2397 = vmul.u32 %v2396, 296
      %v2398 = vsub.s32 %v2389, %v2397
      %v2399 = vsub.s32 0, %v2398
      %v2400 = vsel %vm2387, %v2399, %v2398
      %vm2401 = vcmp.lt.s32.totalorder %v2091, 0
      %v2402 = vsub.s32 0, %v2091
      %v2403 = vsel %vm2401, %v2402, %v2091
      %v2404 = vmul.u32.u64.compose %v2403, 3714566310
      %v2405 = vextract.low.u32 %v2404
      %v2406 = vextract.high.u32 %v2404
      %vm2407 = vc.u32 %v2405, 3714566310
      %v2408 = vsel %vm2407, 1, 0
      %v2409 = vadd.s32 %v2406, %v2408
      %v2410 = vshrl.u32 %v2409, 8
      %v2411 = vmul.u32 %v2410, 296
      %v2412 = vsub.s32 %v2403, %v2411
      %v2413 = vsub.s32 0, %v2412
      %v2414 = vsel %vm2401, %v2413, %v2412
      %vm2415 = vcmp.lt.s32.totalorder %v2092, 0
      %v2416 = vsub.s32 0, %v2092
      %v2417 = vsel %vm2415, %v2416, %v2092
      %v2418 = vmul.u32.u64.compose %v2417, 3714566310
      %v2419 = vextract.low.u32 %v2418
      %v2420 = vextract.high.u32 %v2418
      %vm2421 = vc.u32 %v2419, 3714566310
      %v2422 = vsel %vm2421, 1, 0
      %v2423 = vadd.s32 %v2420, %v2422
      %v2424 = vshrl.u32 %v2423, 8
      %v2425 = vmul.u32 %v2424, 296
      %v2426 = vsub.s32 %v2417, %v2425
      %v2427 = vsub.s32 0, %v2426
      %v2428 = vsel %vm2415, %v2427, %v2426
      %vm2429 = vcmp.lt.s32.totalorder %v2093, 0
      %v2430 = vsub.s32 0, %v2093
      %v2431 = vsel %vm2429, %v2430, %v2093
      %v2432 = vmul.u32.u64.compose %v2431, 3714566310
      %v2433 = vextract.low.u32 %v2432
      %v2434 = vextract.high.u32 %v2432
      %vm2435 = vc.u32 %v2433, 3714566310
      %v2436 = vsel %vm2435, 1, 0
      %v2437 = vadd.s32 %v2434, %v2436
      %v2438 = vshrl.u32 %v2437, 8
      %v2439 = vmul.u32 %v2438, 296
      %v2440 = vsub.s32 %v2431, %v2439
      %v2441 = vsub.s32 0, %v2440
      %v2442 = vsel %vm2429, %v2441, %v2440
      %vm2443 = vcmp.lt.s32.totalorder %v2094, 0
      %v2444 = vsub.s32 0, %v2094
      %v2445 = vsel %vm2443, %v2444, %v2094
      %v2446 = vmul.u32.u64.compose %v2445, 3714566310
      %v2447 = vextract.low.u32 %v2446
      %v2448 = vextract.high.u32 %v2446
      %vm2449 = vc.u32 %v2447, 3714566310
      %v2450 = vsel %vm2449, 1, 0
      %v2451 = vadd.s32 %v2448, %v2450
      %v2452 = vshrl.u32 %v2451, 8
      %v2453 = vmul.u32 %v2452, 296
      %v2454 = vsub.s32 %v2445, %v2453
      %v2455 = vsub.s32 0, %v2454
      %v2456 = vsel %vm2443, %v2455, %v2454
      %vm2457 = vcmp.lt.s32.totalorder %v2095, 0
      %v2458 = vsub.s32 0, %v2095
      %v2459 = vsel %vm2457, %v2458, %v2095
      %v2460 = vmul.u32.u64.compose %v2459, 3714566310
      %v2461 = vextract.low.u32 %v2460
      %v2462 = vextract.high.u32 %v2460
      %vm2463 = vc.u32 %v2461, 3714566310
      %v2464 = vsel %vm2463, 1, 0
      %v2465 = vadd.s32 %v2462, %v2464
      %v2466 = vshrl.u32 %v2465, 8
      %v2467 = vmul.u32 %v2466, 296
      %v2468 = vsub.s32 %v2459, %v2467
      %v2469 = vsub.s32 0, %v2468
      %v2470 = vsel %vm2457, %v2469, %v2468
      %vm2471 = vcmp.lt.s32.totalorder %v2096, 0
      %v2472 = vsub.s32 0, %v2096
      %v2473 = vsel %vm2471, %v2472, %v2096
      %v2474 = vmul.u32.u64.compose %v2473, 3714566310
      %v2475 = vextract.low.u32 %v2474
      %v2476 = vextract.high.u32 %v2474
      %vm2477 = vc.u32 %v2475, 3714566310
      %v2478 = vsel %vm2477, 1, 0
      %v2479 = vadd.s32 %v2476, %v2478
      %v2480 = vshrl.u32 %v2479, 8
      %v2481 = vmul.u32 %v2480, 296
      %v2482 = vsub.s32 %v2473, %v2481
      %v2483 = vsub.s32 0, %v2482
      %v2484 = vsel %vm2471, %v2483, %v2482
      %vm2485 = vcmp.lt.s32.totalorder %v2097, 0
      %v2486 = vsub.s32 0, %v2097
      %v2487 = vsel %vm2485, %v2486, %v2097
      %v2488 = vmul.u32.u64.compose %v2487, 3714566310
      %v2489 = vextract.low.u32 %v2488
      %v2490 = vextract.high.u32 %v2488
      %vm2491 = vc.u32 %v2489, 3714566310
      %v2492 = vsel %vm2491, 1, 0
      %v2493 = vadd.s32 %v2490, %v2492
      %v2494 = vshrl.u32 %v2493, 8
      %v2495 = vmul.u32 %v2494, 296
      %v2496 = vsub.s32 %v2487, %v2495
      %v2497 = vsub.s32 0, %v2496
      %v2498 = vsel %vm2485, %v2497, %v2496
      %vm2499 = vcmp.lt.s32.totalorder %v2098, 0
      %v2500 = vsub.s32 0, %v2098
      %v2501 = vsel %vm2499, %v2500, %v2098
      %v2502 = vmul.u32.u64.compose %v2501, 3714566310
      %v2503 = vextract.low.u32 %v2502
      %v2504 = vextract.high.u32 %v2502
      %vm2505 = vc.u32 %v2503, 3714566310
      %v2506 = vsel %vm2505, 1, 0
      %v2507 = vadd.s32 %v2504, %v2506
      %v2508 = vshrl.u32 %v2507, 8
      %v2509 = vmul.u32 %v2508, 296
      %v2510 = vsub.s32 %v2501, %v2509
      %v2511 = vsub.s32 0, %v2510
      %v2512 = vsel %vm2499, %v2511, %v2510
      %vm2513 = vcmp.lt.s32.totalorder %v2099, 0
      %v2514 = vsub.s32 0, %v2099
      %v2515 = vsel %vm2513, %v2514, %v2099
      %v2516 = vmul.u32.u64.compose %v2515, 3714566310
      %v2517 = vextract.low.u32 %v2516
      %v2518 = vextract.high.u32 %v2516
      %vm2519 = vc.u32 %v2517, 3714566310
      %v2520 = vsel %vm2519, 1, 0
      %v2521 = vadd.s32 %v2518, %v2520
      %v2522 = vshrl.u32 %v2521, 8
      %v2523 = vmul.u32 %v2522, 296
      %v2524 = vsub.s32 %v2515, %v2523
      %v2525 = vsub.s32 0, %v2524
      %v2526 = vsel %vm2513, %v2525, %v2524
      %vm2527 = vcmp.lt.s32.totalorder %v2100, 0
      %v2528 = vsub.s32 0, %v2100
      %v2529 = vsel %vm2527, %v2528, %v2100
      %v2530 = vmul.u32.u64.compose %v2529, 3714566310
      %v2531 = vextract.low.u32 %v2530
      %v2532 = vextract.high.u32 %v2530
      %vm2533 = vc.u32 %v2531, 3714566310
      %v2534 = vsel %vm2533, 1, 0
      %v2535 = vadd.s32 %v2532, %v2534
      %v2536 = vshrl.u32 %v2535, 8
      %v2537 = vmul.u32 %v2536, 296
      %v2538 = vsub.s32 %v2529, %v2537
      %v2539 = vsub.s32 0, %v2538
      %v2540 = vsel %vm2527, %v2539, %v2538
      %vm2541 = vcmp.lt.s32.totalorder %v2101, 0
      %v2542 = vsub.s32 0, %v2101
      %v2543 = vsel %vm2541, %v2542, %v2101
      %v2544 = vmul.u32.u64.compose %v2543, 3714566310
      %v2545 = vextract.low.u32 %v2544
      %v2546 = vextract.high.u32 %v2544
      %vm2547 = vc.u32 %v2545, 3714566310
      %v2548 = vsel %vm2547, 1, 0
      %v2549 = vadd.s32 %v2546, %v2548
      %v2550 = vshrl.u32 %v2549, 8
      %v2551 = vmul.u32 %v2550, 296
      %v2552 = vsub.s32 %v2543, %v2551
      %v2553 = vsub.s32 0, %v2552
      %v2554 = vsel %vm2541, %v2553, %v2552
      %vm2555 = vcmp.lt.s32.totalorder %v2102, 0
      %v2556 = vsub.s32 0, %v2102
      %v2557 = vsel %vm2555, %v2556, %v2102
      %v2558 = vmul.u32.u64.compose %v2557, 3714566310
      %v2559 = vextract.low.u32 %v2558
      %v2560 = vextract.high.u32 %v2558
      %vm2561 = vc.u32 %v2559, 3714566310
      %v2562 = vsel %vm2561, 1, 0
      %v2563 = vadd.s32 %v2560, %v2562
      %v2564 = vshrl.u32 %v2563, 8
      %v2565 = vmul.u32 %v2564, 296
      %v2566 = vsub.s32 %v2557, %v2565
      %v2567 = vsub.s32 0, %v2566
      %v2568 = vsel %vm2555, %v2567, %v2566
      %vm2569 = vcmp.lt.s32.totalorder %v2103, 0
      %v2570 = vsub.s32 0, %v2103
      %v2571 = vsel %vm2569, %v2570, %v2103
      %v2572 = vmul.u32.u64.compose %v2571, 3714566310
      %v2573 = vextract.low.u32 %v2572
      %v2574 = vextract.high.u32 %v2572
      %vm2575 = vc.u32 %v2573, 3714566310
      %v2576 = vsel %vm2575, 1, 0
      %v2577 = vadd.s32 %v2574, %v2576
      %v2578 = vshrl.u32 %v2577, 8
      %v2579 = vmul.u32 %v2578, 296
      %v2580 = vsub.s32 %v2571, %v2579
      %v2581 = vsub.s32 0, %v2580
      %v2582 = vsel %vm2569, %v2581, %v2580
      %vm2583 = vcmp.lt.s32.totalorder %v2104, 0
      %v2584 = vsub.s32 0, %v2104
      %v2585 = vsel %vm2583, %v2584, %v2104
      %v2586 = vmul.u32.u64.compose %v2585, 3714566310
      %v2587 = vextract.low.u32 %v2586
      %v2588 = vextract.high.u32 %v2586
      %vm2589 = vc.u32 %v2587, 3714566310
      %v2590 = vsel %vm2589, 1, 0
      %v2591 = vadd.s32 %v2588, %v2590
      %v2592 = vshrl.u32 %v2591, 8
      %v2593 = vmul.u32 %v2592, 296
      %v2594 = vsub.s32 %v2585, %v2593
      %v2595 = vsub.s32 0, %v2594
      %v2596 = vsel %vm2583, %v2595, %v2594
      %vm2597 = vcmp.lt.s32.totalorder %v2105, 0
      %v2598 = vsub.s32 0, %v2105
      %v2599 = vsel %vm2597, %v2598, %v2105
      %v2600 = vmul.u32.u64.compose %v2599, 3714566310
      %v2601 = vextract.low.u32 %v2600
      %v2602 = vextract.high.u32 %v2600
      %vm2603 = vc.u32 %v2601, 3714566310
      %v2604 = vsel %vm2603, 1, 0
      %v2605 = vadd.s32 %v2602, %v2604
      %v2606 = vshrl.u32 %v2605, 8
      %v2607 = vmul.u32 %v2606, 296
      %v2608 = vsub.s32 %v2599, %v2607
      %v2609 = vsub.s32 0, %v2608
      %v2610 = vsel %vm2597, %v2609, %v2608
      %vm2611 = vcmp.lt.s32.totalorder %v2106, 0
      %v2612 = vsub.s32 0, %v2106
      %v2613 = vsel %vm2611, %v2612, %v2106
      %v2614 = vmul.u32.u64.compose %v2613, 3714566310
      %v2615 = vextract.low.u32 %v2614
      %v2616 = vextract.high.u32 %v2614
      %vm2617 = vc.u32 %v2615, 3714566310
      %v2618 = vsel %vm2617, 1, 0
      %v2619 = vadd.s32 %v2616, %v2618
      %v2620 = vshrl.u32 %v2619, 8
      %v2621 = vmul.u32 %v2620, 296
      %v2622 = vsub.s32 %v2613, %v2621
      %v2623 = vsub.s32 0, %v2622
      %v2624 = vsel %vm2611, %v2623, %v2622
      %vm2625 = vcmp.ne.s32.totalorder %v2120, 0
      %vm2626 = vcmp.ne.s32.totalorder %v2134, 0
      %vm2627 = vcmp.ne.s32.totalorder %v2148, 0
      %vm2628 = vcmp.ne.s32.totalorder %v2162, 0
      %vm2629 = vcmp.ne.s32.totalorder %v2176, 0
      %vm2630 = vcmp.ne.s32.totalorder %v2190, 0
      %vm2631 = vcmp.ne.s32.totalorder %v2204, 0
      %vm2632 = vcmp.ne.s32.totalorder %v2218, 0
      %vm2633 = vcmp.ne.s32.totalorder %v2232, 0
      %vm2634 = vcmp.ne.s32.totalorder %v2246, 0
      %vm2635 = vcmp.ne.s32.totalorder %v2260, 0
      %vm2636 = vcmp.ne.s32.totalorder %v2274, 0
      %vm2637 = vcmp.ne.s32.totalorder %v2288, 0
      %vm2638 = vcmp.ne.s32.totalorder %v2302, 0
      %vm2639 = vcmp.ne.s32.totalorder %v2316, 0
      %vm2640 = vcmp.ne.s32.totalorder %v2330, 0
      %vm2641 = vcmp.ne.s32.totalorder %v2344, 0
      %vm2642 = vcmp.ne.s32.totalorder %v2358, 0
      %vm2643 = vcmp.ne.s32.totalorder %v2372, 0
      %vm2644 = vcmp.ne.s32.totalorder %v2386, 0
      %vm2645 = vcmp.ne.s32.totalorder %v2400, 0
      %vm2646 = vcmp.ne.s32.totalorder %v2414, 0
      %vm2647 = vcmp.ne.s32.totalorder %v2428, 0
      %vm2648 = vcmp.ne.s32.totalorder %v2442, 0
      %vm2649 = vcmp.ne.s32.totalorder %v2456, 0
      %vm2650 = vcmp.ne.s32.totalorder %v2470, 0
      %vm2651 = vcmp.ne.s32.totalorder %v2484, 0
      %vm2652 = vcmp.ne.s32.totalorder %v2498, 0
      %vm2653 = vcmp.ne.s32.totalorder %v2512, 0
      %vm2654 = vcmp.ne.s32.totalorder %v2526, 0
      %vm2655 = vcmp.ne.s32.totalorder %v2540, 0
      %vm2656 = vcmp.ne.s32.totalorder %v2554, 0
      %vm2657 = vcmp.ne.s32.totalorder %v2568, 0
      %vm2658 = vcmp.ne.s32.totalorder %v2582, 0
      %vm2659 = vcmp.ne.s32.totalorder %v2596, 0
      %vm2660 = vcmp.ne.s32.totalorder %v2610, 0
      %vm2661 = vcmp.ne.s32.totalorder %v2624, 0
      %vm2662 = vcmp.lt.s32.totalorder %v2120, 0
      %vm2663 = vcmp.lt.s32.totalorder %v2134, 0
      %vm2664 = vcmp.lt.s32.totalorder %v2148, 0
      %vm2665 = vcmp.lt.s32.totalorder %v2162, 0
      %vm2666 = vcmp.lt.s32.totalorder %v2176, 0
      %vm2667 = vcmp.lt.s32.totalorder %v2190, 0
      %vm2668 = vcmp.lt.s32.totalorder %v2204, 0
      %vm2669 = vcmp.lt.s32.totalorder %v2218, 0
      %vm2670 = vcmp.lt.s32.totalorder %v2232, 0
      %vm2671 = vcmp.lt.s32.totalorder %v2246, 0
      %vm2672 = vcmp.lt.s32.totalorder %v2260, 0
      %vm2673 = vcmp.lt.s32.totalorder %v2274, 0
      %vm2674 = vcmp.lt.s32.totalorder %v2288, 0
      %vm2675 = vcmp.lt.s32.totalorder %v2302, 0
      %vm2676 = vcmp.lt.s32.totalorder %v2316, 0
      %vm2677 = vcmp.lt.s32.totalorder %v2330, 0
      %vm2678 = vcmp.lt.s32.totalorder %v2344, 0
      %vm2679 = vcmp.lt.s32.totalorder %v2358, 0
      %vm2680 = vcmp.lt.s32.totalorder %v2372, 0
      %vm2681 = vcmp.lt.s32.totalorder %v2386, 0
      %vm2682 = vcmp.lt.s32.totalorder %v2400, 0
      %vm2683 = vcmp.lt.s32.totalorder %v2414, 0
      %vm2684 = vcmp.lt.s32.totalorder %v2428, 0
      %vm2685 = vcmp.lt.s32.totalorder %v2442, 0
      %vm2686 = vcmp.lt.s32.totalorder %v2456, 0
      %vm2687 = vcmp.lt.s32.totalorder %v2470, 0
      %vm2688 = vcmp.lt.s32.totalorder %v2484, 0
      %vm2689 = vcmp.lt.s32.totalorder %v2498, 0
      %vm2690 = vcmp.lt.s32.totalorder %v2512, 0
      %vm2691 = vcmp.lt.s32.totalorder %v2526, 0
      %vm2692 = vcmp.lt.s32.totalorder %v2540, 0
      %vm2693 = vcmp.lt.s32.totalorder %v2554, 0
      %vm2694 = vcmp.lt.s32.totalorder %v2568, 0
      %vm2695 = vcmp.lt.s32.totalorder %v2582, 0
      %vm2696 = vcmp.lt.s32.totalorder %v2596, 0
      %vm2697 = vcmp.lt.s32.totalorder %v2610, 0
      %vm2698 = vcmp.lt.s32.totalorder %v2624, 0
      %vm2699 = vmand %vm2662, %vm2625
      %vm2700 = vmand %vm2663, %vm2626
      %vm2701 = vmand %vm2664, %vm2627
      %vm2702 = vmand %vm2665, %vm2628
      %vm2703 = vmand %vm2666, %vm2629
      %vm2704 = vmand %vm2667, %vm2630
      %vm2705 = vmand %vm2668, %vm2631
      %vm2706 = vmand %vm2669, %vm2632
      %vm2707 = vmand %vm2670, %vm2633
      %vm2708 = vmand %vm2671, %vm2634
      %vm2709 = vmand %vm2672, %vm2635
      %vm2710 = vmand %vm2673, %vm2636
      %vm2711 = vmand %vm2674, %vm2637
      %vm2712 = vmand %vm2675, %vm2638
      %vm2713 = vmand %vm2676, %vm2639
      %vm2714 = vmand %vm2677, %vm2640
      %vm2715 = vmand %vm2678, %vm2641
      %vm2716 = vmand %vm2679, %vm2642
      %vm2717 = vmand %vm2680, %vm2643
      %vm2718 = vmand %vm2681, %vm2644
      %vm2719 = vmand %vm2682, %vm2645
      %vm2720 = vmand %vm2683, %vm2646
      %vm2721 = vmand %vm2684, %vm2647
      %vm2722 = vmand %vm2685, %vm2648
      %vm2723 = vmand %vm2686, %vm2649
      %vm2724 = vmand %vm2687, %vm2650
      %vm2725 = vmand %vm2688, %vm2651
      %vm2726 = vmand %vm2689, %vm2652
      %vm2727 = vmand %vm2690, %vm2653
      %vm2728 = vmand %vm2691, %vm2654
      %vm2729 = vmand %vm2692, %vm2655
      %vm2730 = vmand %vm2693, %vm2656
      %vm2731 = vmand %vm2694, %vm2657
      %vm2732 = vmand %vm2695, %vm2658
      %vm2733 = vmand %vm2696, %vm2659
      %vm2734 = vmand %vm2697, %vm2660
      %vm2735 = vmand %vm2698, %vm2661
      %v2736 = vadd.s32 %v2120, 296
      %v2737 = vadd.s32 %v2134, 296
      %v2738 = vadd.s32 %v2148, 296
      %v2739 = vadd.s32 %v2162, 296
      %v2740 = vadd.s32 %v2176, 296
      %v2741 = vadd.s32 %v2190, 296
      %v2742 = vadd.s32 %v2204, 296
      %v2743 = vadd.s32 %v2218, 296
      %v2744 = vadd.s32 %v2232, 296
      %v2745 = vadd.s32 %v2246, 296
      %v2746 = vadd.s32 %v2260, 296
      %v2747 = vadd.s32 %v2274, 296
      %v2748 = vadd.s32 %v2288, 296
      %v2749 = vadd.s32 %v2302, 296
      %v2750 = vadd.s32 %v2316, 296
      %v2751 = vadd.s32 %v2330, 296
      %v2752 = vadd.s32 %v2344, 296
      %v2753 = vadd.s32 %v2358, 296
      %v2754 = vadd.s32 %v2372, 296
      %v2755 = vadd.s32 %v2386, 296
      %v2756 = vadd.s32 %v2400, 296
      %v2757 = vadd.s32 %v2414, 296
      %v2758 = vadd.s32 %v2428, 296
      %v2759 = vadd.s32 %v2442, 296
      %v2760 = vadd.s32 %v2456, 296
      %v2761 = vadd.s32 %v2470, 296
      %v2762 = vadd.s32 %v2484, 296
      %v2763 = vadd.s32 %v2498, 296
      %v2764 = vadd.s32 %v2512, 296
      %v2765 = vadd.s32 %v2526, 296
      %v2766 = vadd.s32 %v2540, 296
      %v2767 = vadd.s32 %v2554, 296
      %v2768 = vadd.s32 %v2568, 296
      %v2769 = vadd.s32 %v2582, 296
      %v2770 = vadd.s32 %v2596, 296
      %v2771 = vadd.s32 %v2610, 296
      %v2772 = vadd.s32 %v2624, 296
      %v2773 = vsel %vm2699, %v2736, %v2120
      %v2774 = vsel %vm2700, %v2737, %v2134
      %v2775 = vsel %vm2701, %v2738, %v2148
      %v2776 = vsel %vm2702, %v2739, %v2162
      %v2777 = vsel %vm2703, %v2740, %v2176
      %v2778 = vsel %vm2704, %v2741, %v2190
      %v2779 = vsel %vm2705, %v2742, %v2204
      %v2780 = vsel %vm2706, %v2743, %v2218
      %v2781 = vsel %vm2707, %v2744, %v2232
      %v2782 = vsel %vm2708, %v2745, %v2246
      %v2783 = vsel %vm2709, %v2746, %v2260
      %v2784 = vsel %vm2710, %v2747, %v2274
      %v2785 = vsel %vm2711, %v2748, %v2288
      %v2786 = vsel %vm2712, %v2749, %v2302
      %v2787 = vsel %vm2713, %v2750, %v2316
      %v2788 = vsel %vm2714, %v2751, %v2330
      %v2789 = vsel %vm2715, %v2752, %v2344
      %v2790 = vsel %vm2716, %v2753, %v2358
      %v2791 = vsel %vm2717, %v2754, %v2372
      %v2792 = vsel %vm2718, %v2755, %v2386
      %v2793 = vsel %vm2719, %v2756, %v2400
      %v2794 = vsel %vm2720, %v2757, %v2414
      %v2795 = vsel %vm2721, %v2758, %v2428
      %v2796 = vsel %vm2722, %v2759, %v2442
      %v2797 = vsel %vm2723, %v2760, %v2456
      %v2798 = vsel %vm2724, %v2761, %v2470
      %v2799 = vsel %vm2725, %v2762, %v2484
      %v2800 = vsel %vm2726, %v2763, %v2498
      %v2801 = vsel %vm2727, %v2764, %v2512
      %v2802 = vsel %vm2728, %v2765, %v2526
      %v2803 = vsel %vm2729, %v2766, %v2540
      %v2804 = vsel %vm2730, %v2767, %v2554
      %v2805 = vsel %vm2731, %v2768, %v2568
      %v2806 = vsel %vm2732, %v2769, %v2582
      %v2807 = vsel %vm2733, %v2770, %v2596
      %v2808 = vsel %vm2734, %v2771, %v2610
      %v2809 = vsel %vm2735, %v2772, %v2624
      %vm2810 = vcmp.lt.s32.totalorder %v2773, 272
      %vm2811 = vcmp.lt.s32.totalorder %v2774, 272
      %vm2812 = vcmp.lt.s32.totalorder %v2775, 272
      %vm2813 = vcmp.lt.s32.totalorder %v2776, 272
      %vm2814 = vcmp.lt.s32.totalorder %v2777, 272
      %vm2815 = vcmp.lt.s32.totalorder %v2778, 272
      %vm2816 = vcmp.lt.s32.totalorder %v2779, 272
      %vm2817 = vcmp.lt.s32.totalorder %v2780, 272
      %vm2818 = vcmp.lt.s32.totalorder %v2781, 272
      %vm2819 = vcmp.lt.s32.totalorder %v2782, 272
      %vm2820 = vcmp.lt.s32.totalorder %v2783, 272
      %vm2821 = vcmp.lt.s32.totalorder %v2784, 272
      %vm2822 = vcmp.lt.s32.totalorder %v2785, 272
      %vm2823 = vcmp.lt.s32.totalorder %v2786, 272
      %vm2824 = vcmp.lt.s32.totalorder %v2787, 272
      %vm2825 = vcmp.lt.s32.totalorder %v2788, 272
      %vm2826 = vcmp.lt.s32.totalorder %v2789, 272
      %vm2827 = vcmp.lt.s32.totalorder %v2790, 272
      %vm2828 = vcmp.lt.s32.totalorder %v2791, 272
      %vm2829 = vcmp.lt.s32.totalorder %v2792, 272
      %vm2830 = vcmp.lt.s32.totalorder %v2793, 272
      %vm2831 = vcmp.lt.s32.totalorder %v2794, 272
      %vm2832 = vcmp.lt.s32.totalorder %v2795, 272
      %vm2833 = vcmp.lt.s32.totalorder %v2796, 272
      %vm2834 = vcmp.lt.s32.totalorder %v2797, 272
      %vm2835 = vcmp.lt.s32.totalorder %v2798, 272
      %vm2836 = vcmp.lt.s32.totalorder %v2799, 272
      %vm2837 = vcmp.lt.s32.totalorder %v2800, 272
      %vm2838 = vcmp.lt.s32.totalorder %v2801, 272
      %vm2839 = vcmp.lt.s32.totalorder %v2802, 272
      %vm2840 = vcmp.lt.s32.totalorder %v2803, 272
      %vm2841 = vcmp.lt.s32.totalorder %v2804, 272
      %vm2842 = vcmp.lt.s32.totalorder %v2805, 272
      %vm2843 = vcmp.lt.s32.totalorder %v2806, 272
      %vm2844 = vcmp.lt.s32.totalorder %v2807, 272
      %vm2845 = vcmp.lt.s32.totalorder %v2808, 272
      %vm2846 = vcmp.lt.s32.totalorder %v2809, 272
      %vm2847 = vcmp.lt.s32.totalorder %v2773, 0
      %v2848 = vsub.s32 0, %v2773
      %v2849 = vsel %vm2847, %v2848, %v2773
      %v2850 = vmul.u32.u64.compose %v2849, 4042322161
      %v2851 = vextract.low.u32 %v2850
      %v2852 = vextract.high.u32 %v2850
      %v2853 = vshrl.u32 %v2852, 4
      %v2854 = vmul.u32 %v2853, 17
      %v2855 = vsub.s32 %v2849, %v2854
      %v2856 = vsub.s32 0, %v2855
      %v2857 = vsel %vm2847, %v2856, %v2855
      %vm2858 = vcmp.lt.s32.totalorder %v2774, 0
      %v2859 = vsub.s32 0, %v2774
      %v2860 = vsel %vm2858, %v2859, %v2774
      %v2861 = vmul.u32.u64.compose %v2860, 4042322161
      %v2862 = vextract.low.u32 %v2861
      %v2863 = vextract.high.u32 %v2861
      %v2864 = vshrl.u32 %v2863, 4
      %v2865 = vmul.u32 %v2864, 17
      %v2866 = vsub.s32 %v2860, %v2865
      %v2867 = vsub.s32 0, %v2866
      %v2868 = vsel %vm2858, %v2867, %v2866
      %vm2869 = vcmp.lt.s32.totalorder %v2775, 0
      %v2870 = vsub.s32 0, %v2775
      %v2871 = vsel %vm2869, %v2870, %v2775
      %v2872 = vmul.u32.u64.compose %v2871, 4042322161
      %v2873 = vextract.low.u32 %v2872
      %v2874 = vextract.high.u32 %v2872
      %v2875 = vshrl.u32 %v2874, 4
      %v2876 = vmul.u32 %v2875, 17
      %v2877 = vsub.s32 %v2871, %v2876
      %v2878 = vsub.s32 0, %v2877
      %v2879 = vsel %vm2869, %v2878, %v2877
      %vm2880 = vcmp.lt.s32.totalorder %v2776, 0
      %v2881 = vsub.s32 0, %v2776
      %v2882 = vsel %vm2880, %v2881, %v2776
      %v2883 = vmul.u32.u64.compose %v2882, 4042322161
      %v2884 = vextract.low.u32 %v2883
      %v2885 = vextract.high.u32 %v2883
      %v2886 = vshrl.u32 %v2885, 4
      %v2887 = vmul.u32 %v2886, 17
      %v2888 = vsub.s32 %v2882, %v2887
      %v2889 = vsub.s32 0, %v2888
      %v2890 = vsel %vm2880, %v2889, %v2888
      %vm2891 = vcmp.lt.s32.totalorder %v2777, 0
      %v2892 = vsub.s32 0, %v2777
      %v2893 = vsel %vm2891, %v2892, %v2777
      %v2894 = vmul.u32.u64.compose %v2893, 4042322161
      %v2895 = vextract.low.u32 %v2894
      %v2896 = vextract.high.u32 %v2894
      %v2897 = vshrl.u32 %v2896, 4
      %v2898 = vmul.u32 %v2897, 17
      %v2899 = vsub.s32 %v2893, %v2898
      %v2900 = vsub.s32 0, %v2899
      %v2901 = vsel %vm2891, %v2900, %v2899
      %vm2902 = vcmp.lt.s32.totalorder %v2778, 0
      %v2903 = vsub.s32 0, %v2778
      %v2904 = vsel %vm2902, %v2903, %v2778
      %v2905 = vmul.u32.u64.compose %v2904, 4042322161
      %v2906 = vextract.low.u32 %v2905
      %v2907 = vextract.high.u32 %v2905
      %v2908 = vshrl.u32 %v2907, 4
      %v2909 = vmul.u32 %v2908, 17
      %v2910 = vsub.s32 %v2904, %v2909
      %v2911 = vsub.s32 0, %v2910
      %v2912 = vsel %vm2902, %v2911, %v2910
      %vm2913 = vcmp.lt.s32.totalorder %v2779, 0
      %v2914 = vsub.s32 0, %v2779
      %v2915 = vsel %vm2913, %v2914, %v2779
      %v2916 = vmul.u32.u64.compose %v2915, 4042322161
      %v2917 = vextract.low.u32 %v2916
      %v2918 = vextract.high.u32 %v2916
      %v2919 = vshrl.u32 %v2918, 4
      %v2920 = vmul.u32 %v2919, 17
      %v2921 = vsub.s32 %v2915, %v2920
      %v2922 = vsub.s32 0, %v2921
      %v2923 = vsel %vm2913, %v2922, %v2921
      %vm2924 = vcmp.lt.s32.totalorder %v2780, 0
      %v2925 = vsub.s32 0, %v2780
      %v2926 = vsel %vm2924, %v2925, %v2780
      %v2927 = vmul.u32.u64.compose %v2926, 4042322161
      %v2928 = vextract.low.u32 %v2927
      %v2929 = vextract.high.u32 %v2927
      %v2930 = vshrl.u32 %v2929, 4
      %v2931 = vmul.u32 %v2930, 17
      %v2932 = vsub.s32 %v2926, %v2931
      %v2933 = vsub.s32 0, %v2932
      %v2934 = vsel %vm2924, %v2933, %v2932
      %vm2935 = vcmp.lt.s32.totalorder %v2781, 0
      %v2936 = vsub.s32 0, %v2781
      %v2937 = vsel %vm2935, %v2936, %v2781
      %v2938 = vmul.u32.u64.compose %v2937, 4042322161
      %v2939 = vextract.low.u32 %v2938
      %v2940 = vextract.high.u32 %v2938
      %v2941 = vshrl.u32 %v2940, 4
      %v2942 = vmul.u32 %v2941, 17
      %v2943 = vsub.s32 %v2937, %v2942
      %v2944 = vsub.s32 0, %v2943
      %v2945 = vsel %vm2935, %v2944, %v2943
      %vm2946 = vcmp.lt.s32.totalorder %v2782, 0
      %v2947 = vsub.s32 0, %v2782
      %v2948 = vsel %vm2946, %v2947, %v2782
      %v2949 = vmul.u32.u64.compose %v2948, 4042322161
      %v2950 = vextract.low.u32 %v2949
      %v2951 = vextract.high.u32 %v2949
      %v2952 = vshrl.u32 %v2951, 4
      %v2953 = vmul.u32 %v2952, 17
      %v2954 = vsub.s32 %v2948, %v2953
      %v2955 = vsub.s32 0, %v2954
      %v2956 = vsel %vm2946, %v2955, %v2954
      %vm2957 = vcmp.lt.s32.totalorder %v2783, 0
      %v2958 = vsub.s32 0, %v2783
      %v2959 = vsel %vm2957, %v2958, %v2783
      %v2960 = vmul.u32.u64.compose %v2959, 4042322161
      %v2961 = vextract.low.u32 %v2960
      %v2962 = vextract.high.u32 %v2960
      %v2963 = vshrl.u32 %v2962, 4
      %v2964 = vmul.u32 %v2963, 17
      %v2965 = vsub.s32 %v2959, %v2964
      %v2966 = vsub.s32 0, %v2965
      %v2967 = vsel %vm2957, %v2966, %v2965
      %vm2968 = vcmp.lt.s32.totalorder %v2784, 0
      %v2969 = vsub.s32 0, %v2784
      %v2970 = vsel %vm2968, %v2969, %v2784
      %v2971 = vmul.u32.u64.compose %v2970, 4042322161
      %v2972 = vextract.low.u32 %v2971
      %v2973 = vextract.high.u32 %v2971
      %v2974 = vshrl.u32 %v2973, 4
      %v2975 = vmul.u32 %v2974, 17
      %v2976 = vsub.s32 %v2970, %v2975
      %v2977 = vsub.s32 0, %v2976
      %v2978 = vsel %vm2968, %v2977, %v2976
      %vm2979 = vcmp.lt.s32.totalorder %v2785, 0
      %v2980 = vsub.s32 0, %v2785
      %v2981 = vsel %vm2979, %v2980, %v2785
      %v2982 = vmul.u32.u64.compose %v2981, 4042322161
      %v2983 = vextract.low.u32 %v2982
      %v2984 = vextract.high.u32 %v2982
      %v2985 = vshrl.u32 %v2984, 4
      %v2986 = vmul.u32 %v2985, 17
      %v2987 = vsub.s32 %v2981, %v2986
      %v2988 = vsub.s32 0, %v2987
      %v2989 = vsel %vm2979, %v2988, %v2987
      %vm2990 = vcmp.lt.s32.totalorder %v2786, 0
      %v2991 = vsub.s32 0, %v2786
      %v2992 = vsel %vm2990, %v2991, %v2786
      %v2993 = vmul.u32.u64.compose %v2992, 4042322161
      %v2994 = vextract.low.u32 %v2993
      %v2995 = vextract.high.u32 %v2993
      %v2996 = vshrl.u32 %v2995, 4
      %v2997 = vmul.u32 %v2996, 17
      %v2998 = vsub.s32 %v2992, %v2997
      %v2999 = vsub.s32 0, %v2998
      %v3000 = vsel %vm2990, %v2999, %v2998
      %vm3001 = vcmp.lt.s32.totalorder %v2787, 0
      %v3002 = vsub.s32 0, %v2787
      %v3003 = vsel %vm3001, %v3002, %v2787
      %v3004 = vmul.u32.u64.compose %v3003, 4042322161
      %v3005 = vextract.low.u32 %v3004
      %v3006 = vextract.high.u32 %v3004
      %v3007 = vshrl.u32 %v3006, 4
      %v3008 = vmul.u32 %v3007, 17
      %v3009 = vsub.s32 %v3003, %v3008
      %v3010 = vsub.s32 0, %v3009
      %v3011 = vsel %vm3001, %v3010, %v3009
      %vm3012 = vcmp.lt.s32.totalorder %v2788, 0
      %v3013 = vsub.s32 0, %v2788
      %v3014 = vsel %vm3012, %v3013, %v2788
      %v3015 = vmul.u32.u64.compose %v3014, 4042322161
      %v3016 = vextract.low.u32 %v3015
      %v3017 = vextract.high.u32 %v3015
      %v3018 = vshrl.u32 %v3017, 4
      %v3019 = vmul.u32 %v3018, 17
      %v3020 = vsub.s32 %v3014, %v3019
      %v3021 = vsub.s32 0, %v3020
      %v3022 = vsel %vm3012, %v3021, %v3020
      %vm3023 = vcmp.lt.s32.totalorder %v2789, 0
      %v3024 = vsub.s32 0, %v2789
      %v3025 = vsel %vm3023, %v3024, %v2789
      %v3026 = vmul.u32.u64.compose %v3025, 4042322161
      %v3027 = vextract.low.u32 %v3026
      %v3028 = vextract.high.u32 %v3026
      %v3029 = vshrl.u32 %v3028, 4
      %v3030 = vmul.u32 %v3029, 17
      %v3031 = vsub.s32 %v3025, %v3030
      %v3032 = vsub.s32 0, %v3031
      %v3033 = vsel %vm3023, %v3032, %v3031
      %vm3034 = vcmp.lt.s32.totalorder %v2790, 0
      %v3035 = vsub.s32 0, %v2790
      %v3036 = vsel %vm3034, %v3035, %v2790
      %v3037 = vmul.u32.u64.compose %v3036, 4042322161
      %v3038 = vextract.low.u32 %v3037
      %v3039 = vextract.high.u32 %v3037
      %v3040 = vshrl.u32 %v3039, 4
      %v3041 = vmul.u32 %v3040, 17
      %v3042 = vsub.s32 %v3036, %v3041
      %v3043 = vsub.s32 0, %v3042
      %v3044 = vsel %vm3034, %v3043, %v3042
      %vm3045 = vcmp.lt.s32.totalorder %v2791, 0
      %v3046 = vsub.s32 0, %v2791
      %v3047 = vsel %vm3045, %v3046, %v2791
      %v3048 = vmul.u32.u64.compose %v3047, 4042322161
      %v3049 = vextract.low.u32 %v3048
      %v3050 = vextract.high.u32 %v3048
      %v3051 = vshrl.u32 %v3050, 4
      %v3052 = vmul.u32 %v3051, 17
      %v3053 = vsub.s32 %v3047, %v3052
      %v3054 = vsub.s32 0, %v3053
      %v3055 = vsel %vm3045, %v3054, %v3053
      %vm3056 = vcmp.lt.s32.totalorder %v2792, 0
      %v3057 = vsub.s32 0, %v2792
      %v3058 = vsel %vm3056, %v3057, %v2792
      %v3059 = vmul.u32.u64.compose %v3058, 4042322161
      %v3060 = vextract.low.u32 %v3059
      %v3061 = vextract.high.u32 %v3059
      %v3062 = vshrl.u32 %v3061, 4
      %v3063 = vmul.u32 %v3062, 17
      %v3064 = vsub.s32 %v3058, %v3063
      %v3065 = vsub.s32 0, %v3064
      %v3066 = vsel %vm3056, %v3065, %v3064
      %vm3067 = vcmp.lt.s32.totalorder %v2793, 0
      %v3068 = vsub.s32 0, %v2793
      %v3069 = vsel %vm3067, %v3068, %v2793
      %v3070 = vmul.u32.u64.compose %v3069, 4042322161
      %v3071 = vextract.low.u32 %v3070
      %v3072 = vextract.high.u32 %v3070
      %v3073 = vshrl.u32 %v3072, 4
      %v3074 = vmul.u32 %v3073, 17
      %v3075 = vsub.s32 %v3069, %v3074
      %v3076 = vsub.s32 0, %v3075
      %v3077 = vsel %vm3067, %v3076, %v3075
      %vm3078 = vcmp.lt.s32.totalorder %v2794, 0
      %v3079 = vsub.s32 0, %v2794
      %v3080 = vsel %vm3078, %v3079, %v2794
      %v3081 = vmul.u32.u64.compose %v3080, 4042322161
      %v3082 = vextract.low.u32 %v3081
      %v3083 = vextract.high.u32 %v3081
      %v3084 = vshrl.u32 %v3083, 4
      %v3085 = vmul.u32 %v3084, 17
      %v3086 = vsub.s32 %v3080, %v3085
      %v3087 = vsub.s32 0, %v3086
      %v3088 = vsel %vm3078, %v3087, %v3086
      %vm3089 = vcmp.lt.s32.totalorder %v2795, 0
      %v3090 = vsub.s32 0, %v2795
      %v3091 = vsel %vm3089, %v3090, %v2795
      %v3092 = vmul.u32.u64.compose %v3091, 4042322161
      %v3093 = vextract.low.u32 %v3092
      %v3094 = vextract.high.u32 %v3092
      %v3095 = vshrl.u32 %v3094, 4
      %v3096 = vmul.u32 %v3095, 17
      %v3097 = vsub.s32 %v3091, %v3096
      %v3098 = vsub.s32 0, %v3097
      %v3099 = vsel %vm3089, %v3098, %v3097
      %vm3100 = vcmp.lt.s32.totalorder %v2796, 0
      %v3101 = vsub.s32 0, %v2796
      %v3102 = vsel %vm3100, %v3101, %v2796
      %v3103 = vmul.u32.u64.compose %v3102, 4042322161
      %v3104 = vextract.low.u32 %v3103
      %v3105 = vextract.high.u32 %v3103
      %v3106 = vshrl.u32 %v3105, 4
      %v3107 = vmul.u32 %v3106, 17
      %v3108 = vsub.s32 %v3102, %v3107
      %v3109 = vsub.s32 0, %v3108
      %v3110 = vsel %vm3100, %v3109, %v3108
      %vm3111 = vcmp.lt.s32.totalorder %v2797, 0
      %v3112 = vsub.s32 0, %v2797
      %v3113 = vsel %vm3111, %v3112, %v2797
      %v3114 = vmul.u32.u64.compose %v3113, 4042322161
      %v3115 = vextract.low.u32 %v3114
      %v3116 = vextract.high.u32 %v3114
      %v3117 = vshrl.u32 %v3116, 4
      %v3118 = vmul.u32 %v3117, 17
      %v3119 = vsub.s32 %v3113, %v3118
      %v3120 = vsub.s32 0, %v3119
      %v3121 = vsel %vm3111, %v3120, %v3119
      %vm3122 = vcmp.lt.s32.totalorder %v2798, 0
      %v3123 = vsub.s32 0, %v2798
      %v3124 = vsel %vm3122, %v3123, %v2798
      %v3125 = vmul.u32.u64.compose %v3124, 4042322161
      %v3126 = vextract.low.u32 %v3125
      %v3127 = vextract.high.u32 %v3125
      %v3128 = vshrl.u32 %v3127, 4
      %v3129 = vmul.u32 %v3128, 17
      %v3130 = vsub.s32 %v3124, %v3129
      %v3131 = vsub.s32 0, %v3130
      %v3132 = vsel %vm3122, %v3131, %v3130
      %vm3133 = vcmp.lt.s32.totalorder %v2799, 0
      %v3134 = vsub.s32 0, %v2799
      %v3135 = vsel %vm3133, %v3134, %v2799
      %v3136 = vmul.u32.u64.compose %v3135, 4042322161
      %v3137 = vextract.low.u32 %v3136
      %v3138 = vextract.high.u32 %v3136
      %v3139 = vshrl.u32 %v3138, 4
      %v3140 = vmul.u32 %v3139, 17
      %v3141 = vsub.s32 %v3135, %v3140
      %v3142 = vsub.s32 0, %v3141
      %v3143 = vsel %vm3133, %v3142, %v3141
      %vm3144 = vcmp.lt.s32.totalorder %v2800, 0
      %v3145 = vsub.s32 0, %v2800
      %v3146 = vsel %vm3144, %v3145, %v2800
      %v3147 = vmul.u32.u64.compose %v3146, 4042322161
      %v3148 = vextract.low.u32 %v3147
      %v3149 = vextract.high.u32 %v3147
      %v3150 = vshrl.u32 %v3149, 4
      %v3151 = vmul.u32 %v3150, 17
      %v3152 = vsub.s32 %v3146, %v3151
      %v3153 = vsub.s32 0, %v3152
      %v3154 = vsel %vm3144, %v3153, %v3152
      %vm3155 = vcmp.lt.s32.totalorder %v2801, 0
      %v3156 = vsub.s32 0, %v2801
      %v3157 = vsel %vm3155, %v3156, %v2801
      %v3158 = vmul.u32.u64.compose %v3157, 4042322161
      %v3159 = vextract.low.u32 %v3158
      %v3160 = vextract.high.u32 %v3158
      %v3161 = vshrl.u32 %v3160, 4
      %v3162 = vmul.u32 %v3161, 17
      %v3163 = vsub.s32 %v3157, %v3162
      %v3164 = vsub.s32 0, %v3163
      %v3165 = vsel %vm3155, %v3164, %v3163
      %vm3166 = vcmp.lt.s32.totalorder %v2802, 0
      %v3167 = vsub.s32 0, %v2802
      %v3168 = vsel %vm3166, %v3167, %v2802
      %v3169 = vmul.u32.u64.compose %v3168, 4042322161
      %v3170 = vextract.low.u32 %v3169
      %v3171 = vextract.high.u32 %v3169
      %v3172 = vshrl.u32 %v3171, 4
      %v3173 = vmul.u32 %v3172, 17
      %v3174 = vsub.s32 %v3168, %v3173
      %v3175 = vsub.s32 0, %v3174
      %v3176 = vsel %vm3166, %v3175, %v3174
      %vm3177 = vcmp.lt.s32.totalorder %v2803, 0
      %v3178 = vsub.s32 0, %v2803
      %v3179 = vsel %vm3177, %v3178, %v2803
      %v3180 = vmul.u32.u64.compose %v3179, 4042322161
      %v3181 = vextract.low.u32 %v3180
      %v3182 = vextract.high.u32 %v3180
      %v3183 = vshrl.u32 %v3182, 4
      %v3184 = vmul.u32 %v3183, 17
      %v3185 = vsub.s32 %v3179, %v3184
      %v3186 = vsub.s32 0, %v3185
      %v3187 = vsel %vm3177, %v3186, %v3185
      %vm3188 = vcmp.lt.s32.totalorder %v2804, 0
      %v3189 = vsub.s32 0, %v2804
      %v3190 = vsel %vm3188, %v3189, %v2804
      %v3191 = vmul.u32.u64.compose %v3190, 4042322161
      %v3192 = vextract.low.u32 %v3191
      %v3193 = vextract.high.u32 %v3191
      %v3194 = vshrl.u32 %v3193, 4
      %v3195 = vmul.u32 %v3194, 17
      %v3196 = vsub.s32 %v3190, %v3195
      %v3197 = vsub.s32 0, %v3196
      %v3198 = vsel %vm3188, %v3197, %v3196
      %vm3199 = vcmp.lt.s32.totalorder %v2805, 0
      %v3200 = vsub.s32 0, %v2805
      %v3201 = vsel %vm3199, %v3200, %v2805
      %v3202 = vmul.u32.u64.compose %v3201, 4042322161
      %v3203 = vextract.low.u32 %v3202
      %v3204 = vextract.high.u32 %v3202
      %v3205 = vshrl.u32 %v3204, 4
      %v3206 = vmul.u32 %v3205, 17
      %v3207 = vsub.s32 %v3201, %v3206
      %v3208 = vsub.s32 0, %v3207
      %v3209 = vsel %vm3199, %v3208, %v3207
      %vm3210 = vcmp.lt.s32.totalorder %v2806, 0
      %v3211 = vsub.s32 0, %v2806
      %v3212 = vsel %vm3210, %v3211, %v2806
      %v3213 = vmul.u32.u64.compose %v3212, 4042322161
      %v3214 = vextract.low.u32 %v3213
      %v3215 = vextract.high.u32 %v3213
      %v3216 = vshrl.u32 %v3215, 4
      %v3217 = vmul.u32 %v3216, 17
      %v3218 = vsub.s32 %v3212, %v3217
      %v3219 = vsub.s32 0, %v3218
      %v3220 = vsel %vm3210, %v3219, %v3218
      %vm3221 = vcmp.lt.s32.totalorder %v2807, 0
      %v3222 = vsub.s32 0, %v2807
      %v3223 = vsel %vm3221, %v3222, %v2807
      %v3224 = vmul.u32.u64.compose %v3223, 4042322161
      %v3225 = vextract.low.u32 %v3224
      %v3226 = vextract.high.u32 %v3224
      %v3227 = vshrl.u32 %v3226, 4
      %v3228 = vmul.u32 %v3227, 17
      %v3229 = vsub.s32 %v3223, %v3228
      %v3230 = vsub.s32 0, %v3229
      %v3231 = vsel %vm3221, %v3230, %v3229
      %vm3232 = vcmp.lt.s32.totalorder %v2808, 0
      %v3233 = vsub.s32 0, %v2808
      %v3234 = vsel %vm3232, %v3233, %v2808
      %v3235 = vmul.u32.u64.compose %v3234, 4042322161
      %v3236 = vextract.low.u32 %v3235
      %v3237 = vextract.high.u32 %v3235
      %v3238 = vshrl.u32 %v3237, 4
      %v3239 = vmul.u32 %v3238, 17
      %v3240 = vsub.s32 %v3234, %v3239
      %v3241 = vsub.s32 0, %v3240
      %v3242 = vsel %vm3232, %v3241, %v3240
      %vm3243 = vcmp.lt.s32.totalorder %v2809, 0
      %v3244 = vsub.s32 0, %v2809
      %v3245 = vsel %vm3243, %v3244, %v2809
      %v3246 = vmul.u32.u64.compose %v3245, 4042322161
      %v3247 = vextract.low.u32 %v3246
      %v3248 = vextract.high.u32 %v3246
      %v3249 = vshrl.u32 %v3248, 4
      %v3250 = vmul.u32 %v3249, 17
      %v3251 = vsub.s32 %v3245, %v3250
      %v3252 = vsub.s32 0, %v3251
      %v3253 = vsel %vm3243, %v3252, %v3251
      %vm3254 = vcmp.ne.s32.totalorder %v2857, 0
      %vm3255 = vcmp.ne.s32.totalorder %v2868, 0
      %vm3256 = vcmp.ne.s32.totalorder %v2879, 0
      %vm3257 = vcmp.ne.s32.totalorder %v2890, 0
      %vm3258 = vcmp.ne.s32.totalorder %v2901, 0
      %vm3259 = vcmp.ne.s32.totalorder %v2912, 0
      %vm3260 = vcmp.ne.s32.totalorder %v2923, 0
      %vm3261 = vcmp.ne.s32.totalorder %v2934, 0
      %vm3262 = vcmp.ne.s32.totalorder %v2945, 0
      %vm3263 = vcmp.ne.s32.totalorder %v2956, 0
      %vm3264 = vcmp.ne.s32.totalorder %v2967, 0
      %vm3265 = vcmp.ne.s32.totalorder %v2978, 0
      %vm3266 = vcmp.ne.s32.totalorder %v2989, 0
      %vm3267 = vcmp.ne.s32.totalorder %v3000, 0
      %vm3268 = vcmp.ne.s32.totalorder %v3011, 0
      %vm3269 = vcmp.ne.s32.totalorder %v3022, 0
      %vm3270 = vcmp.ne.s32.totalorder %v3033, 0
      %vm3271 = vcmp.ne.s32.totalorder %v3044, 0
      %vm3272 = vcmp.ne.s32.totalorder %v3055, 0
      %vm3273 = vcmp.ne.s32.totalorder %v3066, 0
      %vm3274 = vcmp.ne.s32.totalorder %v3077, 0
      %vm3275 = vcmp.ne.s32.totalorder %v3088, 0
      %vm3276 = vcmp.ne.s32.totalorder %v3099, 0
      %vm3277 = vcmp.ne.s32.totalorder %v3110, 0
      %vm3278 = vcmp.ne.s32.totalorder %v3121, 0
      %vm3279 = vcmp.ne.s32.totalorder %v3132, 0
      %vm3280 = vcmp.ne.s32.totalorder %v3143, 0
      %vm3281 = vcmp.ne.s32.totalorder %v3154, 0
      %vm3282 = vcmp.ne.s32.totalorder %v3165, 0
      %vm3283 = vcmp.ne.s32.totalorder %v3176, 0
      %vm3284 = vcmp.ne.s32.totalorder %v3187, 0
      %vm3285 = vcmp.ne.s32.totalorder %v3198, 0
      %vm3286 = vcmp.ne.s32.totalorder %v3209, 0
      %vm3287 = vcmp.ne.s32.totalorder %v3220, 0
      %vm3288 = vcmp.ne.s32.totalorder %v3231, 0
      %vm3289 = vcmp.ne.s32.totalorder %v3242, 0
      %vm3290 = vcmp.ne.s32.totalorder %v3253, 0
      %vm3291 = vcmp.lt.s32.totalorder %v2857, 0
      %vm3292 = vcmp.lt.s32.totalorder %v2868, 0
      %vm3293 = vcmp.lt.s32.totalorder %v2879, 0
      %vm3294 = vcmp.lt.s32.totalorder %v2890, 0
      %vm3295 = vcmp.lt.s32.totalorder %v2901, 0
      %vm3296 = vcmp.lt.s32.totalorder %v2912, 0
      %vm3297 = vcmp.lt.s32.totalorder %v2923, 0
      %vm3298 = vcmp.lt.s32.totalorder %v2934, 0
      %vm3299 = vcmp.lt.s32.totalorder %v2945, 0
      %vm3300 = vcmp.lt.s32.totalorder %v2956, 0
      %vm3301 = vcmp.lt.s32.totalorder %v2967, 0
      %vm3302 = vcmp.lt.s32.totalorder %v2978, 0
      %vm3303 = vcmp.lt.s32.totalorder %v2989, 0
      %vm3304 = vcmp.lt.s32.totalorder %v3000, 0
      %vm3305 = vcmp.lt.s32.totalorder %v3011, 0
      %vm3306 = vcmp.lt.s32.totalorder %v3022, 0
      %vm3307 = vcmp.lt.s32.totalorder %v3033, 0
      %vm3308 = vcmp.lt.s32.totalorder %v3044, 0
      %vm3309 = vcmp.lt.s32.totalorder %v3055, 0
      %vm3310 = vcmp.lt.s32.totalorder %v3066, 0
      %vm3311 = vcmp.lt.s32.totalorder %v3077, 0
      %vm3312 = vcmp.lt.s32.totalorder %v3088, 0
      %vm3313 = vcmp.lt.s32.totalorder %v3099, 0
      %vm3314 = vcmp.lt.s32.totalorder %v3110, 0
      %vm3315 = vcmp.lt.s32.totalorder %v3121, 0
      %vm3316 = vcmp.lt.s32.totalorder %v3132, 0
      %vm3317 = vcmp.lt.s32.totalorder %v3143, 0
      %vm3318 = vcmp.lt.s32.totalorder %v3154, 0
      %vm3319 = vcmp.lt.s32.totalorder %v3165, 0
      %vm3320 = vcmp.lt.s32.totalorder %v3176, 0
      %vm3321 = vcmp.lt.s32.totalorder %v3187, 0
      %vm3322 = vcmp.lt.s32.totalorder %v3198, 0
      %vm3323 = vcmp.lt.s32.totalorder %v3209, 0
      %vm3324 = vcmp.lt.s32.totalorder %v3220, 0
      %vm3325 = vcmp.lt.s32.totalorder %v3231, 0
      %vm3326 = vcmp.lt.s32.totalorder %v3242, 0
      %vm3327 = vcmp.lt.s32.totalorder %v3253, 0
      %vm3328 = vmand %vm3291, %vm3254
      %vm3329 = vmand %vm3292, %vm3255
      %vm3330 = vmand %vm3293, %vm3256
      %vm3331 = vmand %vm3294, %vm3257
      %vm3332 = vmand %vm3295, %vm3258
      %vm3333 = vmand %vm3296, %vm3259
      %vm3334 = vmand %vm3297, %vm3260
      %vm3335 = vmand %vm3298, %vm3261
      %vm3336 = vmand %vm3299, %vm3262
      %vm3337 = vmand %vm3300, %vm3263
      %vm3338 = vmand %vm3301, %vm3264
      %vm3339 = vmand %vm3302, %vm3265
      %vm3340 = vmand %vm3303, %vm3266
      %vm3341 = vmand %vm3304, %vm3267
      %vm3342 = vmand %vm3305, %vm3268
      %vm3343 = vmand %vm3306, %vm3269
      %vm3344 = vmand %vm3307, %vm3270
      %vm3345 = vmand %vm3308, %vm3271
      %vm3346 = vmand %vm3309, %vm3272
      %vm3347 = vmand %vm3310, %vm3273
      %vm3348 = vmand %vm3311, %vm3274
      %vm3349 = vmand %vm3312, %vm3275
      %vm3350 = vmand %vm3313, %vm3276
      %vm3351 = vmand %vm3314, %vm3277
      %vm3352 = vmand %vm3315, %vm3278
      %vm3353 = vmand %vm3316, %vm3279
      %vm3354 = vmand %vm3317, %vm3280
      %vm3355 = vmand %vm3318, %vm3281
      %vm3356 = vmand %vm3319, %vm3282
      %vm3357 = vmand %vm3320, %vm3283
      %vm3358 = vmand %vm3321, %vm3284
      %vm3359 = vmand %vm3322, %vm3285
      %vm3360 = vmand %vm3323, %vm3286
      %vm3361 = vmand %vm3324, %vm3287
      %vm3362 = vmand %vm3325, %vm3288
      %vm3363 = vmand %vm3326, %vm3289
      %vm3364 = vmand %vm3327, %vm3290
      %v3365 = vadd.s32 %v2857, 17
      %v3366 = vadd.s32 %v2868, 17
      %v3367 = vadd.s32 %v2879, 17
      %v3368 = vadd.s32 %v2890, 17
      %v3369 = vadd.s32 %v2901, 17
      %v3370 = vadd.s32 %v2912, 17
      %v3371 = vadd.s32 %v2923, 17
      %v3372 = vadd.s32 %v2934, 17
      %v3373 = vadd.s32 %v2945, 17
      %v3374 = vadd.s32 %v2956, 17
      %v3375 = vadd.s32 %v2967, 17
      %v3376 = vadd.s32 %v2978, 17
      %v3377 = vadd.s32 %v2989, 17
      %v3378 = vadd.s32 %v3000, 17
      %v3379 = vadd.s32 %v3011, 17
      %v3380 = vadd.s32 %v3022, 17
      %v3381 = vadd.s32 %v3033, 17
      %v3382 = vadd.s32 %v3044, 17
      %v3383 = vadd.s32 %v3055, 17
      %v3384 = vadd.s32 %v3066, 17
      %v3385 = vadd.s32 %v3077, 17
      %v3386 = vadd.s32 %v3088, 17
      %v3387 = vadd.s32 %v3099, 17
      %v3388 = vadd.s32 %v3110, 17
      %v3389 = vadd.s32 %v3121, 17
      %v3390 = vadd.s32 %v3132, 17
      %v3391 = vadd.s32 %v3143, 17
      %v3392 = vadd.s32 %v3154, 17
      %v3393 = vadd.s32 %v3165, 17
      %v3394 = vadd.s32 %v3176, 17
      %v3395 = vadd.s32 %v3187, 17
      %v3396 = vadd.s32 %v3198, 17
      %v3397 = vadd.s32 %v3209, 17
      %v3398 = vadd.s32 %v3220, 17
      %v3399 = vadd.s32 %v3231, 17
      %v3400 = vadd.s32 %v3242, 17
      %v3401 = vadd.s32 %v3253, 17
      %v3402 = vsel %vm3328, %v3365, %v2857
      %v3403 = vsel %vm3329, %v3366, %v2868
      %v3404 = vsel %vm3330, %v3367, %v2879
      %v3405 = vsel %vm3331, %v3368, %v2890
      %v3406 = vsel %vm3332, %v3369, %v2901
      %v3407 = vsel %vm3333, %v3370, %v2912
      %v3408 = vsel %vm3334, %v3371, %v2923
      %v3409 = vsel %vm3335, %v3372, %v2934
      %v3410 = vsel %vm3336, %v3373, %v2945
      %v3411 = vsel %vm3337, %v3374, %v2956
      %v3412 = vsel %vm3338, %v3375, %v2967
      %v3413 = vsel %vm3339, %v3376, %v2978
      %v3414 = vsel %vm3340, %v3377, %v2989
      %v3415 = vsel %vm3341, %v3378, %v3000
      %v3416 = vsel %vm3342, %v3379, %v3011
      %v3417 = vsel %vm3343, %v3380, %v3022
      %v3418 = vsel %vm3344, %v3381, %v3033
      %v3419 = vsel %vm3345, %v3382, %v3044
      %v3420 = vsel %vm3346, %v3383, %v3055
      %v3421 = vsel %vm3347, %v3384, %v3066
      %v3422 = vsel %vm3348, %v3385, %v3077
      %v3423 = vsel %vm3349, %v3386, %v3088
      %v3424 = vsel %vm3350, %v3387, %v3099
      %v3425 = vsel %vm3351, %v3388, %v3110
      %v3426 = vsel %vm3352, %v3389, %v3121
      %v3427 = vsel %vm3353, %v3390, %v3132
      %v3428 = vsel %vm3354, %v3391, %v3143
      %v3429 = vsel %vm3355, %v3392, %v3154
      %v3430 = vsel %vm3356, %v3393, %v3165
      %v3431 = vsel %vm3357, %v3394, %v3176
      %v3432 = vsel %vm3358, %v3395, %v3187
      %v3433 = vsel %vm3359, %v3396, %v3198
      %v3434 = vsel %vm3360, %v3397, %v3209
      %v3435 = vsel %vm3361, %v3398, %v3220
      %v3436 = vsel %vm3362, %v3399, %v3231
      %v3437 = vsel %vm3363, %v3400, %v3242
      %v3438 = vsel %vm3364, %v3401, %v3253
      %vm3439 = vcmp.lt.s32.totalorder %v3402, 16
      %vm3440 = vcmp.lt.s32.totalorder %v3403, 16
      %vm3441 = vcmp.lt.s32.totalorder %v3404, 16
      %vm3442 = vcmp.lt.s32.totalorder %v3405, 16
      %vm3443 = vcmp.lt.s32.totalorder %v3406, 16
      %vm3444 = vcmp.lt.s32.totalorder %v3407, 16
      %vm3445 = vcmp.lt.s32.totalorder %v3408, 16
      %vm3446 = vcmp.lt.s32.totalorder %v3409, 16
      %vm3447 = vcmp.lt.s32.totalorder %v3410, 16
      %vm3448 = vcmp.lt.s32.totalorder %v3411, 16
      %vm3449 = vcmp.lt.s32.totalorder %v3412, 16
      %vm3450 = vcmp.lt.s32.totalorder %v3413, 16
      %vm3451 = vcmp.lt.s32.totalorder %v3414, 16
      %vm3452 = vcmp.lt.s32.totalorder %v3415, 16
      %vm3453 = vcmp.lt.s32.totalorder %v3416, 16
      %vm3454 = vcmp.lt.s32.totalorder %v3417, 16
      %vm3455 = vcmp.lt.s32.totalorder %v3418, 16
      %vm3456 = vcmp.lt.s32.totalorder %v3419, 16
      %vm3457 = vcmp.lt.s32.totalorder %v3420, 16
      %vm3458 = vcmp.lt.s32.totalorder %v3421, 16
      %vm3459 = vcmp.lt.s32.totalorder %v3422, 16
      %vm3460 = vcmp.lt.s32.totalorder %v3423, 16
      %vm3461 = vcmp.lt.s32.totalorder %v3424, 16
      %vm3462 = vcmp.lt.s32.totalorder %v3425, 16
      %vm3463 = vcmp.lt.s32.totalorder %v3426, 16
      %vm3464 = vcmp.lt.s32.totalorder %v3427, 16
      %vm3465 = vcmp.lt.s32.totalorder %v3428, 16
      %vm3466 = vcmp.lt.s32.totalorder %v3429, 16
      %vm3467 = vcmp.lt.s32.totalorder %v3430, 16
      %vm3468 = vcmp.lt.s32.totalorder %v3431, 16
      %vm3469 = vcmp.lt.s32.totalorder %v3432, 16
      %vm3470 = vcmp.lt.s32.totalorder %v3433, 16
      %vm3471 = vcmp.lt.s32.totalorder %v3434, 16
      %vm3472 = vcmp.lt.s32.totalorder %v3435, 16
      %vm3473 = vcmp.lt.s32.totalorder %v3436, 16
      %vm3474 = vcmp.lt.s32.totalorder %v3437, 16
      %vm3475 = vcmp.lt.s32.totalorder %v3438, 16
      %vm3476 = vmand %vm2810, %vm3439
      %vm3477 = vmand %vm2811, %vm3440
      %vm3478 = vmand %vm2812, %vm3441
      %vm3479 = vmand %vm2813, %vm3442
      %vm3480 = vmand %vm2814, %vm3443
      %vm3481 = vmand %vm2815, %vm3444
      %vm3482 = vmand %vm2816, %vm3445
      %vm3483 = vmand %vm2817, %vm3446
      %vm3484 = vmand %vm2818, %vm3447
      %vm3485 = vmand %vm2819, %vm3448
      %vm3486 = vmand %vm2820, %vm3449
      %vm3487 = vmand %vm2821, %vm3450
      %vm3488 = vmand %vm2822, %vm3451
      %vm3489 = vmand %vm2823, %vm3452
      %vm3490 = vmand %vm2824, %vm3453
      %vm3491 = vmand %vm2825, %vm3454
      %vm3492 = vmand %vm2826, %vm3455
      %vm3493 = vmand %vm2827, %vm3456
      %vm3494 = vmand %vm2828, %vm3457
      %vm3495 = vmand %vm2829, %vm3458
      %vm3496 = vmand %vm2830, %vm3459
      %vm3497 = vmand %vm2831, %vm3460
      %vm3498 = vmand %vm2832, %vm3461
      %vm3499 = vmand %vm2833, %vm3462
      %vm3500 = vmand %vm2834, %vm3463
      %vm3501 = vmand %vm2835, %vm3464
      %vm3502 = vmand %vm2836, %vm3465
      %vm3503 = vmand %vm2837, %vm3466
      %vm3504 = vmand %vm2838, %vm3467
      %vm3505 = vmand %vm2839, %vm3468
      %vm3506 = vmand %vm2840, %vm3469
      %vm3507 = vmand %vm2841, %vm3470
      %vm3508 = vmand %vm2842, %vm3471
      %vm3509 = vmand %vm2843, %vm3472
      %vm3510 = vmand %vm2844, %vm3473
      %vm3511 = vmand %vm2845, %vm3474
      %vm3512 = vmand %vm2846, %vm3475
      %v3513 = vsel %vm3476, %v1846, 0.0
      %v3514 = vsel %vm3477, %v1847, 0.0
      %v3515 = vsel %vm3478, %v1848, 0.0
      %v3516 = vsel %vm3479, %v1849, 0.0
      %v3517 = vsel %vm3480, %v1850, 0.0
      %v3518 = vsel %vm3481, %v1851, 0.0
      %v3519 = vsel %vm3482, %v1852, 0.0
      %v3520 = vsel %vm3483, %v1853, 0.0
      %v3521 = vsel %vm3484, %v1854, 0.0
      %v3522 = vsel %vm3485, %v1855, 0.0
      %v3523 = vsel %vm3486, %v1856, 0.0
      %v3524 = vsel %vm3487, %v1857, 0.0
      %v3525 = vsel %vm3488, %v1858, 0.0
      %v3526 = vsel %vm3489, %v1859, 0.0
      %v3527 = vsel %vm3490, %v1860, 0.0
      %v3528 = vsel %vm3491, %v1861, 0.0
      %v3529 = vsel %vm3492, %v1862, 0.0
      %v3530 = vsel %vm3493, %v1863, 0.0
      %v3531 = vsel %vm3494, %v1864, 0.0
      %v3532 = vsel %vm3495, %v1865, 0.0
      %v3533 = vsel %vm3496, %v1866, 0.0
      %v3534 = vsel %vm3497, %v1867, 0.0
      %v3535 = vsel %vm3498, %v1868, 0.0
      %v3536 = vsel %vm3499, %v1869, 0.0
      %v3537 = vsel %vm3500, %v1870, 0.0
      %v3538 = vsel %vm3501, %v1871, 0.0
      %v3539 = vsel %vm3502, %v1872, 0.0
      %v3540 = vsel %vm3503, %v1873, 0.0
      %v3541 = vsel %vm3504, %v1874, 0.0
      %v3542 = vsel %vm3505, %v1875, 0.0
      %v3543 = vsel %vm3506, %v1876, 0.0
      %v3544 = vsel %vm3507, %v1877, 0.0
      %v3545 = vsel %vm3508, %v1878, 0.0
      %v3546 = vsel %vm3509, %v1879, 0.0
      %v3547 = vsel %vm3510, %v1880, 0.0
      %v3548 = vsel %vm3511, %v1881, 0.0
      %v3549 = vsel %vm3512, %v1882, 0.0
      %v3550 = vadd.f32 %v3513, %v3514
      %v3551 = vadd.f32 %v3550, %v3515
      %v3552 = vadd.f32 %v3551, %v3516
      %v3553 = vadd.f32 %v3552, %v3517
      %v3554 = vadd.f32 %v3553, %v3518
      %v3555 = vadd.f32 %v3554, %v3519
      %v3556 = vadd.f32 %v3555, %v3520
      %v3557 = vadd.f32 %v3556, %v3521
      %v3558 = vadd.f32 %v3557, %v3522
      %v3559 = vadd.f32 %v3558, %v3523
      %v3560 = vadd.f32 %v3559, %v3524
      %v3561 = vadd.f32 %v3560, %v3525
      %v3562 = vadd.f32 %v3561, %v3526
      %v3563 = vadd.f32 %v3562, %v3527
      %v3564 = vadd.f32 %v3563, %v3528
      %v3565 = vadd.f32 %v3564, %v3529
      %v3566 = vadd.f32 %v3565, %v3530
      %v3567 = vadd.f32 %v3566, %v3531
      %v3568 = vadd.f32 %v3567, %v3532
      %v3569 = vadd.f32 %v3568, %v3533
      %v3570 = vadd.f32 %v3569, %v3534
      %v3571 = vadd.f32 %v3570, %v3535
      %v3572 = vadd.f32 %v3571, %v3536
      %v3573 = vadd.f32 %v3572, %v3537
      %v3574 = vadd.f32 %v3573, %v3538
      %v3575 = vadd.f32 %v3574, %v3539
      %v3576 = vadd.f32 %v3575, %v3540
      %v3577 = vadd.f32 %v3576, %v3541
      %v3578 = vadd.f32 %v3577, %v3542
      %v3579 = vadd.f32 %v3578, %v3543
      %v3580 = vadd.f32 %v3579, %v3544
      %v3581 = vadd.f32 %v3580, %v3545
      %v3582 = vadd.f32 %v3581, %v3546
      %v3583 = vadd.f32 %v3582, %v3547
      %v3584 = vadd.f32 %v3583, %v3548
      %v3585 = vadd.f32 %v3584, %v3549
      %v3586 = vrot.slane %v3585, 4
      %v3587 = vadd.f32 %v3585, %v3586
      %v3588 = vrot.slane %v3587, 2
      %v3589 = vadd.f32 %v3587, %v3588
      %v3590 = vrot.slane %v3589, 1
      %v3591 = vadd.f32 %v3589, %v3590
      %v3592 = vmul.f32 %v3513, %v3513
      %v3593 = vmul.f32 %v3514, %v3514
      %v3594 = vmul.f32 %v3515, %v3515
      %v3595 = vmul.f32 %v3516, %v3516
      %v3596 = vmul.f32 %v3517, %v3517
      %v3597 = vmul.f32 %v3518, %v3518
      %v3598 = vmul.f32 %v3519, %v3519
      %v3599 = vmul.f32 %v3520, %v3520
      %v3600 = vmul.f32 %v3521, %v3521
      %v3601 = vmul.f32 %v3522, %v3522
      %v3602 = vmul.f32 %v3523, %v3523
      %v3603 = vmul.f32 %v3524, %v3524
      %v3604 = vmul.f32 %v3525, %v3525
      %v3605 = vmul.f32 %v3526, %v3526
      %v3606 = vmul.f32 %v3527, %v3527
      %v3607 = vmul.f32 %v3528, %v3528
      %v3608 = vmul.f32 %v3529, %v3529
      %v3609 = vmul.f32 %v3530, %v3530
      %v3610 = vmul.f32 %v3531, %v3531
      %v3611 = vmul.f32 %v3532, %v3532
      %v3612 = vmul.f32 %v3533, %v3533
      %v3613 = vmul.f32 %v3534, %v3534
      %v3614 = vmul.f32 %v3535, %v3535
      %v3615 = vmul.f32 %v3536, %v3536
      %v3616 = vmul.f32 %v3537, %v3537
      %v3617 = vmul.f32 %v3538, %v3538
      %v3618 = vmul.f32 %v3539, %v3539
      %v3619 = vmul.f32 %v3540, %v3540
      %v3620 = vmul.f32 %v3541, %v3541
      %v3621 = vmul.f32 %v3542, %v3542
      %v3622 = vmul.f32 %v3543, %v3543
      %v3623 = vmul.f32 %v3544, %v3544
      %v3624 = vmul.f32 %v3545, %v3545
      %v3625 = vmul.f32 %v3546, %v3546
      %v3626 = vmul.f32 %v3547, %v3547
      %v3627 = vmul.f32 %v3548, %v3548
      %v3628 = vmul.f32 %v3549, %v3549
      %v3629 = vadd.f32 %v3592, %v3593
      %v3630 = vadd.f32 %v3629, %v3594
      %v3631 = vadd.f32 %v3630, %v3595
      %v3632 = vadd.f32 %v3631, %v3596
      %v3633 = vadd.f32 %v3632, %v3597
      %v3634 = vadd.f32 %v3633, %v3598
      %v3635 = vadd.f32 %v3634, %v3599
      %v3636 = vadd.f32 %v3635, %v3600
      %v3637 = vadd.f32 %v3636, %v3601
      %v3638 = vadd.f32 %v3637, %v3602
      %v3639 = vadd.f32 %v3638, %v3603
      %v3640 = vadd.f32 %v3639, %v3604
      %v3641 = vadd.f32 %v3640, %v3605
      %v3642 = vadd.f32 %v3641, %v3606
      %v3643 = vadd.f32 %v3642, %v3607
      %v3644 = vadd.f32 %v3643, %v3608
      %v3645 = vadd.f32 %v3644, %v3609
      %v3646 = vadd.f32 %v3645, %v3610
      %v3647 = vadd.f32 %v3646, %v3611
      %v3648 = vadd.f32 %v3647, %v3612
      %v3649 = vadd.f32 %v3648, %v3613
      %v3650 = vadd.f32 %v3649, %v3614
      %v3651 = vadd.f32 %v3650, %v3615
      %v3652 = vadd.f32 %v3651, %v3616
      %v3653 = vadd.f32 %v3652, %v3617
      %v3654 = vadd.f32 %v3653, %v3618
      %v3655 = vadd.f32 %v3654, %v3619
      %v3656 = vadd.f32 %v3655, %v3620
      %v3657 = vadd.f32 %v3656, %v3621
      %v3658 = vadd.f32 %v3657, %v3622
      %v3659 = vadd.f32 %v3658, %v3623
      %v3660 = vadd.f32 %v3659, %v3624
      %v3661 = vadd.f32 %v3660, %v3625
      %v3662 = vadd.f32 %v3661, %v3626
      %v3663 = vadd.f32 %v3662, %v3627
      %v3664 = vadd.f32 %v3663, %v3628
      %v3665 = vrot.slane %v3664, 4
      %v3666 = vadd.f32 %v3664, %v3665
      %v3667 = vrot.slane %v3666, 2
      %v3668 = vadd.f32 %v3666, %v3667
      %v3669 = vrot.slane %v3668, 1
      %v3670 = vadd.f32 %v3668, %v3669
      %vm3671 = vcmp.eq.s32.totalorder %v2070, 0
      %vm3672 = vcmp.eq.s32.totalorder %v2070, 1
      %v3673 = vsel %vm3672, %v3670, 0.0
      %v3674 = vsel %vm3671, %v3591, %v3673
      %3675 = vst [vmem:[%s181] sm:$0xff] %v3674
      %p3676 = scmp.lt.s32.totalorder %s15, 1
      %s3677 = scalar_select %p3676, %s15, 1
      %s3678 = smul.addr %s3677, 37
      %s3679 = smul.addr %s3678, 4
      %s3680 = scalar_lea.vmem %s2, %s3679
      %p3681 = scmp.lt.s32.totalorder %s15, 1
      %s3682 = scalar_select %p3681, %s15, 1
      %s3683 = smul.addr %s3682, 8
      %s3684 = scalar_lea.vmem %s3, %s3683
      // Predicated region
      $region29: #{discriminator_forward.6} parent=27 // pred_check
        %p3685 = pneg %p80
      $region30: #{discriminator_forward.6} parent=27 // pred_check_branch
        %3687 = sbr.rel (%p3685) target = $region32
      $region31: #{discriminator_forward.6} parent=27 // pred_region
        _
      $region32: #{discriminator_forward.6} parent=27 // pred_fallthru
        _
      // Predicated region
      $region33: #{discriminator_forward.6} parent=27 // pred_check
        %p3688 = pneg %p106
      $region34: #{discriminator_forward.6} parent=27 // pred_check_branch
        %3690 = sbr.rel (%p3688) target = $region36
      $region35: #{discriminator_forward.6} parent=27 // pred_region
        _
      $region36: #{discriminator_forward.6} parent=27 // pred_fallthru
        _
    $region28: #{discriminator_forward.6} parent=5 // pred_fallthru
      _
    %p3691 = scmp.le.s32.totalorder 2, %s10
    // Predicated region
    $region37: #{discriminator_forward.6} parent=5 // pred_check
      %p3692 = pneg %p3691
    $region38: #{discriminator_forward.6} parent=5 // pred_check_branch
      %3694 = sbr.rel (%p3692) target = $region40
    $region39: #{discriminator_forward.6} parent=5 // pred_region
      %s3695 = ssub.s32 %s10, 2
      // Predicated region
      $region41: #{discriminator_forward.6} parent=39 // pred_check
        %p3696 = pneg %p86
      $region42: #{discriminator_forward.6} parent=39 // pred_check_branch
        %3698 = sbr.rel (%p3696) target = $region44
      $region43: #{discriminator_forward.6} parent=39 // pred_region
        %p3699 = scmp.lt.s32.totalorder %s16, 1
        %s3700 = scalar_select %p3699, %s16, 1
        %s3701 = smul.addr %s3700, 37
        %s3702 = smul.addr %s3701, 4
        %s3703 = scalar_lea.vmem %s2, %s3702
      $region44: #{discriminator_forward.6} parent=39 // pred_fallthru
        _
      // Predicated region
      $region45: #{discriminator_forward.6} parent=39 // pred_check
        %p3704 = pneg %p112
      $region46: #{discriminator_forward.6} parent=39 // pred_check_branch
        %3706 = sbr.rel (%p3704) target = $region48
      $region47: #{discriminator_forward.6} parent=39 // pred_region
        %p3707 = scmp.lt.s32.totalorder %s16, 1
        %s3708 = scalar_select %p3707, %s16, 1
        %s3709 = smul.addr %s3708, 8
        %s3710 = scalar_lea.vmem %s3, %s3709
      $region48: #{discriminator_forward.6} parent=39 // pred_fallthru
        _
    $region40: #{discriminator_forward.6} parent=5 // pred_fallthru
      _
  $region6: #{discriminator_forward.6} parent=0 // loop_footer
    %s14 = sadd.s32 1, %s10
  $region7: #{discriminator_forward.6} parent=0 // loop_footer_branch
    %9 = sbr.rel target = $region3
  $region8: #{discriminator_forward.6} parent=0 // loop_exit
    _

// kernel: discriminator_forward.7
$region0: #{discriminator_forward.7}
  #allocation0 [shape = 'u32[]', space=smem, size = 0x4, offset = 0x4, fixed_abs, tag = 'smem constant byte address 0x4 - core index']
  #allocation1 [shape = 'u32[144,128]{1,0:T(1,128)}', space=vmem, size = 0x12000, scoped, tag = 'internal scratch']
  %s0 = inlined_call_operand.vmem [shape: bf16[2,104,64], index: 0, kind: input, shape index: {}]
  %s1 = inlined_call_operand.vmem [shape: bf16[4,64,128], index: 1, kind: input, shape index: {}]
  %s2 = inlined_call_operand.vmem [shape: bf16[2,88,128], index: 2, kind: output, shape index: {0}]
  %s3 = inlined_call_operand.vmem [shape: f32[2,8,128], index: 3, kind: output, shape index: {1}]
  %4 = xla_tuple %s2, %s3
  %s5 = sld [smem:[#allocation0]]
  $region49: #{discriminator_forward.7} parent=0
    _
  %s7 = ssub.s32 1, %s5
  %s8 = scalar_select 0, %s7, %s5
  loop: start=0, step=1, limit=4
  $region2: #{discriminator_forward.7} parent=0 // loop_pre_header
    _
  $region3: #{discriminator_forward.7} parent=0 // loop_header
    %s10 = sphi 0, %s14
    %p11 = scmp.ge.s32.totalorder %s10, 4
    %s20 = sphi 0, %s22
    %s23 = sphi 0, %s20
    %s24 = sphi 0, %s23
    %s40 = sphi 0, %s24
    %s44 = sphi 0, %s44
    %s46 = sphi 0, %s44
    %s47 = sphi 0, %s46
    %s61 = sphi 0, %s47
    %s67 = sphi 0, %s69
    %s70 = sphi 0, %s67
    %s71 = sphi 0, %s70
    %s87 = sphi 0, %s71
    %s93 = sphi 0, %s95
    %s96 = sphi 0, %s93
    %s97 = sphi 0, %s96
    %s113 = sphi 0, %s97
  $region4: #{discriminator_forward.7} parent=0 // loop_header_branch
    %13 = sbr.rel (%p11) target = $region8
  $region5: #{discriminator_forward.7} parent=0 // loop_body
    %s15 = ssub.s32 %s10, 1
    %s16 = ssub.s32 %s10, 2
    %s17 = sadd.s32 %s10, 1
    %s18 = ssub.s32 %s10, %s17
    %p19 = scmp.eq.s32.totalorder %s18, 0
    %s21 = sadd.s32 %s20, 1
    %s22 = scalar_select %p19, %s20, %s21
    %p25 = pneg %p19
    %p26 = scmp.eq.s32.totalorder %s10, 1
    %p27 = por %p25, %p26
    %p28 = scmp.ne.s32.totalorder %s20, %s23
    %p29 = scmp.eq.s32.totalorder %s10, 0
    %p30 = por %p28, %p29
    %p31 = scmp.ne.s32.totalorder %s20, %s23
    %p32 = scmp.eq.s32.totalorder %s15, 1
    %p33 = por %p31, %p32
    %p34 = scmp.ne.s32.totalorder %s23, %s24
    %p35 = scmp.eq.s32.totalorder %s15, 0
    %p36 = por %p34, %p35
    %p37 = scmp.ne.s32.totalorder %s23, %s24
    %p38 = scmp.eq.s32.totalorder %s16, 1
    %p39 = por %p37, %p38
    %p41 = scmp.ne.s32.totalorder %s24, %s40
    %p42 = scmp.eq.s32.totalorder %s16, 0
    %p43 = por %p41, %p42
    %s45 = sadd.s32 %s44, 1
    %p48 = scmp.eq.s32.totalorder %s10, 1
    %p49 = scmp.ne.s32.totalorder %s44, %s46
    %p50 = scmp.eq.s32.totalorder %s10, 0
    %p51 = por %p49, %p50
    %p52 = scmp.ne.s32.totalorder %s44, %s46
    %p53 = scmp.eq.s32.totalorder %s15, 1
    %p54 = por %p52, %p53
    %p55 = scmp.ne.s32.totalorder %s46, %s47
    %p56 = scmp.eq.s32.totalorder %s15, 0
    %p57 = por %p55, %p56
    %p58 = scmp.ne.s32.totalorder %s46, %s47
    %p59 = scmp.eq.s32.totalorder %s16, 1
    %p60 = por %p58, %p59
    %p62 = scmp.ne.s32.totalorder %s47, %s61
    %p63 = scmp.eq.s32.totalorder %s16, 0
    %p64 = por %p62, %p63
    %s65 = ssub.s32 %s10, %s17
    %p66 = scmp.eq.s32.totalorder %s65, 0
    %s68 = sadd.s32 %s67, 1
    %s69 = scalar_select %p66, %s67, %s68
    %p72 = pneg %p66
    %p73 = scmp.eq.s32.totalorder %s10, 1
    %p74 = por %p72, %p73
    %p75 = scmp.ne.s32.totalorder %s67, %s70
    %p76 = scmp.eq.s32.totalorder %s10, 0
    %p77 = por %p75, %p76
    %p78 = scmp.ne.s32.totalorder %s67, %s70
    %p79 = scmp.eq.s32.totalorder %s15, 1
    %p80 = por %p78, %p79
    %p81 = scmp.ne.s32.totalorder %s70, %s71
    %p82 = scmp.eq.s32.totalorder %s15, 0
    %p83 = por %p81, %p82
    %p84 = scmp.ne.s32.totalorder %s70, %s71
    %p85 = scmp.eq.s32.totalorder %s16, 1
    %p86 = por %p84, %p85
    %p88 = scmp.ne.s32.totalorder %s71, %s87
    %p89 = scmp.eq.s32.totalorder %s16, 0
    %p90 = por %p88, %p89
    %s91 = ssub.s32 %s10, %s17
    %p92 = scmp.eq.s32.totalorder %s91, 0
    %s94 = sadd.s32 %s93, 1
    %s95 = scalar_select %p92, %s93, %s94
    %p98 = pneg %p92
    %p99 = scmp.eq.s32.totalorder %s10, 1
    %p100 = por %p98, %p99
    %p101 = scmp.ne.s32.totalorder %s93, %s96
    %p102 = scmp.eq.s32.totalorder %s10, 0
    %p103 = por %p101, %p102
    %p104 = scmp.ne.s32.totalorder %s93, %s96
    %p105 = scmp.eq.s32.totalorder %s15, 1
    %p106 = por %p104, %p105
    %p107 = scmp.ne.s32.totalorder %s96, %s97
    %p108 = scmp.eq.s32.totalorder %s15, 0
    %p109 = por %p107, %p108
    %p110 = scmp.ne.s32.totalorder %s96, %s97
    %p111 = scmp.eq.s32.totalorder %s16, 1
    %p112 = por %p110, %p111
    %p114 = scmp.ne.s32.totalorder %s97, %s113
    %p115 = scmp.eq.s32.totalorder %s16, 0
    %p116 = por %p114, %p115
    %p117 = scmp.le.s32.totalorder 1, %s10
    %p118 = scmp.lt.s32.totalorder %s10, 3
    %p119 = pnand %p117, %p118
    %p120 = pneg %p119
    // Predicated region
    $region9: #{discriminator_forward.7} parent=5 // pred_check
      _
    $region10: #{discriminator_forward.7} parent=5 // pred_check_branch
      %122 = sbr.rel (%p119) target = $region12
    $region11: #{discriminator_forward.7} parent=5 // pred_region
      %s123 = ssub.s32 %s10, 1
      // Predicated region
      $region13: #{discriminator_forward.7} parent=11 // pred_check
        %p124 = pneg %p57
      $region14: #{discriminator_forward.7} parent=11 // pred_check_branch
        %126 = sbr.rel (%p124) target = $region16
      $region15: #{discriminator_forward.7} parent=11 // pred_region
        _
      $region16: #{discriminator_forward.7} parent=11 // pred_fallthru
        _
    $region12: #{discriminator_forward.7} parent=5 // pred_fallthru
      _
    %p127 = scmp.lt.s32.totalorder %s10, 2
    // Predicated region
    $region17: #{discriminator_forward.7} parent=5 // pred_check
      %p128 = pneg %p127
    $region18: #{discriminator_forward.7} parent=5 // pred_check_branch
      %130 = sbr.rel (%p128) target = $region20
    $region19: #{discriminator_forward.7} parent=5 // pred_region
      // Predicated region
      $region21: #{discriminator_forward.7} parent=19 // pred_check
        %p131 = pneg %p30
      $region22: #{discriminator_forward.7} parent=19 // pred_check_branch
        %133 = sbr.rel (%p131) target = $region24
      $region23: #{discriminator_forward.7} parent=19 // pred_region
        %p134 = scmp.lt.s32.totalorder %s10, 1
        %s135 = scalar_select %p134, %s10, 1
        %s136 = smul.addr %s135, 13
        %s137 = smul.addr %s136, 4
        %s138 = scalar_lea.vmem %s0, %s137
      $region24: #{discriminator_forward.7} parent=19 // pred_fallthru
        _
    $region20: #{discriminator_forward.7} parent=5 // pred_fallthru
      _
    %p139 = scmp.le.s32.totalorder 1, %s10
    %p140 = scmp.lt.s32.totalorder %s10, 3
    %p141 = pnand %p139, %p140
    %p142 = pneg %p141
    // Predicated region
    $region25: #{discriminator_forward.7} parent=5 // pred_check
      _
    $region26: #{discriminator_forward.7} parent=5 // pred_check_branch
      %144 = sbr.rel (%p141) target = $region28
    $region27: #{discriminator_forward.7} parent=5 // pred_region
      %s145 = ssub.s32 %s10, 1
      %p146 = scmp.lt.s32.totalorder %s15, 1
      %s147 = scalar_select %p146, %s15, 1
      %s148 = smul.addr %s147, 13
      %s149 = smul.addr %s148, 4
      %s150 = scalar_lea.vmem %s0, %s149
      %p151 = pneg %p36
      %p152 = pneg %p33
      %p153 = pneg %p57
      %p154 = pneg %p54
      %p155 = pneg %p83
      %p156 = pneg %p80
      %p157 = scmp.lt.s32.totalorder %s15, 1
      %s158 = scalar_select %p157, %s15, 1
      %s159 = smul.addr %s158, 11
      %s160 = smul.addr %s159, 4
      %s161 = scalar_lea.vmem %s2, %s160
      %p162 = pneg %p109
      %p163 = pneg %p106
      %p164 = scmp.lt.s32.totalorder %s15, 1
      %s165 = scalar_select %p164, %s15, 1
      %s166 = smul.addr %s165, 8
      %s167 = scalar_lea.vmem %s3, %s166
      %p168 = scmp.lt.s32.totalorder %s15, 1
      %s169 = scalar_select %p168, %s15, 1
      %s170 = smul.addr %s169, 13
      %s171 = smul.addr %s170, 4
      %s172 = scalar_lea.vmem %s0, %s171
      %p173 = scmp.lt.s32.totalorder %s15, 1
      %s174 = scalar_select %p173, %s15, 1
      %s175 = smul.addr %s174, 11
      %s176 = smul.addr %s175, 4
      %s177 = scalar_lea.vmem %s2, %s176
      %p178 = scmp.lt.s32.totalorder %s15, 1
      %s179 = scalar_select %p178, %s15, 1
      %s180 = smul.addr %s179, 8
      %s181 = scalar_lea.vmem %s3, %s180
      %v183 = vld [vmem:[%s172] sm:$0xf]
      %v184 = vld [vmem:[%s172 + $0x4] sm:$0xf]
      %v185 = vld [vmem:[%s172 + $0x8] sm:$0xf]
      %v186 = vld [vmem:[%s172 + $0xc] sm:$0xf]
      %v187 = vld [vmem:[%s172 + $0x10] sm:$0xf]
      %v188 = vld [vmem:[%s172 + $0x14] sm:$0xf]
      %v189 = vld [vmem:[%s172 + $0x18] sm:$0xf]
      %v190 = vld [vmem:[%s172 + $0x1c] sm:$0xf]
      %v191 = vld [vmem:[%s172 + $0x20] sm:$0xf]
      %v192 = vld [vmem:[%s172 + $0x24] sm:$0xf]
      %v193 = vld [vmem:[%s172 + $0x28] sm:$0xf]
      %v194 = vld [vmem:[%s1] sm:$0xf]
      %v195 = vld [vmem:[%s1 + $0x4] sm:$0xf]
      %v196 = vld [vmem:[%s1 + $0x8] sm:$0xf]
      %v197 = vld [vmem:[%s1 + $0xc] sm:$0xf]
      %v198 = vld [vmem:[%s1 + $0x10] sm:$0xf]
      %v199 = vld [vmem:[%s1 + $0x14] sm:$0xf]
      %v200 = vld [vmem:[%s1 + $0x18] sm:$0xf]
      %v201 = vld [vmem:[%s1 + $0x1c] sm:$0xf]
      %v202 = vld [vmem:[%s172 + $0x2c] sm:$0x1]
      %s203 = scalar_lea.vmem %s1, 32
      %v204 = vld [vmem:[%s203] sm:$0xf]
      %v205 = vld [vmem:[%s203 + $0x4] sm:$0xf]
      %v206 = vld [vmem:[%s203 + $0x8] sm:$0xf]
      %v207 = vld [vmem:[%s203 + $0xc] sm:$0xf]
      %v208 = vld [vmem:[%s203 + $0x10] sm:$0xf]
      %v209 = vld [vmem:[%s203 + $0x14] sm:$0xf]
      %v210 = vld [vmem:[%s203 + $0x18] sm:$0xf]
      %v211 = vld [vmem:[%s203 + $0x1c] sm:$0xf]
      %v224 = vunpack.c.l.b16 %v183
      %v225 = vunpack.c.l.b16 %v184
      %v226 = vunpack.c.l.b16 %v185
      %v227 = vunpack.c.l.b16 %v186
      %v228 = vunpack.c.l.b16 %v187
      %v229 = vunpack.c.l.b16 %v188
      %v230 = vunpack.c.l.b16 %v189
      %v231 = vunpack.c.l.b16 %v190
      %v232 = vunpack.c.l.b16 %v191
      %v233 = vunpack.c.l.b16 %v192
      %v234 = vunpack.c.l.b16 %v193
      %v235 = vunpack.c.l.b16 %v202
      %v236 = vpack.c.b16 %v225, %v224
      %v237 = vpack.c.b16 %v227, %v226
      %v238 = vpack.c.b16 %v229, %v228
      %v239 = vpack.c.b16 %v231, %v230
      %v240 = vpack.c.b16 %v233, %v232
      %v241 = vpack.c.b16 %v235, %v234
      %vm242 = vsmask.f32 7424
      %v244 = vshrl.u32 %v236, 16
      %v246 = vshll.u32 %v236, 16
      %v248 = vrot.slane %v246, 1
      %v249 = vor.u32 %v244, %v248
      %v251 = vshll.u32 %v237, 16
      %v253 = vrot.slane %v251, 1
      %v254 = vsel %vm242, %v249, %v253
      %v255 = vshrl.u32 %v237, 16
      %v257 = vor.u32 %v255, %v253
      %v259 = vshll.u32 %v238, 16
      %v261 = vrot.slane %v259, 1
      %v262 = vsel %vm242, %v257, %v261
      %v263 = vshrl.u32 %v238, 16
      %v265 = vor.u32 %v263, %v261
      %v267 = vshll.u32 %v239, 16
      %v269 = vrot.slane %v267, 1
      %v270 = vsel %vm242, %v265, %v269
      %v271 = vshrl.u32 %v239, 16
      %v273 = vor.u32 %v271, %v269
      %v275 = vshll.u32 %v240, 16
      %v277 = vrot.slane %v275, 1
      %v278 = vsel %vm242, %v273, %v277
      %v279 = vshrl.u32 %v240, 16
      %v281 = vor.u32 %v279, %v277
      %v283 = vshll.u32 %v241, 16
      %v285 = vrot.slane %v283, 1
      %v286 = vsel %vm242, %v281, %v285
      %v287 = vshrl.u32 %v241, 16
      %v289 = vor.u32 %v287, %v285
      %v298 = vunpack.c.l.b16 %v204
      %v299 = vunpack.c.l.b16 %v205
      %v300 = vunpack.c.l.b16 %v206
      %v301 = vunpack.c.l.b16 %v207
      %v302 = vunpack.c.l.b16 %v208
      %v303 = vunpack.c.l.b16 %v209
      %v304 = vunpack.c.l.b16 %v210
      %v305 = vunpack.c.l.b16 %v211
      %v306 = vpack.c.b16 %v299, %v298
      %v307 = vpack.c.b16 %v301, %v300
      %v308 = vpack.c.b16 %v303, %v302
      %v309 = vpack.c.b16 %v305, %v304
      %vm314 = vcmask 523264
      %v316 = vsel %vm314, %v254, 0
      %v319 = vsel %vm314, %v262, 0
      %v322 = vsel %vm314, %v270, 0
      %v325 = vsel %vm314, %v278, 0
      %v328 = vsel %vm314, %v286, 0
      %v331 = vsel %vm314, %v289, 0
      %333 = vmatprep.subr.bf16.mxu0 0
      %334 = vmatpush1.bf16.msra.mxu0 %v306
      %335 = vmatprep.subr.bf16.mxu0 0
      %336 = vmatpush1.bf16.msra.mxu0 %v307
      %337 = vmatprep.subr.bf16.mxu0 0
      %338 = vmatpush1.bf16.msra.mxu0 %v308
      %339 = vmatprep.subr.bf16.mxu0 0
      %340 = vmatpush1.bf16.msra.mxu0 %v309
      %341 = vmatprep.subr.bf16.mxu0 0
      %342 = vmatpush1.bf16.msra.mxu0 0
      %343 = vmatprep.subr.bf16.mxu0 0
      %344 = vmatpush1.bf16.msra.mxu0 0
      %345 = vmatprep.subr.bf16.mxu0 0
      %346 = vmatpush1.bf16.msra.mxu0 0
      %347 = vmatprep.subr.bf16.mxu0 0
      %348 = vmatpush1.bf16.msra.mxu0 0
      %349 = vmatprep.subr.bf16.mxu0 0
      %350 = vmatpush1.bf16.msra.mxu0 0
      %351 = vmatprep.subr.bf16.mxu0 0
      %352 = vmatpush1.bf16.msra.mxu0 0
      %353 = vmatprep.subr.bf16.mxu0 0
      %354 = vmatpush1.bf16.msra.mxu0 0
      %355 = vmatprep.subr.bf16.mxu0 0
      %356 = vmatpush1.bf16.msra.mxu0 0
      %357 = vmatprep.subr.bf16.mxu0 0
      %358 = vmatpush1.bf16.msra.mxu0 0
      %359 = vmatprep.subr.bf16.mxu0 0
      %360 = vmatpush1.bf16.msra.mxu0 0
      %361 = vmatprep.subr.bf16.mxu0 0
      %362 = vmatpush1.bf16.msra.mxu0 0
      %363 = vmatprep.subr.bf16.mxu0 0
      %364 = vmatpush1.bf16.msra.mxu0 0
      %365 = vmatprep.mubr.bf16.mxu0 0
      %366 = vmatmul.mubr.bf16.gmra.mrb[0].mxu0 %v316
      %v367 = vpop.f32.mrb[0].mxu0
      %v368 = vadd.f32 0.0, %v367
      %v369 = vpop.f32.mrb[0].mxu0
      %v370 = vpop.f32.mrb[0].mxu0
      %v371 = vadd.f32 0.0, %v370
      %v372 = vpop.f32.mrb[0].mxu0
      %373 = vmatprep.mubr.bf16.mxu0 0
      %374 = vmatmul.mubr.bf16.gmra.mrb[0].mxu0 %v319
      %v375 = vpop.f32.mrb[0].mxu0
      %v376 = vadd.f32 0.0, %v375
      %v377 = vpop.f32.mrb[0].mxu0
      %v378 = vpop.f32.mrb[0].mxu0
      %v379 = vadd.f32 0.0, %v378
      %v380 = vpop.f32.mrb[0].mxu0
      %381 = vmatprep.mubr.bf16.mxu0 0
      %382 = vmatmul.mubr.bf16.gmra.mrb[0].mxu0 %v322
      %v383 = vpop.f32.mrb[0].mxu0
      %v384 = vadd.f32 0.0, %v383
      %v385 = vpop.f32.mrb[0].mxu0
      %v386 = vpop.f32.mrb[0].mxu0
      %v387 = vadd.f32 0.0, %v386
      %v388 = vpop.f32.mrb[0].mxu0
      %389 = vmatprep.mubr.bf16.mxu0 0
      %390 = vmatmul.mubr.bf16.gmra.mrb[0].mxu0 %v325
      %v391 = vpop.f32.mrb[0].mxu0
      %v392 = vadd.f32 0.0, %v391
      %v393 = vpop.f32.mrb[0].mxu0
      %v394 = vpop.f32.mrb[0].mxu0
      %v395 = vadd.f32 0.0, %v394
      %v396 = vpop.f32.mrb[0].mxu0
      %397 = vmatprep.mubr.bf16.mxu0 0
      %398 = vmatmul.mubr.bf16.gmra.mrb[0].mxu0 %v328
      %v399 = vpop.f32.mrb[0].mxu0
      %v400 = vadd.f32 0.0, %v399
      %v401 = vpop.f32.mrb[0].mxu0
      %v402 = vpop.f32.mrb[0].mxu0
      %v403 = vadd.f32 0.0, %v402
      %v404 = vpop.f32.mrb[0].mxu0
      %405 = vmatprep.mubr.bf16.mxu0 0
      %406 = vmatmul.mubr.bf16.gmra.mrb[0].mxu0 %v331
      %v407 = vpop.f32.mrb[0].mxu0
      %v408 = vadd.f32 0.0, %v407
      %v409 = vpop.f32.mrb[0].mxu0
      %v410 = vpop.f32.mrb[0].mxu0
      %v411 = vpop.f32.mrb[0].mxu0
      %412 = vdwg.mxu0
      %v413 = vpack.c.b16 %v234, %v234
      %v422 = vunpack.c.l.b16 %v194
      %v423 = vunpack.c.l.b16 %v195
      %v424 = vunpack.c.l.b16 %v196
      %v425 = vunpack.c.l.b16 %v197
      %v426 = vunpack.c.l.b16 %v198
      %v427 = vunpack.c.l.b16 %v199
      %v428 = vunpack.c.l.b16 %v200
      %v429 = vunpack.c.l.b16 %v201
      %v430 = vpack.c.b16 %v423, %v422
      %v431 = vpack.c.b16 %v425, %v424
      %v432 = vpack.c.b16 %v427, %v426
      %v433 = vpack.c.b16 %v429, %v428
      %v438 = vsel %vm314, %v236, 0
      %v440 = vsel %vm314, %v237, 0
      %v442 = vsel %vm314, %v238, 0
      %v444 = vsel %vm314, %v239, 0
      %v446 = vsel %vm314, %v240, 0
      %v449 = vsel %vm314, %v413, 0
      %451 = vmatprep.subr.bf16.mxu0 0
      %452 = vmatpush1.bf16.msra.mxu0 %v430
      %453 = vmatprep.subr.bf16.mxu0 0
      %454 = vmatpush1.bf16.msra.mxu0 %v431
      %455 = vmatprep.subr.bf16.mxu0 0
      %456 = vmatpush1.bf16.msra.mxu0 %v432
      %457 = vmatprep.subr.bf16.mxu0 0
      %458 = vmatpush1.bf16.msra.mxu0 %v433
      %459 = vmatprep.subr.bf16.mxu0 0
      %460 = vmatpush1.bf16.msra.mxu0 0
      %461 = vmatprep.subr.bf16.mxu0 0
      %462 = vmatpush1.bf16.msra.mxu0 0
      %463 = vmatprep.subr.bf16.mxu0 0
      %464 = vmatpush1.bf16.msra.mxu0 0
      %465 = vmatprep.subr.bf16.mxu0 0
      %466 = vmatpush1.bf16.msra.mxu0 0
      %467 = vmatprep.subr.bf16.mxu0 0
      %468 = vmatpush1.bf16.msra.mxu0 0
      %469 = vmatprep.subr.bf16.mxu0 0
      %470 = vmatpush1.bf16.msra.mxu0 0
      %471 = vmatprep.subr.bf16.mxu0 0
      %472 = vmatpush1.bf16.msra.mxu0 0
      %473 = vmatprep.subr.bf16.mxu0 0
      %474 = vmatpush1.bf16.msra.mxu0 0
      %475 = vmatprep.subr.bf16.mxu0 0
      %476 = vmatpush1.bf16.msra.mxu0 0
      %477 = vmatprep.subr.bf16.mxu0 0
      %478 = vmatpush1.bf16.msra.mxu0 0
      %479 = vmatprep.subr.bf16.mxu0 0
      %480 = vmatpush1.bf16.msra.mxu0 0
      %481 = vmatprep.subr.bf16.mxu0 0
      %482 = vmatpush1.bf16.msra.mxu0 0
      %483 = vmatprep.mubr.bf16.mxu0 0
      %484 = vmatmul.mubr.bf16.gmra.mrb[0].mxu0 %v438
      %v485 = vpop.f32.mrb[0].mxu0
      %v486 = vadd.f32 %v368, %v485
      %v487 = vpop.f32.mrb[0].mxu0
      %v488 = vpop.f32.mrb[0].mxu0
      %v489 = vadd.f32 %v371, %v488
      %v490 = vpop.f32.mrb[0].mxu0
      %491 = vmatprep.mubr.bf16.mxu0 0
      %492 = vmatmul.mubr.bf16.gmra.mrb[0].mxu0 %v440
      %v493 = vpop.f32.mrb[0].mxu0
      %v494 = vadd.f32 %v376, %v493
      %v495 = vpop.f32.mrb[0].mxu0
      %v496 = vpop.f32.mrb[0].mxu0
      %v497 = vadd.f32 %v379, %v496
      %v498 = vpop.f32.mrb[0].mxu0
      %499 = vmatprep.mubr.bf16.mxu0 0
      %500 = vmatmul.mubr.bf16.gmra.mrb[0].mxu0 %v442
      %v501 = vpop.f32.mrb[0].mxu0
      %v502 = vadd.f32 %v384, %v501
      %v503 = vpop.f32.mrb[0].mxu0
      %v504 = vpop.f32.mrb[0].mxu0
      %v505 = vadd.f32 %v387, %v504
      %v506 = vpop.f32.mrb[0].mxu0
      %507 = vmatprep.mubr.bf16.mxu0 0
      %508 = vmatmul.mubr.bf16.gmra.mrb[0].mxu0 %v444
      %v509 = vpop.f32.mrb[0].mxu0
      %v510 = vadd.f32 %v392, %v509
      %v511 = vpop.f32.mrb[0].mxu0
      %v512 = vpop.f32.mrb[0].mxu0
      %v513 = vadd.f32 %v395, %v512
      %v514 = vpop.f32.mrb[0].mxu0
      %515 = vmatprep.mubr.bf16.mxu0 0
      %516 = vmatmul.mubr.bf16.gmra.mrb[0].mxu0 %v446
      %v517 = vpop.f32.mrb[0].mxu0
      %v518 = vadd.f32 %v400, %v517
      %v519 = vpop.f32.mrb[0].mxu0
      %v520 = vpop.f32.mrb[0].mxu0
      %v521 = vadd.f32 %v403, %v520
      %v522 = vpop.f32.mrb[0].mxu0
      %523 = vmatprep.mubr.bf16.mxu0 0
      %524 = vmatmul.mubr.bf16.gmra.mrb[0].mxu0 %v449
      %v525 = vpop.f32.mrb[0].mxu0
      %v526 = vadd.f32 %v408, %v525
      %v527 = vpop.f32.mrb[0].mxu0
      %v528 = vpop.f32.mrb[0].mxu0
      %v529 = vpop.f32.mrb[0].mxu0
      %530 = vdwg.mxu0
      %v531 = vld [vmem:[%s172 + $0x4] sm:$0xf]
      %v532 = vld [vmem:[%s172 + $0x8] sm:$0xf]
      %v533 = vld [vmem:[%s172 + $0xc] sm:$0xf]
      %v534 = vld [vmem:[%s172 + $0x10] sm:$0xf]
      %v535 = vld [vmem:[%s172 + $0x14] sm:$0xf]
      %v536 = vld [vmem:[%s172 + $0x18] sm:$0xf]
      %v537 = vld [vmem:[%s172 + $0x1c] sm:$0xf]
      %v538 = vld [vmem:[%s172 + $0x20] sm:$0xf]
      %v539 = vld [vmem:[%s172 + $0x24] sm:$0xf]
      %v540 = vld [vmem:[%s172 + $0x28] sm:$0xf]
      %v541 = vld [vmem:[%s172 + $0x2c] sm:$0xf]
      %v542 = vld [vmem:[%s172 + $0x30] sm:$0x1]
      %s543 = scalar_lea.vmem %s1, 64
      %v544 = vld [vmem:[%s543] sm:$0xf]
      %v545 = vld [vmem:[%s543 + $0x4] sm:$0xf]
      %v546 = vld [vmem:[%s543 + $0x8] sm:$0xf]
      %v547 = vld [vmem:[%s543 + $0xc] sm:$0xf]
      %v548 = vld [vmem:[%s543 + $0x10] sm:$0xf]
      %v549 = vld [vmem:[%s543 + $0x14] sm:$0xf]
      %v550 = vld [vmem:[%s543 + $0x18] sm:$0xf]
      %v551 = vld [vmem:[%s543 + $0x1c] sm:$0xf]
      %v564 = vunpack.c.l.b16 %v531
      %v565 = vunpack.c.l.b16 %v532
      %v566 = vunpack.c.l.b16 %v533
      %v567 = vunpack.c.l.b16 %v534
      %v568 = vunpack.c.l.b16 %v535
      %v569 = vunpack.c.l.b16 %v536
      %v570 = vunpack.c.l.b16 %v537
      %v571 = vunpack.c.l.b16 %v538
      %v572 = vunpack.c.l.b16 %v539
      %v573 = vunpack.c.l.b16 %v540
      %v574 = vunpack.c.l.b16 %v541
      %v575 = vunpack.c.l.b16 %v542
      %v576 = vpack.c.b16 %v565, %v564
      %v577 = vpack.c.b16 %v567, %v566
      %v578 = vpack.c.b16 %v569, %v568
      %v579 = vpack.c.b16 %v571, %v570
      %v580 = vpack.c.b16 %v573, %v572
      %v581 = vpack.c.b16 %v575, %v574
      %v583 = vshrl.u32 %v576, 16
      %v585 = vshll.u32 %v576, 16
      %v587 = vrot.slane %v585, 1
      %v588 = vor.u32 %v583, %v587
      %v590 = vshll.u32 %v577, 16
      %v592 = vrot.slane %v590, 1
      %v593 = vsel %vm242, %v588, %v592
      %v594 = vshrl.u32 %v577, 16
      %v596 = vor.u32 %v594, %v592
      %v598 = vshll.u32 %v578, 16
      %v600 = vrot.slane %v598, 1
      %v601 = vsel %vm242, %v596, %v600
      %v602 = vshrl.u32 %v578, 16
      %v604 = vor.u32 %v602, %v600
      %v606 = vshll.u32 %v579, 16
      %v608 = vrot.slane %v606, 1
      %v609 = vsel %vm242, %v604, %v608
      %v610 = vshrl.u32 %v579, 16
      %v612 = vor.u32 %v610, %v608
      %v614 = vshll.u32 %v580, 16
      %v616 = vrot.slane %v614, 1
      %v617 = vsel %vm242, %v612, %v616
      %v618 = vshrl.u32 %v580, 16
      %v620 = vor.u32 %v618, %v616
      %v622 = vshll.u32 %v581, 16
      %v624 = vrot.slane %v622, 1
      %v625 = vsel %vm242, %v620, %v624
      %v626 = vshrl.u32 %v581, 16
      %v628 = vor.u32 %v626, %v624
      %v637 = vunpack.c.l.b16 %v544
      %v638 = vunpack.c.l.b16 %v545
      %v639 = vunpack.c.l.b16 %v546
      %v640 = vunpack.c.l.b16 %v547
      %v641 = vunpack.c.l.b16 %v548
      %v642 = vunpack.c.l.b16 %v549
      %v643 = vunpack.c.l.b16 %v550
      %v644 = vunpack.c.l.b16 %v551
      %v645 = vpack.c.b16 %v638, %v637
      %v646 = vpack.c.b16 %v640, %v639
      %v647 = vpack.c.b16 %v642, %v641
      %v648 = vpack.c.b16 %v644, %v643
      %v654 = vsel %vm314, %v593, 0
      %v657 = vsel %vm314, %v601, 0
      %v660 = vsel %vm314, %v609, 0
      %v663 = vsel %vm314, %v617, 0
      %v666 = vsel %vm314, %v625, 0
      %v669 = vsel %vm314, %v628, 0
      %671 = vmatprep.subr.bf16.mxu0 0
      %672 = vmatpush1.bf16.msra.mxu0 %v645
      %673 = vmatprep.subr.bf16.mxu0 0
      %674 = vmatpush1.bf16.msra.mxu0 %v646
      %675 = vmatprep.subr.bf16.mxu0 0
      %676 = vmatpush1.bf16.msra.mxu0 %v647
      %677 = vmatprep.subr.bf16.mxu0 0
      %678 = vmatpush1.bf16.msra.mxu0 %v648
      %679 = vmatprep.subr.bf16.mxu0 0
      %680 = vmatpush1.bf16.msra.mxu0 0
      %681 = vmatprep.subr.bf16.mxu0 0
      %682 = vmatpush1.bf16.msra.mxu0 0
      %683 = vmatprep.subr.bf16.mxu0 0
      %684 = vmatpush1.bf16.msra.mxu0 0
      %685 = vmatprep.subr.bf16.mxu0 0
      %686 = vmatpush1.bf16.msra.mxu0 0
      %687 = vmatprep.subr.bf16.mxu0 0
      %688 = vmatpush1.bf16.msra.mxu0 0
      %689 = vmatprep.subr.bf16.mxu0 0
      %690 = vmatpush1.bf16.msra.mxu0 0
      %691 = vmatprep.subr.bf16.mxu0 0
      %692 = vmatpush1.bf16.msra.mxu0 0
      %693 = vmatprep.subr.bf16.mxu0 0
      %694 = vmatpush1.bf16.msra.mxu0 0
      %695 = vmatprep.subr.bf16.mxu0 0
      %696 = vmatpush1.bf16.msra.mxu0 0
      %697 = vmatprep.subr.bf16.mxu0 0
      %698 = vmatpush1.bf16.msra.mxu0 0
      %699 = vmatprep.subr.bf16.mxu0 0
      %700 = vmatpush1.bf16.msra.mxu0 0
      %701 = vmatprep.subr.bf16.mxu0 0
      %702 = vmatpush1.bf16.msra.mxu0 0
      %703 = vmatprep.mubr.bf16.mxu0 0
      %704 = vmatmul.mubr.bf16.gmra.mrb[0].mxu0 %v654
      %v705 = vpop.f32.mrb[0].mxu0
      %v706 = vadd.f32 0.0, %v705
      %v707 = vpop.f32.mrb[0].mxu0
      %v708 = vpop.f32.mrb[0].mxu0
      %v709 = vadd.f32 0.0, %v708
      %v710 = vpop.f32.mrb[0].mxu0
      %711 = vmatprep.mubr.bf16.mxu0 0
      %712 = vmatmul.mubr.bf16.gmra.mrb[0].mxu0 %v657
      %v713 = vpop.f32.mrb[0].mxu0
      %v714 = vadd.f32 0.0, %v713
      %v715 = vpop.f32.mrb[0].mxu0
      %v716 = vpop.f32.mrb[0].mxu0
      %v717 = vadd.f32 0.0, %v716
      %v718 = vpop.f32.mrb[0].mxu0
      %719 = vmatprep.mubr.bf16.mxu0 0
      %720 = vmatmul.mubr.bf16.gmra.mrb[0].mxu0 %v660
      %v721 = vpop.f32.mrb[0].mxu0
      %v722 = vadd.f32 0.0, %v721
      %v723 = vpop.f32.mrb[0].mxu0
      %v724 = vpop.f32.mrb[0].mxu0
      %v725 = vadd.f32 0.0, %v724
      %v726 = vpop.f32.mrb[0].mxu0
      %727 = vmatprep.mubr.bf16.mxu0 0
      %728 = vmatmul.mubr.bf16.gmra.mrb[0].mxu0 %v663
      %v729 = vpop.f32.mrb[0].mxu0
      %v730 = vadd.f32 0.0, %v729
      %v731 = vpop.f32.mrb[0].mxu0
      %v732 = vpop.f32.mrb[0].mxu0
      %v733 = vadd.f32 0.0, %v732
      %v734 = vpop.f32.mrb[0].mxu0
      %735 = vmatprep.mubr.bf16.mxu0 0
      %736 = vmatmul.mubr.bf16.gmra.mrb[0].mxu0 %v666
      %v737 = vpop.f32.mrb[0].mxu0
      %v738 = vadd.f32 0.0, %v737
      %v739 = vpop.f32.mrb[0].mxu0
      %v740 = vpop.f32.mrb[0].mxu0
      %v741 = vadd.f32 0.0, %v740
      %v742 = vpop.f32.mrb[0].mxu0
      %743 = vmatprep.mubr.bf16.mxu0 0
      %744 = vmatmul.mubr.bf16.gmra.mrb[0].mxu0 %v669
      %v745 = vpop.f32.mrb[0].mxu0
      %v746 = vadd.f32 0.0, %v745
      %v747 = vpop.f32.mrb[0].mxu0
      %v748 = vpop.f32.mrb[0].mxu0
      %v749 = vpop.f32.mrb[0].mxu0
      %750 = vdwg.mxu0
      %v751 = vadd.f32 %v486, %v706
      %v752 = vadd.f32 %v489, %v709
      %v753 = vadd.f32 %v494, %v714
      %v754 = vadd.f32 %v497, %v717
      %v755 = vadd.f32 %v502, %v722
      %v756 = vadd.f32 %v505, %v725
      %v757 = vadd.f32 %v510, %v730
      %v758 = vadd.f32 %v513, %v733
      %v759 = vadd.f32 %v518, %v738
      %v760 = vadd.f32 %v521, %v741
      %v761 = vadd.f32 %v526, %v746
      %v762 = vld [vmem:[%s172 + $0x4] sm:$0xe]
      %s763 = scalar_lea.vmem %s1, 96
      %v764 = vld [vmem:[%s763] sm:$0xf]
      %v765 = vld [vmem:[%s763 + $0x4] sm:$0xf]
      %v766 = vld [vmem:[%s763 + $0x8] sm:$0xf]
      %v767 = vld [vmem:[%s763 + $0xc] sm:$0xf]
      %v768 = vld [vmem:[%s763 + $0x10] sm:$0xf]
      %v769 = vld [vmem:[%s763 + $0x14] sm:$0xf]
      %v770 = vld [vmem:[%s763 + $0x18] sm:$0xf]
      %v771 = vld [vmem:[%s763 + $0x1c] sm:$0xf]
      %v773 = vunpack.c.l.b16 %v762
      %v774 = vpack.c.b16 %v565, %v773
      %vm775 = vcmask 1046528
      %v776 = vrot.slane %v774, 1
      %v777 = vrot.slane %v577, 1
      %v778 = vsel %vm775, %v776, %v777
      %v779 = vrot.slane %v578, 1
      %v780 = vsel %vm775, %v777, %v779
      %v781 = vrot.slane %v579, 1
      %v782 = vsel %vm775, %v779, %v781
      %v783 = vrot.slane %v580, 1
      %v784 = vsel %vm775, %v781, %v783
      %v785 = vrot.slane %v581, 1
      %v786 = vsel %vm775, %v783, %v785
      %v795 = vunpack.c.l.b16 %v764
      %v796 = vunpack.c.l.b16 %v765
      %v797 = vunpack.c.l.b16 %v766
      %v798 = vunpack.c.l.b16 %v767
      %v799 = vunpack.c.l.b16 %v768
      %v800 = vunpack.c.l.b16 %v769
      %v801 = vunpack.c.l.b16 %v770
      %v802 = vunpack.c.l.b16 %v771
      %v803 = vpack.c.b16 %v796, %v795
      %v804 = vpack.c.b16 %v798, %v797
      %v805 = vpack.c.b16 %v800, %v799
      %v806 = vpack.c.b16 %v802, %v801
      %v812 = vsel %vm314, %v778, 0
      %v815 = vsel %vm314, %v780, 0
      %v818 = vsel %vm314, %v782, 0
      %v821 = vsel %vm314, %v784, 0
      %v824 = vsel %vm314, %v786, 0
      %v827 = vsel %vm314, %v785, 0
      %829 = vmatprep.subr.bf16.mxu0 0
      %830 = vmatpush1.bf16.msra.mxu0 %v803
      %831 = vmatprep.subr.bf16.mxu0 0
      %832 = vmatpush1.bf16.msra.mxu0 %v804
      %833 = vmatprep.subr.bf16.mxu0 0
      %834 = vmatpush1.bf16.msra.mxu0 %v805
      %835 = vmatprep.subr.bf16.mxu0 0
      %836 = vmatpush1.bf16.msra.mxu0 %v806
      %837 = vmatprep.subr.bf16.mxu0 0
      %838 = vmatpush1.bf16.msra.mxu0 0
      %839 = vmatprep.subr.bf16.mxu0 0
      %840 = vmatpush1.bf16.msra.mxu0 0
      %841 = vmatprep.subr.bf16.mxu0 0
      %842 = vmatpush1.bf16.msra.mxu0 0
      %843 = vmatprep.subr.bf16.mxu0 0
      %844 = vmatpush1.bf16.msra.mxu0 0
      %845 = vmatprep.subr.bf16.mxu0 0
      %846 = vmatpush1.bf16.msra.mxu0 0
      %847 = vmatprep.subr.bf16.mxu0 0
      %848 = vmatpush1.bf16.msra.mxu0 0
      %849 = vmatprep.subr.bf16.mxu0 0
      %850 = vmatpush1.bf16.msra.mxu0 0
      %851 = vmatprep.subr.bf16.mxu0 0
      %852 = vmatpush1.bf16.msra.mxu0 0
      %853 = vmatprep.subr.bf16.mxu0 0
      %854 = vmatpush1.bf16.msra.mxu0 0
      %855 = vmatprep.subr.bf16.mxu0 0
      %856 = vmatpush1.bf16.msra.mxu0 0
      %857 = vmatprep.subr.bf16.mxu0 0
      %858 = vmatpush1.bf16.msra.mxu0 0
      %859 = vmatprep.subr.bf16.mxu0 0
      %860 = vmatpush1.bf16.msra.mxu0 0
      %861 = vmatprep.mubr.bf16.mxu0 0
      %862 = vmatmul.mubr.bf16.gmra.mrb[0].mxu0 %v812
      %v863 = vpop.f32.mrb[0].mxu0
      %v864 = vadd.f32 0.0, %v863
      %v865 = vpop.f32.mrb[0].mxu0
      %v866 = vpop.f32.mrb[0].mxu0
      %v867 = vadd.f32 0.0, %v866
      %v868 = vpop.f32.mrb[0].mxu0
      %869 = vmatprep.mubr.bf16.mxu0 0
      %870 = vmatmul.mubr.bf16.gmra.mrb[0].mxu0 %v815
      %v871 = vpop.f32.mrb[0].mxu0
      %v872 = vadd.f32 0.0, %v871
      %v873 = vpop.f32.mrb[0].mxu0
      %v874 = vpop.f32.mrb[0].mxu0
      %v875 = vadd.f32 0.0, %v874
      %v876 = vpop.f32.mrb[0].mxu0
      %877 = vmatprep.mubr.bf16.mxu0 0
      %878 = vmatmul.mubr.bf16.gmra.mrb[0].mxu0 %v818
      %v879 = vpop.f32.mrb[0].mxu0
      %v880 = vadd.f32 0.0, %v879
      %v881 = vpop.f32.mrb[0].mxu0
      %v882 = vpop.f32.mrb[0].mxu0
      %v883 = vadd.f32 0.0, %v882
      %v884 = vpop.f32.mrb[0].mxu0
      %885 = vmatprep.mubr.bf16.mxu0 0
      %886 = vmatmul.mubr.bf16.gmra.mrb[0].mxu0 %v821
      %v887 = vpop.f32.mrb[0].mxu0
      %v888 = vadd.f32 0.0, %v887
      %v889 = vpop.f32.mrb[0].mxu0
      %v890 = vpop.f32.mrb[0].mxu0
      %v891 = vadd.f32 0.0, %v890
      %v892 = vpop.f32.mrb[0].mxu0
      %893 = vmatprep.mubr.bf16.mxu0 0
      %894 = vmatmul.mubr.bf16.gmra.mrb[0].mxu0 %v824
      %v895 = vpop.f32.mrb[0].mxu0
      %v896 = vadd.f32 0.0, %v895
      %v897 = vpop.f32.mrb[0].mxu0
      %v898 = vpop.f32.mrb[0].mxu0
      %v899 = vadd.f32 0.0, %v898
      %v900 = vpop.f32.mrb[0].mxu0
      %901 = vmatprep.mubr.bf16.mxu0 0
      %902 = vmatmul.mubr.bf16.gmra.mrb[0].mxu0 %v827
      %v903 = vpop.f32.mrb[0].mxu0
      %v904 = vadd.f32 0.0, %v903
      %v905 = vpop.f32.mrb[0].mxu0
      %v906 = vpop.f32.mrb[0].mxu0
      %v907 = vpop.f32.mrb[0].mxu0
      %908 = vdwg.mxu0
      %v909 = vadd.f32 %v751, %v864
      %v910 = vadd.f32 %v752, %v867
      %v911 = vadd.f32 %v753, %v872
      %v912 = vadd.f32 %v754, %v875
      %v913 = vadd.f32 %v755, %v880
      %v914 = vadd.f32 %v756, %v883
      %v915 = vadd.f32 %v757, %v888
      %v916 = vadd.f32 %v758, %v891
      %v917 = vadd.f32 %v759, %v896
      %v918 = vadd.f32 %v760, %v899
      %v919 = vadd.f32 %v761, %v904
      %v920 = vpack.c.bf16 %v910, %v909
      %v921 = vpack.c.bf16 %v912, %v911
      %v922 = vpack.c.bf16 %v914, %v913
      %v923 = vpack.c.bf16 %v916, %v915
      %v924 = vpack.c.bf16 %v918, %v917
      %v925 = vpack.c.bf16 %v919, %v919
      %v932 = vunpack.c.l.b16 %v920
      %v933 = vunpack.c.h.b16 %v920
      %v934 = vunpack.c.l.b16 %v921
      %v935 = vunpack.c.h.b16 %v921
      %v936 = vunpack.c.l.b16 %v922
      %v937 = vunpack.c.h.b16 %v922
      %v938 = vunpack.c.l.b16 %v923
      %v939 = vunpack.c.h.b16 %v923
      %v940 = vunpack.c.l.b16 %v924
      %v941 = vunpack.c.h.b16 %v924
      %v942 = vunpack.c.l.b16 %v925
      %v943 = vpack.c.b16 %v932, %v932
      %v944 = vpack.c.b16 %v933, %v933
      %v945 = vpack.c.b16 %v934, %v934
      %v946 = vpack.c.b16 %v935, %v935
      %v947 = vpack.c.b16 %v936, %v936
      %v948 = vpack.c.b16 %v937, %v937
      %v949 = vpack.c.b16 %v938, %v938
      %v950 = vpack.c.b16 %v939, %v939
      %v951 = vpack.c.b16 %v940, %v940
      %v952 = vpack.c.b16 %v941, %v941
      %v953 = vpack.c.b16 %v942, %v942
      %965 = vst [vmem:[%s177] sm:$0xf] %v943
      %966 = vst [vmem:[%s177 + $0x4] sm:$0xf] %v944
      %967 = vst [vmem:[%s177 + $0x8] sm:$0xf] %v945
      %968 = vst [vmem:[%s177 + $0xc] sm:$0xf] %v946
      %969 = vst [vmem:[%s177 + $0x10] sm:$0xf] %v947
      %970 = vst [vmem:[%s177 + $0x14] sm:$0xf] %v948
      %971 = vst [vmem:[%s177 + $0x18] sm:$0xf] %v949
      %972 = vst [vmem:[%s177 + $0x1c] sm:$0xf] %v950
      %973 = vst [vmem:[%s177 + $0x20] sm:$0xf] %v951
      %974 = vst [vmem:[%s177 + $0x24] sm:$0xf] %v952
      %975 = vst [vmem:[%s177 + $0x28] sm:$0xf] %v953
      %v976 = vlaneseq
      %v977 = vshrl.u32 %v976, 7
      %v978 = vadd.s32 %v977, 8
      %v979 = vadd.s32 %v977, 16
      %v980 = vadd.s32 %v977, 24
      %v981 = vadd.s32 %v977, 32
      %v982 = vadd.s32 %v977, 40
      %v983 = vadd.s32 %v977, 48
      %v984 = vadd.s32 %v977, 56
      %v985 = vadd.s32 %v977, 64
      %v986 = vadd.s32 %v977, 72
      %v987 = vadd.s32 %v977, 80
      %vm988 = vcmp.lt.s32.totalorder %v977, 0
      %v989 = vsub.s32 0, %v977
      %v990 = vsel %vm988, %v989, %v977
      %v991 = vmul.u32.u64.compose %v990, 3123612579
      %v992 = vextract.low.u32 %v991
      %v993 = vextract.high.u32 %v991
      %v994 = vshrl.u32 %v993, 6
      %v995 = vmul.u32 %v994, 88
      %v996 = vsub.s32 %v990, %v995
      %v997 = vsub.s32 0, %v996
      %v998 = vsel %vm988, %v997, %v996
      %vm999 = vcmp.lt.s32.totalorder %v978, 0
      %v1000 = vsub.s32 0, %v978
      %v1001 = vsel %vm999, %v1000, %v978
      %v1002 = vmul.u32.u64.compose %v1001, 3123612579
      %v1003 = vextract.low.u32 %v1002
      %v1004 = vextract.high.u32 %v1002
      %v1005 = vshrl.u32 %v1004, 6
      %v1006 = vmul.u32 %v1005, 88
      %v1007 = vsub.s32 %v1001, %v1006
      %v1008 = vsub.s32 0, %v1007
      %v1009 = vsel %vm999, %v1008, %v1007
      %vm1010 = vcmp.lt.s32.totalorder %v979, 0
      %v1011 = vsub.s32 0, %v979
      %v1012 = vsel %vm1010, %v1011, %v979
      %v1013 = vmul.u32.u64.compose %v1012, 3123612579
      %v1014 = vextract.low.u32 %v1013
      %v1015 = vextract.high.u32 %v1013
      %v1016 = vshrl.u32 %v1015, 6
      %v1017 = vmul.u32 %v1016, 88
      %v1018 = vsub.s32 %v1012, %v1017
      %v1019 = vsub.s32 0, %v1018
      %v1020 = vsel %vm1010, %v1019, %v1018
      %vm1021 = vcmp.lt.s32.totalorder %v980, 0
      %v1022 = vsub.s32 0, %v980
      %v1023 = vsel %vm1021, %v1022, %v980
      %v1024 = vmul.u32.u64.compose %v1023, 3123612579
      %v1025 = vextract.low.u32 %v1024
      %v1026 = vextract.high.u32 %v1024
      %v1027 = vshrl.u32 %v1026, 6
      %v1028 = vmul.u32 %v1027, 88
      %v1029 = vsub.s32 %v1023, %v1028
      %v1030 = vsub.s32 0, %v1029
      %v1031 = vsel %vm1021, %v1030, %v1029
      %vm1032 = vcmp.lt.s32.totalorder %v981, 0
      %v1033 = vsub.s32 0, %v981
      %v1034 = vsel %vm1032, %v1033, %v981
      %v1035 = vmul.u32.u64.compose %v1034, 3123612579
      %v1036 = vextract.low.u32 %v1035
      %v1037 = vextract.high.u32 %v1035
      %v1038 = vshrl.u32 %v1037, 6
      %v1039 = vmul.u32 %v1038, 88
      %v1040 = vsub.s32 %v1034, %v1039
      %v1041 = vsub.s32 0, %v1040
      %v1042 = vsel %vm1032, %v1041, %v1040
      %vm1043 = vcmp.lt.s32.totalorder %v982, 0
      %v1044 = vsub.s32 0, %v982
      %v1045 = vsel %vm1043, %v1044, %v982
      %v1046 = vmul.u32.u64.compose %v1045, 3123612579
      %v1047 = vextract.low.u32 %v1046
      %v1048 = vextract.high.u32 %v1046
      %v1049 = vshrl.u32 %v1048, 6
      %v1050 = vmul.u32 %v1049, 88
      %v1051 = vsub.s32 %v1045, %v1050
      %v1052 = vsub.s32 0, %v1051
      %v1053 = vsel %vm1043, %v1052, %v1051
      %vm1054 = vcmp.lt.s32.totalorder %v983, 0
      %v1055 = vsub.s32 0, %v983
      %v1056 = vsel %vm1054, %v1055, %v983
      %v1057 = vmul.u32.u64.compose %v1056, 3123612579
      %v1058 = vextract.low.u32 %v1057
      %v1059 = vextract.high.u32 %v1057
      %v1060 = vshrl.u32 %v1059, 6
      %v1061 = vmul.u32 %v1060, 88
      %v1062 = vsub.s32 %v1056, %v1061
      %v1063 = vsub.s32 0, %v1062
      %v1064 = vsel %vm1054, %v1063, %v1062
      %vm1065 = vcmp.lt.s32.totalorder %v984, 0
      %v1066 = vsub.s32 0, %v984
      %v1067 = vsel %vm1065, %v1066, %v984
      %v1068 = vmul.u32.u64.compose %v1067, 3123612579
      %v1069 = vextract.low.u32 %v1068
      %v1070 = vextract.high.u32 %v1068
      %v1071 = vshrl.u32 %v1070, 6
      %v1072 = vmul.u32 %v1071, 88
      %v1073 = vsub.s32 %v1067, %v1072
      %v1074 = vsub.s32 0, %v1073
      %v1075 = vsel %vm1065, %v1074, %v1073
      %vm1076 = vcmp.lt.s32.totalorder %v985, 0
      %v1077 = vsub.s32 0, %v985
      %v1078 = vsel %vm1076, %v1077, %v985
      %v1079 = vmul.u32.u64.compose %v1078, 3123612579
      %v1080 = vextract.low.u32 %v1079
      %v1081 = vextract.high.u32 %v1079
      %v1082 = vshrl.u32 %v1081, 6
      %v1083 = vmul.u32 %v1082, 88
      %v1084 = vsub.s32 %v1078, %v1083
      %v1085 = vsub.s32 0, %v1084
      %v1086 = vsel %vm1076, %v1085, %v1084
      %vm1087 = vcmp.lt.s32.totalorder %v986, 0
      %v1088 = vsub.s32 0, %v986
      %v1089 = vsel %vm1087, %v1088, %v986
      %v1090 = vmul.u32.u64.compose %v1089, 3123612579
      %v1091 = vextract.low.u32 %v1090
      %v1092 = vextract.high.u32 %v1090
      %v1093 = vshrl.u32 %v1092, 6
      %v1094 = vmul.u32 %v1093, 88
      %v1095 = vsub.s32 %v1089, %v1094
      %v1096 = vsub.s32 0, %v1095
      %v1097 = vsel %vm1087, %v1096, %v1095
      %vm1098 = vcmp.lt.s32.totalorder %v987, 0
      %v1099 = vsub.s32 0, %v987
      %v1100 = vsel %vm1098, %v1099, %v987
      %v1101 = vmul.u32.u64.compose %v1100, 3123612579
      %v1102 = vextract.low.u32 %v1101
      %v1103 = vextract.high.u32 %v1101
      %v1104 = vshrl.u32 %v1103, 6
      %v1105 = vmul.u32 %v1104, 88
      %v1106 = vsub.s32 %v1100, %v1105
      %v1107 = vsub.s32 0, %v1106
      %v1108 = vsel %vm1098, %v1107, %v1106
      %vm1109 = vcmp.ne.s32.totalorder %v998, 0
      %vm1110 = vcmp.ne.s32.totalorder %v1009, 0
      %vm1111 = vcmp.ne.s32.totalorder %v1020, 0
      %vm1112 = vcmp.ne.s32.totalorder %v1031, 0
      %vm1113 = vcmp.ne.s32.totalorder %v1042, 0
      %vm1114 = vcmp.ne.s32.totalorder %v1053, 0
      %vm1115 = vcmp.ne.s32.totalorder %v1064, 0
      %vm1116 = vcmp.ne.s32.totalorder %v1075, 0
      %vm1117 = vcmp.ne.s32.totalorder %v1086, 0
      %vm1118 = vcmp.ne.s32.totalorder %v1097, 0
      %vm1119 = vcmp.ne.s32.totalorder %v1108, 0
      %vm1120 = vcmp.lt.s32.totalorder %v998, 0
      %vm1121 = vcmp.lt.s32.totalorder %v1009, 0
      %vm1122 = vcmp.lt.s32.totalorder %v1020, 0
      %vm1123 = vcmp.lt.s32.totalorder %v1031, 0
      %vm1124 = vcmp.lt.s32.totalorder %v1042, 0
      %vm1125 = vcmp.lt.s32.totalorder %v1053, 0
      %vm1126 = vcmp.lt.s32.totalorder %v1064, 0
      %vm1127 = vcmp.lt.s32.totalorder %v1075, 0
      %vm1128 = vcmp.lt.s32.totalorder %v1086, 0
      %vm1129 = vcmp.lt.s32.totalorder %v1097, 0
      %vm1130 = vcmp.lt.s32.totalorder %v1108, 0
      %vm1131 = vmand %vm1120, %vm1109
      %vm1132 = vmand %vm1121, %vm1110
      %vm1133 = vmand %vm1122, %vm1111
      %vm1134 = vmand %vm1123, %vm1112
      %vm1135 = vmand %vm1124, %vm1113
      %vm1136 = vmand %vm1125, %vm1114
      %vm1137 = vmand %vm1126, %vm1115
      %vm1138 = vmand %vm1127, %vm1116
      %vm1139 = vmand %vm1128, %vm1117
      %vm1140 = vmand %vm1129, %vm1118
      %vm1141 = vmand %vm1130, %vm1119
      %v1142 = vadd.s32 %v998, 88
      %v1143 = vadd.s32 %v1009, 88
      %v1144 = vadd.s32 %v1020, 88
      %v1145 = vadd.s32 %v1031, 88
      %v1146 = vadd.s32 %v1042, 88
      %v1147 = vadd.s32 %v1053, 88
      %v1148 = vadd.s32 %v1064, 88
      %v1149 = vadd.s32 %v1075, 88
      %v1150 = vadd.s32 %v1086, 88
      %v1151 = vadd.s32 %v1097, 88
      %v1152 = vadd.s32 %v1108, 88
      %v1153 = vsel %vm1131, %v1142, %v998
      %v1154 = vsel %vm1132, %v1143, %v1009
      %v1155 = vsel %vm1133, %v1144, %v1020
      %v1156 = vsel %vm1134, %v1145, %v1031
      %v1157 = vsel %vm1135, %v1146, %v1042
      %v1158 = vsel %vm1136, %v1147, %v1053
      %v1159 = vsel %vm1137, %v1148, %v1064
      %v1160 = vsel %vm1138, %v1149, %v1075
      %v1161 = vsel %vm1139, %v1150, %v1086
      %v1162 = vsel %vm1140, %v1151, %v1097
      %v1163 = vsel %vm1141, %v1152, %v1108
      %vm1164 = vcmp.lt.s32.totalorder %v1153, 72
      %vm1165 = vcmp.lt.s32.totalorder %v1154, 72
      %vm1166 = vcmp.lt.s32.totalorder %v1155, 72
      %vm1167 = vcmp.lt.s32.totalorder %v1156, 72
      %vm1168 = vcmp.lt.s32.totalorder %v1157, 72
      %vm1169 = vcmp.lt.s32.totalorder %v1158, 72
      %vm1170 = vcmp.lt.s32.totalorder %v1159, 72
      %vm1171 = vcmp.lt.s32.totalorder %v1160, 72
      %vm1172 = vcmp.lt.s32.totalorder %v1161, 72
      %vm1173 = vcmp.lt.s32.totalorder %v1162, 72
      %vm1174 = vcmp.lt.s32.totalorder %v1163, 72
      %vm1175 = vcmp.lt.s32.totalorder %v1153, 0
      %v1176 = vsub.s32 0, %v1153
      %v1177 = vsel %vm1175, %v1176, %v1153
      %v1178 = vmul.u32.u64.compose %v1177, 3817748708
      %v1179 = vextract.low.u32 %v1178
      %v1180 = vextract.high.u32 %v1178
      %v1181 = vshrl.u32 %v1180, 3
      %v1182 = vmul.u32 %v1181, 9
      %v1183 = vsub.s32 %v1177, %v1182
      %v1184 = vsub.s32 0, %v1183
      %v1185 = vsel %vm1175, %v1184, %v1183
      %vm1186 = vcmp.lt.s32.totalorder %v1154, 0
      %v1187 = vsub.s32 0, %v1154
      %v1188 = vsel %vm1186, %v1187, %v1154
      %v1189 = vmul.u32.u64.compose %v1188, 3817748708
      %v1190 = vextract.low.u32 %v1189
      %v1191 = vextract.high.u32 %v1189
      %v1192 = vshrl.u32 %v1191, 3
      %v1193 = vmul.u32 %v1192, 9
      %v1194 = vsub.s32 %v1188, %v1193
      %v1195 = vsub.s32 0, %v1194
      %v1196 = vsel %vm1186, %v1195, %v1194
      %vm1197 = vcmp.lt.s32.totalorder %v1155, 0
      %v1198 = vsub.s32 0, %v1155
      %v1199 = vsel %vm1197, %v1198, %v1155
      %v1200 = vmul.u32.u64.compose %v1199, 3817748708
      %v1201 = vextract.low.u32 %v1200
      %v1202 = vextract.high.u32 %v1200
      %v1203 = vshrl.u32 %v1202, 3
      %v1204 = vmul.u32 %v1203, 9
      %v1205 = vsub.s32 %v1199, %v1204
      %v1206 = vsub.s32 0, %v1205
      %v1207 = vsel %vm1197, %v1206, %v1205
      %vm1208 = vcmp.lt.s32.totalorder %v1156, 0
      %v1209 = vsub.s32 0, %v1156
      %v1210 = vsel %vm1208, %v1209, %v1156
      %v1211 = vmul.u32.u64.compose %v1210, 3817748708
      %v1212 = vextract.low.u32 %v1211
      %v1213 = vextract.high.u32 %v1211
      %v1214 = vshrl.u32 %v1213, 3
      %v1215 = vmul.u32 %v1214, 9
      %v1216 = vsub.s32 %v1210, %v1215
      %v1217 = vsub.s32 0, %v1216
      %v1218 = vsel %vm1208, %v1217, %v1216
      %vm1219 = vcmp.lt.s32.totalorder %v1157, 0
      %v1220 = vsub.s32 0, %v1157
      %v1221 = vsel %vm1219, %v1220, %v1157
      %v1222 = vmul.u32.u64.compose %v1221, 3817748708
      %v1223 = vextract.low.u32 %v1222
      %v1224 = vextract.high.u32 %v1222
      %v1225 = vshrl.u32 %v1224, 3
      %v1226 = vmul.u32 %v1225, 9
      %v1227 = vsub.s32 %v1221, %v1226
      %v1228 = vsub.s32 0, %v1227
      %v1229 = vsel %vm1219, %v1228, %v1227
      %vm1230 = vcmp.lt.s32.totalorder %v1158, 0
      %v1231 = vsub.s32 0, %v1158
      %v1232 = vsel %vm1230, %v1231, %v1158
      %v1233 = vmul.u32.u64.compose %v1232, 3817748708
      %v1234 = vextract.low.u32 %v1233
      %v1235 = vextract.high.u32 %v1233
      %v1236 = vshrl.u32 %v1235, 3
      %v1237 = vmul.u32 %v1236, 9
      %v1238 = vsub.s32 %v1232, %v1237
      %v1239 = vsub.s32 0, %v1238
      %v1240 = vsel %vm1230, %v1239, %v1238
      %vm1241 = vcmp.lt.s32.totalorder %v1159, 0
      %v1242 = vsub.s32 0, %v1159
      %v1243 = vsel %vm1241, %v1242, %v1159
      %v1244 = vmul.u32.u64.compose %v1243, 3817748708
      %v1245 = vextract.low.u32 %v1244
      %v1246 = vextract.high.u32 %v1244
      %v1247 = vshrl.u32 %v1246, 3
      %v1248 = vmul.u32 %v1247, 9
      %v1249 = vsub.s32 %v1243, %v1248
      %v1250 = vsub.s32 0, %v1249
      %v1251 = vsel %vm1241, %v1250, %v1249
      %vm1252 = vcmp.lt.s32.totalorder %v1160, 0
      %v1253 = vsub.s32 0, %v1160
      %v1254 = vsel %vm1252, %v1253, %v1160
      %v1255 = vmul.u32.u64.compose %v1254, 3817748708
      %v1256 = vextract.low.u32 %v1255
      %v1257 = vextract.high.u32 %v1255
      %v1258 = vshrl.u32 %v1257, 3
      %v1259 = vmul.u32 %v1258, 9
      %v1260 = vsub.s32 %v1254, %v1259
      %v1261 = vsub.s32 0, %v1260
      %v1262 = vsel %vm1252, %v1261, %v1260
      %vm1263 = vcmp.lt.s32.totalorder %v1161, 0
      %v1264 = vsub.s32 0, %v1161
      %v1265 = vsel %vm1263, %v1264, %v1161
      %v1266 = vmul.u32.u64.compose %v1265, 3817748708
      %v1267 = vextract.low.u32 %v1266
      %v1268 = vextract.high.u32 %v1266
      %v1269 = vshrl.u32 %v1268, 3
      %v1270 = vmul.u32 %v1269, 9
      %v1271 = vsub.s32 %v1265, %v1270
      %v1272 = vsub.s32 0, %v1271
      %v1273 = vsel %vm1263, %v1272, %v1271
      %vm1274 = vcmp.lt.s32.totalorder %v1162, 0
      %v1275 = vsub.s32 0, %v1162
      %v1276 = vsel %vm1274, %v1275, %v1162
      %v1277 = vmul.u32.u64.compose %v1276, 3817748708
      %v1278 = vextract.low.u32 %v1277
      %v1279 = vextract.high.u32 %v1277
      %v1280 = vshrl.u32 %v1279, 3
      %v1281 = vmul.u32 %v1280, 9
      %v1282 = vsub.s32 %v1276, %v1281
      %v1283 = vsub.s32 0, %v1282
      %v1284 = vsel %vm1274, %v1283, %v1282
      %vm1285 = vcmp.lt.s32.totalorder %v1163, 0
      %v1286 = vsub.s32 0, %v1163
      %v1287 = vsel %vm1285, %v1286, %v1163
      %v1288 = vmul.u32.u64.compose %v1287, 3817748708
      %v1289 = vextract.low.u32 %v1288
      %v1290 = vextract.high.u32 %v1288
      %v1291 = vshrl.u32 %v1290, 3
      %v1292 = vmul.u32 %v1291, 9
      %v1293 = vsub.s32 %v1287, %v1292
      %v1294 = vsub.s32 0, %v1293
      %v1295 = vsel %vm1285, %v1294, %v1293
      %vm1296 = vcmp.ne.s32.totalorder %v1185, 0
      %vm1297 = vcmp.ne.s32.totalorder %v1196, 0
      %vm1298 = vcmp.ne.s32.totalorder %v1207, 0
      %vm1299 = vcmp.ne.s32.totalorder %v1218, 0
      %vm1300 = vcmp.ne.s32.totalorder %v1229, 0
      %vm1301 = vcmp.ne.s32.totalorder %v1240, 0
      %vm1302 = vcmp.ne.s32.totalorder %v1251, 0
      %vm1303 = vcmp.ne.s32.totalorder %v1262, 0
      %vm1304 = vcmp.ne.s32.totalorder %v1273, 0
      %vm1305 = vcmp.ne.s32.totalorder %v1284, 0
      %vm1306 = vcmp.ne.s32.totalorder %v1295, 0
      %vm1307 = vcmp.lt.s32.totalorder %v1185, 0
      %vm1308 = vcmp.lt.s32.totalorder %v1196, 0
      %vm1309 = vcmp.lt.s32.totalorder %v1207, 0
      %vm1310 = vcmp.lt.s32.totalorder %v1218, 0
      %vm1311 = vcmp.lt.s32.totalorder %v1229, 0
      %vm1312 = vcmp.lt.s32.totalorder %v1240, 0
      %vm1313 = vcmp.lt.s32.totalorder %v1251, 0
      %vm1314 = vcmp.lt.s32.totalorder %v1262, 0
      %vm1315 = vcmp.lt.s32.totalorder %v1273, 0
      %vm1316 = vcmp.lt.s32.totalorder %v1284, 0
      %vm1317 = vcmp.lt.s32.totalorder %v1295, 0
      %vm1318 = vmand %vm1307, %vm1296
      %vm1319 = vmand %vm1308, %vm1297
      %vm1320 = vmand %vm1309, %vm1298
      %vm1321 = vmand %vm1310, %vm1299
      %vm1322 = vmand %vm1311, %vm1300
      %vm1323 = vmand %vm1312, %vm1301
      %vm1324 = vmand %vm1313, %vm1302
      %vm1325 = vmand %vm1314, %vm1303
      %vm1326 = vmand %vm1315, %vm1304
      %vm1327 = vmand %vm1316, %vm1305
      %vm1328 = vmand %vm1317, %vm1306
      %v1329 = vadd.s32 %v1185, 9
      %v1330 = vadd.s32 %v1196, 9
      %v1331 = vadd.s32 %v1207, 9
      %v1332 = vadd.s32 %v1218, 9
      %v1333 = vadd.s32 %v1229, 9
      %v1334 = vadd.s32 %v1240, 9
      %v1335 = vadd.s32 %v1251, 9
      %v1336 = vadd.s32 %v1262, 9
      %v1337 = vadd.s32 %v1273, 9
      %v1338 = vadd.s32 %v1284, 9
      %v1339 = vadd.s32 %v1295, 9
      %v1340 = vsel %vm1318, %v1329, %v1185
      %v1341 = vsel %vm1319, %v1330, %v1196
      %v1342 = vsel %vm1320, %v1331, %v1207
      %v1343 = vsel %vm1321, %v1332, %v1218
      %v1344 = vsel %vm1322, %v1333, %v1229
      %v1345 = vsel %vm1323, %v1334, %v1240
      %v1346 = vsel %vm1324, %v1335, %v1251
      %v1347 = vsel %vm1325, %v1336, %v1262
      %v1348 = vsel %vm1326, %v1337, %v1273
      %v1349 = vsel %vm1327, %v1338, %v1284
      %v1350 = vsel %vm1328, %v1339, %v1295
      %vm1351 = vcmp.lt.s32.totalorder %v1340, 8
      %vm1352 = vcmp.lt.s32.totalorder %v1341, 8
      %vm1353 = vcmp.lt.s32.totalorder %v1342, 8
      %vm1354 = vcmp.lt.s32.totalorder %v1343, 8
      %vm1355 = vcmp.lt.s32.totalorder %v1344, 8
      %vm1356 = vcmp.lt.s32.totalorder %v1345, 8
      %vm1357 = vcmp.lt.s32.totalorder %v1346, 8
      %vm1358 = vcmp.lt.s32.totalorder %v1347, 8
      %vm1359 = vcmp.lt.s32.totalorder %v1348, 8
      %vm1360 = vcmp.lt.s32.totalorder %v1349, 8
      %vm1361 = vcmp.lt.s32.totalorder %v1350, 8
      %vm1362 = vmand %vm1164, %vm1351
      %vm1363 = vmand %vm1165, %vm1352
      %vm1364 = vmand %vm1166, %vm1353
      %vm1365 = vmand %vm1167, %vm1354
      %vm1366 = vmand %vm1168, %vm1355
      %vm1367 = vmand %vm1169, %vm1356
      %vm1368 = vmand %vm1170, %vm1357
      %vm1369 = vmand %vm1171, %vm1358
      %vm1370 = vmand %vm1172, %vm1359
      %vm1371 = vmand %vm1173, %vm1360
      %vm1372 = vmand %vm1174, %vm1361
      %v1373 = vsel %vm1362, %v909, 0.0
      %v1374 = vsel %vm1363, %v910, 0.0
      %v1375 = vsel %vm1364, %v911, 0.0
      %v1376 = vsel %vm1365, %v912, 0.0
      %v1377 = vsel %vm1366, %v913, 0.0
      %v1378 = vsel %vm1367, %v914, 0.0
      %v1379 = vsel %vm1368, %v915, 0.0
      %v1380 = vsel %vm1369, %v916, 0.0
      %v1381 = vsel %vm1370, %v917, 0.0
      %v1382 = vsel %vm1371, %v918, 0.0
      %v1383 = vsel %vm1372, %v919, 0.0
      %v1384 = vadd.f32 %v1373, %v1374
      %v1385 = vadd.f32 %v1384, %v1375
      %v1386 = vadd.f32 %v1385, %v1376
      %v1387 = vadd.f32 %v1386, %v1377
      %v1388 = vadd.f32 %v1387, %v1378
      %v1389 = vadd.f32 %v1388, %v1379
      %v1390 = vadd.f32 %v1389, %v1380
      %v1391 = vadd.f32 %v1390, %v1381
      %v1392 = vadd.f32 %v1391, %v1382
      %v1393 = vadd.f32 %v1392, %v1383
      %v1394 = vrot.slane %v1393, 4
      %v1395 = vadd.f32 %v1393, %v1394
      %v1396 = vrot.slane %v1395, 2
      %v1397 = vadd.f32 %v1395, %v1396
      %v1398 = vrot.slane %v1397, 1
      %v1399 = vadd.f32 %v1397, %v1398
      %v1400 = vmul.f32 %v1373, %v1373
      %v1401 = vmul.f32 %v1374, %v1374
      %v1402 = vmul.f32 %v1375, %v1375
      %v1403 = vmul.f32 %v1376, %v1376
      %v1404 = vmul.f32 %v1377, %v1377
      %v1405 = vmul.f32 %v1378, %v1378
      %v1406 = vmul.f32 %v1379, %v1379
      %v1407 = vmul.f32 %v1380, %v1380
      %v1408 = vmul.f32 %v1381, %v1381
      %v1409 = vmul.f32 %v1382, %v1382
      %v1410 = vmul.f32 %v1383, %v1383
      %v1411 = vadd.f32 %v1400, %v1401
      %v1412 = vadd.f32 %v1411, %v1402
      %v1413 = vadd.f32 %v1412, %v1403
      %v1414 = vadd.f32 %v1413, %v1404
      %v1415 = vadd.f32 %v1414, %v1405
      %v1416 = vadd.f32 %v1415, %v1406
      %v1417 = vadd.f32 %v1416, %v1407
      %v1418 = vadd.f32 %v1417, %v1408
      %v1419 = vadd.f32 %v1418, %v1409
      %v1420 = vadd.f32 %v1419, %v1410
      %v1421 = vrot.slane %v1420, 4
      %v1422 = vadd.f32 %v1420, %v1421
      %v1423 = vrot.slane %v1422, 2
      %v1424 = vadd.f32 %v1422, %v1423
      %v1425 = vrot.slane %v1424, 1
      %v1426 = vadd.f32 %v1424, %v1425
      %vm1427 = vcmp.eq.s32.totalorder %v977, 0
      %vm1428 = vcmp.eq.s32.totalorder %v977, 1
      %v1429 = vsel %vm1428, %v1426, 0.0
      %v1430 = vsel %vm1427, %v1399, %v1429
      %1431 = vst [vmem:[%s181] sm:$0xff] %v1430
      %p1432 = scmp.lt.s32.totalorder %s15, 1
      %s1433 = scalar_select %p1432, %s15, 1
      %s1434 = smul.addr %s1433, 11
      %s1435 = smul.addr %s1434, 4
      %s1436 = scalar_lea.vmem %s2, %s1435
      %p1437 = scmp.lt.s32.totalorder %s15, 1
      %s1438 = scalar_select %p1437, %s15, 1
      %s1439 = smul.addr %s1438, 8
      %s1440 = scalar_lea.vmem %s3, %s1439
      // Predicated region
      $region29: #{discriminator_forward.7} parent=27 // pred_check
        %p1441 = pneg %p80
      $region30: #{discriminator_forward.7} parent=27 // pred_check_branch
        %1443 = sbr.rel (%p1441) target = $region32
      $region31: #{discriminator_forward.7} parent=27 // pred_region
        _
      $region32: #{discriminator_forward.7} parent=27 // pred_fallthru
        _
      // Predicated region
      $region33: #{discriminator_forward.7} parent=27 // pred_check
        %p1444 = pneg %p106
      $region34: #{discriminator_forward.7} parent=27 // pred_check_branch
        %1446 = sbr.rel (%p1444) target = $region36
      $region35: #{discriminator_forward.7} parent=27 // pred_region
        _
      $region36: #{discriminator_forward.7} parent=27 // pred_fallthru
        _
    $region28: #{discriminator_forward.7} parent=5 // pred_fallthru
      _
    %p1447 = scmp.le.s32.totalorder 2, %s10
    // Predicated region
    $region37: #{discriminator_forward.7} parent=5 // pred_check
      %p1448 = pneg %p1447
    $region38: #{discriminator_forward.7} parent=5 // pred_check_branch
      %1450 = sbr.rel (%p1448) target = $region40
    $region39: #{discriminator_forward.7} parent=5 // pred_region
      %s1451 = ssub.s32 %s10, 2
      // Predicated region
      $region41: #{discriminator_forward.7} parent=39 // pred_check
        %p1452 = pneg %p86
      $region42: #{discriminator_forward.7} parent=39 // pred_check_branch
        %1454 = sbr.rel (%p1452) target = $region44
      $region43: #{discriminator_forward.7} parent=39 // pred_region
        %p1455 = scmp.lt.s32.totalorder %s16, 1
        %s1456 = scalar_select %p1455, %s16, 1
        %s1457 = smul.addr %s1456, 11
        %s1458 = smul.addr %s1457, 4
        %s1459 = scalar_lea.vmem %s2, %s1458
      $region44: #{discriminator_forward.7} parent=39 // pred_fallthru
        _
      // Predicated region
      $region45: #{discriminator_forward.7} parent=39 // pred_check
        %p1460 = pneg %p112
      $region46: #{discriminator_forward.7} parent=39 // pred_check_branch
        %1462 = sbr.rel (%p1460) target = $region48
      $region47: #{discriminator_forward.7} parent=39 // pred_region
        %p1463 = scmp.lt.s32.totalorder %s16, 1
        %s1464 = scalar_select %p1463, %s16, 1
        %s1465 = smul.addr %s1464, 8
        %s1466 = scalar_lea.vmem %s3, %s1465
      $region48: #{discriminator_forward.7} parent=39 // pred_fallthru
        _
    $region40: #{discriminator_forward.7} parent=5 // pred_fallthru
      _
  $region6: #{discriminator_forward.7} parent=0 // loop_footer
    %s14 = sadd.s32 1, %s10
  $region7: #{discriminator_forward.7} parent=0 // loop_footer_branch
    %9 = sbr.rel target = $region3
  $region8: #{discriminator_forward.7} parent=0 // loop_exit
    _

// kernel: discriminator_forward.9
$region0: #{discriminator_forward.9}
  #allocation0 [shape = 'u32[]', space=smem, size = 0x4, offset = 0x4, fixed_abs, tag = 'smem constant byte address 0x4 - core index']
  #allocation1 [shape = 'u32[144,128]{1,0:T(1,128)}', space=vmem, size = 0x12000, scoped, tag = 'internal scratch']
  %s0 = inlined_call_operand.vmem [shape: bf16[2,1024], index: 0, kind: input, shape index: {}]
  %s1 = inlined_call_operand.vmem [shape: bf16[1024,128], index: 1, kind: input, shape index: {}]
  %s2 = inlined_call_operand.vmem [shape: f32[2,128], index: 2, kind: output, shape index: {}]
  %s3 = sld [smem:[#allocation0]]
  $region18: #{discriminator_forward.9} parent=0
    _
  %s5 = ssub.s32 1, %s3
  %s6 = scalar_select 0, %s5, %s3
  // Predicated region
  $region2: #{discriminator_forward.9} parent=0 // pred_check
    _
  $region3: #{discriminator_forward.9} parent=0 // pred_check_branch
    %8 = sbr.rel (0) target = $region5
  $region4: #{discriminator_forward.9} parent=0 // pred_region
    _
  $region5: #{discriminator_forward.9} parent=0 // pred_fallthru
    _
  // Predicated region
  $region6: #{discriminator_forward.9} parent=0 // pred_check
    _
  $region7: #{discriminator_forward.9} parent=0 // pred_check_branch
    %10 = sbr.rel (0) target = $region9
  $region8: #{discriminator_forward.9} parent=0 // pred_region
    _
  $region9: #{discriminator_forward.9} parent=0 // pred_fallthru
    _
  %v12 = vld [vmem:[%s0] sm:$0xff]
  %v13 = vld [vmem:[%s1] sm:$0xf]
  %v14 = vld [vmem:[%s1 + $0x4] sm:$0xf]
  %v15 = vld [vmem:[%s1 + $0x8] sm:$0xf]
  %v16 = vld [vmem:[%s1 + $0xc] sm:$0xf]
  %v17 = vld [vmem:[%s1 + $0x10] sm:$0xf]
  %v18 = vld [vmem:[%s1 + $0x14] sm:$0xf]
  %v19 = vld [vmem:[%s1 + $0x18] sm:$0xf]
  %v20 = vld [vmem:[%s1 + $0x1c] sm:$0xf]
  %v21 = vld [vmem:[%s1 + $0x20] sm:$0xf]
  %v22 = vld [vmem:[%s1 + $0x24] sm:$0xf]
  %v23 = vld [vmem:[%s1 + $0x28] sm:$0xf]
  %v24 = vld [vmem:[%s1 + $0x2c] sm:$0xf]
  %v25 = vld [vmem:[%s1 + $0x30] sm:$0xf]
  %v26 = vld [vmem:[%s1 + $0x34] sm:$0xf]
  %v27 = vld [vmem:[%s1 + $0x38] sm:$0xf]
  %v28 = vld [vmem:[%s1 + $0x3c] sm:$0xf]
  %v29 = vld [vmem:[%s1 + $0x40] sm:$0xf]
  %v30 = vld [vmem:[%s1 + $0x44] sm:$0xf]
  %v31 = vld [vmem:[%s1 + $0x48] sm:$0xf]
  %v32 = vld [vmem:[%s1 + $0x4c] sm:$0xf]
  %v33 = vld [vmem:[%s1 + $0x50] sm:$0xf]
  %v34 = vld [vmem:[%s1 + $0x54] sm:$0xf]
  %v35 = vld [vmem:[%s1 + $0x58] sm:$0xf]
  %v36 = vld [vmem:[%s1 + $0x5c] sm:$0xf]
  %v37 = vld [vmem:[%s1 + $0x60] sm:$0xf]
  %v38 = vld [vmem:[%s1 + $0x64] sm:$0xf]
  %v39 = vld [vmem:[%s1 + $0x68] sm:$0xf]
  %v40 = vld [vmem:[%s1 + $0x6c] sm:$0xf]
  %v41 = vld [vmem:[%s1 + $0x70] sm:$0xf]
  %v42 = vld [vmem:[%s1 + $0x74] sm:$0xf]
  %v43 = vld [vmem:[%s1 + $0x78] sm:$0xf]
  %v44 = vld [vmem:[%s1 + $0x7c] sm:$0xf]
  %v45 = vld [vmem:[%s1 + $0x80] sm:$0xf]
  %v46 = vld [vmem:[%s1 + $0x84] sm:$0xf]
  %v47 = vld [vmem:[%s1 + $0x88] sm:$0xf]
  %v48 = vld [vmem:[%s1 + $0x8c] sm:$0xf]
  %v49 = vld [vmem:[%s1 + $0x90] sm:$0xf]
  %v50 = vld [vmem:[%s1 + $0x94] sm:$0xf]
  %v51 = vld [vmem:[%s1 + $0x98] sm:$0xf]
  %v52 = vld [vmem:[%s1 + $0x9c] sm:$0xf]
  %v53 = vld [vmem:[%s1 + $0xa0] sm:$0xf]
  %v54 = vld [vmem:[%s1 + $0xa4] sm:$0xf]
  %v55 = vld [vmem:[%s1 + $0xa8] sm:$0xf]
  %v56 = vld [vmem:[%s1 + $0xac] sm:$0xf]
  %v57 = vld [vmem:[%s1 + $0xb0] sm:$0xf]
  %v58 = vld [vmem:[%s1 + $0xb4] sm:$0xf]
  %v59 = vld [vmem:[%s1 + $0xb8] sm:$0xf]
  %v60 = vld [vmem:[%s1 + $0xbc] sm:$0xf]
  %v61 = vld [vmem:[%s1 + $0xc0] sm:$0xf]
  %v62 = vld [vmem:[%s1 + $0xc4] sm:$0xf]
  %v63 = vld [vmem:[%s1 + $0xc8] sm:$0xf]
  %v64 = vld [vmem:[%s1 + $0xcc] sm:$0xf]
  %v65 = vld [vmem:[%s1 + $0xd0] sm:$0xf]
  %v66 = vld [vmem:[%s1 + $0xd4] sm:$0xf]
  %v67 = vld [vmem:[%s1 + $0xd8] sm:$0xf]
  %v68 = vld [vmem:[%s1 + $0xdc] sm:$0xf]
  %v69 = vld [vmem:[%s1 + $0xe0] sm:$0xf]
  %v70 = vld [vmem:[%s1 + $0xe4] sm:$0xf]
  %v71 = vld [vmem:[%s1 + $0xe8] sm:$0xf]
  %v72 = vld [vmem:[%s1 + $0xec] sm:$0xf]
  %v73 = vld [vmem:[%s1 + $0xf0] sm:$0xf]
  %v74 = vld [vmem:[%s1 + $0xf4] sm:$0xf]
  %v75 = vld [vmem:[%s1 + $0xf8] sm:$0xf]
  %v76 = vld [vmem:[%s1 + $0xfc] sm:$0xf]
  %v77 = vld [vmem:[%s1 + $0x100] sm:$0xf]
  %v78 = vld [vmem:[%s1 + $0x104] sm:$0xf]
  %v79 = vld [vmem:[%s1 + $0x108] sm:$0xf]
  %v80 = vld [vmem:[%s1 + $0x10c] sm:$0xf]
  %v81 = vld [vmem:[%s1 + $0x110] sm:$0xf]
  %v82 = vld [vmem:[%s1 + $0x114] sm:$0xf]
  %v83 = vld [vmem:[%s1 + $0x118] sm:$0xf]
  %v84 = vld [vmem:[%s1 + $0x11c] sm:$0xf]
  %v85 = vld [vmem:[%s1 + $0x120] sm:$0xf]
  %v86 = vld [vmem:[%s1 + $0x124] sm:$0xf]
  %v87 = vld [vmem:[%s1 + $0x128] sm:$0xf]
  %v88 = vld [vmem:[%s1 + $0x12c] sm:$0xf]
  %v89 = vld [vmem:[%s1 + $0x130] sm:$0xf]
  %v90 = vld [vmem:[%s1 + $0x134] sm:$0xf]
  %v91 = vld [vmem:[%s1 + $0x138] sm:$0xf]
  %v92 = vld [vmem:[%s1 + $0x13c] sm:$0xf]
  %v93 = vld [vmem:[%s1 + $0x140] sm:$0xf]
  %v94 = vld [vmem:[%s1 + $0x144] sm:$0xf]
  %v95 = vld [vmem:[%s1 + $0x148] sm:$0xf]
  %v96 = vld [vmem:[%s1 + $0x14c] sm:$0xf]
  %v97 = vld [vmem:[%s1 + $0x150] sm:$0xf]
  %v98 = vld [vmem:[%s1 + $0x154] sm:$0xf]
  %v99 = vld [vmem:[%s1 + $0x158] sm:$0xf]
  %v100 = vld [vmem:[%s1 + $0x15c] sm:$0xf]
  %v101 = vld [vmem:[%s1 + $0x160] sm:$0xf]
  %v102 = vld [vmem:[%s1 + $0x164] sm:$0xf]
  %v103 = vld [vmem:[%s1 + $0x168] sm:$0xf]
  %v104 = vld [vmem:[%s1 + $0x16c] sm:$0xf]
  %v105 = vld [vmem:[%s1 + $0x170] sm:$0xf]
  %v106 = vld [vmem:[%s1 + $0x174] sm:$0xf]
  %v107 = vld [vmem:[%s1 + $0x178] sm:$0xf]
  %v108 = vld [vmem:[%s1 + $0x17c] sm:$0xf]
  %v109 = vld [vmem:[%s1 + $0x180] sm:$0xf]
  %v110 = vld [vmem:[%s1 + $0x184] sm:$0xf]
  %v111 = vld [vmem:[%s1 + $0x188] sm:$0xf]
  %v112 = vld [vmem:[%s1 + $0x18c] sm:$0xf]
  %v113 = vld [vmem:[%s1 + $0x190] sm:$0xf]
  %v114 = vld [vmem:[%s1 + $0x194] sm:$0xf]
  %v115 = vld [vmem:[%s1 + $0x198] sm:$0xf]
  %v116 = vld [vmem:[%s1 + $0x19c] sm:$0xf]
  %v117 = vld [vmem:[%s1 + $0x1a0] sm:$0xf]
  %v118 = vld [vmem:[%s1 + $0x1a4] sm:$0xf]
  %v119 = vld [vmem:[%s1 + $0x1a8] sm:$0xf]
  %v120 = vld [vmem:[%s1 + $0x1ac] sm:$0xf]
  %v121 = vld [vmem:[%s1 + $0x1b0] sm:$0xf]
  %v122 = vld [vmem:[%s1 + $0x1b4] sm:$0xf]
  %v123 = vld [vmem:[%s1 + $0x1b8] sm:$0xf]
  %v124 = vld [vmem:[%s1 + $0x1bc] sm:$0xf]
  %v125 = vld [vmem:[%s1 + $0x1c0] sm:$0xf]
  %v126 = vld [vmem:[%s1 + $0x1c4] sm:$0xf]
  %v127 = vld [vmem:[%s1 + $0x1c8] sm:$0xf]
  %v128 = vld [vmem:[%s1 + $0x1cc] sm:$0xf]
  %v129 = vld [vmem:[%s1 + $0x1d0] sm:$0xf]
  %v130 = vld [vmem:[%s1 + $0x1d4] sm:$0xf]
  %v131 = vld [vmem:[%s1 + $0x1d8] sm:$0xf]
  %v132 = vld [vmem:[%s1 + $0x1dc] sm:$0xf]
  %v133 = vld [vmem:[%s1 + $0x1e0] sm:$0xf]
  %v134 = vld [vmem:[%s1 + $0x1e4] sm:$0xf]
  %v135 = vld [vmem:[%s1 + $0x1e8] sm:$0xf]
  %v136 = vld [vmem:[%s1 + $0x1ec] sm:$0xf]
  %v137 = vld [vmem:[%s1 + $0x1f0] sm:$0xf]
  %v138 = vld [vmem:[%s1 + $0x1f4] sm:$0xf]
  %v139 = vld [vmem:[%s1 + $0x1f8] sm:$0xf]
  %v140 = vld [vmem:[%s1 + $0x1fc] sm:$0xf]
  %v142 = vcombine.high %v12, %v12
  %v144 = vunpack.c.l.s4 1966171168
  %v145 = vunpack.c.0.s8 %v144
  %v146 = vlaneseq
  %v147 = vshrl.u32 %v146, 7
  %v148 = vsub.s32 %v145, %v147
  %v149 = vrot.slane %v12, %v148
  %v151 = vunpack.c.l.s4 1966171168
  %v152 = vunpack.c.0.s8 %v151
  %v153 = vlaneseq
  %v154 = vshrl.u32 %v153, 7
  %v155 = vsub.s32 %v152, %v154
  %v156 = vrot.slane %v142, %v155
  %v157 = vcombine.high %v149, %v149
  %v158 = vcombine.high %v156, %v156
  %v160 = vunpack.c.l.s4 1966171168
  %v161 = vunpack.c.0.s8 %v160
  %v162 = vlaneseq
  %v163 = vshrl.u32 %v162, 7
  %v164 = vsub.s32 %v161, %v163
  %v165 = vrot.slane %v149, %v164
  %v167 = vunpack.c.l.s4 1966171168
  %v168 = vunpack.c.0.s8 %v167
  %v169 = vlaneseq
  %v170 = vshrl.u32 %v169, 7
  %v171 = vsub.s32 %v168, %v170
  %v172 = vrot.slane %v156, %v171
  %v174 = vunpack.c.l.s4 1966171168
  %v175 = vunpack.c.0.s8 %v174
  %v176 = vlaneseq
  %v177 = vshrl.u32 %v176, 7
  %v178 = vsub.s32 %v175, %v177
  %v179 = vrot.slane %v157, %v178
  %v181 = vunpack.c.l.s4 1966171168
  %v182 = vunpack.c.0.s8 %v181
  %v183 = vlaneseq
  %v184 = vshrl.u32 %v183, 7
  %v185 = vsub.s32 %v182, %v184
  %v186 = vrot.slane %v158, %v185
  %v187 = vcombine.high %v165, %v165
  %v188 = vcombine.high %v172, %v172
  %v189 = vcombine.high %v179, %v179
  %v190 = vcombine.high %v186, %v186
  %v327 = vunpack.c.l.b16 %v13
  %v328 = vunpack.c.l.b16 %v14
  %v329 = vunpack.c.l.b16 %v15
  %v330 = vunpack.c.l.b16 %v16
  %v331 = vunpack.c.l.b16 %v17
  %v332 = vunpack.c.l.b16 %v18
  %v333 = vunpack.c.l.b16 %v19
  %v334 = vunpack.c.l.b16 %v20
  %v335 = vunpack.c.l.b16 %v21
  %v336 = vunpack.c.l.b16 %v22
  %v337 = vunpack.c.l.b16 %v23
  %v338 = vunpack.c.l.b16 %v24
  %v339 = vunpack.c.l.b16 %v25
  %v340 = vunpack.c.l.b16 %v26
  %v341 = vunpack.c.l.b16 %v27
  %v342 = vunpack.c.l.b16 %v28
  %v343 = vunpack.c.l.b16 %v29
  %v344 = vunpack.c.l.b16 %v30
  %v345 = vunpack.c.l.b16 %v31
  %v346 = vunpack.c.l.b16 %v32
  %v347 = vunpack.c.l.b16 %v33
  %v348 = vunpack.c.l.b16 %v34
  %v349 = vunpack.c.l.b16 %v35
  %v350 = vunpack.c.l.b16 %v36
  %v351 = vunpack.c.l.b16 %v37
  %v352 = vunpack.c.l.b16 %v38
  %v353 = vunpack.c.l.b16 %v39
  %v354 = vunpack.c.l.b16 %v40
  %v355 = vunpack.c.l.b16 %v41
  %v356 = vunpack.c.l.b16 %v42
  %v357 = vunpack.c.l.b16 %v43
  %v358 = vunpack.c.l.b16 %v44
  %v359 = vunpack.c.l.b16 %v45
  %v360 = vunpack.c.l.b16 %v46
  %v361 = vunpack.c.l.b16 %v47
  %v362 = vunpack.c.l.b16 %v48
  %v363 = vunpack.c.l.b16 %v49
  %v364 = vunpack.c.l.b16 %v50
  %v365 = vunpack.c.l.b16 %v51
  %v366 = vunpack.c.l.b16 %v52
  %v367 = vunpack.c.l.b16 %v53
  %v368 = vunpack.c.l.b16 %v54
  %v369 = vunpack.c.l.b16 %v55
  %v370 = vunpack.c.l.b16 %v56
  %v371 = vunpack.c.l.b16 %v57
  %v372 = vunpack.c.l.b16 %v58
  %v373 = vunpack.c.l.b16 %v59
  %v374 = vunpack.c.l.b16 %v60
  %v375 = vunpack.c.l.b16 %v61
  %v376 = vunpack.c.l.b16 %v62
  %v377 = vunpack.c.l.b16 %v63
  %v378 = vunpack.c.l.b16 %v64
  %v379 = vunpack.c.l.b16 %v65
  %v380 = vunpack.c.l.b16 %v66
  %v381 = vunpack.c.l.b16 %v67
  %v382 = vunpack.c.l.b16 %v68
  %v383 = vunpack.c.l.b16 %v69
  %v384 = vunpack.c.l.b16 %v70
  %v385 = vunpack.c.l.b16 %v71
  %v386 = vunpack.c.l.b16 %v72
  %v387 = vunpack.c.l.b16 %v73
  %v388 = vunpack.c.l.b16 %v74
  %v389 = vunpack.c.l.b16 %v75
  %v390 = vunpack.c.l.b16 %v76
  %v391 = vunpack.c.l.b16 %v77
  %v392 = vunpack.c.l.b16 %v78
  %v393 = vunpack.c.l.b16 %v79
  %v394 = vunpack.c.l.b16 %v80
  %v395 = vunpack.c.l.b16 %v81
  %v396 = vunpack.c.l.b16 %v82
  %v397 = vunpack.c.l.b16 %v83
  %v398 = vunpack.c.l.b16 %v84
  %v399 = vunpack.c.l.b16 %v85
  %v400 = vunpack.c.l.b16 %v86
  %v401 = vunpack.c.l.b16 %v87
  %v402 = vunpack.c.l.b16 %v88
  %v403 = vunpack.c.l.b16 %v89
  %v404 = vunpack.c.l.b16 %v90
  %v405 = vunpack.c.l.b16 %v91
  %v406 = vunpack.c.l.b16 %v92
  %v407 = vunpack.c.l.b16 %v93
  %v408 = vunpack.c.l.b16 %v94
  %v409 = vunpack.c.l.b16 %v95
  %v410 = vunpack.c.l.b16 %v96
  %v411 = vunpack.c.l.b16 %v97
  %v412 = vunpack.c.l.b16 %v98
  %v413 = vunpack.c.l.b16 %v99
  %v414 = vunpack.c.l.b16 %v100
  %v415 = vunpack.c.l.b16 %v101
  %v416 = vunpack.c.l.b16 %v102
  %v417 = vunpack.c.l.b16 %v103
  %v418 = vunpack.c.l.b16 %v104
  %v419 = vunpack.c.l.b16 %v105
  %v420 = vunpack.c.l.b16 %v106
  %v421 = vunpack.c.l.b16 %v107
  %v422 = vunpack.c.l.b16 %v108
  %v423 = vunpack.c.l.b16 %v109
  %v424 = vunpack.c.l.b16 %v110
  %v425 = vunpack.c.l.b16 %v111
  %v426 = vunpack.c.l.b16 %v112
  %v427 = vunpack.c.l.b16 %v113
  %v428 = vunpack.c.l.b16 %v114
  %v429 = vunpack.c.l.b16 %v115
  %v430 = vunpack.c.l.b16 %v116
  %v431 = vunpack.c.l.b16 %v117
  %v432 = vunpack.c.l.b16 %v118
  %v433 = vunpack.c.l.b16 %v119
  %v434 = vunpack.c.l.b16 %v120
  %v435 = vunpack.c.l.b16 %v121
  %v436 = vunpack.c.l.b16 %v122
  %v437 = vunpack.c.l.b16 %v123
  %v438 = vunpack.c.l.b16 %v124
  %v439 = vunpack.c.l.b16 %v125
  %v440 = vunpack.c.l.b16 %v126
  %v441 = vunpack.c.l.b16 %v127
  %v442 = vunpack.c.l.b16 %v128
  %v443 = vunpack.c.l.b16 %v129
  %v444 = vunpack.c.l.b16 %v130
  %v445 = vunpack.c.l.b16 %v131
  %v446 = vunpack.c.l.b16 %v132
  %v447 = vunpack.c.l.b16 %v133
  %v448 = vunpack.c.l.b16 %v134
  %v449 = vunpack.c.l.b16 %v135
  %v450 = vunpack.c.l.b16 %v136
  %v451 = vunpack.c.l.b16 %v137
  %v452 = vunpack.c.l.b16 %v138
  %v453 = vunpack.c.l.b16 %v139
  %v454 = vunpack.c.l.b16 %v140
  %v455 = vpack.c.b16 %v328, %v327
  %v456 = vpack.c.b16 %v330, %v329
  %v457 = vpack.c.b16 %v332, %v331
  %v458 = vpack.c.b16 %v334, %v333
  %v459 = vpack.c.b16 %v336, %v335
  %v460 = vpack.c.b16 %v338, %v337
  %v461 = vpack.c.b16 %v340, %v339
  %v462 = vpack.c.b16 %v342, %v341
  %v463 = vpack.c.b16 %v344, %v343
  %v464 = vpack.c.b16 %v346, %v345
  %v465 = vpack.c.b16 %v348, %v347
  %v466 = vpack.c.b16 %v350, %v349
  %v467 = vpack.c.b16 %v352, %v351
  %v468 = vpack.c.b16 %v354, %v353
  %v469 = vpack.c.b16 %v356, %v355
  %v470 = vpack.c.b16 %v358, %v357
  %v471 = vpack.c.b16 %v360, %v359
  %v472 = vpack.c.b16 %v362, %v361
  %v473 = vpack.c.b16 %v364, %v363
  %v474 = vpack.c.b16 %v366, %v365
  %v475 = vpack.c.b16 %v368, %v367
  %v476 = vpack.c.b16 %v370, %v369
  %v477 = vpack.c.b16 %v372, %v371
  %v478 = vpack.c.b16 %v374, %v373
  %v479 = vpack.c.b16 %v376, %v375
  %v480 = vpack.c.b16 %v378, %v377
  %v481 = vpack.c.b16 %v380, %v379
  %v482 = vpack.c.b16 %v382, %v381
  %v483 = vpack.c.b16 %v384, %v383
  %v484 = vpack.c.b16 %v386, %v385
  %v485 = vpack.c.b16 %v388, %v387
  %v486 = vpack.c.b16 %v390, %v389
  %v487 = vpack.c.b16 %v392, %v391
  %v488 = vpack.c.b16 %v394, %v393
  %v489 = vpack.c.b16 %v396, %v395
  %v490 = vpack.c.b16 %v398, %v397
  %v491 = vpack.c.b16 %v400, %v399
  %v492 = vpack.c.b16 %v402, %v401
  %v493 = vpack.c.b16 %v404, %v403
  %v494 = vpack.c.b16 %v406, %v405
  %v495 = vpack.c.b16 %v408, %v407
  %v496 = vpack.c.b16 %v410, %v409
  %v497 = vpack.c.b16 %v412, %v411
  %v498 = vpack.c.b16 %v414, %v413
  %v499 = vpack.c.b16 %v416, %v415
  %v500 = vpack.c.b16 %v418, %v417
  %v501 = vpack.c.b16 %v420, %v419
  %v502 = vpack.c.b16 %v422, %v421
  %v503 = vpack.c.b16 %v424, %v423
  %v504 = vpack.c.b16 %v426, %v425
  %v505 = vpack.c.b16 %v428, %v427
  %v506 = vpack.c.b16 %v430, %v429
  %v507 = vpack.c.b16 %v432, %v431
  %v508 = vpack.c.b16 %v434, %v433
  %v509 = vpack.c.b16 %v436, %v435
  %v510 = vpack.c.b16 %v438, %v437
  %v511 = vpack.c.b16 %v440, %v439
  %v512 = vpack.c.b16 %v442, %v441
  %v513 = vpack.c.b16 %v444, %v443
  %v514 = vpack.c.b16 %v446, %v445
  %v515 = vpack.c.b16 %v448, %v447
  %v516 = vpack.c.b16 %v450, %v449
  %v517 = vpack.c.b16 %v452, %v451
  %v518 = vpack.c.b16 %v454, %v453
  %583 = vmatprep.subr.bf16.mxu0 0
  %584 = vmatpush1.bf16.msra.mxu0 %v455
  %585 = vmatprep.subr.bf16.mxu0 0
  %586 = vmatpush1.bf16.msra.mxu0 %v456
  %587 = vmatprep.subr.bf16.mxu0 0
  %588 = vmatpush1.bf16.msra.mxu0 %v457
  %589 = vmatprep.subr.bf16.mxu0 0
  %590 = vmatpush1.bf16.msra.mxu0 %v458
  %591 = vmatprep.subr.bf16.mxu0 0
  %592 = vmatpush1.bf16.msra.mxu0 %v459
  %593 = vmatprep.subr.bf16.mxu0 0
  %594 = vmatpush1.bf16.msra.mxu0 %v460
  %595 = vmatprep.subr.bf16.mxu0 0
  %596 = vmatpush1.bf16.msra.mxu0 %v461
  %597 = vmatprep.subr.bf16.mxu0 0
  %598 = vmatpush1.bf16.msra.mxu0 %v462
  %599 = vmatprep.subr.bf16.mxu0 0
  %600 = vmatpush1.bf16.msra.mxu0 %v463
  %601 = vmatprep.subr.bf16.mxu0 0
  %602 = vmatpush1.bf16.msra.mxu0 %v464
  %603 = vmatprep.subr.bf16.mxu0 0
  %604 = vmatpush1.bf16.msra.mxu0 %v465
  %605 = vmatprep.subr.bf16.mxu0 0
  %606 = vmatpush1.bf16.msra.mxu0 %v466
  %607 = vmatprep.subr.bf16.mxu0 0
  %608 = vmatpush1.bf16.msra.mxu0 %v467
  %609 = vmatprep.subr.bf16.mxu0 0
  %610 = vmatpush1.bf16.msra.mxu0 %v468
  %611 = vmatprep.subr.bf16.mxu0 0
  %612 = vmatpush1.bf16.msra.mxu0 %v469
  %613 = vmatprep.subr.bf16.mxu0 0
  %614 = vmatpush1.bf16.msra.mxu0 %v470
  %615 = vmatprep.mubr.bf16.mxu0 %v179
  %616 = vmatmul.mubr.bf16.gmra.mrb[0].mxu0 %v165
  %v617 = vpop.f32.mrb[0].mxu0
  %v618 = vadd.f32 0.0, %v617
  %v619 = vpop.f32.mrb[0].mxu0
  %v620 = vpop.f32.mrb[0].mxu0
  %v621 = vpop.f32.mrb[0].mxu0
  %622 = vdwg.mxu0
  %623 = vmatprep.subr.bf16.mxu0 0
  %624 = vmatpush1.bf16.msra.mxu0 %v471
  %625 = vmatprep.subr.bf16.mxu0 0
  %626 = vmatpush1.bf16.msra.mxu0 %v472
  %627 = vmatprep.subr.bf16.mxu0 0
  %628 = vmatpush1.bf16.msra.mxu0 %v473
  %629 = vmatprep.subr.bf16.mxu0 0
  %630 = vmatpush1.bf16.msra.mxu0 %v474
  %631 = vmatprep.subr.bf16.mxu0 0
  %632 = vmatpush1.bf16.msra.mxu0 %v475
  %633 = vmatprep.subr.bf16.mxu0 0
  %634 = vmatpush1.bf16.msra.mxu0 %v476
  %635 = vmatprep.subr.bf16.mxu0 0
  %636 = vmatpush1.bf16.msra.mxu0 %v477
  %637 = vmatprep.subr.bf16.mxu0 0
  %638 = vmatpush1.bf16.msra.mxu0 %v478
  %639 = vmatprep.subr.bf16.mxu0 0
  %640 = vmatpush1.bf16.msra.mxu0 %v479
  %641 = vmatprep.subr.bf16.mxu0 0
  %642 = vmatpush1.bf16.msra.mxu0 %v480
  %643 = vmatprep.subr.bf16.mxu0 0
  %644 = vmatpush1.bf16.msra.mxu0 %v481
  %645 = vmatprep.subr.bf16.mxu0 0
  %646 = vmatpush1.bf16.msra.mxu0 %v482
  %647 = vmatprep.subr.bf16.mxu0 0
  %648 = vmatpush1.bf16.msra.mxu0 %v483
  %649 = vmatprep.subr.bf16.mxu0 0
  %650 = vmatpush1.bf16.msra.mxu0 %v484
  %651 = vmatprep.subr.bf16.mxu0 0
  %652 = vmatpush1.bf16.msra.mxu0 %v485
  %653 = vmatprep.subr.bf16.mxu0 0
  %654 = vmatpush1.bf16.msra.mxu0 %v486
  %655 = vmatprep.mubr.bf16.mxu0 %v189
  %656 = vmatmul.mubr.bf16.gmra.mrb[0].mxu0 %v187
  %v657 = vpop.f32.mrb[0].mxu0
  %v658 = vadd.f32 %v618, %v657
  %v659 = vpop.f32.mrb[0].mxu0
  %v660 = vpop.f32.mrb[0].mxu0
  %v661 = vpop.f32.mrb[0].mxu0
  %662 = vdwg.mxu0
  %663 = vmatprep.subr.bf16.mxu0 0
  %664 = vmatpush1.bf16.msra.mxu0 %v487
  %665 = vmatprep.subr.bf16.mxu0 0
  %666 = vmatpush1.bf16.msra.mxu0 %v488
  %667 = vmatprep.subr.bf16.mxu0 0
  %668 = vmatpush1.bf16.msra.mxu0 %v489
  %669 = vmatprep.subr.bf16.mxu0 0
  %670 = vmatpush1.bf16.msra.mxu0 %v490
  %671 = vmatprep.subr.bf16.mxu0 0
  %672 = vmatpush1.bf16.msra.mxu0 %v491
  %673 = vmatprep.subr.bf16.mxu0 0
  %674 = vmatpush1.bf16.msra.mxu0 %v492
  %675 = vmatprep.subr.bf16.mxu0 0
  %676 = vmatpush1.bf16.msra.mxu0 %v493
  %677 = vmatprep.subr.bf16.mxu0 0
  %678 = vmatpush1.bf16.msra.mxu0 %v494
  %679 = vmatprep.subr.bf16.mxu0 0
  %680 = vmatpush1.bf16.msra.mxu0 %v495
  %681 = vmatprep.subr.bf16.mxu0 0
  %682 = vmatpush1.bf16.msra.mxu0 %v496
  %683 = vmatprep.subr.bf16.mxu0 0
  %684 = vmatpush1.bf16.msra.mxu0 %v497
  %685 = vmatprep.subr.bf16.mxu0 0
  %686 = vmatpush1.bf16.msra.mxu0 %v498
  %687 = vmatprep.subr.bf16.mxu0 0
  %688 = vmatpush1.bf16.msra.mxu0 %v499
  %689 = vmatprep.subr.bf16.mxu0 0
  %690 = vmatpush1.bf16.msra.mxu0 %v500
  %691 = vmatprep.subr.bf16.mxu0 0
  %692 = vmatpush1.bf16.msra.mxu0 %v501
  %693 = vmatprep.subr.bf16.mxu0 0
  %694 = vmatpush1.bf16.msra.mxu0 %v502
  %695 = vmatprep.mubr.bf16.mxu0 %v186
  %696 = vmatmul.mubr.bf16.gmra.mrb[0].mxu0 %v172
  %v697 = vpop.f32.mrb[0].mxu0
  %v698 = vadd.f32 %v658, %v697
  %v699 = vpop.f32.mrb[0].mxu0
  %v700 = vpop.f32.mrb[0].mxu0
  %v701 = vpop.f32.mrb[0].mxu0
  %702 = vdwg.mxu0
  %703 = vmatprep.subr.bf16.mxu0 0
  %704 = vmatpush1.bf16.msra.mxu0 %v503
  %705 = vmatprep.subr.bf16.mxu0 0
  %706 = vmatpush1.bf16.msra.mxu0 %v504
  %707 = vmatprep.subr.bf16.mxu0 0
  %708 = vmatpush1.bf16.msra.mxu0 %v505
  %709 = vmatprep.subr.bf16.mxu0 0
  %710 = vmatpush1.bf16.msra.mxu0 %v506
  %711 = vmatprep.subr.bf16.mxu0 0
  %712 = vmatpush1.bf16.msra.mxu0 %v507
  %713 = vmatprep.subr.bf16.mxu0 0
  %714 = vmatpush1.bf16.msra.mxu0 %v508
  %715 = vmatprep.subr.bf16.mxu0 0
  %716 = vmatpush1.bf16.msra.mxu0 %v509
  %717 = vmatprep.subr.bf16.mxu0 0
  %718 = vmatpush1.bf16.msra.mxu0 %v510
  %719 = vmatprep.subr.bf16.mxu0 0
  %720 = vmatpush1.bf16.msra.mxu0 %v511
  %721 = vmatprep.subr.bf16.mxu0 0
  %722 = vmatpush1.bf16.msra.mxu0 %v512
  %723 = vmatprep.subr.bf16.mxu0 0
  %724 = vmatpush1.bf16.msra.mxu0 %v513
  %725 = vmatprep.subr.bf16.mxu0 0
  %726 = vmatpush1.bf16.msra.mxu0 %v514
  %727 = vmatprep.subr.bf16.mxu0 0
  %728 = vmatpush1.bf16.msra.mxu0 %v515
  %729 = vmatprep.subr.bf16.mxu0 0
  %730 = vmatpush1.bf16.msra.mxu0 %v516
  %731 = vmatprep.subr.bf16.mxu0 0
  %732 = vmatpush1.bf16.msra.mxu0 %v517
  %733 = vmatprep.subr.bf16.mxu0 0
  %734 = vmatpush1.bf16.msra.mxu0 %v518
  %735 = vmatprep.mubr.bf16.mxu0 %v190
  %736 = vmatmul.mubr.bf16.gmra.mrb[0].mxu0 %v188
  %v737 = vpop.f32.mrb[0].mxu0
  %v738 = vadd.f32 %v698, %v737
  %v739 = vpop.f32.mrb[0].mxu0
  %v740 = vpop.f32.mrb[0].mxu0
  %v741 = vpop.f32.mrb[0].mxu0
  %742 = vdwg.mxu0
  %v743 = vand.u32 2147483647, %v738
  %v744 = vsub.f32 0.0, %v743
  %v745 = vmul.f32 %v744, 1.442695
  %v746 = vpow.pop %v745
  %vm747 = vcmp.ge.f32.partialorder %v738, 0.0
  %v748 = vsel %vm747, 1.0, %v746
  %v749 = vadd.f32 %v746, 1.0
  %v750 = vrcp.pop %v749
  %v751 = vmul.f32 %v748, %v750
  %752 = vst [vmem:[%s2] sm:$0x3] %v751
  // Predicated region
  $region10: #{discriminator_forward.9} parent=0 // pred_check
    _
  $region11: #{discriminator_forward.9} parent=0 // pred_check_branch
    %754 = sbr.rel (0) target = $region13
  $region12: #{discriminator_forward.9} parent=0 // pred_region
    _
  $region13: #{discriminator_forward.9} parent=0 // pred_fallthru
    _
  // Predicated region
  $region14: #{discriminator_forward.9} parent=0 // pred_check
    _
  $region15: #{discriminator_forward.9} parent=0 // pred_check_branch
    %756 = sbr.rel (0) target = $region17
  $region16: #{discriminator_forward.9} parent=0 // pred_region
    _
  $region17: #{discriminator_forward.9} parent=0 // pred_fallthru
    _

// kernel: discriminator_forward.8
$region0: #{discriminator_forward.8}
  #allocation0 [shape = 'u32[]', space=smem, size = 0x4, offset = 0x4, fixed_abs, tag = 'smem constant byte address 0x4 - core index']
  #allocation1 [shape = 'u32[144,128]{1,0:T(1,128)}', space=vmem, size = 0x12000, scoped, tag = 'internal scratch']
  %s0 = inlined_call_operand.vmem [shape: bf16[2,40,128], index: 0, kind: input, shape index: {}]
  %s1 = inlined_call_operand.vmem [shape: bf16[4,128,128], index: 1, kind: input, shape index: {}]
  %s2 = inlined_call_operand.vmem [shape: bf16[2,32,128], index: 2, kind: output, shape index: {0}]
  %s3 = inlined_call_operand.vmem [shape: f32[2,8,128], index: 3, kind: output, shape index: {1}]
  %4 = xla_tuple %s2, %s3
  %s5 = sld [smem:[#allocation0]]
  $region49: #{discriminator_forward.8} parent=0
    _
  %s7 = ssub.s32 1, %s5
  %s8 = scalar_select 0, %s7, %s5
  loop: start=0, step=1, limit=4
  $region2: #{discriminator_forward.8} parent=0 // loop_pre_header
    _
  $region3: #{discriminator_forward.8} parent=0 // loop_header
    %s10 = sphi 0, %s14
    %p11 = scmp.ge.s32.totalorder %s10, 4
    %s20 = sphi 0, %s22
    %s23 = sphi 0, %s20
    %s24 = sphi 0, %s23
    %s40 = sphi 0, %s24
    %s44 = sphi 0, %s44
    %s46 = sphi 0, %s44
    %s47 = sphi 0, %s46
    %s61 = sphi 0, %s47
    %s67 = sphi 0, %s69
    %s70 = sphi 0, %s67
    %s71 = sphi 0, %s70
    %s87 = sphi 0, %s71
    %s93 = sphi 0, %s95
    %s96 = sphi 0, %s93
    %s97 = sphi 0, %s96
    %s113 = sphi 0, %s97
  $region4: #{discriminator_forward.8} parent=0 // loop_header_branch
    %13 = sbr.rel (%p11) target = $region8
  $region5: #{discriminator_forward.8} parent=0 // loop_body
    %s15 = ssub.s32 %s10, 1
    %s16 = ssub.s32 %s10, 2
    %s17 = sadd.s32 %s10, 1
    %s18 = ssub.s32 %s10, %s17
    %p19 = scmp.eq.s32.totalorder %s18, 0
    %s21 = sadd.s32 %s20, 1
    %s22 = scalar_select %p19, %s20, %s21
    %p25 = pneg %p19
    %p26 = scmp.eq.s32.totalorder %s10, 1
    %p27 = por %p25, %p26
    %p28 = scmp.ne.s32.totalorder %s20, %s23
    %p29 = scmp.eq.s32.totalorder %s10, 0
    %p30 = por %p28, %p29
    %p31 = scmp.ne.s32.totalorder %s20, %s23
    %p32 = scmp.eq.s32.totalorder %s15, 1
    %p33 = por %p31, %p32
    %p34 = scmp.ne.s32.totalorder %s23, %s24
    %p35 = scmp.eq.s32.totalorder %s15, 0
    %p36 = por %p34, %p35
    %p37 = scmp.ne.s32.totalorder %s23, %s24
    %p38 = scmp.eq.s32.totalorder %s16, 1
    %p39 = por %p37, %p38
    %p41 = scmp.ne.s32.totalorder %s24, %s40
    %p42 = scmp.eq.s32.totalorder %s16, 0
    %p43 = por %p41, %p42
    %s45 = sadd.s32 %s44, 1
    %p48 = scmp.eq.s32.totalorder %s10, 1
    %p49 = scmp.ne.s32.totalorder %s44, %s46
    %p50 = scmp.eq.s32.totalorder %s10, 0
    %p51 = por %p49, %p50
    %p52 = scmp.ne.s32.totalorder %s44, %s46
    %p53 = scmp.eq.s32.totalorder %s15, 1
    %p54 = por %p52, %p53
    %p55 = scmp.ne.s32.totalorder %s46, %s47
    %p56 = scmp.eq.s32.totalorder %s15, 0
    %p57 = por %p55, %p56
    %p58 = scmp.ne.s32.totalorder %s46, %s47
    %p59 = scmp.eq.s32.totalorder %s16, 1
    %p60 = por %p58, %p59
    %p62 = scmp.ne.s32.totalorder %s47, %s61
    %p63 = scmp.eq.s32.totalorder %s16, 0
    %p64 = por %p62, %p63
    %s65 = ssub.s32 %s10, %s17
    %p66 = scmp.eq.s32.totalorder %s65, 0
    %s68 = sadd.s32 %s67, 1
    %s69 = scalar_select %p66, %s67, %s68
    %p72 = pneg %p66
    %p73 = scmp.eq.s32.totalorder %s10, 1
    %p74 = por %p72, %p73
    %p75 = scmp.ne.s32.totalorder %s67, %s70
    %p76 = scmp.eq.s32.totalorder %s10, 0
    %p77 = por %p75, %p76
    %p78 = scmp.ne.s32.totalorder %s67, %s70
    %p79 = scmp.eq.s32.totalorder %s15, 1
    %p80 = por %p78, %p79
    %p81 = scmp.ne.s32.totalorder %s70, %s71
    %p82 = scmp.eq.s32.totalorder %s15, 0
    %p83 = por %p81, %p82
    %p84 = scmp.ne.s32.totalorder %s70, %s71
    %p85 = scmp.eq.s32.totalorder %s16, 1
    %p86 = por %p84, %p85
    %p88 = scmp.ne.s32.totalorder %s71, %s87
    %p89 = scmp.eq.s32.totalorder %s16, 0
    %p90 = por %p88, %p89
    %s91 = ssub.s32 %s10, %s17
    %p92 = scmp.eq.s32.totalorder %s91, 0
    %s94 = sadd.s32 %s93, 1
    %s95 = scalar_select %p92, %s93, %s94
    %p98 = pneg %p92
    %p99 = scmp.eq.s32.totalorder %s10, 1
    %p100 = por %p98, %p99
    %p101 = scmp.ne.s32.totalorder %s93, %s96
    %p102 = scmp.eq.s32.totalorder %s10, 0
    %p103 = por %p101, %p102
    %p104 = scmp.ne.s32.totalorder %s93, %s96
    %p105 = scmp.eq.s32.totalorder %s15, 1
    %p106 = por %p104, %p105
    %p107 = scmp.ne.s32.totalorder %s96, %s97
    %p108 = scmp.eq.s32.totalorder %s15, 0
    %p109 = por %p107, %p108
    %p110 = scmp.ne.s32.totalorder %s96, %s97
    %p111 = scmp.eq.s32.totalorder %s16, 1
    %p112 = por %p110, %p111
    %p114 = scmp.ne.s32.totalorder %s97, %s113
    %p115 = scmp.eq.s32.totalorder %s16, 0
    %p116 = por %p114, %p115
    %p117 = scmp.le.s32.totalorder 1, %s10
    %p118 = scmp.lt.s32.totalorder %s10, 3
    %p119 = pnand %p117, %p118
    %p120 = pneg %p119
    // Predicated region
    $region9: #{discriminator_forward.8} parent=5 // pred_check
      _
    $region10: #{discriminator_forward.8} parent=5 // pred_check_branch
      %122 = sbr.rel (%p119) target = $region12
    $region11: #{discriminator_forward.8} parent=5 // pred_region
      %s123 = ssub.s32 %s10, 1
      // Predicated region
      $region13: #{discriminator_forward.8} parent=11 // pred_check
        %p124 = pneg %p57
      $region14: #{discriminator_forward.8} parent=11 // pred_check_branch
        %126 = sbr.rel (%p124) target = $region16
      $region15: #{discriminator_forward.8} parent=11 // pred_region
        _
      $region16: #{discriminator_forward.8} parent=11 // pred_fallthru
        _
    $region12: #{discriminator_forward.8} parent=5 // pred_fallthru
      _
    %p127 = scmp.lt.s32.totalorder %s10, 2
    // Predicated region
    $region17: #{discriminator_forward.8} parent=5 // pred_check
      %p128 = pneg %p127
    $region18: #{discriminator_forward.8} parent=5 // pred_check_branch
      %130 = sbr.rel (%p128) target = $region20
    $region19: #{discriminator_forward.8} parent=5 // pred_region
      // Predicated region
      $region21: #{discriminator_forward.8} parent=19 // pred_check
        %p131 = pneg %p30
      $region22: #{discriminator_forward.8} parent=19 // pred_check_branch
        %133 = sbr.rel (%p131) target = $region24
      $region23: #{discriminator_forward.8} parent=19 // pred_region
        %p134 = scmp.lt.s32.totalorder %s10, 1
        %s135 = scalar_select %p134, %s10, 1
        %s136 = smul.addr %s135, 5
        %s137 = smul.addr %s136, 4
        %s138 = scalar_lea.vmem %s0, %s137
      $region24: #{discriminator_forward.8} parent=19 // pred_fallthru
        _
    $region20: #{discriminator_forward.8} parent=5 // pred_fallthru
      _
    %p139 = scmp.le.s32.totalorder 1, %s10
    %p140 = scmp.lt.s32.totalorder %s10, 3
    %p141 = pnand %p139, %p140
    %p142 = pneg %p141
    // Predicated region
    $region25: #{discriminator_forward.8} parent=5 // pred_check
      _
    $region26: #{discriminator_forward.8} parent=5 // pred_check_branch
      %144 = sbr.rel (%p141) target = $region28
    $region27: #{discriminator_forward.8} parent=5 // pred_region
      %s145 = ssub.s32 %s10, 1
      %p146 = scmp.lt.s32.totalorder %s15, 1
      %s147 = scalar_select %p146, %s15, 1
      %s148 = smul.addr %s147, 5
      %s149 = smul.addr %s148, 4
      %s150 = scalar_lea.vmem %s0, %s149
      %p151 = pneg %p36
      %p152 = pneg %p33
      %p153 = pneg %p57
      %p154 = pneg %p54
      %p155 = pneg %p83
      %p156 = pneg %p80
      %p157 = scmp.lt.s32.totalorder %s15, 1
      %s158 = scalar_select %p157, %s15, 1
      %s159 = smul.addr %s158, 4
      %s160 = smul.addr %s159, 4
      %s161 = scalar_lea.vmem %s2, %s160
      %p162 = pneg %p109
      %p163 = pneg %p106
      %p164 = scmp.lt.s32.totalorder %s15, 1
      %s165 = scalar_select %p164, %s15, 1
      %s166 = smul.addr %s165, 8
      %s167 = scalar_lea.vmem %s3, %s166
      %p168 = scmp.lt.s32.totalorder %s15, 1
      %s169 = scalar_select %p168, %s15, 1
      %s170 = smul.addr %s169, 5
      %s171 = smul.addr %s170, 4
      %s172 = scalar_lea.vmem %s0, %s171
      %p173 = scmp.lt.s32.totalorder %s15, 1
      %s174 = scalar_select %p173, %s15, 1
      %s175 = smul.addr %s174, 4
      %s176 = smul.addr %s175, 4
      %s177 = scalar_lea.vmem %s2, %s176
      %p178 = scmp.lt.s32.totalorder %s15, 1
      %s179 = scalar_select %p178, %s15, 1
      %s180 = smul.addr %s179, 8
      %s181 = scalar_lea.vmem %s3, %s180
      %v183 = vld [vmem:[%s172] sm:$0xf]
      %v184 = vld [vmem:[%s172 + $0x4] sm:$0xf]
      %v185 = vld [vmem:[%s172 + $0x8] sm:$0xf]
      %v186 = vld [vmem:[%s172 + $0xc] sm:$0xf]
      %v187 = vld [vmem:[%s1] sm:$0xf]
      %v188 = vld [vmem:[%s1 + $0x4] sm:$0xf]
      %v189 = vld [vmem:[%s1 + $0x8] sm:$0xf]
      %v190 = vld [vmem:[%s1 + $0xc] sm:$0xf]
      %v191 = vld [vmem:[%s1 + $0x10] sm:$0xf]
      %v192 = vld [vmem:[%s1 + $0x14] sm:$0xf]
      %v193 = vld [vmem:[%s1 + $0x18] sm:$0xf]
      %v194 = vld [vmem:[%s1 + $0x1c] sm:$0xf]
      %v195 = vld [vmem:[%s1 + $0x20] sm:$0xf]
      %v196 = vld [vmem:[%s1 + $0x24] sm:$0xf]
      %v197 = vld [vmem:[%s1 + $0x28] sm:$0xf]
      %v198 = vld [vmem:[%s1 + $0x2c] sm:$0xf]
      %v199 = vld [vmem:[%s1 + $0x30] sm:$0xf]
      %v200 = vld [vmem:[%s1 + $0x34] sm:$0xf]
      %v201 = vld [vmem:[%s1 + $0x38] sm:$0xf]
      %v202 = vld [vmem:[%s1 + $0x3c] sm:$0xf]
      %v203 = vld [vmem:[%s172] sm:$0xf]
      %v204 = vld [vmem:[%s172 + $0x4] sm:$0xf]
      %v205 = vld [vmem:[%s172 + $0x8] sm:$0xf]
      %v206 = vld [vmem:[%s172 + $0xc] sm:$0xf]
      %v207 = vld [vmem:[%s172 + $0x10] sm:$0x1]
      %s208 = scalar_lea.vmem %s1, 64
      %v209 = vld [vmem:[%s208] sm:$0xf]
      %v210 = vld [vmem:[%s208 + $0x4] sm:$0xf]
      %v211 = vld [vmem:[%s208 + $0x8] sm:$0xf]
      %v212 = vld [vmem:[%s208 + $0xc] sm:$0xf]
      %v213 = vld [vmem:[%s208 + $0x10] sm:$0xf]
      %v214 = vld [vmem:[%s208 + $0x14] sm:$0xf]
      %v215 = vld [vmem:[%s208 + $0x18] sm:$0xf]
      %v216 = vld [vmem:[%s208 + $0x1c] sm:$0xf]
      %v217 = vld [vmem:[%s208 + $0x20] sm:$0xf]
      %v218 = vld [vmem:[%s208 + $0x24] sm:$0xf]
      %v219 = vld [vmem:[%s208 + $0x28] sm:$0xf]
      %v220 = vld [vmem:[%s208 + $0x2c] sm:$0xf]
      %v221 = vld [vmem:[%s208 + $0x30] sm:$0xf]
      %v222 = vld [vmem:[%s208 + $0x34] sm:$0xf]
      %v223 = vld [vmem:[%s208 + $0x38] sm:$0xf]
      %v224 = vld [vmem:[%s208 + $0x3c] sm:$0xf]
      %v230 = vunpack.c.l.b16 %v203
      %v231 = vunpack.c.l.b16 %v204
      %v232 = vunpack.c.l.b16 %v205
      %v233 = vunpack.c.l.b16 %v206
      %v234 = vunpack.c.l.b16 %v207
      %v235 = vpack.c.b16 %v231, %v230
      %v236 = vpack.c.b16 %v233, %v232
      %v237 = vpack.c.b16 %v234, %v234
      %vm238 = vsmask.f32 7424
      %v240 = vshrl.u32 %v235, 16
      %v242 = vshll.u32 %v235, 16
      %v244 = vrot.slane %v242, 1
      %v245 = vor.u32 %v240, %v244
      %v247 = vshll.u32 %v236, 16
      %v249 = vrot.slane %v247, 1
      %v250 = vsel %vm238, %v245, %v249
      %v251 = vshrl.u32 %v236, 16
      %v253 = vor.u32 %v251, %v249
      %v255 = vshll.u32 %v237, 16
      %v257 = vrot.slane %v255, 1
      %v258 = vsel %vm238, %v253, %v257
      %v277 = vunpack.c.l.b16 %v209
      %v278 = vunpack.c.l.b16 %v210
      %v279 = vunpack.c.l.b16 %v211
      %v280 = vunpack.c.l.b16 %v212
      %v281 = vunpack.c.l.b16 %v213
      %v282 = vunpack.c.l.b16 %v214
      %v283 = vunpack.c.l.b16 %v215
      %v284 = vunpack.c.l.b16 %v216
      %v285 = vunpack.c.l.b16 %v217
      %v286 = vunpack.c.l.b16 %v218
      %v287 = vunpack.c.l.b16 %v219
      %v288 = vunpack.c.l.b16 %v220
      %v289 = vunpack.c.l.b16 %v221
      %v290 = vunpack.c.l.b16 %v222
      %v291 = vunpack.c.l.b16 %v223
      %v292 = vunpack.c.l.b16 %v224
      %v293 = vpack.c.b16 %v278, %v277
      %v294 = vpack.c.b16 %v280, %v279
      %v295 = vpack.c.b16 %v282, %v281
      %v296 = vpack.c.b16 %v284, %v283
      %v297 = vpack.c.b16 %v286, %v285
      %v298 = vpack.c.b16 %v288, %v287
      %v299 = vpack.c.b16 %v290, %v289
      %v300 = vpack.c.b16 %v292, %v291
      %309 = vmatprep.subr.bf16.mxu0 0
      %310 = vmatpush1.bf16.msra.mxu0 %v293
      %311 = vmatprep.subr.bf16.mxu0 0
      %312 = vmatpush1.bf16.msra.mxu0 %v294
      %313 = vmatprep.subr.bf16.mxu0 0
      %314 = vmatpush1.bf16.msra.mxu0 %v295
      %315 = vmatprep.subr.bf16.mxu0 0
      %316 = vmatpush1.bf16.msra.mxu0 %v296
      %317 = vmatprep.subr.bf16.mxu0 0
      %318 = vmatpush1.bf16.msra.mxu0 %v297
      %319 = vmatprep.subr.bf16.mxu0 0
      %320 = vmatpush1.bf16.msra.mxu0 %v298
      %321 = vmatprep.subr.bf16.mxu0 0
      %322 = vmatpush1.bf16.msra.mxu0 %v299
      %323 = vmatprep.subr.bf16.mxu0 0
      %324 = vmatpush1.bf16.msra.mxu0 %v300
      %325 = vmatprep.subr.bf16.mxu0 0
      %326 = vmatpush1.bf16.msra.mxu0 0
      %327 = vmatprep.subr.bf16.mxu0 0
      %328 = vmatpush1.bf16.msra.mxu0 0
      %329 = vmatprep.subr.bf16.mxu0 0
      %330 = vmatpush1.bf16.msra.mxu0 0
      %331 = vmatprep.subr.bf16.mxu0 0
      %332 = vmatpush1.bf16.msra.mxu0 0
      %333 = vmatprep.subr.bf16.mxu0 0
      %334 = vmatpush1.bf16.msra.mxu0 0
      %335 = vmatprep.subr.bf16.mxu0 0
      %336 = vmatpush1.bf16.msra.mxu0 0
      %337 = vmatprep.subr.bf16.mxu0 0
      %338 = vmatpush1.bf16.msra.mxu0 0
      %339 = vmatprep.subr.bf16.mxu0 0
      %340 = vmatpush1.bf16.msra.mxu0 0
      %341 = vmatprep.mubr.bf16.mxu0 0
      %342 = vmatmul.mubr.bf16.gmra.mrb[0].mxu0 %v250
      %v343 = vpop.f32.mrb[0].mxu0
      %v344 = vadd.f32 0.0, %v343
      %v345 = vpop.f32.mrb[0].mxu0
      %v346 = vpop.f32.mrb[0].mxu0
      %v347 = vadd.f32 0.0, %v346
      %v348 = vpop.f32.mrb[0].mxu0
      %349 = vmatprep.mubr.bf16.mxu0 0
      %350 = vmatmul.mubr.bf16.gmra.mrb[0].mxu0 %v258
      %v351 = vpop.f32.mrb[0].mxu0
      %v352 = vadd.f32 0.0, %v351
      %v353 = vpop.f32.mrb[0].mxu0
      %v354 = vpop.f32.mrb[0].mxu0
      %v355 = vadd.f32 0.0, %v354
      %v356 = vpop.f32.mrb[0].mxu0
      %357 = vdwg.mxu0
      %v362 = vunpack.c.l.b16 %v183
      %v363 = vunpack.c.l.b16 %v184
      %v364 = vunpack.c.l.b16 %v185
      %v365 = vunpack.c.l.b16 %v186
      %v366 = vpack.c.b16 %v363, %v362
      %v367 = vpack.c.b16 %v365, %v364
      %v386 = vunpack.c.l.b16 %v187
      %v387 = vunpack.c.l.b16 %v188
      %v388 = vunpack.c.l.b16 %v189
      %v389 = vunpack.c.l.b16 %v190
      %v390 = vunpack.c.l.b16 %v191
      %v391 = vunpack.c.l.b16 %v192
      %v392 = vunpack.c.l.b16 %v193
      %v393 = vunpack.c.l.b16 %v194
      %v394 = vunpack.c.l.b16 %v195
      %v395 = vunpack.c.l.b16 %v196
      %v396 = vunpack.c.l.b16 %v197
      %v397 = vunpack.c.l.b16 %v198
      %v398 = vunpack.c.l.b16 %v199
      %v399 = vunpack.c.l.b16 %v200
      %v400 = vunpack.c.l.b16 %v201
      %v401 = vunpack.c.l.b16 %v202
      %v402 = vpack.c.b16 %v387, %v386
      %v403 = vpack.c.b16 %v389, %v388
      %v404 = vpack.c.b16 %v391, %v390
      %v405 = vpack.c.b16 %v393, %v392
      %v406 = vpack.c.b16 %v395, %v394
      %v407 = vpack.c.b16 %v397, %v396
      %v408 = vpack.c.b16 %v399, %v398
      %v409 = vpack.c.b16 %v401, %v400
      %418 = vmatprep.subr.bf16.mxu0 0
      %419 = vmatpush1.bf16.msra.mxu0 %v402
      %420 = vmatprep.subr.bf16.mxu0 0
      %421 = vmatpush1.bf16.msra.mxu0 %v403
      %422 = vmatprep.subr.bf16.mxu0 0
      %423 = vmatpush1.bf16.msra.mxu0 %v404
      %424 = vmatprep.subr.bf16.mxu0 0
      %425 = vmatpush1.bf16.msra.mxu0 %v405
      %426 = vmatprep.subr.bf16.mxu0 0
      %427 = vmatpush1.bf16.msra.mxu0 %v406
      %428 = vmatprep.subr.bf16.mxu0 0
      %429 = vmatpush1.bf16.msra.mxu0 %v407
      %430 = vmatprep.subr.bf16.mxu0 0
      %431 = vmatpush1.bf16.msra.mxu0 %v408
      %432 = vmatprep.subr.bf16.mxu0 0
      %433 = vmatpush1.bf16.msra.mxu0 %v409
      %434 = vmatprep.subr.bf16.mxu0 0
      %435 = vmatpush1.bf16.msra.mxu0 0
      %436 = vmatprep.subr.bf16.mxu0 0
      %437 = vmatpush1.bf16.msra.mxu0 0
      %438 = vmatprep.subr.bf16.mxu0 0
      %439 = vmatpush1.bf16.msra.mxu0 0
      %440 = vmatprep.subr.bf16.mxu0 0
      %441 = vmatpush1.bf16.msra.mxu0 0
      %442 = vmatprep.subr.bf16.mxu0 0
      %443 = vmatpush1.bf16.msra.mxu0 0
      %444 = vmatprep.subr.bf16.mxu0 0
      %445 = vmatpush1.bf16.msra.mxu0 0
      %446 = vmatprep.subr.bf16.mxu0 0
      %447 = vmatpush1.bf16.msra.mxu0 0
      %448 = vmatprep.subr.bf16.mxu0 0
      %449 = vmatpush1.bf16.msra.mxu0 0
      %450 = vmatprep.mubr.bf16.mxu0 0
      %451 = vmatmul.mubr.bf16.gmra.mrb[0].mxu0 %v366
      %v452 = vpop.f32.mrb[0].mxu0
      %v453 = vadd.f32 %v344, %v452
      %v454 = vpop.f32.mrb[0].mxu0
      %v455 = vpop.f32.mrb[0].mxu0
      %v456 = vadd.f32 %v347, %v455
      %v457 = vpop.f32.mrb[0].mxu0
      %458 = vmatprep.mubr.bf16.mxu0 0
      %459 = vmatmul.mubr.bf16.gmra.mrb[0].mxu0 %v367
      %v460 = vpop.f32.mrb[0].mxu0
      %v461 = vadd.f32 %v352, %v460
      %v462 = vpop.f32.mrb[0].mxu0
      %v463 = vpop.f32.mrb[0].mxu0
      %v464 = vadd.f32 %v355, %v463
      %v465 = vpop.f32.mrb[0].mxu0
      %466 = vdwg.mxu0
      %v467 = vld [vmem:[%s172] sm:$0xc]
      %v468 = vld [vmem:[%s172 + $0x10] sm:$0x7]
      %s469 = scalar_lea.vmem %s1, 128
      %v470 = vld [vmem:[%s469] sm:$0xf]
      %v471 = vld [vmem:[%s469 + $0x4] sm:$0xf]
      %v472 = vld [vmem:[%s469 + $0x8] sm:$0xf]
      %v473 = vld [vmem:[%s469 + $0xc] sm:$0xf]
      %v474 = vld [vmem:[%s469 + $0x10] sm:$0xf]
      %v475 = vld [vmem:[%s469 + $0x14] sm:$0xf]
      %v476 = vld [vmem:[%s469 + $0x18] sm:$0xf]
      %v477 = vld [vmem:[%s469 + $0x1c] sm:$0xf]
      %v478 = vld [vmem:[%s469 + $0x20] sm:$0xf]
      %v479 = vld [vmem:[%s469 + $0x24] sm:$0xf]
      %v480 = vld [vmem:[%s469 + $0x28] sm:$0xf]
      %v481 = vld [vmem:[%s469 + $0x2c] sm:$0xf]
      %v482 = vld [vmem:[%s469 + $0x30] sm:$0xf]
      %v483 = vld [vmem:[%s469 + $0x34] sm:$0xf]
      %v484 = vld [vmem:[%s469 + $0x38] sm:$0xf]
      %v485 = vld [vmem:[%s469 + $0x3c] sm:$0xf]
      %v488 = vunpack.c.l.b16 %v467
      %v489 = vunpack.c.l.b16 %v468
      %v490 = vpack.c.b16 %v231, %v488
      %v491 = vpack.c.b16 %v489, %v489
      %vm492 = vsmask.f32 5376
      %v494 = vshrl.u32 %v490, 16
      %v496 = vrot.slane %v494, 2
      %v497 = vshll.u32 %v490, 16
      %v499 = vrot.slane %v497, 3
      %v500 = vor.u32 %v496, %v499
      %v501 = vrot.slane %v251, 2
      %v502 = vrot.slane %v247, 3
      %v503 = vor.u32 %v501, %v502
      %v504 = vsel %vm492, %v500, %v503
      %v506 = vshrl.u32 %v491, 16
      %v508 = vrot.slane %v506, 2
      %v509 = vshll.u32 %v491, 16
      %v511 = vrot.slane %v509, 3
      %v512 = vor.u32 %v508, %v511
      %v513 = vsel %vm492, %v503, %v512
      %v532 = vunpack.c.l.b16 %v470
      %v533 = vunpack.c.l.b16 %v471
      %v534 = vunpack.c.l.b16 %v472
      %v535 = vunpack.c.l.b16 %v473
      %v536 = vunpack.c.l.b16 %v474
      %v537 = vunpack.c.l.b16 %v475
      %v538 = vunpack.c.l.b16 %v476
      %v539 = vunpack.c.l.b16 %v477
      %v540 = vunpack.c.l.b16 %v478
      %v541 = vunpack.c.l.b16 %v479
      %v542 = vunpack.c.l.b16 %v480
      %v543 = vunpack.c.l.b16 %v481
      %v544 = vunpack.c.l.b16 %v482
      %v545 = vunpack.c.l.b16 %v483
      %v546 = vunpack.c.l.b16 %v484
      %v547 = vunpack.c.l.b16 %v485
      %v548 = vpack.c.b16 %v533, %v532
      %v549 = vpack.c.b16 %v535, %v534
      %v550 = vpack.c.b16 %v537, %v536
      %v551 = vpack.c.b16 %v539, %v538
      %v552 = vpack.c.b16 %v541, %v540
      %v553 = vpack.c.b16 %v543, %v542
      %v554 = vpack.c.b16 %v545, %v544
      %v555 = vpack.c.b16 %v547, %v546
      %564 = vmatprep.subr.bf16.mxu0 0
      %565 = vmatpush1.bf16.msra.mxu0 %v548
      %566 = vmatprep.subr.bf16.mxu0 0
      %567 = vmatpush1.bf16.msra.mxu0 %v549
      %568 = vmatprep.subr.bf16.mxu0 0
      %569 = vmatpush1.bf16.msra.mxu0 %v550
      %570 = vmatprep.subr.bf16.mxu0 0
      %571 = vmatpush1.bf16.msra.mxu0 %v551
      %572 = vmatprep.subr.bf16.mxu0 0
      %573 = vmatpush1.bf16.msra.mxu0 %v552
      %574 = vmatprep.subr.bf16.mxu0 0
      %575 = vmatpush1.bf16.msra.mxu0 %v553
      %576 = vmatprep.subr.bf16.mxu0 0
      %577 = vmatpush1.bf16.msra.mxu0 %v554
      %578 = vmatprep.subr.bf16.mxu0 0
      %579 = vmatpush1.bf16.msra.mxu0 %v555
      %580 = vmatprep.subr.bf16.mxu0 0
      %581 = vmatpush1.bf16.msra.mxu0 0
      %582 = vmatprep.subr.bf16.mxu0 0
      %583 = vmatpush1.bf16.msra.mxu0 0
      %584 = vmatprep.subr.bf16.mxu0 0
      %585 = vmatpush1.bf16.msra.mxu0 0
      %586 = vmatprep.subr.bf16.mxu0 0
      %587 = vmatpush1.bf16.msra.mxu0 0
      %588 = vmatprep.subr.bf16.mxu0 0
      %589 = vmatpush1.bf16.msra.mxu0 0
      %590 = vmatprep.subr.bf16.mxu0 0
      %591 = vmatpush1.bf16.msra.mxu0 0
      %592 = vmatprep.subr.bf16.mxu0 0
      %593 = vmatpush1.bf16.msra.mxu0 0
      %594 = vmatprep.subr.bf16.mxu0 0
      %595 = vmatpush1.bf16.msra.mxu0 0
      %596 = vmatprep.mubr.bf16.mxu0 0
      %597 = vmatmul.mubr.bf16.gmra.mrb[0].mxu0 %v504
      %v598 = vpop.f32.mrb[0].mxu0
      %v599 = vadd.f32 0.0, %v598
      %v600 = vpop.f32.mrb[0].mxu0
      %v601 = vpop.f32.mrb[0].mxu0
      %v602 = vadd.f32 0.0, %v601
      %v603 = vpop.f32.mrb[0].mxu0
      %604 = vmatprep.mubr.bf16.mxu0 0
      %605 = vmatmul.mubr.bf16.gmra.mrb[0].mxu0 %v513
      %v606 = vpop.f32.mrb[0].mxu0
      %v607 = vadd.f32 0.0, %v606
      %v608 = vpop.f32.mrb[0].mxu0
      %v609 = vpop.f32.mrb[0].mxu0
      %v610 = vadd.f32 0.0, %v609
      %v611 = vpop.f32.mrb[0].mxu0
      %612 = vdwg.mxu0
      %v613 = vadd.f32 %v453, %v599
      %v614 = vadd.f32 %v456, %v602
      %v615 = vadd.f32 %v461, %v607
      %v616 = vadd.f32 %v464, %v610
      %v617 = vld [vmem:[%s172] sm:$0x8]
      %s618 = scalar_lea.vmem %s1, 192
      %v619 = vld [vmem:[%s618] sm:$0xf]
      %v620 = vld [vmem:[%s618 + $0x4] sm:$0xf]
      %v621 = vld [vmem:[%s618 + $0x8] sm:$0xf]
      %v622 = vld [vmem:[%s618 + $0xc] sm:$0xf]
      %v623 = vld [vmem:[%s618 + $0x10] sm:$0xf]
      %v624 = vld [vmem:[%s618 + $0x14] sm:$0xf]
      %v625 = vld [vmem:[%s618 + $0x18] sm:$0xf]
      %v626 = vld [vmem:[%s618 + $0x1c] sm:$0xf]
      %v627 = vld [vmem:[%s618 + $0x20] sm:$0xf]
      %v628 = vld [vmem:[%s618 + $0x24] sm:$0xf]
      %v629 = vld [vmem:[%s618 + $0x28] sm:$0xf]
      %v630 = vld [vmem:[%s618 + $0x2c] sm:$0xf]
      %v631 = vld [vmem:[%s618 + $0x30] sm:$0xf]
      %v632 = vld [vmem:[%s618 + $0x34] sm:$0xf]
      %v633 = vld [vmem:[%s618 + $0x38] sm:$0xf]
      %v634 = vld [vmem:[%s618 + $0x3c] sm:$0xf]
      %v636 = vunpack.c.l.b16 %v617
      %v637 = vpack.c.b16 %v231, %v636
      %vm638 = vcmask 1044480
      %v639 = vrot.slane %v637, 3
      %v640 = vrot.slane %v236, 3
      %v641 = vsel %vm638, %v639, %v640
      %v642 = vrot.slane %v491, 3
      %v643 = vsel %vm638, %v640, %v642
      %v662 = vunpack.c.l.b16 %v619
      %v663 = vunpack.c.l.b16 %v620
      %v664 = vunpack.c.l.b16 %v621
      %v665 = vunpack.c.l.b16 %v622
      %v666 = vunpack.c.l.b16 %v623
      %v667 = vunpack.c.l.b16 %v624
      %v668 = vunpack.c.l.b16 %v625
      %v669 = vunpack.c.l.b16 %v626
      %v670 = vunpack.c.l.b16 %v627
      %v671 = vunpack.c.l.b16 %v628
      %v672 = vunpack.c.l.b16 %v629
      %v673 = vunpack.c.l.b16 %v630
      %v674 = vunpack.c.l.b16 %v631
      %v675 = vunpack.c.l.b16 %v632
      %v676 = vunpack.c.l.b16 %v633
      %v677 = vunpack.c.l.b16 %v634
      %v678 = vpack.c.b16 %v663, %v662
      %v679 = vpack.c.b16 %v665, %v664
      %v680 = vpack.c.b16 %v667, %v666
      %v681 = vpack.c.b16 %v669, %v668
      %v682 = vpack.c.b16 %v671, %v670
      %v683 = vpack.c.b16 %v673, %v672
      %v684 = vpack.c.b16 %v675, %v674
      %v685 = vpack.c.b16 %v677, %v676
      %694 = vmatprep.subr.bf16.mxu0 0
      %695 = vmatpush1.bf16.msra.mxu0 %v678
      %696 = vmatprep.subr.bf16.mxu0 0
      %697 = vmatpush1.bf16.msra.mxu0 %v679
      %698 = vmatprep.subr.bf16.mxu0 0
      %699 = vmatpush1.bf16.msra.mxu0 %v680
      %700 = vmatprep.subr.bf16.mxu0 0
      %701 = vmatpush1.bf16.msra.mxu0 %v681
      %702 = vmatprep.subr.bf16.mxu0 0
      %703 = vmatpush1.bf16.msra.mxu0 %v682
      %704 = vmatprep.subr.bf16.mxu0 0
      %705 = vmatpush1.bf16.msra.mxu0 %v683
      %706 = vmatprep.subr.bf16.mxu0 0
      %707 = vmatpush1.bf16.msra.mxu0 %v684
      %708 = vmatprep.subr.bf16.mxu0 0
      %709 = vmatpush1.bf16.msra.mxu0 %v685
      %710 = vmatprep.subr.bf16.mxu0 0
      %711 = vmatpush1.bf16.msra.mxu0 0
      %712 = vmatprep.subr.bf16.mxu0 0
      %713 = vmatpush1.bf16.msra.mxu0 0
      %714 = vmatprep.subr.bf16.mxu0 0
      %715 = vmatpush1.bf16.msra.mxu0 0
      %716 = vmatprep.subr.bf16.mxu0 0
      %717 = vmatpush1.bf16.msra.mxu0 0
      %718 = vmatprep.subr.bf16.mxu0 0
      %719 = vmatpush1.bf16.msra.mxu0 0
      %720 = vmatprep.subr.bf16.mxu0 0
      %721 = vmatpush1.bf16.msra.mxu0 0
      %722 = vmatprep.subr.bf16.mxu0 0
      %723 = vmatpush1.bf16.msra.mxu0 0
      %724 = vmatprep.subr.bf16.mxu0 0
      %725 = vmatpush1.bf16.msra.mxu0 0
      %726 = vmatprep.mubr.bf16.mxu0 0
      %727 = vmatmul.mubr.bf16.gmra.mrb[0].mxu0 %v641
      %v728 = vpop.f32.mrb[0].mxu0
      %v729 = vadd.f32 0.0, %v728
      %v730 = vpop.f32.mrb[0].mxu0
      %v731 = vpop.f32.mrb[0].mxu0
      %v732 = vadd.f32 0.0, %v731
      %v733 = vpop.f32.mrb[0].mxu0
      %734 = vmatprep.mubr.bf16.mxu0 0
      %735 = vmatmul.mubr.bf16.gmra.mrb[0].mxu0 %v643
      %v736 = vpop.f32.mrb[0].mxu0
      %v737 = vadd.f32 0.0, %v736
      %v738 = vpop.f32.mrb[0].mxu0
      %v739 = vpop.f32.mrb[0].mxu0
      %v740 = vadd.f32 0.0, %v739
      %v741 = vpop.f32.mrb[0].mxu0
      %742 = vdwg.mxu0
      %v743 = vadd.f32 %v613, %v729
      %v744 = vadd.f32 %v614, %v732
      %v745 = vadd.f32 %v615, %v737
      %v746 = vadd.f32 %v616, %v740
      %v747 = vpack.c.bf16 %v744, %v743
      %v748 = vpack.c.bf16 %v746, %v745
      %v751 = vunpack.c.l.b16 %v747
      %v752 = vunpack.c.h.b16 %v747
      %v753 = vunpack.c.l.b16 %v748
      %v754 = vunpack.c.h.b16 %v748
      %v755 = vpack.c.b16 %v751, %v751
      %v756 = vpack.c.b16 %v752, %v752
      %v757 = vpack.c.b16 %v753, %v753
      %v758 = vpack.c.b16 %v754, %v754
      %763 = vst [vmem:[%s177] sm:$0xf] %v755
      %764 = vst [vmem:[%s177 + $0x4] sm:$0xf] %v756
      %765 = vst [vmem:[%s177 + $0x8] sm:$0xf] %v757
      %766 = vst [vmem:[%s177 + $0xc] sm:$0xf] %v758
      %v767 = vlaneseq
      %v768 = vshrl.u32 %v767, 7
      %v769 = vadd.s32 %v768, 8
      %v770 = vadd.s32 %v768, 16
      %v771 = vadd.s32 %v768, 24
      %vm772 = vcmp.lt.s32.totalorder %v768, 0
      %v773 = vsub.s32 0, %v768
      %v774 = vsel %vm772, %v773, %v768
      %v775 = vshrl.u32 %v774, 5
      %v776 = vand.u32 %v774, 31
      %v777 = vsub.s32 0, %v776
      %v778 = vsel %vm772, %v777, %v776
      %vm779 = vcmp.lt.s32.totalorder %v769, 0
      %v780 = vsub.s32 0, %v769
      %v781 = vsel %vm779, %v780, %v769
      %v782 = vshrl.u32 %v781, 5
      %v783 = vand.u32 %v781, 31
      %v784 = vsub.s32 0, %v783
      %v785 = vsel %vm779, %v784, %v783
      %vm786 = vcmp.lt.s32.totalorder %v770, 0
      %v787 = vsub.s32 0, %v770
      %v788 = vsel %vm786, %v787, %v770
      %v789 = vshrl.u32 %v788, 5
      %v790 = vand.u32 %v788, 31
      %v791 = vsub.s32 0, %v790
      %v792 = vsel %vm786, %v791, %v790
      %vm793 = vcmp.lt.s32.totalorder %v771, 0
      %v794 = vsub.s32 0, %v771
      %v795 = vsel %vm793, %v794, %v771
      %v796 = vshrl.u32 %v795, 5
      %v797 = vand.u32 %v795, 31
      %v798 = vsub.s32 0, %v797
      %v799 = vsel %vm793, %v798, %v797
      %vm800 = vcmp.ne.s32.totalorder %v778, 0
      %vm801 = vcmp.ne.s32.totalorder %v785, 0
      %vm802 = vcmp.ne.s32.totalorder %v792, 0
      %vm803 = vcmp.ne.s32.totalorder %v799, 0
      %vm804 = vcmp.lt.s32.totalorder %v778, 0
      %vm805 = vcmp.lt.s32.totalorder %v785, 0
      %vm806 = vcmp.lt.s32.totalorder %v792, 0
      %vm807 = vcmp.lt.s32.totalorder %v799, 0
      %vm808 = vmand %vm804, %vm800
      %vm809 = vmand %vm805, %vm801
      %vm810 = vmand %vm806, %vm802
      %vm811 = vmand %vm807, %vm803
      %v812 = vadd.s32 %v778, 32
      %v813 = vadd.s32 %v785, 32
      %v814 = vadd.s32 %v792, 32
      %v815 = vadd.s32 %v799, 32
      %v816 = vsel %vm808, %v812, %v778
      %v817 = vsel %vm809, %v813, %v785
      %v818 = vsel %vm810, %v814, %v792
      %v819 = vsel %vm811, %v815, %v799
      %vm820 = vcmp.lt.s32.totalorder %v816, 20
      %vm821 = vcmp.lt.s32.totalorder %v817, 20
      %vm822 = vcmp.lt.s32.totalorder %v818, 20
      %vm823 = vcmp.lt.s32.totalorder %v819, 20
      %vm824 = vcmp.lt.s32.totalorder %v816, 0
      %v825 = vsub.s32 0, %v816
      %v826 = vsel %vm824, %v825, %v816
      %v827 = vmul.u32.u64.compose %v826, 3435973837
      %v828 = vextract.low.u32 %v827
      %v829 = vextract.high.u32 %v827
      %v830 = vshrl.u32 %v829, 2
      %v831 = vmul.u32 %v830, 5
      %v832 = vsub.s32 %v826, %v831
      %v833 = vsub.s32 0, %v832
      %v834 = vsel %vm824, %v833, %v832
      %vm835 = vcmp.lt.s32.totalorder %v817, 0
      %v836 = vsub.s32 0, %v817
      %v837 = vsel %vm835, %v836, %v817
      %v838 = vmul.u32.u64.compose %v837, 3435973837
      %v839 = vextract.low.u32 %v838
      %v840 = vextract.high.u32 %v838
      %v841 = vshrl.u32 %v840, 2
      %v842 = vmul.u32 %v841, 5
      %v843 = vsub.s32 %v837, %v842
      %v844 = vsub.s32 0, %v843
      %v845 = vsel %vm835, %v844, %v843
      %vm846 = vcmp.lt.s32.totalorder %v818, 0
      %v847 = vsub.s32 0, %v818
      %v848 = vsel %vm846, %v847, %v818
      %v849 = vmul.u32.u64.compose %v848, 3435973837
      %v850 = vextract.low.u32 %v849
      %v851 = vextract.high.u32 %v849
      %v852 = vshrl.u32 %v851, 2
      %v853 = vmul.u32 %v852, 5
      %v854 = vsub.s32 %v848, %v853
      %v855 = vsub.s32 0, %v854
      %v856 = vsel %vm846, %v855, %v854
      %vm857 = vcmp.lt.s32.totalorder %v819, 0
      %v858 = vsub.s32 0, %v819
      %v859 = vsel %vm857, %v858, %v819
      %v860 = vmul.u32.u64.compose %v859, 3435973837
      %v861 = vextract.low.u32 %v860
      %v862 = vextract.high.u32 %v860
      %v863 = vshrl.u32 %v862, 2
      %v864 = vmul.u32 %v863, 5
      %v865 = vsub.s32 %v859, %v864
      %v866 = vsub.s32 0, %v865
      %v867 = vsel %vm857, %v866, %v865
      %vm868 = vcmp.ne.s32.totalorder %v834, 0
      %vm869 = vcmp.ne.s32.totalorder %v845, 0
      %vm870 = vcmp.ne.s32.totalorder %v856, 0
      %vm871 = vcmp.ne.s32.totalorder %v867, 0
      %vm872 = vcmp.lt.s32.totalorder %v834, 0
      %vm873 = vcmp.lt.s32.totalorder %v845, 0
      %vm874 = vcmp.lt.s32.totalorder %v856, 0
      %vm875 = vcmp.lt.s32.totalorder %v867, 0
      %vm876 = vmand %vm872, %vm868
      %vm877 = vmand %vm873, %vm869
      %vm878 = vmand %vm874, %vm870
      %vm879 = vmand %vm875, %vm871
      %v880 = vadd.s32 %v834, 5
      %v881 = vadd.s32 %v845, 5
      %v882 = vadd.s32 %v856, 5
      %v883 = vadd.s32 %v867, 5
      %v884 = vsel %vm876, %v880, %v834
      %v885 = vsel %vm877, %v881, %v845
      %v886 = vsel %vm878, %v882, %v856
      %v887 = vsel %vm879, %v883, %v867
      %vm888 = vcmp.lt.s32.totalorder %v884, 4
      %vm889 = vcmp.lt.s32.totalorder %v885, 4
      %vm890 = vcmp.lt.s32.totalorder %v886, 4
      %vm891 = vcmp.lt.s32.totalorder %v887, 4
      %vm892 = vmand %vm820, %vm888
      %vm893 = vmand %vm821, %vm889
      %vm894 = vmand %vm822, %vm890
      %vm895 = vmand %vm823, %vm891
      %v896 = vsel %vm892, %v743, 0.0
      %v897 = vsel %vm893, %v744, 0.0
      %v898 = vsel %vm894, %v745, 0.0
      %v899 = vsel %vm895, %v746, 0.0
      %v900 = vadd.f32 %v896, %v897
      %v901 = vadd.f32 %v900, %v898
      %v902 = vadd.f32 %v901, %v899
      %v903 = vrot.slane %v902, 4
      %v904 = vadd.f32 %v902, %v903
      %v905 = vrot.slane %v904, 2
      %v906 = vadd.f32 %v904, %v905
      %v907 = vrot.slane %v906, 1
      %v908 = vadd.f32 %v906, %v907
      %v909 = vmul.f32 %v896, %v896
      %v910 = vmul.f32 %v897, %v897
      %v911 = vmul.f32 %v898, %v898
      %v912 = vmul.f32 %v899, %v899
      %v913 = vadd.f32 %v909, %v910
      %v914 = vadd.f32 %v913, %v911
      %v915 = vadd.f32 %v914, %v912
      %v916 = vrot.slane %v915, 4
      %v917 = vadd.f32 %v915, %v916
      %v918 = vrot.slane %v917, 2
      %v919 = vadd.f32 %v917, %v918
      %v920 = vrot.slane %v919, 1
      %v921 = vadd.f32 %v919, %v920
      %vm922 = vcmp.eq.s32.totalorder %v768, 0
      %vm923 = vcmp.eq.s32.totalorder %v768, 1
      %v924 = vsel %vm923, %v921, 0.0
      %v925 = vsel %vm922, %v908, %v924
      %926 = vst [vmem:[%s181] sm:$0xff] %v925
      %p927 = scmp.lt.s32.totalorder %s15, 1
      %s928 = scalar_select %p927, %s15, 1
      %s929 = smul.addr %s928, 4
      %s930 = smul.addr %s929, 4
      %s931 = scalar_lea.vmem %s2, %s930
      %p932 = scmp.lt.s32.totalorder %s15, 1
      %s933 = scalar_select %p932, %s15, 1
      %s934 = smul.addr %s933, 8
      %s935 = scalar_lea.vmem %s3, %s934
      // Predicated region
      $region29: #{discriminator_forward.8} parent=27 // pred_check
        %p936 = pneg %p80
      $region30: #{discriminator_forward.8} parent=27 // pred_check_branch
        %938 = sbr.rel (%p936) target = $region32
      $region31: #{discriminator_forward.8} parent=27 // pred_region
        _
      $region32: #{discriminator_forward.8} parent=27 // pred_fallthru
        _
      // Predicated region
      $region33: #{discriminator_forward.8} parent=27 // pred_check
        %p939 = pneg %p106
      $region34: #{discriminator_forward.8} parent=27 // pred_check_branch
        %941 = sbr.rel (%p939) target = $region36
      $region35: #{discriminator_forward.8} parent=27 // pred_region
        _
      $region36: #{discriminator_forward.8} parent=27 // pred_fallthru
        _
    $region28: #{discriminator_forward.8} parent=5 // pred_fallthru
      _
    %p942 = scmp.le.s32.totalorder 2, %s10
    // Predicated region
    $region37: #{discriminator_forward.8} parent=5 // pred_check
      %p943 = pneg %p942
    $region38: #{discriminator_forward.8} parent=5 // pred_check_branch
      %945 = sbr.rel (%p943) target = $region40
    $region39: #{discriminator_forward.8} parent=5 // pred_region
      %s946 = ssub.s32 %s10, 2
      // Predicated region
      $region41: #{discriminator_forward.8} parent=39 // pred_check
        %p947 = pneg %p86
      $region42: #{discriminator_forward.8} parent=39 // pred_check_branch
        %949 = sbr.rel (%p947) target = $region44
      $region43: #{discriminator_forward.8} parent=39 // pred_region
        %p950 = scmp.lt.s32.totalorder %s16, 1
        %s951 = scalar_select %p950, %s16, 1
        %s952 = smul.addr %s951, 4
        %s953 = smul.addr %s952, 4
        %s954 = scalar_lea.vmem %s2, %s953
      $region44: #{discriminator_forward.8} parent=39 // pred_fallthru
        _
      // Predicated region
      $region45: #{discriminator_forward.8} parent=39 // pred_check
        %p955 = pneg %p112
      $region46: #{discriminator_forward.8} parent=39 // pred_check_branch
        %957 = sbr.rel (%p955) target = $region48
      $region47: #{discriminator_forward.8} parent=39 // pred_region
        %p958 = scmp.lt.s32.totalorder %s16, 1
        %s959 = scalar_select %p958, %s16, 1
        %s960 = smul.addr %s959, 8
        %s961 = scalar_lea.vmem %s3, %s960
      $region48: #{discriminator_forward.8} parent=39 // pred_fallthru
        _
    $region40: #{discriminator_forward.8} parent=5 // pred_fallthru
      _
  $region6: #{discriminator_forward.8} parent=0 // loop_footer
    %s14 = sadd.s32 1, %s10
  $region7: #{discriminator_forward.8} parent=0 // loop_footer_branch
    %9 = sbr.rel target = $region3
  $region8: #{discriminator_forward.8} parent=0 // loop_exit
    _

</llo_original>
